<compile_context>
chip_gen: v5e
topology: v5e:2x2
jax: 0.10.0
libtpu: 0.0.40
codegen_flags: <defaults>
</compile_context>

<pallas_src>
import math

import jax
import jax.numpy as jnp
from jax.experimental import pallas as pl
from jax.experimental.pallas import tpu as pltpu

# ---- scaled-down configuration (original constants in comments) -------------
D_SIZE = 256          # original d_size = 1024
KERNEL_SIZE = 256     # original kernel_size = 2048
N_SAMPLES = 1024      # original exp.n_samples = 2 ** 15
N_EVENTS = 16         # original sparse_coding_iterations = 32
N_SCHED_FRAMES = 32   # original n_scheduling_frames / impulse_frames = 512
BATCH = 2

_TWO_PI = 2.0 * math.pi


# -----------------------------------------------------------------------------
# Kernel 1: fused  soft_dirac-select  @  unit_norm(atoms)  *  amps
#   One grid step: whole dictionary resident in VMEM, SMEM-prefetched argmax
#   indices drive dynamic row slices, normalization is vectorized over the dense
#   (B*E, K) output block, which is written back as one lane/sublane-dense slab.
# -----------------------------------------------------------------------------
def _gather_events_kernel(idx_ref, atoms_ref, amp_ref, out_ref):
    be = out_ref.shape[0]
    # Gather the selected rows (static trip count; each iteration is a dynamic
    # second-minor slice of the VMEM-resident dictionary).
    for i in range(be):
        out_ref[pl.ds(i, 1), :] = atoms_ref[pl.ds(idx_ref[i], 1), :]
    # Vectorized unit_norm over the kernel axis + amplitude scaling.
    x = out_ref[...]                                            # (BE, K) dense
    nrm = jnp.sqrt(jnp.sum(x * x, axis=-1, keepdims=True))      # (BE, 1)
    # TODO(synk): eps placement copied from previous version (norm + 1e-8); confirm
    # against the reference unit_norm if its eps sits inside the sqrt instead.
    out_ref[...] = x * (amp_ref[...] / (nrm + 1e-8))


def gather_normalized_events(atoms_param, idx_flat, amps_col):
    d, k = atoms_param.shape
    be = idx_flat.shape[0]
    return pl.pallas_call(
        _gather_events_kernel,
        out_shape=jax.ShapeDtypeStruct((be, k), jnp.float32),
        grid_spec=pltpu.PrefetchScalarGridSpec(
            num_scalar_prefetch=1,                               # idx -> SMEM
            grid=(1,),                                           # single step: no per-row overhead
            in_specs=[
                pl.BlockSpec((d, k), lambda i, idx: (0, 0)),     # whole dict resident in VMEM
                pl.BlockSpec((be, 1), lambda i, idx: (0, 0)),    # amps column
            ],
            out_specs=pl.BlockSpec((be, k), lambda i, idx: (0, 0)),
        ),
        compiler_params=pltpu.CompilerParams(dimension_semantics=("parallel",)),
    )(idx_flat, atoms_param, amps_col)


# -----------------------------------------------------------------------------
# Kernel 2: fft_shift phase ramp (per event) + sum over events, in rfft domain.
#   spec' = spec * exp(-i * 2*pi * k * shift / n_coeffs); out = sum_events spec'
#   Coefficients are laid out (E, Q, 128) with k = 128*q + p.  Angle addition:
#     cos/sin(2*pi*(coarse_q + fine_p)),   coarse_q = frac(128*q*r),  fine_p = frac(p*r)
#   coarse cos/sin (E, Q, 1) is a tiny precomputed input; fine cos/sin (E, 1, 128)
#   is computed in-kernel (2*E transcendental vregs); the bulk is VPU-only.
# -----------------------------------------------------------------------------
def _shift_sum_kernel(re_ref, im_ref, r_ref, cc_ref, sc_ref, ore_ref, oim_ref):
    re = re_ref[0]                                              # (E, Q, 128)
    im = im_ref[0]
    r = r_ref[0]                                                # (E, 1, 1) cycles/coeff in [0,1)
    cc = cc_ref[0]                                              # (E, Q, 1) cos of coarse phase
    sc = sc_ref[0]                                              # (E, Q, 1) sin of coarse phase
    e, q, pw = re.shape

    # fine ramp over the 128 lanes of a coefficient group (grid-/tile-invariant)
    p_iota = jax.lax.broadcasted_iota(jnp.int32, (e, 1, pw), 2).astype(jnp.float32)
    fine = p_iota * r
    fine = fine - jnp.floor(fine)                               # keep cos/sin args in [0, 2*pi)
    theta = _TWO_PI * fine
    cf = jnp.cos(theta)                                         # (E, 1, 128)  -- only EUP work
    sf = jnp.sin(theta)

    # angle addition (pure VPU): cos/sin of the full phase for every coefficient
    cs = cc * cf - sc * sf                                      # (E, Q, 128)
    sn = sc * cf + cc * sf

    # spec * exp(-i*theta), summed over events
    acc_re = jnp.sum(re * cs + im * sn, axis=0)                 # (Q, 128)
    acc_im = jnp.sum(im * cs - re * sn, axis=0)
    ore_ref[...] = acc_re[None, None, :, :]
    oim_ref[...] = acc_im[None, None, :, :]


def shift_and_sum(spec_re, spec_im, r4, cc, sc):
    b, e, q, pw = spec_re.shape
    elems = b * e * q * pw
    cost = pl.CostEstimate(
        flops=14 * elems,                                       # combine + complex mul + reduce
        transcendentals=2 * b * e * pw,                         # in-kernel fine cos/sin only
        bytes_accessed=4 * (2 * elems + 2 * b * q * pw + 2 * b * e * q),
    )
    return pl.pallas_call(
        _shift_sum_kernel,
        out_shape=(jax.ShapeDtypeStruct((b, 1, q, pw), jnp.float32),
                   jax.ShapeDtypeStruct((b, 1, q, pw), jnp.float32)),
        grid=(b,),                                              # whole coefficient axis per step
        in_specs=[
            pl.BlockSpec((1, e, q, pw), lambda i: (i, 0, 0, 0)),
            pl.BlockSpec((1, e, q, pw), lambda i: (i, 0, 0, 0)),
            pl.BlockSpec((1, e, 1, 1), lambda i: (i, 0, 0, 0)),
            pl.BlockSpec((1, e, q, 1), lambda i: (i, 0, 0, 0)),
            pl.BlockSpec((1, e, q, 1), lambda i: (i, 0, 0, 0)),
        ],
        out_specs=(pl.BlockSpec((1, 1, q, pw), lambda i: (i, 0, 0, 0)),
                   pl.BlockSpec((1, 1, q, pw), lambda i: (i, 0, 0, 0))),
        compiler_params=pltpu.CompilerParams(
            dimension_semantics=("parallel",),
            # explicit VMEM budget (v7x has 64 MiB total); at original sizes the
            # double-buffered re/im slabs are ~6 MiB each, comfortably under this.
            vmem_limit_bytes=24 * 1024 * 1024),
        cost_estimate=cost,
    )(spec_re, spec_im, r4, cc, sc)


# -----------------------------------------------------------------------------
# Kernel 3: max_norm(x[..., :n_samples])  -- the truncation is fused via the input
#           BlockSpec (only the first n_samples lanes of the irfft output are read);
#           one grid step for the whole batch, reciprocal + multiply normalize.
# -----------------------------------------------------------------------------
def _max_norm_kernel(x_ref, o_ref):
    x = x_ref[...]                                              # (B, 1, N)
    m = jnp.max(jnp.abs(x), axis=-1, keepdims=True)             # (B, 1, 1)
    o_ref[...] = x * pl.reciprocal(m + 1e-8, approx=True)


def max_norm_truncate(x_full, n):
    b = x_full.shape[0]
    return pl.pallas_call(
        _max_norm_kernel,
        out_shape=jax.ShapeDtypeStruct((b, 1, n), jnp.float32),
        grid=(1,),                                              # single step: pure overhead otherwise
        in_specs=[pl.BlockSpec((b, 1, n), lambda i: (0, 0, 0))],  # block 0 == first n lanes
        out_specs=pl.BlockSpec((b, 1, n), lambda i: (0, 0, 0)),
        compiler_params=pltpu.CompilerParams(dimension_semantics=("parallel",)),
    )(x_full)


# -----------------------------------------------------------------------------
# Model forward (Model.forward -> _core_forward with scalar_positioning=True)
# -----------------------------------------------------------------------------
def model_forward(atoms_param, atom_selection, amps, positions):
    b, e, _ = atom_selection.shape
    k = atoms_param.shape[1]
    n = N_SAMPLES
    n_fft = 3 * n                      # F.pad to n_samples, then fft_shift pads 2*n more
    n_coeffs = n_fft // 2 + 1

    # sel = soft_dirac(atom_selection); events = (sel @ unit_norm(atoms)) * amps
    # TODO(synk): soft_dirac is modeled as a hard argmax one-hot (exact for the forward
    # pass); the argmax + data-dependent gather is not differentiable.
    idx_flat = jnp.argmax(atom_selection, axis=-1).reshape(-1).astype(jnp.int32)
    amps_col = amps.reshape(-1, 1).astype(jnp.float32)
    events = gather_normalized_events(atoms_param.astype(jnp.float32),
                                      idx_flat, amps_col)        # (B*E, K)
    events = events.reshape(b, e, k)

    # combined zero padding: kernel_size -> n_samples -> 3*n_samples
    events = jnp.pad(events, ((0, 0), (0, 0), (0, n_fft - k)))

    # scalar positioning: positions.sum(dim=-1, keepdim=True); shift in samples.
    # Range-reduce the shift mod n_coeffs exactly: integer part in int32 arithmetic,
    # fractional part kept in f32 (avoids f32 precision loss at large shifts).
    pos_scalar = jnp.sum(positions, axis=-1)                     # (B, E)
    shift_samples = pos_scalar * (0.5 * n)
    s_int = jnp.floor(shift_samples)
    s_frac = shift_samples - s_int                               # [0, 1)
    s_mod = jnp.mod(s_int.astype(jnp.int32), n_coeffs).astype(jnp.float32)
    r = (s_mod + s_frac) / jnp.float32(n_coeffs)                 # cycles per coefficient

    # TODO(synk): rfft / irfft have no Pallas primitive; they stay in jnp.fft.
    spec = jnp.fft.rfft(events, axis=-1, norm="ortho")
    spec_re = jnp.real(spec).astype(jnp.float32)
    spec_im = jnp.imag(spec).astype(jnp.float32)

    # pad coefficient axis to a multiple of 128 lanes and split k = 128*q + p
    q_tiles = (n_coeffs + 127) // 128
    c_pad = q_tiles * 128
    pad_c = c_pad - n_coeffs
    spec_re = jnp.pad(spec_re, ((0, 0), (0, 0), (0, pad_c))).reshape(b, e, q_tiles, 128)
    spec_im = jnp.pad(spec_im, ((0, 0), (0, 0), (0, pad_c))).reshape(b, e, q_tiles, 128)

    # tiny coarse-phase cos/sin tables (B*E*Q values; ~128x smaller than the spec data),
    # computed compactly here so the kernel's transcendental load is only the fine ramp.
    step = 128.0 * r
    step = step - jnp.floor(step)                                # frac(128 * r)
    qidx = jnp.arange(q_tiles, dtype=jnp.float32)
    coarse = qidx[None, None, :] * step[..., None]               # (B, E, Q)
    coarse = coarse - jnp.floor(coarse)
    cc = jnp.cos(_TWO_PI * coarse)[..., None]                    # (B, E, Q, 1)
    sc = jnp.sin(_TWO_PI * coarse)[..., None]
    r4 = r.reshape(b, e, 1, 1).astype(jnp.float32)

    out_re, out_im = shift_and_sum(spec_re, spec_im, r4,
                                   cc.astype(jnp.float32), sc.astype(jnp.float32))
    out_re = out_re.reshape(b, 1, c_pad)[..., :n_coeffs]
    out_im = out_im.reshape(b, 1, c_pad)[..., :n_coeffs]

    summed = jax.lax.complex(out_re, out_im)
    shifted = jnp.fft.irfft(summed, n=n_fft, axis=-1, norm="ortho")  # (B, 1, 3N)

    # TODO(synk): ReverbGenerator (self.verb) is an undefined external module; identity here.
    # result = max_norm(final[..., :n_samples])   (truncation fused into the kernel)
    return max_norm_truncate(shifted.astype(jnp.float32), n)


if __name__ == "__main__":
    key = jax.random.PRNGKey(0)
    k1, k2, k3, k4 = jax.random.split(key, 4)

    # Parameter from Model.__init__: self.atoms ~ U(-1, 1), shape (d_size, kernel_size)
    atoms_param = jax.random.uniform(k1, (D_SIZE, KERNEL_SIZE), jnp.float32, -1.0, 1.0)

    # Deterministic stand-ins for the Encoder heads (to_atoms, to_amps**2, to_positions).
    # TODO(synk): Encoder front-end (exp.pooled_filter_bank, sparsify_vectors, ...) is
    # undefined external code, so its outputs are synthesized here instead.
    atom_selection = jax.random.uniform(k2, (BATCH, N_EVENTS, D_SIZE), jnp.float32, -1.0, 1.0)
    amps = jax.random.uniform(k3, (BATCH, N_EVENTS, 1), jnp.float32, 0.0, 1.0) ** 2
    positions = jax.random.uniform(k4, (BATCH, N_EVENTS, N_SCHED_FRAMES), jnp.float32, -1.0, 1.0)

    out = jax.jit(model_forward)(atoms_param, atom_selection, amps, positions)
    out = jax.block_until_ready(out)

    assert out.shape == (BATCH, 1, N_SAMPLES), out.shape
    assert bool(jnp.all(jnp.isfinite(out)))
    # max_norm bound (loose tolerance: normalization uses the approx EUP reciprocal)
    assert float(jnp.max(jnp.abs(out))) <= 1.0 + 1e-2

    print("KERNEL_OK")
</pallas_src>

<mosaic_0001>
module attributes {stable_mosaic.version = 11 : i64} {
  func.func @_gather_events_kernel(%arg0: i32, %arg1: memref<32xi32, #tpu.memory_space<smem>>, %arg2: memref<256x256xf32, #tpu.memory_space<vmem>>, %arg3: memref<32x1xf32, #tpu.memory_space<vmem>>, %arg4: memref<32x256xf32, #tpu.memory_space<vmem>>) attributes {dimension_semantics = [#tpu.dimension_semantics<parallel>], iteration_bounds = array<i64: 1>, scalar_prefetch = 1 : i64, scratch_operands = 0 : i64, tpu.core_type = #tpu.core_type<tc>, window_params = [{pipeline_mode = #tpu.pipeline_mode<synchronous>, transform_indices = @transform_0, window_bounds = array<i64: 256, 256>}, {pipeline_mode = #tpu.pipeline_mode<synchronous>, transform_indices = @transform_1, window_bounds = array<i64: 32, 1>}, {pipeline_mode = #tpu.pipeline_mode<synchronous>, transform_indices = @transform_2, window_bounds = array<i64: 32, 256>}]} {
    %c0 = arith.constant 0 : index
    %0 = memref.load %arg1[%c0] : memref<32xi32, #tpu.memory_space<smem>>
    %1 = arith.index_cast %0 : i32 to index
    %c0_0 = arith.constant 0 : index
    %2 = vector.load %arg2[%1, %c0_0] : memref<256x256xf32, #tpu.memory_space<vmem>>, vector<1x256xf32>
    %c0_1 = arith.constant 0 : index
    %c0_2 = arith.constant 0 : index
    %3 = vector.load %arg4[%c0_1, %c0_2] : memref<32x256xf32, #tpu.memory_space<vmem>>, vector<1x256xf32>
    tpu.vector_store %arg4[%c0_1, %c0_2], %2 {strides = array<i32>} : memref<32x256xf32, #tpu.memory_space<vmem>>, vector<1x256xf32>,
    %c1 = arith.constant 1 : index
    %4 = memref.load %arg1[%c1] : memref<32xi32, #tpu.memory_space<smem>>
    %5 = arith.index_cast %4 : i32 to index
    %c0_3 = arith.constant 0 : index
    %6 = vector.load %arg2[%5, %c0_3] : memref<256x256xf32, #tpu.memory_space<vmem>>, vector<1x256xf32>
    %c1_4 = arith.constant 1 : index
    %c0_5 = arith.constant 0 : index
    %7 = vector.load %arg4[%c1_4, %c0_5] : memref<32x256xf32, #tpu.memory_space<vmem>>, vector<1x256xf32>
    tpu.vector_store %arg4[%c1_4, %c0_5], %6 {strides = array<i32>} : memref<32x256xf32, #tpu.memory_space<vmem>>, vector<1x256xf32>,
    %c2 = arith.constant 2 : index
    %8 = memref.load %arg1[%c2] : memref<32xi32, #tpu.memory_space<smem>>
    %9 = arith.index_cast %8 : i32 to index
    %c0_6 = arith.constant 0 : index
    %10 = vector.load %arg2[%9, %c0_6] : memref<256x256xf32, #tpu.memory_space<vmem>>, vector<1x256xf32>
    %c2_7 = arith.constant 2 : index
    %c0_8 = arith.constant 0 : index
    %11 = vector.load %arg4[%c2_7, %c0_8] : memref<32x256xf32, #tpu.memory_space<vmem>>, vector<1x256xf32>
    tpu.vector_store %arg4[%c2_7, %c0_8], %10 {strides = array<i32>} : memref<32x256xf32, #tpu.memory_space<vmem>>, vector<1x256xf32>,
    %c3 = arith.constant 3 : index
    %12 = memref.load %arg1[%c3] : memref<32xi32, #tpu.memory_space<smem>>
    %13 = arith.index_cast %12 : i32 to index
    %c0_9 = arith.constant 0 : index
    %14 = vector.load %arg2[%13, %c0_9] : memref<256x256xf32, #tpu.memory_space<vmem>>, vector<1x256xf32>
    %c3_10 = arith.constant 3 : index
    %c0_11 = arith.constant 0 : index
    %15 = vector.load %arg4[%c3_10, %c0_11] : memref<32x256xf32, #tpu.memory_space<vmem>>, vector<1x256xf32>
    tpu.vector_store %arg4[%c3_10, %c0_11], %14 {strides = array<i32>} : memref<32x256xf32, #tpu.memory_space<vmem>>, vector<1x256xf32>,
    %c4 = arith.constant 4 : index
    %16 = memref.load %arg1[%c4] : memref<32xi32, #tpu.memory_space<smem>>
    %17 = arith.index_cast %16 : i32 to index
    %c0_12 = arith.constant 0 : index
    %18 = vector.load %arg2[%17, %c0_12] : memref<256x256xf32, #tpu.memory_space<vmem>>, vector<1x256xf32>
    %c4_13 = arith.constant 4 : index
    %c0_14 = arith.constant 0 : index
    %19 = vector.load %arg4[%c4_13, %c0_14] : memref<32x256xf32, #tpu.memory_space<vmem>>, vector<1x256xf32>
    tpu.vector_store %arg4[%c4_13, %c0_14], %18 {strides = array<i32>} : memref<32x256xf32, #tpu.memory_space<vmem>>, vector<1x256xf32>,
    %c5 = arith.constant 5 : index
    %20 = memref.load %arg1[%c5] : memref<32xi32, #tpu.memory_space<smem>>
    %21 = arith.index_cast %20 : i32 to index
    %c0_15 = arith.constant 0 : index
    %22 = vector.load %arg2[%21, %c0_15] : memref<256x256xf32, #tpu.memory_space<vmem>>, vector<1x256xf32>
    %c5_16 = arith.constant 5 : index
    %c0_17 = arith.constant 0 : index
    %23 = vector.load %arg4[%c5_16, %c0_17] : memref<32x256xf32, #tpu.memory_space<vmem>>, vector<1x256xf32>
    tpu.vector_store %arg4[%c5_16, %c0_17], %22 {strides = array<i32>} : memref<32x256xf32, #tpu.memory_space<vmem>>, vector<1x256xf32>,
    %c6 = arith.constant 6 : index
    %24 = memref.load %arg1[%c6] : memref<32xi32, #tpu.memory_space<smem>>
    %25 = arith.index_cast %24 : i32 to index
    %c0_18 = arith.constant 0 : index
    %26 = vector.load %arg2[%25, %c0_18] : memref<256x256xf32, #tpu.memory_space<vmem>>, vector<1x256xf32>
    %c6_19 = arith.constant 6 : index
    %c0_20 = arith.constant 0 : index
    %27 = vector.load %arg4[%c6_19, %c0_20] : memref<32x256xf32, #tpu.memory_space<vmem>>, vector<1x256xf32>
    tpu.vector_store %arg4[%c6_19, %c0_20], %26 {strides = array<i32>} : memref<32x256xf32, #tpu.memory_space<vmem>>, vector<1x256xf32>,
    %c7 = arith.constant 7 : index
    %28 = memref.load %arg1[%c7] : memref<32xi32, #tpu.memory_space<smem>>
    %29 = arith.index_cast %28 : i32 to index
    %c0_21 = arith.constant 0 : index
    %30 = vector.load %arg2[%29, %c0_21] : memref<256x256xf32, #tpu.memory_space<vmem>>, vector<1x256xf32>
    %c7_22 = arith.constant 7 : index
    %c0_23 = arith.constant 0 : index
    %31 = vector.load %arg4[%c7_22, %c0_23] : memref<32x256xf32, #tpu.memory_space<vmem>>, vector<1x256xf32>
    tpu.vector_store %arg4[%c7_22, %c0_23], %30 {strides = array<i32>} : memref<32x256xf32, #tpu.memory_space<vmem>>, vector<1x256xf32>,
    %c8 = arith.constant 8 : index
    %32 = memref.load %arg1[%c8] : memref<32xi32, #tpu.memory_space<smem>>
    %33 = arith.index_cast %32 : i32 to index
    %c0_24 = arith.constant 0 : index
    %34 = vector.load %arg2[%33, %c0_24] : memref<256x256xf32, #tpu.memory_space<vmem>>, vector<1x256xf32>
    %c8_25 = arith.constant 8 : index
    %c0_26 = arith.constant 0 : index
    %35 = vector.load %arg4[%c8_25, %c0_26] : memref<32x256xf32, #tpu.memory_space<vmem>>, vector<1x256xf32>
    tpu.vector_store %arg4[%c8_25, %c0_26], %34 {strides = array<i32>} : memref<32x256xf32, #tpu.memory_space<vmem>>, vector<1x256xf32>,
    %c9 = arith.constant 9 : index
    %36 = memref.load %arg1[%c9] : memref<32xi32, #tpu.memory_space<smem>>
    %37 = arith.index_cast %36 : i32 to index
    %c0_27 = arith.constant 0 : index
    %38 = vector.load %arg2[%37, %c0_27] : memref<256x256xf32, #tpu.memory_space<vmem>>, vector<1x256xf32>
    %c9_28 = arith.constant 9 : index
    %c0_29 = arith.constant 0 : index
    %39 = vector.load %arg4[%c9_28, %c0_29] : memref<32x256xf32, #tpu.memory_space<vmem>>, vector<1x256xf32>
    tpu.vector_store %arg4[%c9_28, %c0_29], %38 {strides = array<i32>} : memref<32x256xf32, #tpu.memory_space<vmem>>, vector<1x256xf32>,
    %c10 = arith.constant 10 : index
    %40 = memref.load %arg1[%c10] : memref<32xi32, #tpu.memory_space<smem>>
    %41 = arith.index_cast %40 : i32 to index
    %c0_30 = arith.constant 0 : index
    %42 = vector.load %arg2[%41, %c0_30] : memref<256x256xf32, #tpu.memory_space<vmem>>, vector<1x256xf32>
    %c10_31 = arith.constant 10 : index
    %c0_32 = arith.constant 0 : index
    %43 = vector.load %arg4[%c10_31, %c0_32] : memref<32x256xf32, #tpu.memory_space<vmem>>, vector<1x256xf32>
    tpu.vector_store %arg4[%c10_31, %c0_32], %42 {strides = array<i32>} : memref<32x256xf32, #tpu.memory_space<vmem>>, vector<1x256xf32>,
    %c11 = arith.constant 11 : index
    %44 = memref.load %arg1[%c11] : memref<32xi32, #tpu.memory_space<smem>>
    %45 = arith.index_cast %44 : i32 to index
    %c0_33 = arith.constant 0 : index
    %46 = vector.load %arg2[%45, %c0_33] : memref<256x256xf32, #tpu.memory_space<vmem>>, vector<1x256xf32>
    %c11_34 = arith.constant 11 : index
    %c0_35 = arith.constant 0 : index
    %47 = vector.load %arg4[%c11_34, %c0_35] : memref<32x256xf32, #tpu.memory_space<vmem>>, vector<1x256xf32>
    tpu.vector_store %arg4[%c11_34, %c0_35], %46 {strides = array<i32>} : memref<32x256xf32, #tpu.memory_space<vmem>>, vector<1x256xf32>,
    %c12 = arith.constant 12 : index
    %48 = memref.load %arg1[%c12] : memref<32xi32, #tpu.memory_space<smem>>
    %49 = arith.index_cast %48 : i32 to index
    %c0_36 = arith.constant 0 : index
    %50 = vector.load %arg2[%49, %c0_36] : memref<256x256xf32, #tpu.memory_space<vmem>>, vector<1x256xf32>
    %c12_37 = arith.constant 12 : index
    %c0_38 = arith.constant 0 : index
    %51 = vector.load %arg4[%c12_37, %c0_38] : memref<32x256xf32, #tpu.memory_space<vmem>>, vector<1x256xf32>
    tpu.vector_store %arg4[%c12_37, %c0_38], %50 {strides = array<i32>} : memref<32x256xf32, #tpu.memory_space<vmem>>, vector<1x256xf32>,
    %c13 = arith.constant 13 : index
    %52 = memref.load %arg1[%c13] : memref<32xi32, #tpu.memory_space<smem>>
    %53 = arith.index_cast %52 : i32 to index
    %c0_39 = arith.constant 0 : index
    %54 = vector.load %arg2[%53, %c0_39] : memref<256x256xf32, #tpu.memory_space<vmem>>, vector<1x256xf32>
    %c13_40 = arith.constant 13 : index
    %c0_41 = arith.constant 0 : index
    %55 = vector.load %arg4[%c13_40, %c0_41] : memref<32x256xf32, #tpu.memory_space<vmem>>, vector<1x256xf32>
    tpu.vector_store %arg4[%c13_40, %c0_41], %54 {strides = array<i32>} : memref<32x256xf32, #tpu.memory_space<vmem>>, vector<1x256xf32>,
    %c14 = arith.constant 14 : index
    %56 = memref.load %arg1[%c14] : memref<32xi32, #tpu.memory_space<smem>>
    %57 = arith.index_cast %56 : i32 to index
    %c0_42 = arith.constant 0 : index
    %58 = vector.load %arg2[%57, %c0_42] : memref<256x256xf32, #tpu.memory_space<vmem>>, vector<1x256xf32>
    %c14_43 = arith.constant 14 : index
    %c0_44 = arith.constant 0 : index
    %59 = vector.load %arg4[%c14_43, %c0_44] : memref<32x256xf32, #tpu.memory_space<vmem>>, vector<1x256xf32>
    tpu.vector_store %arg4[%c14_43, %c0_44], %58 {strides = array<i32>} : memref<32x256xf32, #tpu.memory_space<vmem>>, vector<1x256xf32>,
    %c15 = arith.constant 15 : index
    %60 = memref.load %arg1[%c15] : memref<32xi32, #tpu.memory_space<smem>>
    %61 = arith.index_cast %60 : i32 to index
    %c0_45 = arith.constant 0 : index
    %62 = vector.load %arg2[%61, %c0_45] : memref<256x256xf32, #tpu.memory_space<vmem>>, vector<1x256xf32>
    %c15_46 = arith.constant 15 : index
    %c0_47 = arith.constant 0 : index
    %63 = vector.load %arg4[%c15_46, %c0_47] : memref<32x256xf32, #tpu.memory_space<vmem>>, vector<1x256xf32>
    tpu.vector_store %arg4[%c15_46, %c0_47], %62 {strides = array<i32>} : memref<32x256xf32, #tpu.memory_space<vmem>>, vector<1x256xf32>,
    %c16 = arith.constant 16 : index
    %64 = memref.load %arg1[%c16] : memref<32xi32, #tpu.memory_space<smem>>
    %65 = arith.index_cast %64 : i32 to index
    %c0_48 = arith.constant 0 : index
    %66 = vector.load %arg2[%65, %c0_48] : memref<256x256xf32, #tpu.memory_space<vmem>>, vector<1x256xf32>
    %c16_49 = arith.constant 16 : index
    %c0_50 = arith.constant 0 : index
    %67 = vector.load %arg4[%c16_49, %c0_50] : memref<32x256xf32, #tpu.memory_space<vmem>>, vector<1x256xf32>
    tpu.vector_store %arg4[%c16_49, %c0_50], %66 {strides = array<i32>} : memref<32x256xf32, #tpu.memory_space<vmem>>, vector<1x256xf32>,
    %c17 = arith.constant 17 : index
    %68 = memref.load %arg1[%c17] : memref<32xi32, #tpu.memory_space<smem>>
    %69 = arith.index_cast %68 : i32 to index
    %c0_51 = arith.constant 0 : index
    %70 = vector.load %arg2[%69, %c0_51] : memref<256x256xf32, #tpu.memory_space<vmem>>, vector<1x256xf32>
    %c17_52 = arith.constant 17 : index
    %c0_53 = arith.constant 0 : index
    %71 = vector.load %arg4[%c17_52, %c0_53] : memref<32x256xf32, #tpu.memory_space<vmem>>, vector<1x256xf32>
    tpu.vector_store %arg4[%c17_52, %c0_53], %70 {strides = array<i32>} : memref<32x256xf32, #tpu.memory_space<vmem>>, vector<1x256xf32>,
    %c18 = arith.constant 18 : index
    %72 = memref.load %arg1[%c18] : memref<32xi32, #tpu.memory_space<smem>>
    %73 = arith.index_cast %72 : i32 to index
    %c0_54 = arith.constant 0 : index
    %74 = vector.load %arg2[%73, %c0_54] : memref<256x256xf32, #tpu.memory_space<vmem>>, vector<1x256xf32>
    %c18_55 = arith.constant 18 : index
    %c0_56 = arith.constant 0 : index
    %75 = vector.load %arg4[%c18_55, %c0_56] : memref<32x256xf32, #tpu.memory_space<vmem>>, vector<1x256xf32>
    tpu.vector_store %arg4[%c18_55, %c0_56], %74 {strides = array<i32>} : memref<32x256xf32, #tpu.memory_space<vmem>>, vector<1x256xf32>,
    %c19 = arith.constant 19 : index
    %76 = memref.load %arg1[%c19] : memref<32xi32, #tpu.memory_space<smem>>
    %77 = arith.index_cast %76 : i32 to index
    %c0_57 = arith.constant 0 : index
    %78 = vector.load %arg2[%77, %c0_57] : memref<256x256xf32, #tpu.memory_space<vmem>>, vector<1x256xf32>
    %c19_58 = arith.constant 19 : index
    %c0_59 = arith.constant 0 : index
    %79 = vector.load %arg4[%c19_58, %c0_59] : memref<32x256xf32, #tpu.memory_space<vmem>>, vector<1x256xf32>
    tpu.vector_store %arg4[%c19_58, %c0_59], %78 {strides = array<i32>} : memref<32x256xf32, #tpu.memory_space<vmem>>, vector<1x256xf32>,
    %c20 = arith.constant 20 : index
    %80 = memref.load %arg1[%c20] : memref<32xi32, #tpu.memory_space<smem>>
    %81 = arith.index_cast %80 : i32 to index
    %c0_60 = arith.constant 0 : index
    %82 = vector.load %arg2[%81, %c0_60] : memref<256x256xf32, #tpu.memory_space<vmem>>, vector<1x256xf32>
    %c20_61 = arith.constant 20 : index
    %c0_62 = arith.constant 0 : index
    %83 = vector.load %arg4[%c20_61, %c0_62] : memref<32x256xf32, #tpu.memory_space<vmem>>, vector<1x256xf32>
    tpu.vector_store %arg4[%c20_61, %c0_62], %82 {strides = array<i32>} : memref<32x256xf32, #tpu.memory_space<vmem>>, vector<1x256xf32>,
    %c21 = arith.constant 21 : index
    %84 = memref.load %arg1[%c21] : memref<32xi32, #tpu.memory_space<smem>>
    %85 = arith.index_cast %84 : i32 to index
    %c0_63 = arith.constant 0 : index
    %86 = vector.load %arg2[%85, %c0_63] : memref<256x256xf32, #tpu.memory_space<vmem>>, vector<1x256xf32>
    %c21_64 = arith.constant 21 : index
    %c0_65 = arith.constant 0 : index
    %87 = vector.load %arg4[%c21_64, %c0_65] : memref<32x256xf32, #tpu.memory_space<vmem>>, vector<1x256xf32>
    tpu.vector_store %arg4[%c21_64, %c0_65], %86 {strides = array<i32>} : memref<32x256xf32, #tpu.memory_space<vmem>>, vector<1x256xf32>,
    %c22 = arith.constant 22 : index
    %88 = memref.load %arg1[%c22] : memref<32xi32, #tpu.memory_space<smem>>
    %89 = arith.index_cast %88 : i32 to index
    %c0_66 = arith.constant 0 : index
    %90 = vector.load %arg2[%89, %c0_66] : memref<256x256xf32, #tpu.memory_space<vmem>>, vector<1x256xf32>
    %c22_67 = arith.constant 22 : index
    %c0_68 = arith.constant 0 : index
    %91 = vector.load %arg4[%c22_67, %c0_68] : memref<32x256xf32, #tpu.memory_space<vmem>>, vector<1x256xf32>
    tpu.vector_store %arg4[%c22_67, %c0_68], %90 {strides = array<i32>} : memref<32x256xf32, #tpu.memory_space<vmem>>, vector<1x256xf32>,
    %c23 = arith.constant 23 : index
    %92 = memref.load %arg1[%c23] : memref<32xi32, #tpu.memory_space<smem>>
    %93 = arith.index_cast %92 : i32 to index
    %c0_69 = arith.constant 0 : index
    %94 = vector.load %arg2[%93, %c0_69] : memref<256x256xf32, #tpu.memory_space<vmem>>, vector<1x256xf32>
    %c23_70 = arith.constant 23 : index
    %c0_71 = arith.constant 0 : index
    %95 = vector.load %arg4[%c23_70, %c0_71] : memref<32x256xf32, #tpu.memory_space<vmem>>, vector<1x256xf32>
    tpu.vector_store %arg4[%c23_70, %c0_71], %94 {strides = array<i32>} : memref<32x256xf32, #tpu.memory_space<vmem>>, vector<1x256xf32>,
    %c24 = arith.constant 24 : index
    %96 = memref.load %arg1[%c24] : memref<32xi32, #tpu.memory_space<smem>>
    %97 = arith.index_cast %96 : i32 to index
    %c0_72 = arith.constant 0 : index
    %98 = vector.load %arg2[%97, %c0_72] : memref<256x256xf32, #tpu.memory_space<vmem>>, vector<1x256xf32>
    %c24_73 = arith.constant 24 : index
    %c0_74 = arith.constant 0 : index
    %99 = vector.load %arg4[%c24_73, %c0_74] : memref<32x256xf32, #tpu.memory_space<vmem>>, vector<1x256xf32>
    tpu.vector_store %arg4[%c24_73, %c0_74], %98 {strides = array<i32>} : memref<32x256xf32, #tpu.memory_space<vmem>>, vector<1x256xf32>,
    %c25 = arith.constant 25 : index
    %100 = memref.load %arg1[%c25] : memref<32xi32, #tpu.memory_space<smem>>
    %101 = arith.index_cast %100 : i32 to index
    %c0_75 = arith.constant 0 : index
    %102 = vector.load %arg2[%101, %c0_75] : memref<256x256xf32, #tpu.memory_space<vmem>>, vector<1x256xf32>
    %c25_76 = arith.constant 25 : index
    %c0_77 = arith.constant 0 : index
    %103 = vector.load %arg4[%c25_76, %c0_77] : memref<32x256xf32, #tpu.memory_space<vmem>>, vector<1x256xf32>
    tpu.vector_store %arg4[%c25_76, %c0_77], %102 {strides = array<i32>} : memref<32x256xf32, #tpu.memory_space<vmem>>, vector<1x256xf32>,
    %c26 = arith.constant 26 : index
    %104 = memref.load %arg1[%c26] : memref<32xi32, #tpu.memory_space<smem>>
    %105 = arith.index_cast %104 : i32 to index
    %c0_78 = arith.constant 0 : index
    %106 = vector.load %arg2[%105, %c0_78] : memref<256x256xf32, #tpu.memory_space<vmem>>, vector<1x256xf32>
    %c26_79 = arith.constant 26 : index
    %c0_80 = arith.constant 0 : index
    %107 = vector.load %arg4[%c26_79, %c0_80] : memref<32x256xf32, #tpu.memory_space<vmem>>, vector<1x256xf32>
    tpu.vector_store %arg4[%c26_79, %c0_80], %106 {strides = array<i32>} : memref<32x256xf32, #tpu.memory_space<vmem>>, vector<1x256xf32>,
    %c27 = arith.constant 27 : index
    %108 = memref.load %arg1[%c27] : memref<32xi32, #tpu.memory_space<smem>>
    %109 = arith.index_cast %108 : i32 to index
    %c0_81 = arith.constant 0 : index
    %110 = vector.load %arg2[%109, %c0_81] : memref<256x256xf32, #tpu.memory_space<vmem>>, vector<1x256xf32>
    %c27_82 = arith.constant 27 : index
    %c0_83 = arith.constant 0 : index
    %111 = vector.load %arg4[%c27_82, %c0_83] : memref<32x256xf32, #tpu.memory_space<vmem>>, vector<1x256xf32>
    tpu.vector_store %arg4[%c27_82, %c0_83], %110 {strides = array<i32>} : memref<32x256xf32, #tpu.memory_space<vmem>>, vector<1x256xf32>,
    %c28 = arith.constant 28 : index
    %112 = memref.load %arg1[%c28] : memref<32xi32, #tpu.memory_space<smem>>
    %113 = arith.index_cast %112 : i32 to index
    %c0_84 = arith.constant 0 : index
    %114 = vector.load %arg2[%113, %c0_84] : memref<256x256xf32, #tpu.memory_space<vmem>>, vector<1x256xf32>
    %c28_85 = arith.constant 28 : index
    %c0_86 = arith.constant 0 : index
    %115 = vector.load %arg4[%c28_85, %c0_86] : memref<32x256xf32, #tpu.memory_space<vmem>>, vector<1x256xf32>
    tpu.vector_store %arg4[%c28_85, %c0_86], %114 {strides = array<i32>} : memref<32x256xf32, #tpu.memory_space<vmem>>, vector<1x256xf32>,
    %c29 = arith.constant 29 : index
    %116 = memref.load %arg1[%c29] : memref<32xi32, #tpu.memory_space<smem>>
    %117 = arith.index_cast %116 : i32 to index
    %c0_87 = arith.constant 0 : index
    %118 = vector.load %arg2[%117, %c0_87] : memref<256x256xf32, #tpu.memory_space<vmem>>, vector<1x256xf32>
    %c29_88 = arith.constant 29 : index
    %c0_89 = arith.constant 0 : index
    %119 = vector.load %arg4[%c29_88, %c0_89] : memref<32x256xf32, #tpu.memory_space<vmem>>, vector<1x256xf32>
    tpu.vector_store %arg4[%c29_88, %c0_89], %118 {strides = array<i32>} : memref<32x256xf32, #tpu.memory_space<vmem>>, vector<1x256xf32>,
    %c30 = arith.constant 30 : index
    %120 = memref.load %arg1[%c30] : memref<32xi32, #tpu.memory_space<smem>>
    %121 = arith.index_cast %120 : i32 to index
    %c0_90 = arith.constant 0 : index
    %122 = vector.load %arg2[%121, %c0_90] : memref<256x256xf32, #tpu.memory_space<vmem>>, vector<1x256xf32>
    %c30_91 = arith.constant 30 : index
    %c0_92 = arith.constant 0 : index
    %123 = vector.load %arg4[%c30_91, %c0_92] : memref<32x256xf32, #tpu.memory_space<vmem>>, vector<1x256xf32>
    tpu.vector_store %arg4[%c30_91, %c0_92], %122 {strides = array<i32>} : memref<32x256xf32, #tpu.memory_space<vmem>>, vector<1x256xf32>,
    %c31 = arith.constant 31 : index
    %124 = memref.load %arg1[%c31] : memref<32xi32, #tpu.memory_space<smem>>
    %125 = arith.index_cast %124 : i32 to index
    %c0_93 = arith.constant 0 : index
    %126 = vector.load %arg2[%125, %c0_93] : memref<256x256xf32, #tpu.memory_space<vmem>>, vector<1x256xf32>
    %c31_94 = arith.constant 31 : index
    %c0_95 = arith.constant 0 : index
    %127 = vector.load %arg4[%c31_94, %c0_95] : memref<32x256xf32, #tpu.memory_space<vmem>>, vector<1x256xf32>
    tpu.vector_store %arg4[%c31_94, %c0_95], %126 {strides = array<i32>} : memref<32x256xf32, #tpu.memory_space<vmem>>, vector<1x256xf32>,
    %c0_96 = arith.constant 0 : index
    %c0_97 = arith.constant 0 : index
    %128 = vector.load %arg4[%c0_96, %c0_97] : memref<32x256xf32, #tpu.memory_space<vmem>>, vector<32x256xf32>
    %129 = arith.mulf %128, %128 : vector<32x256xf32>
    %cst = arith.constant dense<0.000000e+00> : vector<32xf32>
    %130 = vector.multi_reduction <add>, %129, %cst [1] : vector<32x256xf32> to vector<32xf32>
    %131 = vector.shape_cast %130 : vector<32xf32> to vector<32x1xf32>
    %132 = math.sqrt %131 : vector<32x1xf32>
    %c0_98 = arith.constant 0 : index
    %c0_99 = arith.constant 0 : index
    %133 = vector.load %arg3[%c0_98, %c0_99] : memref<32x1xf32, #tpu.memory_space<vmem>>, vector<32x1xf32>
    %cst_100 = arith.constant 9.99999993E-9 : f32
    %134 = vector.broadcast %cst_100 : f32 to vector<32x1xf32>
    %135 = arith.addf %132, %134 : vector<32x1xf32>
    %136 = arith.divf %133, %135 : vector<32x1xf32>
    %137 = vector.broadcast %136 : vector<32x1xf32> to vector<32x256xf32>
    %138 = arith.mulf %128, %137 : vector<32x256xf32>
    %c0_101 = arith.constant 0 : index
    %c0_102 = arith.constant 0 : index
    %139 = vector.load %arg4[%c0_101, %c0_102] : memref<32x256xf32, #tpu.memory_space<vmem>>, vector<32x256xf32>
    tpu.vector_store %arg4[%c0_101, %c0_102], %138 {strides = array<i32>} : memref<32x256xf32, #tpu.memory_space<vmem>>, vector<32x256xf32>,
    return
  }
  func.func @transform_0(%arg0: i32, %arg1: memref<32xi32, #tpu.memory_space<smem>>) -> (i32, i32) {
    %c0_i32 = arith.constant 0 : i32
    %c0_i32_0 = arith.constant 0 : i32
    %c0_i32_1 = arith.constant 0 : i32
    return %c0_i32, %c0_i32_0 : i32, i32
  }
  func.func @transform_1(%arg0: i32, %arg1: memref<32xi32, #tpu.memory_space<smem>>) -> (i32, i32) {
    %c0_i32 = arith.constant 0 : i32
    %c0_i32_0 = arith.constant 0 : i32
    %c0_i32_1 = arith.constant 0 : i32
    return %c0_i32, %c0_i32_0 : i32, i32
  }
  func.func @transform_2(%arg0: i32, %arg1: memref<32xi32, #tpu.memory_space<smem>>) -> (i32, i32) {
    %c0_i32 = arith.constant 0 : i32
    %c0_i32_0 = arith.constant 0 : i32
    %c0_i32_1 = arith.constant 0 : i32
    return %c0_i32, %c0_i32_0 : i32, i32
  }
}

module attributes {stable_mosaic.version = 11 : i64} {
  func.func @_shift_sum_kernel(%arg0: i32, %arg1: memref<1x16x13x128xf32, #tpu.memory_space<vmem>>, %arg2: memref<1x16x13x128xf32, #tpu.memory_space<vmem>>, %arg3: memref<1x16x1x1xf32, #tpu.memory_space<vmem>>, %arg4: memref<1x16x13x1xf32, #tpu.memory_space<vmem>>, %arg5: memref<1x16x13x1xf32, #tpu.memory_space<vmem>>, %arg6: memref<1x1x13x128xf32, #tpu.memory_space<vmem>>, %arg7: memref<1x1x13x128xf32, #tpu.memory_space<vmem>>) attributes {dimension_semantics = [#tpu.dimension_semantics<parallel>], iteration_bounds = array<i64: 2>, scalar_prefetch = 0 : i64, scratch_operands = 0 : i64, tpu.core_type = #tpu.core_type<tc>, window_params = [{transform_indices = @transform_0, window_bounds = array<i64: 1, 16, 13, 128>}, {transform_indices = @transform_1, window_bounds = array<i64: 1, 16, 13, 128>}, {transform_indices = @transform_2, window_bounds = array<i64: 1, 16, 1, 1>}, {transform_indices = @transform_3, window_bounds = array<i64: 1, 16, 13, 1>}, {transform_indices = @transform_4, window_bounds = array<i64: 1, 16, 13, 1>}, {transform_indices = @transform_5, window_bounds = array<i64: 1, 1, 13, 128>}, {transform_indices = @transform_6, window_bounds = array<i64: 1, 1, 13, 128>}]} {
    %c0 = arith.constant 0 : index
    %c0_0 = arith.constant 0 : index
    %c0_1 = arith.constant 0 : index
    %c0_2 = arith.constant 0 : index
    %0 = vector.load %arg1[%c0, %c0_0, %c0_1, %c0_2] : memref<1x16x13x128xf32, #tpu.memory_space<vmem>>, vector<1x16x13x128xf32>
    %1 = vector.shape_cast %0 : vector<1x16x13x128xf32> to vector<16x13x128xf32>
    %c0_3 = arith.constant 0 : index
    %c0_4 = arith.constant 0 : index
    %c0_5 = arith.constant 0 : index
    %c0_6 = arith.constant 0 : index
    %2 = vector.load %arg2[%c0_3, %c0_4, %c0_5, %c0_6] : memref<1x16x13x128xf32, #tpu.memory_space<vmem>>, vector<1x16x13x128xf32>
    %3 = vector.shape_cast %2 : vector<1x16x13x128xf32> to vector<16x13x128xf32>
    %c0_7 = arith.constant 0 : index
    %c0_8 = arith.constant 0 : index
    %c0_9 = arith.constant 0 : index
    %c0_10 = arith.constant 0 : index
    %4 = vector.load %arg3[%c0_7, %c0_8, %c0_9, %c0_10] : memref<1x16x1x1xf32, #tpu.memory_space<vmem>>, vector<1x16x1x1xf32>
    %5 = vector.shape_cast %4 : vector<1x16x1x1xf32> to vector<16x1x1xf32>
    %c0_11 = arith.constant 0 : index
    %c0_12 = arith.constant 0 : index
    %c0_13 = arith.constant 0 : index
    %c0_14 = arith.constant 0 : index
    %6 = vector.load %arg4[%c0_11, %c0_12, %c0_13, %c0_14] : memref<1x16x13x1xf32, #tpu.memory_space<vmem>>, vector<1x16x13x1xf32>
    %7 = vector.shape_cast %6 : vector<1x16x13x1xf32> to vector<16x13x1xf32>
    %c0_15 = arith.constant 0 : index
    %c0_16 = arith.constant 0 : index
    %c0_17 = arith.constant 0 : index
    %c0_18 = arith.constant 0 : index
    %8 = vector.load %arg5[%c0_15, %c0_16, %c0_17, %c0_18] : memref<1x16x13x1xf32, #tpu.memory_space<vmem>>, vector<1x16x13x1xf32>
    %9 = vector.shape_cast %8 : vector<1x16x13x1xf32> to vector<16x13x1xf32>
    %10 = tpu.iota {dimensions = array<i32: 2>} : vector<16x1x128xi32>
    %11 = arith.sitofp %10 : vector<16x1x128xi32> to vector<16x1x128xf32>
    %12 = vector.broadcast %5 : vector<16x1x1xf32> to vector<16x1x128xf32>
    %13 = arith.mulf %11, %12 : vector<16x1x128xf32>
    %14 = math.floor %13 : vector<16x1x128xf32>
    %15 = arith.subf %13, %14 : vector<16x1x128xf32>
    %cst = arith.constant 6.28318548 : f32
    %16 = vector.broadcast %cst : f32 to vector<16x1x128xf32>
    %17 = arith.mulf %16, %15 : vector<16x1x128xf32>
    %18 = math.cos %17 : vector<16x1x128xf32>
    %19 = math.sin %17 : vector<16x1x128xf32>
    %20 = vector.broadcast %7 : vector<16x13x1xf32> to vector<16x13x128xf32>
    %21 = vector.broadcast %18 : vector<16x1x128xf32> to vector<16x13x128xf32>
    %22 = arith.mulf %20, %21 : vector<16x13x128xf32>
    %23 = vector.broadcast %9 : vector<16x13x1xf32> to vector<16x13x128xf32>
    %24 = vector.broadcast %19 : vector<16x1x128xf32> to vector<16x13x128xf32>
    %25 = arith.mulf %23, %24 : vector<16x13x128xf32>
    %26 = arith.subf %22, %25 : vector<16x13x128xf32>
    %27 = vector.broadcast %9 : vector<16x13x1xf32> to vector<16x13x128xf32>
    %28 = vector.broadcast %18 : vector<16x1x128xf32> to vector<16x13x128xf32>
    %29 = arith.mulf %27, %28 : vector<16x13x128xf32>
    %30 = vector.broadcast %7 : vector<16x13x1xf32> to vector<16x13x128xf32>
    %31 = vector.broadcast %19 : vector<16x1x128xf32> to vector<16x13x128xf32>
    %32 = arith.mulf %30, %31 : vector<16x13x128xf32>
    %33 = arith.addf %29, %32 : vector<16x13x128xf32>
    %34 = arith.mulf %1, %26 : vector<16x13x128xf32>
    %35 = arith.mulf %3, %33 : vector<16x13x128xf32>
    %36 = arith.addf %34, %35 : vector<16x13x128xf32>
    %cst_19 = arith.constant dense<0.000000e+00> : vector<13x128xf32>
    %37 = vector.multi_reduction <add>, %36, %cst_19 [0] : vector<16x13x128xf32> to vector<13x128xf32>
    %38 = arith.mulf %3, %26 : vector<16x13x128xf32>
    %39 = arith.mulf %1, %33 : vector<16x13x128xf32>
    %40 = arith.subf %38, %39 : vector<16x13x128xf32>
    %cst_20 = arith.constant dense<0.000000e+00> : vector<13x128xf32>
    %41 = vector.multi_reduction <add>, %40, %cst_20 [0] : vector<16x13x128xf32> to vector<13x128xf32>
    %42 = vector.shape_cast %37 : vector<13x128xf32> to vector<1x1x13x128xf32>
    %c0_21 = arith.constant 0 : index
    %c0_22 = arith.constant 0 : index
    %c0_23 = arith.constant 0 : index
    %c0_24 = arith.constant 0 : index
    %43 = vector.load %arg6[%c0_21, %c0_22, %c0_23, %c0_24] : memref<1x1x13x128xf32, #tpu.memory_space<vmem>>, vector<1x1x13x128xf32>
    tpu.vector_store %arg6[%c0_21, %c0_22, %c0_23, %c0_24], %42 {strides = array<i32>} : memref<1x1x13x128xf32, #tpu.memory_space<vmem>>, vector<1x1x13x128xf32>,
    %44 = vector.shape_cast %41 : vector<13x128xf32> to vector<1x1x13x128xf32>
    %c0_25 = arith.constant 0 : index
    %c0_26 = arith.constant 0 : index
    %c0_27 = arith.constant 0 : index
    %c0_28 = arith.constant 0 : index
    %45 = vector.load %arg7[%c0_25, %c0_26, %c0_27, %c0_28] : memref<1x1x13x128xf32, #tpu.memory_space<vmem>>, vector<1x1x13x128xf32>
    tpu.vector_store %arg7[%c0_25, %c0_26, %c0_27, %c0_28], %44 {strides = array<i32>} : memref<1x1x13x128xf32, #tpu.memory_space<vmem>>, vector<1x1x13x128xf32>,
    return
  }
  func.func @transform_0(%arg0: i32) -> (i32, i32, i32, i32) {
    %c0_i32 = arith.constant 0 : i32
    %c0_i32_0 = arith.constant 0 : i32
    %c0_i32_1 = arith.constant 0 : i32
    %c0_i32_2 = arith.constant 0 : i32
    return %arg0, %c0_i32, %c0_i32_0, %c0_i32_1 : i32, i32, i32, i32
  }
  func.func @transform_1(%arg0: i32) -> (i32, i32, i32, i32) {
    %c0_i32 = arith.constant 0 : i32
    %c0_i32_0 = arith.constant 0 : i32
    %c0_i32_1 = arith.constant 0 : i32
    %c0_i32_2 = arith.constant 0 : i32
    return %arg0, %c0_i32, %c0_i32_0, %c0_i32_1 : i32, i32, i32, i32
  }
  func.func @transform_2(%arg0: i32) -> (i32, i32, i32, i32) {
    %c0_i32 = arith.constant 0 : i32
    %c0_i32_0 = arith.constant 0 : i32
    %c0_i32_1 = arith.constant 0 : i32
    %c0_i32_2 = arith.constant 0 : i32
    return %arg0, %c0_i32, %c0_i32_0, %c0_i32_1 : i32, i32, i32, i32
  }
  func.func @transform_3(%arg0: i32) -> (i32, i32, i32, i32) {
    %c0_i32 = arith.constant 0 : i32
    %c0_i32_0 = arith.constant 0 : i32
    %c0_i32_1 = arith.constant 0 : i32
    %c0_i32_2 = arith.constant 0 : i32
    return %arg0, %c0_i32, %c0_i32_0, %c0_i32_1 : i32, i32, i32, i32
  }
  func.func @transform_4(%arg0: i32) -> (i32, i32, i32, i32) {
    %c0_i32 = arith.constant 0 : i32
    %c0_i32_0 = arith.constant 0 : i32
    %c0_i32_1 = arith.constant 0 : i32
    %c0_i32_2 = arith.constant 0 : i32
    return %arg0, %c0_i32, %c0_i32_0, %c0_i32_1 : i32, i32, i32, i32
  }
  func.func @transform_5(%arg0: i32) -> (i32, i32, i32, i32) {
    %c0_i32 = arith.constant 0 : i32
    %c0_i32_0 = arith.constant 0 : i32
    %c0_i32_1 = arith.constant 0 : i32
    %c0_i32_2 = arith.constant 0 : i32
    return %arg0, %c0_i32, %c0_i32_0, %c0_i32_1 : i32, i32, i32, i32
  }
  func.func @transform_6(%arg0: i32) -> (i32, i32, i32, i32) {
    %c0_i32 = arith.constant 0 : i32
    %c0_i32_0 = arith.constant 0 : i32
    %c0_i32_1 = arith.constant 0 : i32
    %c0_i32_2 = arith.constant 0 : i32
    return %arg0, %c0_i32, %c0_i32_0, %c0_i32_1 : i32, i32, i32, i32
  }
}

module attributes {stable_mosaic.version = 11 : i64} {
  func.func @_max_norm_kernel(%arg0: i32, %arg1: memref<2x1x1024xf32, #tpu.memory_space<vmem>>, %arg2: memref<2x1x1024xf32, #tpu.memory_space<vmem>>) attributes {dimension_semantics = [#tpu.dimension_semantics<parallel>], iteration_bounds = array<i64: 1>, scalar_prefetch = 0 : i64, scratch_operands = 0 : i64, tpu.core_type = #tpu.core_type<tc>, window_params = [{transform_indices = @transform_0, window_bounds = array<i64: 2, 1, 1024>}, {pipeline_mode = #tpu.pipeline_mode<synchronous>, transform_indices = @transform_1, window_bounds = array<i64: 2, 1, 1024>}]} {
    %c0 = arith.constant 0 : index
    %c0_0 = arith.constant 0 : index
    %c0_1 = arith.constant 0 : index
    %0 = vector.load %arg1[%c0, %c0_0, %c0_1] : memref<2x1x1024xf32, #tpu.memory_space<vmem>>, vector<2x1x1024xf32>
    %1 = math.absf %0 : vector<2x1x1024xf32>
    %cst = arith.constant dense<0xFF800000> : vector<2x1xf32>
    %2 = vector.multi_reduction <maximumf>, %1, %cst [2] : vector<2x1x1024xf32> to vector<2x1xf32>
    %3 = vector.shape_cast %2 : vector<2x1xf32> to vector<2x1x1xf32>
    %cst_2 = arith.constant 9.99999993E-9 : f32
    %4 = vector.broadcast %cst_2 : f32 to vector<2x1x1xf32>
    %5 = arith.addf %3, %4 : vector<2x1x1xf32>
    %6 = tpu.reciprocal %5 {approx = true} : vector<2x1x1xf32> -> vector<2x1x1xf32>
    %7 = vector.broadcast %6 : vector<2x1x1xf32> to vector<2x1x1024xf32>
    %8 = arith.mulf %0, %7 : vector<2x1x1024xf32>
    %c0_3 = arith.constant 0 : index
    %c0_4 = arith.constant 0 : index
    %c0_5 = arith.constant 0 : index
    %9 = vector.load %arg2[%c0_3, %c0_4, %c0_5] : memref<2x1x1024xf32, #tpu.memory_space<vmem>>, vector<2x1x1024xf32>
    tpu.vector_store %arg2[%c0_3, %c0_4, %c0_5], %8 {strides = array<i32>} : memref<2x1x1024xf32, #tpu.memory_space<vmem>>, vector<2x1x1024xf32>,
    return
  }
  func.func @transform_0(%arg0: i32) -> (i32, i32, i32) {
    %c0_i32 = arith.constant 0 : i32
    %c0_i32_0 = arith.constant 0 : i32
    %c0_i32_1 = arith.constant 0 : i32
    %c0_i32_2 = arith.constant 0 : i32
    return %c0_i32, %c0_i32_0, %c0_i32_1 : i32, i32, i32
  }
  func.func @transform_1(%arg0: i32) -> (i32, i32, i32) {
    %c0_i32 = arith.constant 0 : i32
    %c0_i32_0 = arith.constant 0 : i32
    %c0_i32_1 = arith.constant 0 : i32
    %c0_i32_2 = arith.constant 0 : i32
    return %c0_i32, %c0_i32_0, %c0_i32_1 : i32, i32, i32
  }
}

</mosaic_0001>

<llo_original>
// kernel: model_forward.3
$region0: #{model_forward.3}
  #allocation0 [shape = 'u32[]', space=smem, size = 0x4, offset = 0x4, fixed_abs, tag = 'smem constant byte address 0x4 - core index']
  #allocation1 [shape = 'u32[72,128]{1,0:T(1,128)}', space=vmem, size = 0x9000, scoped, tag = 'internal scratch']
  #allocation2 [shape = 's32[1]{0}', space=sflag, size = 0x4, scoped, tag = 'scoped memory for model_forward.3']
  #allocation3 [shape = 'u8[512]{0}', space=smem, size = 0x200, scoped, tag = 'prefetched SMEM operand 0']
  %s0 = inlined_call_operand.vmem [shape: s32[32], index: 0, kind: input, shape index: {}]
  %s1 = inlined_call_operand.hbm [shape: f32[256,256], index: 1, kind: input, shape index: {}]
  %s2 = inlined_call_operand.vmem [shape: f32[32,1], index: 2, kind: input, shape index: {}]
  %s3 = inlined_call_operand.vmem [shape: f32[32,256], index: 3, kind: output, shape index: {}]
  %s4 = sld [smem:[#allocation0]]
  $region22: #{model_forward.3} parent=0
    _
  %s6 = ssub.s32 1, %s4
  %s7 = scalar_select 0, %s6, %s4
  %s9 = sshll.u32 %s0, 4
  %s10 = int_to_ptr.vmem [resolvable:$true] %s9
  %12 = dma.vmem_to_smem %s10, 16, [#allocation3], [#allocation2]
  %14 = dma.done [#allocation2], 16
  %15 = sfence
  $region1: #{model_forward.3} parent=0
    #allocation4 [shape = 'u8[262144]{0}', space=vmem, size = 0x40000, scoped, tag = 'input window, operand 1, single buffered']
    #allocation5 [shape = 's32[1]{0}', space=sflag, size = 0x4, scoped, tag = 'scoped memory for model_forward.3']
    %16 = vsyncpa [#allocation5], 0
    // Predicated region
    $region2: #{model_forward.3} parent=1 // pred_check
      _
    $region3: #{model_forward.3} parent=1 // pred_check_branch
      %18 = sbr.rel (0) target = $region5
    $region4: #{model_forward.3} parent=1 // pred_region
      %20 = vsyncadd [#allocation5], 0
      %s21 = sshll.u32 %s1, 4
      %s22 = int_to_ptr.hbm [resolvable:$true] %s21
      %s23 = sshll.u32 [#allocation4], 4
      %s24 = int_to_ptr.vmem [resolvable:$true] %s23
      %29 = dma.hbm_to_vmem [thread:$0]  %s22, 8192, %s24, [#allocation5], 256, 256, 16
    $region5: #{model_forward.3} parent=1 // pred_fallthru
      _
    // Predicated region
    $region6: #{model_forward.3} parent=1 // pred_check
      _
    $region7: #{model_forward.3} parent=1 // pred_check_branch
      %31 = sbr.rel (0) target = $region9
    $region8: #{model_forward.3} parent=1 // pred_region
      _
    $region9: #{model_forward.3} parent=1 // pred_fallthru
      _
    // Predicated region
    $region10: #{model_forward.3} parent=1 // pred_check
      _
    $region11: #{model_forward.3} parent=1 // pred_check_branch
      %33 = sbr.rel (0) target = $region13
    $region12: #{model_forward.3} parent=1 // pred_region
      %35 = dma.done [#allocation5], 8192
    $region13: #{model_forward.3} parent=1 // pred_fallthru
      _
    %s36 = sld [smem:[#allocation3]]
    %s37 = sshra.s32 %s36, 3
    %s38 = sand.u32 %s36, 7
    %s39 = sshra.s32 %s36, 3
    %s40 = sand.u32 %s36, 7
    %s41 = smul.u32 %s37, 2
    %s42 = smul.u32 %s41, 8
    %s43 = sadd.s32 %s42, %s40
    %s44 = scalar_lea.vmem [#allocation4], %s43
    %v45 = vld [vmem:[%s44] ss:$8 sm:$0x3]
    %v46 = vlaneseq
    %vm47 = vcmp.ge.s32.totalorder %v46, 0
    %vm48 = vcmp.lt.s32.totalorder %v46, 256
    %vm49 = vmand %vm47, %vm48
    %50 = vst.msk [vmem:[%s3] ss:$8 sm:$0x3] %vm49, %v45
    %51 = vst.msk [vmem:[%s3] ss:$8 sm:$0x0] %vm49, %v45
    %s52 = sld [smem:[#allocation3 + $0x1]]
    %s53 = sshra.s32 %s52, 3
    %s54 = sand.u32 %s52, 7
    %s55 = sshra.s32 %s52, 3
    %s56 = sand.u32 %s52, 7
    %s57 = smul.u32 %s53, 2
    %s58 = smul.u32 %s57, 8
    %s59 = sadd.s32 %s58, %s56
    %s60 = scalar_lea.vmem [#allocation4], %s59
    %v61 = vld [vmem:[%s60] ss:$8 sm:$0x3]
    %s62 = scalar_lea.vmem %s3, 1
    %63 = vst.msk [vmem:[%s62] ss:$8 sm:$0x3] %vm49, %v61
    %64 = vst.msk [vmem:[%s62] ss:$8 sm:$0x0] %vm49, %v61
    %s65 = sld [smem:[#allocation3 + $0x2]]
    %s66 = sshra.s32 %s65, 3
    %s67 = sand.u32 %s65, 7
    %s68 = sshra.s32 %s65, 3
    %s69 = sand.u32 %s65, 7
    %s70 = smul.u32 %s66, 2
    %s71 = smul.u32 %s70, 8
    %s72 = sadd.s32 %s71, %s69
    %s73 = scalar_lea.vmem [#allocation4], %s72
    %v74 = vld [vmem:[%s73] ss:$8 sm:$0x3]
    %s75 = scalar_lea.vmem %s3, 2
    %76 = vst.msk [vmem:[%s75] ss:$8 sm:$0x3] %vm49, %v74
    %77 = vst.msk [vmem:[%s75] ss:$8 sm:$0x0] %vm49, %v74
    %s78 = sld [smem:[#allocation3 + $0x3]]
    %s79 = sshra.s32 %s78, 3
    %s80 = sand.u32 %s78, 7
    %s81 = sshra.s32 %s78, 3
    %s82 = sand.u32 %s78, 7
    %s83 = smul.u32 %s79, 2
    %s84 = smul.u32 %s83, 8
    %s85 = sadd.s32 %s84, %s82
    %s86 = scalar_lea.vmem [#allocation4], %s85
    %v87 = vld [vmem:[%s86] ss:$8 sm:$0x3]
    %s88 = scalar_lea.vmem %s3, 3
    %89 = vst.msk [vmem:[%s88] ss:$8 sm:$0x3] %vm49, %v87
    %90 = vst.msk [vmem:[%s88] ss:$8 sm:$0x0] %vm49, %v87
    %s91 = sld [smem:[#allocation3 + $0x4]]
    %s92 = sshra.s32 %s91, 3
    %s93 = sand.u32 %s91, 7
    %s94 = sshra.s32 %s91, 3
    %s95 = sand.u32 %s91, 7
    %s96 = smul.u32 %s92, 2
    %s97 = smul.u32 %s96, 8
    %s98 = sadd.s32 %s97, %s95
    %s99 = scalar_lea.vmem [#allocation4], %s98
    %v100 = vld [vmem:[%s99] ss:$8 sm:$0x3]
    %s101 = scalar_lea.vmem %s3, 4
    %102 = vst.msk [vmem:[%s101] ss:$8 sm:$0x3] %vm49, %v100
    %103 = vst.msk [vmem:[%s101] ss:$8 sm:$0x0] %vm49, %v100
    %s104 = sld [smem:[#allocation3 + $0x5]]
    %s105 = sshra.s32 %s104, 3
    %s106 = sand.u32 %s104, 7
    %s107 = sshra.s32 %s104, 3
    %s108 = sand.u32 %s104, 7
    %s109 = smul.u32 %s105, 2
    %s110 = smul.u32 %s109, 8
    %s111 = sadd.s32 %s110, %s108
    %s112 = scalar_lea.vmem [#allocation4], %s111
    %v113 = vld [vmem:[%s112] ss:$8 sm:$0x3]
    %s114 = scalar_lea.vmem %s3, 5
    %115 = vst.msk [vmem:[%s114] ss:$8 sm:$0x3] %vm49, %v113
    %116 = vst.msk [vmem:[%s114] ss:$8 sm:$0x0] %vm49, %v113
    %s117 = sld [smem:[#allocation3 + $0x6]]
    %s118 = sshra.s32 %s117, 3
    %s119 = sand.u32 %s117, 7
    %s120 = sshra.s32 %s117, 3
    %s121 = sand.u32 %s117, 7
    %s122 = smul.u32 %s118, 2
    %s123 = smul.u32 %s122, 8
    %s124 = sadd.s32 %s123, %s121
    %s125 = scalar_lea.vmem [#allocation4], %s124
    %v126 = vld [vmem:[%s125] ss:$8 sm:$0x3]
    %s127 = scalar_lea.vmem %s3, 6
    %128 = vst.msk [vmem:[%s127] ss:$8 sm:$0x3] %vm49, %v126
    %129 = vst.msk [vmem:[%s127] ss:$8 sm:$0x0] %vm49, %v126
    %s130 = sld [smem:[#allocation3 + $0x7]]
    %s131 = sshra.s32 %s130, 3
    %s132 = sand.u32 %s130, 7
    %s133 = sshra.s32 %s130, 3
    %s134 = sand.u32 %s130, 7
    %s135 = smul.u32 %s131, 2
    %s136 = smul.u32 %s135, 8
    %s137 = sadd.s32 %s136, %s134
    %s138 = scalar_lea.vmem [#allocation4], %s137
    %v139 = vld [vmem:[%s138] ss:$8 sm:$0x3]
    %s140 = scalar_lea.vmem %s3, 7
    %141 = vst.msk [vmem:[%s140] ss:$8 sm:$0x3] %vm49, %v139
    %142 = vst.msk [vmem:[%s140] ss:$8 sm:$0x0] %vm49, %v139
    %s143 = sld [smem:[#allocation3 + $0x8]]
    %s144 = sshra.s32 %s143, 3
    %s145 = sand.u32 %s143, 7
    %s146 = sshra.s32 %s143, 3
    %s147 = sand.u32 %s143, 7
    %s148 = smul.u32 %s144, 2
    %s149 = smul.u32 %s148, 8
    %s150 = sadd.s32 %s149, %s147
    %s151 = scalar_lea.vmem [#allocation4], %s150
    %v152 = vld [vmem:[%s151] ss:$8 sm:$0x3]
    %s153 = scalar_lea.vmem %s3, 16
    %154 = vst.msk [vmem:[%s153] ss:$8 sm:$0x3] %vm49, %v152
    %155 = vst.msk [vmem:[%s153] ss:$8 sm:$0x0] %vm49, %v152
    %s156 = sld [smem:[#allocation3 + $0x9]]
    %s157 = sshra.s32 %s156, 3
    %s158 = sand.u32 %s156, 7
    %s159 = sshra.s32 %s156, 3
    %s160 = sand.u32 %s156, 7
    %s161 = smul.u32 %s157, 2
    %s162 = smul.u32 %s161, 8
    %s163 = sadd.s32 %s162, %s160
    %s164 = scalar_lea.vmem [#allocation4], %s163
    %v165 = vld [vmem:[%s164] ss:$8 sm:$0x3]
    %s166 = scalar_lea.vmem %s3, 17
    %167 = vst.msk [vmem:[%s166] ss:$8 sm:$0x3] %vm49, %v165
    %168 = vst.msk [vmem:[%s166] ss:$8 sm:$0x0] %vm49, %v165
    %s169 = sld [smem:[#allocation3 + $0xa]]
    %s170 = sshra.s32 %s169, 3
    %s171 = sand.u32 %s169, 7
    %s172 = sshra.s32 %s169, 3
    %s173 = sand.u32 %s169, 7
    %s174 = smul.u32 %s170, 2
    %s175 = smul.u32 %s174, 8
    %s176 = sadd.s32 %s175, %s173
    %s177 = scalar_lea.vmem [#allocation4], %s176
    %v178 = vld [vmem:[%s177] ss:$8 sm:$0x3]
    %s179 = scalar_lea.vmem %s3, 18
    %180 = vst.msk [vmem:[%s179] ss:$8 sm:$0x3] %vm49, %v178
    %181 = vst.msk [vmem:[%s179] ss:$8 sm:$0x0] %vm49, %v178
    %s182 = sld [smem:[#allocation3 + $0xb]]
    %s183 = sshra.s32 %s182, 3
    %s184 = sand.u32 %s182, 7
    %s185 = sshra.s32 %s182, 3
    %s186 = sand.u32 %s182, 7
    %s187 = smul.u32 %s183, 2
    %s188 = smul.u32 %s187, 8
    %s189 = sadd.s32 %s188, %s186
    %s190 = scalar_lea.vmem [#allocation4], %s189
    %v191 = vld [vmem:[%s190] ss:$8 sm:$0x3]
    %s192 = scalar_lea.vmem %s3, 19
    %193 = vst.msk [vmem:[%s192] ss:$8 sm:$0x3] %vm49, %v191
    %194 = vst.msk [vmem:[%s192] ss:$8 sm:$0x0] %vm49, %v191
    %s195 = sld [smem:[#allocation3 + $0xc]]
    %s196 = sshra.s32 %s195, 3
    %s197 = sand.u32 %s195, 7
    %s198 = sshra.s32 %s195, 3
    %s199 = sand.u32 %s195, 7
    %s200 = smul.u32 %s196, 2
    %s201 = smul.u32 %s200, 8
    %s202 = sadd.s32 %s201, %s199
    %s203 = scalar_lea.vmem [#allocation4], %s202
    %v204 = vld [vmem:[%s203] ss:$8 sm:$0x3]
    %s205 = scalar_lea.vmem %s3, 20
    %206 = vst.msk [vmem:[%s205] ss:$8 sm:$0x3] %vm49, %v204
    %207 = vst.msk [vmem:[%s205] ss:$8 sm:$0x0] %vm49, %v204
    %s208 = sld [smem:[#allocation3 + $0xd]]
    %s209 = sshra.s32 %s208, 3
    %s210 = sand.u32 %s208, 7
    %s211 = sshra.s32 %s208, 3
    %s212 = sand.u32 %s208, 7
    %s213 = smul.u32 %s209, 2
    %s214 = smul.u32 %s213, 8
    %s215 = sadd.s32 %s214, %s212
    %s216 = scalar_lea.vmem [#allocation4], %s215
    %v217 = vld [vmem:[%s216] ss:$8 sm:$0x3]
    %s218 = scalar_lea.vmem %s3, 21
    %219 = vst.msk [vmem:[%s218] ss:$8 sm:$0x3] %vm49, %v217
    %220 = vst.msk [vmem:[%s218] ss:$8 sm:$0x0] %vm49, %v217
    %s221 = sld [smem:[#allocation3 + $0xe]]
    %s222 = sshra.s32 %s221, 3
    %s223 = sand.u32 %s221, 7
    %s224 = sshra.s32 %s221, 3
    %s225 = sand.u32 %s221, 7
    %s226 = smul.u32 %s222, 2
    %s227 = smul.u32 %s226, 8
    %s228 = sadd.s32 %s227, %s225
    %s229 = scalar_lea.vmem [#allocation4], %s228
    %v230 = vld [vmem:[%s229] ss:$8 sm:$0x3]
    %s231 = scalar_lea.vmem %s3, 22
    %232 = vst.msk [vmem:[%s231] ss:$8 sm:$0x3] %vm49, %v230
    %233 = vst.msk [vmem:[%s231] ss:$8 sm:$0x0] %vm49, %v230
    %s234 = sld [smem:[#allocation3 + $0xf]]
    %s235 = sshra.s32 %s234, 3
    %s236 = sand.u32 %s234, 7
    %s237 = sshra.s32 %s234, 3
    %s238 = sand.u32 %s234, 7
    %s239 = smul.u32 %s235, 2
    %s240 = smul.u32 %s239, 8
    %s241 = sadd.s32 %s240, %s238
    %s242 = scalar_lea.vmem [#allocation4], %s241
    %v243 = vld [vmem:[%s242] ss:$8 sm:$0x3]
    %s244 = scalar_lea.vmem %s3, 23
    %245 = vst.msk [vmem:[%s244] ss:$8 sm:$0x3] %vm49, %v243
    %246 = vst.msk [vmem:[%s244] ss:$8 sm:$0x0] %vm49, %v243
    %s247 = sld [smem:[#allocation3 + $0x10]]
    %s248 = sshra.s32 %s247, 3
    %s249 = sand.u32 %s247, 7
    %s250 = sshra.s32 %s247, 3
    %s251 = sand.u32 %s247, 7
    %s252 = smul.u32 %s248, 2
    %s253 = smul.u32 %s252, 8
    %s254 = sadd.s32 %s253, %s251
    %s255 = scalar_lea.vmem [#allocation4], %s254
    %v256 = vld [vmem:[%s255] ss:$8 sm:$0x3]
    %s257 = scalar_lea.vmem %s3, 32
    %258 = vst.msk [vmem:[%s257] ss:$8 sm:$0x3] %vm49, %v256
    %259 = vst.msk [vmem:[%s257] ss:$8 sm:$0x0] %vm49, %v256
    %s260 = sld [smem:[#allocation3 + $0x11]]
    %s261 = sshra.s32 %s260, 3
    %s262 = sand.u32 %s260, 7
    %s263 = sshra.s32 %s260, 3
    %s264 = sand.u32 %s260, 7
    %s265 = smul.u32 %s261, 2
    %s266 = smul.u32 %s265, 8
    %s267 = sadd.s32 %s266, %s264
    %s268 = scalar_lea.vmem [#allocation4], %s267
    %v269 = vld [vmem:[%s268] ss:$8 sm:$0x3]
    %s270 = scalar_lea.vmem %s3, 33
    %271 = vst.msk [vmem:[%s270] ss:$8 sm:$0x3] %vm49, %v269
    %272 = vst.msk [vmem:[%s270] ss:$8 sm:$0x0] %vm49, %v269
    %s273 = sld [smem:[#allocation3 + $0x12]]
    %s274 = sshra.s32 %s273, 3
    %s275 = sand.u32 %s273, 7
    %s276 = sshra.s32 %s273, 3
    %s277 = sand.u32 %s273, 7
    %s278 = smul.u32 %s274, 2
    %s279 = smul.u32 %s278, 8
    %s280 = sadd.s32 %s279, %s277
    %s281 = scalar_lea.vmem [#allocation4], %s280
    %v282 = vld [vmem:[%s281] ss:$8 sm:$0x3]
    %s283 = scalar_lea.vmem %s3, 34
    %284 = vst.msk [vmem:[%s283] ss:$8 sm:$0x3] %vm49, %v282
    %285 = vst.msk [vmem:[%s283] ss:$8 sm:$0x0] %vm49, %v282
    %s286 = sld [smem:[#allocation3 + $0x13]]
    %s287 = sshra.s32 %s286, 3
    %s288 = sand.u32 %s286, 7
    %s289 = sshra.s32 %s286, 3
    %s290 = sand.u32 %s286, 7
    %s291 = smul.u32 %s287, 2
    %s292 = smul.u32 %s291, 8
    %s293 = sadd.s32 %s292, %s290
    %s294 = scalar_lea.vmem [#allocation4], %s293
    %v295 = vld [vmem:[%s294] ss:$8 sm:$0x3]
    %s296 = scalar_lea.vmem %s3, 35
    %297 = vst.msk [vmem:[%s296] ss:$8 sm:$0x3] %vm49, %v295
    %298 = vst.msk [vmem:[%s296] ss:$8 sm:$0x0] %vm49, %v295
    %s299 = sld [smem:[#allocation3 + $0x14]]
    %s300 = sshra.s32 %s299, 3
    %s301 = sand.u32 %s299, 7
    %s302 = sshra.s32 %s299, 3
    %s303 = sand.u32 %s299, 7
    %s304 = smul.u32 %s300, 2
    %s305 = smul.u32 %s304, 8
    %s306 = sadd.s32 %s305, %s303
    %s307 = scalar_lea.vmem [#allocation4], %s306
    %v308 = vld [vmem:[%s307] ss:$8 sm:$0x3]
    %s309 = scalar_lea.vmem %s3, 36
    %310 = vst.msk [vmem:[%s309] ss:$8 sm:$0x3] %vm49, %v308
    %311 = vst.msk [vmem:[%s309] ss:$8 sm:$0x0] %vm49, %v308
    %s312 = sld [smem:[#allocation3 + $0x15]]
    %s313 = sshra.s32 %s312, 3
    %s314 = sand.u32 %s312, 7
    %s315 = sshra.s32 %s312, 3
    %s316 = sand.u32 %s312, 7
    %s317 = smul.u32 %s313, 2
    %s318 = smul.u32 %s317, 8
    %s319 = sadd.s32 %s318, %s316
    %s320 = scalar_lea.vmem [#allocation4], %s319
    %v321 = vld [vmem:[%s320] ss:$8 sm:$0x3]
    %s322 = scalar_lea.vmem %s3, 37
    %323 = vst.msk [vmem:[%s322] ss:$8 sm:$0x3] %vm49, %v321
    %324 = vst.msk [vmem:[%s322] ss:$8 sm:$0x0] %vm49, %v321
    %s325 = sld [smem:[#allocation3 + $0x16]]
    %s326 = sshra.s32 %s325, 3
    %s327 = sand.u32 %s325, 7
    %s328 = sshra.s32 %s325, 3
    %s329 = sand.u32 %s325, 7
    %s330 = smul.u32 %s326, 2
    %s331 = smul.u32 %s330, 8
    %s332 = sadd.s32 %s331, %s329
    %s333 = scalar_lea.vmem [#allocation4], %s332
    %v334 = vld [vmem:[%s333] ss:$8 sm:$0x3]
    %s335 = scalar_lea.vmem %s3, 38
    %336 = vst.msk [vmem:[%s335] ss:$8 sm:$0x3] %vm49, %v334
    %337 = vst.msk [vmem:[%s335] ss:$8 sm:$0x0] %vm49, %v334
    %s338 = sld [smem:[#allocation3 + $0x17]]
    %s339 = sshra.s32 %s338, 3
    %s340 = sand.u32 %s338, 7
    %s341 = sshra.s32 %s338, 3
    %s342 = sand.u32 %s338, 7
    %s343 = smul.u32 %s339, 2
    %s344 = smul.u32 %s343, 8
    %s345 = sadd.s32 %s344, %s342
    %s346 = scalar_lea.vmem [#allocation4], %s345
    %v347 = vld [vmem:[%s346] ss:$8 sm:$0x3]
    %s348 = scalar_lea.vmem %s3, 39
    %349 = vst.msk [vmem:[%s348] ss:$8 sm:$0x3] %vm49, %v347
    %350 = vst.msk [vmem:[%s348] ss:$8 sm:$0x0] %vm49, %v347
    %s351 = sld [smem:[#allocation3 + $0x18]]
    %s352 = sshra.s32 %s351, 3
    %s353 = sand.u32 %s351, 7
    %s354 = sshra.s32 %s351, 3
    %s355 = sand.u32 %s351, 7
    %s356 = smul.u32 %s352, 2
    %s357 = smul.u32 %s356, 8
    %s358 = sadd.s32 %s357, %s355
    %s359 = scalar_lea.vmem [#allocation4], %s358
    %v360 = vld [vmem:[%s359] ss:$8 sm:$0x3]
    %s361 = scalar_lea.vmem %s3, 48
    %362 = vst.msk [vmem:[%s361] ss:$8 sm:$0x3] %vm49, %v360
    %363 = vst.msk [vmem:[%s361] ss:$8 sm:$0x0] %vm49, %v360
    %s364 = sld [smem:[#allocation3 + $0x19]]
    %s365 = sshra.s32 %s364, 3
    %s366 = sand.u32 %s364, 7
    %s367 = sshra.s32 %s364, 3
    %s368 = sand.u32 %s364, 7
    %s369 = smul.u32 %s365, 2
    %s370 = smul.u32 %s369, 8
    %s371 = sadd.s32 %s370, %s368
    %s372 = scalar_lea.vmem [#allocation4], %s371
    %v373 = vld [vmem:[%s372] ss:$8 sm:$0x3]
    %s374 = scalar_lea.vmem %s3, 49
    %375 = vst.msk [vmem:[%s374] ss:$8 sm:$0x3] %vm49, %v373
    %376 = vst.msk [vmem:[%s374] ss:$8 sm:$0x0] %vm49, %v373
    %s377 = sld [smem:[#allocation3 + $0x1a]]
    %s378 = sshra.s32 %s377, 3
    %s379 = sand.u32 %s377, 7
    %s380 = sshra.s32 %s377, 3
    %s381 = sand.u32 %s377, 7
    %s382 = smul.u32 %s378, 2
    %s383 = smul.u32 %s382, 8
    %s384 = sadd.s32 %s383, %s381
    %s385 = scalar_lea.vmem [#allocation4], %s384
    %v386 = vld [vmem:[%s385] ss:$8 sm:$0x3]
    %s387 = scalar_lea.vmem %s3, 50
    %388 = vst.msk [vmem:[%s387] ss:$8 sm:$0x3] %vm49, %v386
    %389 = vst.msk [vmem:[%s387] ss:$8 sm:$0x0] %vm49, %v386
    %s390 = sld [smem:[#allocation3 + $0x1b]]
    %s391 = sshra.s32 %s390, 3
    %s392 = sand.u32 %s390, 7
    %s393 = sshra.s32 %s390, 3
    %s394 = sand.u32 %s390, 7
    %s395 = smul.u32 %s391, 2
    %s396 = smul.u32 %s395, 8
    %s397 = sadd.s32 %s396, %s394
    %s398 = scalar_lea.vmem [#allocation4], %s397
    %v399 = vld [vmem:[%s398] ss:$8 sm:$0x3]
    %s400 = scalar_lea.vmem %s3, 51
    %401 = vst.msk [vmem:[%s400] ss:$8 sm:$0x3] %vm49, %v399
    %402 = vst.msk [vmem:[%s400] ss:$8 sm:$0x0] %vm49, %v399
    %s403 = sld [smem:[#allocation3 + $0x1c]]
    %s404 = sshra.s32 %s403, 3
    %s405 = sand.u32 %s403, 7
    %s406 = sshra.s32 %s403, 3
    %s407 = sand.u32 %s403, 7
    %s408 = smul.u32 %s404, 2
    %s409 = smul.u32 %s408, 8
    %s410 = sadd.s32 %s409, %s407
    %s411 = scalar_lea.vmem [#allocation4], %s410
    %v412 = vld [vmem:[%s411] ss:$8 sm:$0x3]
    %s413 = scalar_lea.vmem %s3, 52
    %414 = vst.msk [vmem:[%s413] ss:$8 sm:$0x3] %vm49, %v412
    %415 = vst.msk [vmem:[%s413] ss:$8 sm:$0x0] %vm49, %v412
    %s416 = sld [smem:[#allocation3 + $0x1d]]
    %s417 = sshra.s32 %s416, 3
    %s418 = sand.u32 %s416, 7
    %s419 = sshra.s32 %s416, 3
    %s420 = sand.u32 %s416, 7
    %s421 = smul.u32 %s417, 2
    %s422 = smul.u32 %s421, 8
    %s423 = sadd.s32 %s422, %s420
    %s424 = scalar_lea.vmem [#allocation4], %s423
    %v425 = vld [vmem:[%s424] ss:$8 sm:$0x3]
    %s426 = scalar_lea.vmem %s3, 53
    %427 = vst.msk [vmem:[%s426] ss:$8 sm:$0x3] %vm49, %v425
    %428 = vst.msk [vmem:[%s426] ss:$8 sm:$0x0] %vm49, %v425
    %s429 = sld [smem:[#allocation3 + $0x1e]]
    %s430 = sshra.s32 %s429, 3
    %s431 = sand.u32 %s429, 7
    %s432 = sshra.s32 %s429, 3
    %s433 = sand.u32 %s429, 7
    %s434 = smul.u32 %s430, 2
    %s435 = smul.u32 %s434, 8
    %s436 = sadd.s32 %s435, %s433
    %s437 = scalar_lea.vmem [#allocation4], %s436
    %v438 = vld [vmem:[%s437] ss:$8 sm:$0x3]
    %s439 = scalar_lea.vmem %s3, 54
    %440 = vst.msk [vmem:[%s439] ss:$8 sm:$0x3] %vm49, %v438
    %441 = vst.msk [vmem:[%s439] ss:$8 sm:$0x0] %vm49, %v438
    %s442 = sld [smem:[#allocation3 + $0x1f]]
    %s443 = sshra.s32 %s442, 3
    %s444 = sand.u32 %s442, 7
    %s445 = sshra.s32 %s442, 3
    %s446 = sand.u32 %s442, 7
    %s447 = smul.u32 %s443, 2
    %s448 = smul.u32 %s447, 8
    %s449 = sadd.s32 %s448, %s446
    %s450 = scalar_lea.vmem [#allocation4], %s449
    %v451 = vld [vmem:[%s450] ss:$8 sm:$0x3]
    %s452 = scalar_lea.vmem %s3, 55
    %453 = vst.msk [vmem:[%s452] ss:$8 sm:$0x3] %vm49, %v451
    %454 = vst.msk [vmem:[%s452] ss:$8 sm:$0x0] %vm49, %v451
    %v455 = vld [vmem:[%s3] sm:$0xff]
    %v456 = vld [vmem:[%s3 + $0x8] sm:$0xff]
    %v457 = vld [vmem:[%s3 + $0x10] sm:$0xff]
    %v458 = vld [vmem:[%s3 + $0x18] sm:$0xff]
    %v459 = vld [vmem:[%s3 + $0x20] sm:$0xff]
    %v460 = vld [vmem:[%s3 + $0x28] sm:$0xff]
    %v461 = vld [vmem:[%s3 + $0x30] sm:$0xff]
    %v462 = vld [vmem:[%s3 + $0x38] sm:$0xff]
    %v463 = vmul.f32 %v455, %v455
    %v464 = vmul.f32 %v456, %v456
    %v465 = vmul.f32 %v457, %v457
    %v466 = vmul.f32 %v458, %v458
    %v467 = vmul.f32 %v459, %v459
    %v468 = vmul.f32 %v460, %v460
    %v469 = vmul.f32 %v461, %v461
    %v470 = vmul.f32 %v462, %v462
    %v471 = vadd.f32 %v463, %v464
    %472 = vadd.xlane.f32.xlu0 %v471
    %v473 = vpop.xlane.xlu0 %472
    %v474 = vadd.f32 %v465, %v466
    %475 = vadd.xlane.f32.xlu0 %v474
    %v476 = vpop.xlane.xlu0 %475
    %v477 = vadd.f32 %v467, %v468
    %478 = vadd.xlane.f32.xlu0 %v477
    %v479 = vpop.xlane.xlu0 %478
    %v480 = vadd.f32 %v469, %v470
    %481 = vadd.xlane.f32.xlu0 %v480
    %v482 = vpop.xlane.xlu0 %481
    %v483 = vrsqrt.pop %v473
    %v484 = vmul.f32 %v483, %v473
    %v485 = vmul.f32 %v484, %v483
    %v486 = vmul.f32 0.5, %v485
    %v487 = vsub.f32 1.5, %v486
    %v488 = vmul.f32 %v483, %v487
    %v489 = vmul.f32 %v473, %v488
    %vm490 = vcmp.eq.f32.partialorder %v473, inf
    %v491 = vsel %vm490, %v473, %v489
    %vm492 = vcmp.eq.f32.partialorder %v473, 0.0
    %v493 = vand.u32 %v473, 2147483648
    %v494 = vsel %vm492, %v493, %v491
    %v495 = vrsqrt.pop %v476
    %v496 = vmul.f32 %v495, %v476
    %v497 = vmul.f32 %v496, %v495
    %v498 = vmul.f32 0.5, %v497
    %v499 = vsub.f32 1.5, %v498
    %v500 = vmul.f32 %v495, %v499
    %v501 = vmul.f32 %v476, %v500
    %vm502 = vcmp.eq.f32.partialorder %v476, inf
    %v503 = vsel %vm502, %v476, %v501
    %vm504 = vcmp.eq.f32.partialorder %v476, 0.0
    %v505 = vand.u32 %v476, 2147483648
    %v506 = vsel %vm504, %v505, %v503
    %v507 = vrsqrt.pop %v479
    %v508 = vmul.f32 %v507, %v479
    %v509 = vmul.f32 %v508, %v507
    %v510 = vmul.f32 0.5, %v509
    %v511 = vsub.f32 1.5, %v510
    %v512 = vmul.f32 %v507, %v511
    %v513 = vmul.f32 %v479, %v512
    %vm514 = vcmp.eq.f32.partialorder %v479, inf
    %v515 = vsel %vm514, %v479, %v513
    %vm516 = vcmp.eq.f32.partialorder %v479, 0.0
    %v517 = vand.u32 %v479, 2147483648
    %v518 = vsel %vm516, %v517, %v515
    %v519 = vrsqrt.pop %v482
    %v520 = vmul.f32 %v519, %v482
    %v521 = vmul.f32 %v520, %v519
    %v522 = vmul.f32 0.5, %v521
    %v523 = vsub.f32 1.5, %v522
    %v524 = vmul.f32 %v519, %v523
    %v525 = vmul.f32 %v482, %v524
    %vm526 = vcmp.eq.f32.partialorder %v482, inf
    %v527 = vsel %vm526, %v482, %v525
    %vm528 = vcmp.eq.f32.partialorder %v482, 0.0
    %v529 = vand.u32 %v482, 2147483648
    %v530 = vsel %vm528, %v529, %v527
    %v531 = vld [vmem:[%s2] sm:$0xff]
    %v532 = vld [vmem:[%s2 + $0x8] sm:$0xff]
    %v533 = vld [vmem:[%s2 + $0x10] sm:$0xff]
    %v534 = vld [vmem:[%s2 + $0x18] sm:$0xff]
    %v535 = vadd.f32 %v494, 1e-08
    %v536 = vadd.f32 %v506, 1e-08
    %v537 = vadd.f32 %v518, 1e-08
    %v538 = vadd.f32 %v530, 1e-08
    %v539 = vrcp.pop %v535
    %v540 = vmul.f32 %v535, %v539
    %v541 = vsub.f32 1.0, %v540
    %v542 = vmul.f32 %v539, %v541
    %v543 = vadd.f32 %v539, %v542
    %vm544 = vweird.f32 %v535
    %vm545 = vweird.f32 %v539
    %vm546 = vmor %vm544, %vm545
    %v547 = vsel %vm546, %v539, %v543
    %v548 = vand.u32 2147483647, %v535
    %vm549 = vcmp.eq.f32.partialorder %v548, 8.507059e+37
    %v550 = vand.u32 %v535, 2147483648
    %v551 = vor.u32 1.1754944e-38, %v550
    %v552 = vsel %vm549, %v551, %v547
    %v553 = vmul.f32 %v531, %v552
    %v554 = vrcp.pop %v536
    %v555 = vmul.f32 %v536, %v554
    %v556 = vsub.f32 1.0, %v555
    %v557 = vmul.f32 %v554, %v556
    %v558 = vadd.f32 %v554, %v557
    %vm559 = vweird.f32 %v536
    %vm560 = vweird.f32 %v554
    %vm561 = vmor %vm559, %vm560
    %v562 = vsel %vm561, %v554, %v558
    %v563 = vand.u32 2147483647, %v536
    %vm564 = vcmp.eq.f32.partialorder %v563, 8.507059e+37
    %v565 = vand.u32 %v536, 2147483648
    %v566 = vor.u32 1.1754944e-38, %v565
    %v567 = vsel %vm564, %v566, %v562
    %v568 = vmul.f32 %v532, %v567
    %v569 = vrcp.pop %v537
    %v570 = vmul.f32 %v537, %v569
    %v571 = vsub.f32 1.0, %v570
    %v572 = vmul.f32 %v569, %v571
    %v573 = vadd.f32 %v569, %v572
    %vm574 = vweird.f32 %v537
    %vm575 = vweird.f32 %v569
    %vm576 = vmor %vm574, %vm575
    %v577 = vsel %vm576, %v569, %v573
    %v578 = vand.u32 2147483647, %v537
    %vm579 = vcmp.eq.f32.partialorder %v578, 8.507059e+37
    %v580 = vand.u32 %v537, 2147483648
    %v581 = vor.u32 1.1754944e-38, %v580
    %v582 = vsel %vm579, %v581, %v577
    %v583 = vmul.f32 %v533, %v582
    %v584 = vrcp.pop %v538
    %v585 = vmul.f32 %v538, %v584
    %v586 = vsub.f32 1.0, %v585
    %v587 = vmul.f32 %v584, %v586
    %v588 = vadd.f32 %v584, %v587
    %vm589 = vweird.f32 %v538
    %vm590 = vweird.f32 %v584
    %vm591 = vmor %vm589, %vm590
    %v592 = vsel %vm591, %v584, %v588
    %v593 = vand.u32 2147483647, %v538
    %vm594 = vcmp.eq.f32.partialorder %v593, 8.507059e+37
    %v595 = vand.u32 %v538, 2147483648
    %v596 = vor.u32 1.1754944e-38, %v595
    %v597 = vsel %vm594, %v596, %v592
    %v598 = vmul.f32 %v534, %v597
    %600 = vset.pattern.permute.xlu0 0
    %601 = vperm.xlu0 %600, %v553
    %v602 = vpop.permute.xlu0 %601
    %605 = vset.pattern.permute.xlu0 0
    %606 = vperm.xlu0 %605, %v568
    %v607 = vpop.permute.xlu0 %606
    %610 = vset.pattern.permute.xlu0 0
    %611 = vperm.xlu0 %610, %v583
    %v612 = vpop.permute.xlu0 %611
    %615 = vset.pattern.permute.xlu0 0
    %616 = vperm.xlu0 %615, %v598
    %v617 = vpop.permute.xlu0 %616
    %v619 = vmul.f32 %v455, %v602
    %v620 = vmul.f32 %v456, %v602
    %v621 = vmul.f32 %v457, %v607
    %v622 = vmul.f32 %v458, %v607
    %v623 = vmul.f32 %v459, %v612
    %v624 = vmul.f32 %v460, %v612
    %v625 = vmul.f32 %v461, %v617
    %v626 = vmul.f32 %v462, %v617
    %627 = vst [vmem:[%s3] sm:$0xff] %v619
    %628 = vst [vmem:[%s3 + $0x8] sm:$0xff] %v620
    %629 = vst [vmem:[%s3 + $0x10] sm:$0xff] %v621
    %630 = vst [vmem:[%s3 + $0x18] sm:$0xff] %v622
    %631 = vst [vmem:[%s3 + $0x20] sm:$0xff] %v623
    %632 = vst [vmem:[%s3 + $0x28] sm:$0xff] %v624
    %633 = vst [vmem:[%s3 + $0x30] sm:$0xff] %v625
    %634 = vst [vmem:[%s3 + $0x38] sm:$0xff] %v626
    // Predicated region
    $region14: #{model_forward.3} parent=1 // pred_check
      _
    $region15: #{model_forward.3} parent=1 // pred_check_branch
      %636 = sbr.rel (0) target = $region17
    $region16: #{model_forward.3} parent=1 // pred_region
      _
    $region17: #{model_forward.3} parent=1 // pred_fallthru
      _
    // Predicated region
    $region18: #{model_forward.3} parent=1 // pred_check
      _
    $region19: #{model_forward.3} parent=1 // pred_check_branch
      %638 = sbr.rel (0) target = $region21
    $region20: #{model_forward.3} parent=1 // pred_region
      _
    $region21: #{model_forward.3} parent=1 // pred_fallthru
      _
    %639 = vsyncpa [#allocation5], 1

// kernel: reverse.3
$region0: #{reverse.3}
  %s0 = inlined_call_operand.vmem [shape: f32[2,1,1536], index: 0, kind: input, shape index: {}]
  %s1 = inlined_call_operand.vmem [shape: f32[2,1,1536], index: 1, kind: output, shape index: {}]
  %v2 = vlaneseq
  %v3 = vsub.s32 127, %v2
  %4 = vset.pattern.permute.xlu0 %v3
  $region1: #{reverse.3} parent=0
    #allocation0 [shape = 'u8[4096]{0}', space=vmem, size = 0x1000, scoped, tag = 'operand span for operand 0']
    #allocation1 [shape = 'u8[2048]{0}', space=vmem, size = 0x800, scoped, tag = 'packed  for operand 0']
    #allocation2 [shape = 'u8[4096]{0}', space=vmem, size = 0x1000, scoped, tag = 'operand span for operand 1']
    #allocation3 [shape = 'u8[2048]{0}', space=vmem, size = 0x800, scoped, tag = 'packed  for operand 1']
    loop: start=0, step=1, limit=14
    $region2: #{reverse.3} parent=1 // loop_pre_header
      _
    $region3: #{reverse.3} parent=1 // loop_header
      %s6 = sphi 0, %s10
      %p7 = scmp.ge.s32.totalorder %s6, 14
      %s13 = sphi 0, %s32
      %s14 = sphi 0, %s28
      %s15 = sphi 0, %s24
      %s16 = sphi 0, %s13
      %s17 = sphi 0, %s14
      %s18 = sphi 0, %s15
      %s19 = sphi 0, %s16
      %s20 = sphi 0, %s17
      %s21 = sphi 0, %s18
    $region4: #{reverse.3} parent=1 // loop_header_branch
      %9 = sbr.rel (%p7) target = $region8
    $region5: #{reverse.3} parent=1 // loop_body
      %s11 = ssub.s32 %s6, 1
      %s12 = ssub.s32 %s6, 2
      %s22 = sadd.s32 1, %s15
      %p23 = scmp.ge.s32.totalorder %s22, 12
      %s24 = scalar_select %p23, 0, %s22
      %s25 = sadd.s32 1, %s14
      %s26 = scalar_select %p23, %s25, %s14
      %p27 = scmp.ge.s32.totalorder %s26, 1
      %s28 = scalar_select %p27, 0, %s26
      %s29 = sadd.s32 1, %s13
      %s30 = scalar_select %p27, %s29, %s13
      %p31 = scmp.ge.s32.totalorder %s30, 1
      %s32 = scalar_select %p31, 0, %s30
      %p33 = scmp.le.s32.totalorder 1, %s6
      %p34 = scmp.lt.s32.totalorder %s6, 13
      %p35 = pnand %p33, %p34
      %p36 = pneg %p35
      // Predicated region
      $region9: #{reverse.3} parent=5 // pred_check
        _
      $region10: #{reverse.3} parent=5 // pred_check_branch
        %38 = sbr.rel (%p35) target = $region12
      $region11: #{reverse.3} parent=5 // pred_region
        %s39 = ssub.s32 %s6, 1
      $region12: #{reverse.3} parent=5 // pred_fallthru
        _
      %p40 = scmp.lt.s32.totalorder %s6, 12
      // Predicated region
      $region13: #{reverse.3} parent=5 // pred_check
        %p41 = pneg %p40
      $region14: #{reverse.3} parent=5 // pred_check_branch
        %43 = sbr.rel (%p41) target = $region16
      $region15: #{reverse.3} parent=5 // pred_region
        %s44 = sand.u32 %s6, 1
        %s45 = sand.u32 %s6, 1
        %s46 = smul.addr %s45, 2
        %s47 = scalar_lea.vmem [#allocation1], %s46
        %s48 = ssub.s32 11, %s15
        %s49 = smul.addr %s14, 12
        %s50 = sadd.s32 %s48, %s49
        %s51 = smul.addr %s13, 12
        %s52 = sadd.s32 %s50, %s51
        %s53 = smul.addr %s52, 2
        %s54 = scalar_lea.vmem %s0, %s53
        // Predicated region
        $region17: #{reverse.3} parent=15 // pred_check
          _
        $region18: #{reverse.3} parent=15 // pred_check_branch
          %56 = sbr.rel (0) target = $region20
        $region19: #{reverse.3} parent=15 // pred_region
          // Predicated region
          $region21: #{reverse.3} parent=19 // pred_check
            _
          $region22: #{reverse.3} parent=19 // pred_check_branch
            %58 = sbr.rel target = $region24
          $region23: #{reverse.3} parent=19 // pred_region
            // Predicated region
            $region36: #{reverse.3} parent=23 // pred_check
              _
            $region37: #{reverse.3} parent=23 // pred_check_branch
              %74 = sbr.rel (0) target = $region39
            $region38: #{reverse.3} parent=23 // pred_region
              %s76 = ssub.s32 4, 1
              loop: start=0, step=1, limit=1
              $region40: #{reverse.3} parent=38 // loop_pre_header
                _
              $region41: #{reverse.3} parent=38 // loop_header
                %s78 = sphi 0, %s82
                %p79 = scmp.ge.s32.totalorder %s78, 1
                %s83 = sphi %s54, %s54
                %s84 = sphi %s47, %s47
              $region42: #{reverse.3} parent=38 // loop_header_branch
                %81 = sbr.rel (%p79) target = $region46
              $region43: #{reverse.3} parent=38 // loop_body
                %v85 = vld [vmem:[%s83] sm:%s76]
                %86 = vst [vmem:[%s84] sm:%s76] %v85
              $region44: #{reverse.3} parent=38 // loop_footer
                %s82 = sadd.s32 1, %s78
              $region45: #{reverse.3} parent=38 // loop_footer_branch
                %77 = sbr.rel target = $region41
              $region46: #{reverse.3} parent=38 // loop_exit
                _
            $region39: #{reverse.3} parent=23 // pred_fallthru
              _
          $region24: #{reverse.3} parent=19 // pred_fallthru
            _
          // Predicated region
          $region25: #{reverse.3} parent=19 // pred_check
            _
          $region26: #{reverse.3} parent=19 // pred_check_branch
            %60 = sbr.rel (0) target = $region28
          $region27: #{reverse.3} parent=19 // pred_region
            %s62 = ssub.s32 4, 1
            loop: start=0, step=1, limit=1
            $region29: #{reverse.3} parent=27 // loop_pre_header
              _
            $region30: #{reverse.3} parent=27 // loop_header
              %s64 = sphi 0, %s68
              %p65 = scmp.ge.s32.totalorder %s64, 1
              %s69 = sphi %s54, %s54
              %s70 = sphi %s47, %s47
            $region31: #{reverse.3} parent=27 // loop_header_branch
              %67 = sbr.rel (%p65) target = $region35
            $region32: #{reverse.3} parent=27 // loop_body
              %v71 = vld [vmem:[%s69] sm:%s62]
              %72 = vst [vmem:[%s70] sm:%s62] %v71
            $region33: #{reverse.3} parent=27 // loop_footer
              %s68 = sadd.s32 1, %s64
            $region34: #{reverse.3} parent=27 // loop_footer_branch
              %63 = sbr.rel target = $region30
            $region35: #{reverse.3} parent=27 // loop_exit
              _
          $region28: #{reverse.3} parent=19 // pred_fallthru
            _
        $region20: #{reverse.3} parent=15 // pred_fallthru
          _
        %87 = vnop
      $region16: #{reverse.3} parent=5 // pred_fallthru
        _
      %p88 = scmp.le.s32.totalorder 1, %s6
      %p89 = scmp.lt.s32.totalorder %s6, 13
      %p90 = pnand %p88, %p89
      %p91 = pneg %p90
      // Predicated region
      $region47: #{reverse.3} parent=5 // pred_check
        _
      $region48: #{reverse.3} parent=5 // pred_check_branch
        %93 = sbr.rel (%p90) target = $region50
      $region49: #{reverse.3} parent=5 // pred_region
        %s94 = ssub.s32 %s6, 1
        %s95 = sand.u32 %s11, 1
        %s96 = sand.u32 %s11, 1
        %s97 = smul.addr %s96, 2
        %s98 = scalar_lea.vmem [#allocation1], %s97
        %s99 = sand.u32 %s11, 1
        %s100 = sand.u32 %s11, 1
        %s101 = smul.addr %s100, 2
        %s102 = scalar_lea.vmem [#allocation1], %s101
        %s103 = sand.u32 %s11, 1
        %s104 = sand.u32 %s11, 1
        %s105 = smul.addr %s104, 2
        %s106 = scalar_lea.vmem [#allocation3], %s105
        %s108 = ssub.s32 4, 1
        %v109 = vld [vmem:[%s102] sm:%s108]
        %110 = vst [vmem:[#allocation0] sm:%s108] %v109
        %s111 = ssub.s32 11, %s18
        %v112 = vld [vmem:[#allocation0] sm:$0xff]
        %113 = vperm.xlu0 %4, %v112
        %v114 = vpop.permute.xlu0 %113
        %115 = vst [vmem:[#allocation2] sm:$0xff] %v114
        %s117 = ssub.s32 4, 1
        %v118 = vld [vmem:[#allocation2] sm:%s117]
        %s120 = ssub.s32 4, 1
        %121 = vst [vmem:[%s106] sm:%s120] %v118
        %s122 = sand.u32 %s11, 1
        %s123 = sand.u32 %s11, 1
        %s124 = smul.addr %s123, 2
        %s125 = scalar_lea.vmem [#allocation3], %s124
        %s126 = smul.addr %s17, 12
        %s127 = sadd.s32 %s18, %s126
        %s128 = smul.addr %s16, 12
        %s129 = sadd.s32 %s127, %s128
        %s130 = smul.addr %s129, 2
        %s131 = scalar_lea.vmem %s1, %s130
        // Predicated region
        $region51: #{reverse.3} parent=49 // pred_check
          _
        $region52: #{reverse.3} parent=49 // pred_check_branch
          %133 = sbr.rel (0) target = $region54
        $region53: #{reverse.3} parent=49 // pred_region
          // Predicated region
          $region55: #{reverse.3} parent=53 // pred_check
            _
          $region56: #{reverse.3} parent=53 // pred_check_branch
            %135 = sbr.rel target = $region58
          $region57: #{reverse.3} parent=53 // pred_region
            // Predicated region
            $region70: #{reverse.3} parent=57 // pred_check
              _
            $region71: #{reverse.3} parent=57 // pred_check_branch
              %151 = sbr.rel (0) target = $region73
            $region72: #{reverse.3} parent=57 // pred_region
              %s153 = ssub.s32 4, 1
              loop: start=0, step=1, limit=1
              $region74: #{reverse.3} parent=72 // loop_pre_header
                _
              $region75: #{reverse.3} parent=72 // loop_header
                %s155 = sphi 0, %s159
                %p156 = scmp.ge.s32.totalorder %s155, 1
                %s160 = sphi %s125, %s125
                %s161 = sphi %s131, %s131
              $region76: #{reverse.3} parent=72 // loop_header_branch
                %158 = sbr.rel (%p156) target = $region80
              $region77: #{reverse.3} parent=72 // loop_body
                %v162 = vld [vmem:[%s160] sm:%s153]
                %163 = vst [vmem:[%s161] sm:%s153] %v162
              $region78: #{reverse.3} parent=72 // loop_footer
                %s159 = sadd.s32 1, %s155
              $region79: #{reverse.3} parent=72 // loop_footer_branch
                %154 = sbr.rel target = $region75
              $region80: #{reverse.3} parent=72 // loop_exit
                _
            $region73: #{reverse.3} parent=57 // pred_fallthru
              _
          $region58: #{reverse.3} parent=53 // pred_fallthru
            _
          // Predicated region
          $region59: #{reverse.3} parent=53 // pred_check
            _
          $region60: #{reverse.3} parent=53 // pred_check_branch
            %137 = sbr.rel (0) target = $region62
          $region61: #{reverse.3} parent=53 // pred_region
            %s139 = ssub.s32 4, 1
            loop: start=0, step=1, limit=1
            $region63: #{reverse.3} parent=61 // loop_pre_header
              _
            $region64: #{reverse.3} parent=61 // loop_header
              %s141 = sphi 0, %s145
              %p142 = scmp.ge.s32.totalorder %s141, 1
              %s146 = sphi %s125, %s125
              %s147 = sphi %s131, %s131
            $region65: #{reverse.3} parent=61 // loop_header_branch
              %144 = sbr.rel (%p142) target = $region69
            $region66: #{reverse.3} parent=61 // loop_body
              %v148 = vld [vmem:[%s146] sm:%s139]
              %149 = vst [vmem:[%s147] sm:%s139] %v148
            $region67: #{reverse.3} parent=61 // loop_footer
              %s145 = sadd.s32 1, %s141
            $region68: #{reverse.3} parent=61 // loop_footer_branch
              %140 = sbr.rel target = $region64
            $region69: #{reverse.3} parent=61 // loop_exit
              _
          $region62: #{reverse.3} parent=53 // pred_fallthru
            _
        $region54: #{reverse.3} parent=49 // pred_fallthru
          _
        %164 = vnop
      $region50: #{reverse.3} parent=5 // pred_fallthru
        _
      %p165 = scmp.le.s32.totalorder 2, %s6
      // Predicated region
      $region81: #{reverse.3} parent=5 // pred_check
        %p166 = pneg %p165
      $region82: #{reverse.3} parent=5 // pred_check_branch
        %168 = sbr.rel (%p166) target = $region84
      $region83: #{reverse.3} parent=5 // pred_region
        %s169 = ssub.s32 %s6, 2
        %s170 = sand.u32 %s12, 1
        %s171 = sand.u32 %s12, 1
        %s172 = smul.addr %s171, 2
        %s173 = scalar_lea.vmem [#allocation3], %s172
      $region84: #{reverse.3} parent=5 // pred_fallthru
        _
    $region6: #{reverse.3} parent=1 // loop_footer
      %s10 = sadd.s32 1, %s6
    $region7: #{reverse.3} parent=1 // loop_footer_branch
      %5 = sbr.rel target = $region3
    $region8: #{reverse.3} parent=1 // loop_exit
      _

// kernel: model_forward.4
$region0: #{model_forward.4}
  #allocation0 [shape = 'u32[]', space=smem, size = 0x4, offset = 0x4, fixed_abs, tag = 'smem constant byte address 0x4 - core index']
  #allocation1 [shape = 'u32[72,128]{1,0:T(1,128)}', space=vmem, size = 0x9000, scoped, tag = 'internal scratch']
  %s0 = inlined_call_operand.vmem [shape: f32[2,16,13,128], index: 0, kind: input, shape index: {}]
  %s1 = inlined_call_operand.vmem [shape: f32[2,16,13,128], index: 1, kind: input, shape index: {}]
  %s2 = inlined_call_operand.vmem [shape: f32[2,16,1,1], index: 2, kind: input, shape index: {}]
  %s3 = inlined_call_operand.vmem [shape: f32[2,16,13,1], index: 3, kind: input, shape index: {}]
  %s4 = inlined_call_operand.vmem [shape: f32[2,16,13,1], index: 4, kind: input, shape index: {}]
  %s5 = inlined_call_operand.vmem [shape: f32[2,1,13,128], index: 5, kind: output, shape index: {0}]
  %s6 = inlined_call_operand.vmem [shape: f32[2,1,13,128], index: 6, kind: output, shape index: {1}]
  %7 = xla_tuple %s5, %s6
  %s8 = sld [smem:[#allocation0]]
  $region61: #{model_forward.4} parent=0
    _
  %s10 = ssub.s32 1, %s8
  %s11 = scalar_select 0, %s10, %s8
  loop: start=0, step=1, limit=4
  $region2: #{model_forward.4} parent=0 // loop_pre_header
    _
  $region3: #{model_forward.4} parent=0 // loop_header
    %s13 = sphi 0, %s17
    %p14 = scmp.ge.s32.totalorder %s13, 4
    %s23 = sphi 0, %s25
    %s26 = sphi 0, %s23
    %s27 = sphi 0, %s26
    %s43 = sphi 0, %s27
    %s49 = sphi 0, %s51
    %s52 = sphi 0, %s49
    %s53 = sphi 0, %s52
    %s69 = sphi 0, %s53
    %s75 = sphi 0, %s77
    %s78 = sphi 0, %s75
    %s79 = sphi 0, %s78
    %s95 = sphi 0, %s79
    %s101 = sphi 0, %s103
    %s104 = sphi 0, %s101
    %s105 = sphi 0, %s104
    %s121 = sphi 0, %s105
    %s127 = sphi 0, %s129
    %s130 = sphi 0, %s127
    %s131 = sphi 0, %s130
    %s147 = sphi 0, %s131
    %s153 = sphi 0, %s155
    %s156 = sphi 0, %s153
    %s157 = sphi 0, %s156
    %s173 = sphi 0, %s157
    %s179 = sphi 0, %s181
    %s182 = sphi 0, %s179
    %s183 = sphi 0, %s182
    %s199 = sphi 0, %s183
  $region4: #{model_forward.4} parent=0 // loop_header_branch
    %16 = sbr.rel (%p14) target = $region8
  $region5: #{model_forward.4} parent=0 // loop_body
    %s18 = ssub.s32 %s13, 1
    %s19 = ssub.s32 %s13, 2
    %s20 = sadd.s32 %s13, 1
    %s21 = ssub.s32 %s13, %s20
    %p22 = scmp.eq.s32.totalorder %s21, 0
    %s24 = sadd.s32 %s23, 1
    %s25 = scalar_select %p22, %s23, %s24
    %p28 = pneg %p22
    %p29 = scmp.eq.s32.totalorder %s13, 1
    %p30 = por %p28, %p29
    %p31 = scmp.ne.s32.totalorder %s23, %s26
    %p32 = scmp.eq.s32.totalorder %s13, 0
    %p33 = por %p31, %p32
    %p34 = scmp.ne.s32.totalorder %s23, %s26
    %p35 = scmp.eq.s32.totalorder %s18, 1
    %p36 = por %p34, %p35
    %p37 = scmp.ne.s32.totalorder %s26, %s27
    %p38 = scmp.eq.s32.totalorder %s18, 0
    %p39 = por %p37, %p38
    %p40 = scmp.ne.s32.totalorder %s26, %s27
    %p41 = scmp.eq.s32.totalorder %s19, 1
    %p42 = por %p40, %p41
    %p44 = scmp.ne.s32.totalorder %s27, %s43
    %p45 = scmp.eq.s32.totalorder %s19, 0
    %p46 = por %p44, %p45
    %s47 = ssub.s32 %s13, %s20
    %p48 = scmp.eq.s32.totalorder %s47, 0
    %s50 = sadd.s32 %s49, 1
    %s51 = scalar_select %p48, %s49, %s50
    %p54 = pneg %p48
    %p55 = scmp.eq.s32.totalorder %s13, 1
    %p56 = por %p54, %p55
    %p57 = scmp.ne.s32.totalorder %s49, %s52
    %p58 = scmp.eq.s32.totalorder %s13, 0
    %p59 = por %p57, %p58
    %p60 = scmp.ne.s32.totalorder %s49, %s52
    %p61 = scmp.eq.s32.totalorder %s18, 1
    %p62 = por %p60, %p61
    %p63 = scmp.ne.s32.totalorder %s52, %s53
    %p64 = scmp.eq.s32.totalorder %s18, 0
    %p65 = por %p63, %p64
    %p66 = scmp.ne.s32.totalorder %s52, %s53
    %p67 = scmp.eq.s32.totalorder %s19, 1
    %p68 = por %p66, %p67
    %p70 = scmp.ne.s32.totalorder %s53, %s69
    %p71 = scmp.eq.s32.totalorder %s19, 0
    %p72 = por %p70, %p71
    %s73 = ssub.s32 %s13, %s20
    %p74 = scmp.eq.s32.totalorder %s73, 0
    %s76 = sadd.s32 %s75, 1
    %s77 = scalar_select %p74, %s75, %s76
    %p80 = pneg %p74
    %p81 = scmp.eq.s32.totalorder %s13, 1
    %p82 = por %p80, %p81
    %p83 = scmp.ne.s32.totalorder %s75, %s78
    %p84 = scmp.eq.s32.totalorder %s13, 0
    %p85 = por %p83, %p84
    %p86 = scmp.ne.s32.totalorder %s75, %s78
    %p87 = scmp.eq.s32.totalorder %s18, 1
    %p88 = por %p86, %p87
    %p89 = scmp.ne.s32.totalorder %s78, %s79
    %p90 = scmp.eq.s32.totalorder %s18, 0
    %p91 = por %p89, %p90
    %p92 = scmp.ne.s32.totalorder %s78, %s79
    %p93 = scmp.eq.s32.totalorder %s19, 1
    %p94 = por %p92, %p93
    %p96 = scmp.ne.s32.totalorder %s79, %s95
    %p97 = scmp.eq.s32.totalorder %s19, 0
    %p98 = por %p96, %p97
    %s99 = ssub.s32 %s13, %s20
    %p100 = scmp.eq.s32.totalorder %s99, 0
    %s102 = sadd.s32 %s101, 1
    %s103 = scalar_select %p100, %s101, %s102
    %p106 = pneg %p100
    %p107 = scmp.eq.s32.totalorder %s13, 1
    %p108 = por %p106, %p107
    %p109 = scmp.ne.s32.totalorder %s101, %s104
    %p110 = scmp.eq.s32.totalorder %s13, 0
    %p111 = por %p109, %p110
    %p112 = scmp.ne.s32.totalorder %s101, %s104
    %p113 = scmp.eq.s32.totalorder %s18, 1
    %p114 = por %p112, %p113
    %p115 = scmp.ne.s32.totalorder %s104, %s105
    %p116 = scmp.eq.s32.totalorder %s18, 0
    %p117 = por %p115, %p116
    %p118 = scmp.ne.s32.totalorder %s104, %s105
    %p119 = scmp.eq.s32.totalorder %s19, 1
    %p120 = por %p118, %p119
    %p122 = scmp.ne.s32.totalorder %s105, %s121
    %p123 = scmp.eq.s32.totalorder %s19, 0
    %p124 = por %p122, %p123
    %s125 = ssub.s32 %s13, %s20
    %p126 = scmp.eq.s32.totalorder %s125, 0
    %s128 = sadd.s32 %s127, 1
    %s129 = scalar_select %p126, %s127, %s128
    %p132 = pneg %p126
    %p133 = scmp.eq.s32.totalorder %s13, 1
    %p134 = por %p132, %p133
    %p135 = scmp.ne.s32.totalorder %s127, %s130
    %p136 = scmp.eq.s32.totalorder %s13, 0
    %p137 = por %p135, %p136
    %p138 = scmp.ne.s32.totalorder %s127, %s130
    %p139 = scmp.eq.s32.totalorder %s18, 1
    %p140 = por %p138, %p139
    %p141 = scmp.ne.s32.totalorder %s130, %s131
    %p142 = scmp.eq.s32.totalorder %s18, 0
    %p143 = por %p141, %p142
    %p144 = scmp.ne.s32.totalorder %s130, %s131
    %p145 = scmp.eq.s32.totalorder %s19, 1
    %p146 = por %p144, %p145
    %p148 = scmp.ne.s32.totalorder %s131, %s147
    %p149 = scmp.eq.s32.totalorder %s19, 0
    %p150 = por %p148, %p149
    %s151 = ssub.s32 %s13, %s20
    %p152 = scmp.eq.s32.totalorder %s151, 0
    %s154 = sadd.s32 %s153, 1
    %s155 = scalar_select %p152, %s153, %s154
    %p158 = pneg %p152
    %p159 = scmp.eq.s32.totalorder %s13, 1
    %p160 = por %p158, %p159
    %p161 = scmp.ne.s32.totalorder %s153, %s156
    %p162 = scmp.eq.s32.totalorder %s13, 0
    %p163 = por %p161, %p162
    %p164 = scmp.ne.s32.totalorder %s153, %s156
    %p165 = scmp.eq.s32.totalorder %s18, 1
    %p166 = por %p164, %p165
    %p167 = scmp.ne.s32.totalorder %s156, %s157
    %p168 = scmp.eq.s32.totalorder %s18, 0
    %p169 = por %p167, %p168
    %p170 = scmp.ne.s32.totalorder %s156, %s157
    %p171 = scmp.eq.s32.totalorder %s19, 1
    %p172 = por %p170, %p171
    %p174 = scmp.ne.s32.totalorder %s157, %s173
    %p175 = scmp.eq.s32.totalorder %s19, 0
    %p176 = por %p174, %p175
    %s177 = ssub.s32 %s13, %s20
    %p178 = scmp.eq.s32.totalorder %s177, 0
    %s180 = sadd.s32 %s179, 1
    %s181 = scalar_select %p178, %s179, %s180
    %p184 = pneg %p178
    %p185 = scmp.eq.s32.totalorder %s13, 1
    %p186 = por %p184, %p185
    %p187 = scmp.ne.s32.totalorder %s179, %s182
    %p188 = scmp.eq.s32.totalorder %s13, 0
    %p189 = por %p187, %p188
    %p190 = scmp.ne.s32.totalorder %s179, %s182
    %p191 = scmp.eq.s32.totalorder %s18, 1
    %p192 = por %p190, %p191
    %p193 = scmp.ne.s32.totalorder %s182, %s183
    %p194 = scmp.eq.s32.totalorder %s18, 0
    %p195 = por %p193, %p194
    %p196 = scmp.ne.s32.totalorder %s182, %s183
    %p197 = scmp.eq.s32.totalorder %s19, 1
    %p198 = por %p196, %p197
    %p200 = scmp.ne.s32.totalorder %s183, %s199
    %p201 = scmp.eq.s32.totalorder %s19, 0
    %p202 = por %p200, %p201
    %p203 = scmp.le.s32.totalorder 1, %s13
    %p204 = scmp.lt.s32.totalorder %s13, 3
    %p205 = pnand %p203, %p204
    %p206 = pneg %p205
    // Predicated region
    $region9: #{model_forward.4} parent=5 // pred_check
      _
    $region10: #{model_forward.4} parent=5 // pred_check_branch
      %208 = sbr.rel (%p205) target = $region12
    $region11: #{model_forward.4} parent=5 // pred_region
      %s209 = ssub.s32 %s13, 1
    $region12: #{model_forward.4} parent=5 // pred_fallthru
      _
    %p210 = scmp.lt.s32.totalorder %s13, 2
    // Predicated region
    $region13: #{model_forward.4} parent=5 // pred_check
      %p211 = pneg %p210
    $region14: #{model_forward.4} parent=5 // pred_check_branch
      %213 = sbr.rel (%p211) target = $region16
    $region15: #{model_forward.4} parent=5 // pred_region
      // Predicated region
      $region17: #{model_forward.4} parent=15 // pred_check
        %p214 = pneg %p33
      $region18: #{model_forward.4} parent=15 // pred_check_branch
        %216 = sbr.rel (%p214) target = $region20
      $region19: #{model_forward.4} parent=15 // pred_region
        %p217 = scmp.lt.s32.totalorder %s13, 1
        %s218 = scalar_select %p217, %s13, 1
        %s219 = smul.addr %s218, 32
        %s220 = smul.addr %s219, 8
        %s221 = scalar_lea.vmem %s0, %s220
      $region20: #{model_forward.4} parent=15 // pred_fallthru
        _
      // Predicated region
      $region21: #{model_forward.4} parent=15 // pred_check
        %p222 = pneg %p59
      $region22: #{model_forward.4} parent=15 // pred_check_branch
        %224 = sbr.rel (%p222) target = $region24
      $region23: #{model_forward.4} parent=15 // pred_region
        %p225 = scmp.lt.s32.totalorder %s13, 1
        %s226 = scalar_select %p225, %s13, 1
        %s227 = smul.addr %s226, 32
        %s228 = smul.addr %s227, 8
        %s229 = scalar_lea.vmem %s1, %s228
      $region24: #{model_forward.4} parent=15 // pred_fallthru
        _
      // Predicated region
      $region25: #{model_forward.4} parent=15 // pred_check
        %p230 = pneg %p85
      $region26: #{model_forward.4} parent=15 // pred_check_branch
        %232 = sbr.rel (%p230) target = $region28
      $region27: #{model_forward.4} parent=15 // pred_region
        %p233 = scmp.lt.s32.totalorder %s13, 1
        %s234 = scalar_select %p233, %s13, 1
        %s235 = smul.addr %s234, 16
        %s236 = scalar_lea.vmem %s2, %s235
      $region28: #{model_forward.4} parent=15 // pred_fallthru
        _
      // Predicated region
      $region29: #{model_forward.4} parent=15 // pred_check
        %p237 = pneg %p111
      $region30: #{model_forward.4} parent=15 // pred_check_branch
        %239 = sbr.rel (%p237) target = $region32
      $region31: #{model_forward.4} parent=15 // pred_region
        %p240 = scmp.lt.s32.totalorder %s13, 1
        %s241 = scalar_select %p240, %s13, 1
        %s242 = smul.addr %s241, 32
        %s243 = smul.addr %s242, 8
        %s244 = scalar_lea.vmem %s3, %s243
      $region32: #{model_forward.4} parent=15 // pred_fallthru
        _
      // Predicated region
      $region33: #{model_forward.4} parent=15 // pred_check
        %p245 = pneg %p137
      $region34: #{model_forward.4} parent=15 // pred_check_branch
        %247 = sbr.rel (%p245) target = $region36
      $region35: #{model_forward.4} parent=15 // pred_region
        %p248 = scmp.lt.s32.totalorder %s13, 1
        %s249 = scalar_select %p248, %s13, 1
        %s250 = smul.addr %s249, 32
        %s251 = smul.addr %s250, 8
        %s252 = scalar_lea.vmem %s4, %s251
      $region36: #{model_forward.4} parent=15 // pred_fallthru
        _
    $region16: #{model_forward.4} parent=5 // pred_fallthru
      _
    %p253 = scmp.le.s32.totalorder 1, %s13
    %p254 = scmp.lt.s32.totalorder %s13, 3
    %p255 = pnand %p253, %p254
    %p256 = pneg %p255
    // Predicated region
    $region37: #{model_forward.4} parent=5 // pred_check
      _
    $region38: #{model_forward.4} parent=5 // pred_check_branch
      %258 = sbr.rel (%p255) target = $region40
    $region39: #{model_forward.4} parent=5 // pred_region
      %s259 = ssub.s32 %s13, 1
      %p260 = scmp.lt.s32.totalorder %s18, 1
      %s261 = scalar_select %p260, %s18, 1
      %s262 = smul.addr %s261, 32
      %s263 = smul.addr %s262, 8
      %s264 = scalar_lea.vmem %s0, %s263
      %p265 = pneg %p39
      %p266 = pneg %p36
      %p267 = scmp.lt.s32.totalorder %s18, 1
      %s268 = scalar_select %p267, %s18, 1
      %s269 = smul.addr %s268, 32
      %s270 = smul.addr %s269, 8
      %s271 = scalar_lea.vmem %s1, %s270
      %p272 = pneg %p65
      %p273 = pneg %p62
      %p274 = scmp.lt.s32.totalorder %s18, 1
      %s275 = scalar_select %p274, %s18, 1
      %s276 = smul.addr %s275, 16
      %s277 = scalar_lea.vmem %s2, %s276
      %p278 = pneg %p91
      %p279 = pneg %p88
      %p280 = scmp.lt.s32.totalorder %s18, 1
      %s281 = scalar_select %p280, %s18, 1
      %s282 = smul.addr %s281, 32
      %s283 = smul.addr %s282, 8
      %s284 = scalar_lea.vmem %s3, %s283
      %p285 = pneg %p117
      %p286 = pneg %p114
      %p287 = scmp.lt.s32.totalorder %s18, 1
      %s288 = scalar_select %p287, %s18, 1
      %s289 = smul.addr %s288, 32
      %s290 = smul.addr %s289, 8
      %s291 = scalar_lea.vmem %s4, %s290
      %p292 = pneg %p143
      %p293 = pneg %p140
      %p294 = pneg %p169
      %p295 = pneg %p166
      %p296 = scmp.lt.s32.totalorder %s18, 1
      %s297 = scalar_select %p296, %s18, 1
      %s298 = smul.addr %s297, 2
      %s299 = smul.addr %s298, 8
      %s300 = scalar_lea.vmem %s5, %s299
      %p301 = pneg %p195
      %p302 = pneg %p192
      %p303 = scmp.lt.s32.totalorder %s18, 1
      %s304 = scalar_select %p303, %s18, 1
      %s305 = smul.addr %s304, 2
      %s306 = smul.addr %s305, 8
      %s307 = scalar_lea.vmem %s6, %s306
      %p308 = scmp.lt.s32.totalorder %s18, 1
      %s309 = scalar_select %p308, %s18, 1
      %s310 = smul.addr %s309, 32
      %s311 = smul.addr %s310, 8
      %s312 = scalar_lea.vmem %s0, %s311
      %p313 = scmp.lt.s32.totalorder %s18, 1
      %s314 = scalar_select %p313, %s18, 1
      %s315 = smul.addr %s314, 32
      %s316 = smul.addr %s315, 8
      %s317 = scalar_lea.vmem %s1, %s316
      %p318 = scmp.lt.s32.totalorder %s18, 1
      %s319 = scalar_select %p318, %s18, 1
      %s320 = smul.addr %s319, 16
      %s321 = scalar_lea.vmem %s2, %s320
      %p322 = scmp.lt.s32.totalorder %s18, 1
      %s323 = scalar_select %p322, %s18, 1
      %s324 = smul.addr %s323, 32
      %s325 = smul.addr %s324, 8
      %s326 = scalar_lea.vmem %s3, %s325
      %p327 = scmp.lt.s32.totalorder %s18, 1
      %s328 = scalar_select %p327, %s18, 1
      %s329 = smul.addr %s328, 32
      %s330 = smul.addr %s329, 8
      %s331 = scalar_lea.vmem %s4, %s330
      %p332 = scmp.lt.s32.totalorder %s18, 1
      %s333 = scalar_select %p332, %s18, 1
      %s334 = smul.addr %s333, 2
      %s335 = smul.addr %s334, 8
      %s336 = scalar_lea.vmem %s5, %s335
      %p337 = scmp.lt.s32.totalorder %s18, 1
      %s338 = scalar_select %p337, %s18, 1
      %s339 = smul.addr %s338, 2
      %s340 = smul.addr %s339, 8
      %s341 = scalar_lea.vmem %s6, %s340
      %v342 = vld [vmem:[%s312] sm:$0xff]
      %v343 = vld [vmem:[%s312 + $0x8] sm:$0x1f]
      %v344 = vld [vmem:[%s312 + $0x10] sm:$0xff]
      %v345 = vld [vmem:[%s312 + $0x18] sm:$0x1f]
      %v346 = vld [vmem:[%s312 + $0x20] sm:$0xff]
      %v347 = vld [vmem:[%s312 + $0x28] sm:$0x1f]
      %v348 = vld [vmem:[%s312 + $0x30] sm:$0xff]
      %v349 = vld [vmem:[%s312 + $0x38] sm:$0x1f]
      %v350 = vld [vmem:[%s312 + $0x40] sm:$0xff]
      %v351 = vld [vmem:[%s312 + $0x48] sm:$0x1f]
      %v352 = vld [vmem:[%s312 + $0x50] sm:$0xff]
      %v353 = vld [vmem:[%s312 + $0x58] sm:$0x1f]
      %v354 = vld [vmem:[%s312 + $0x60] sm:$0xff]
      %v355 = vld [vmem:[%s312 + $0x68] sm:$0x1f]
      %v356 = vld [vmem:[%s312 + $0x70] sm:$0xff]
      %v357 = vld [vmem:[%s312 + $0x78] sm:$0x1f]
      %v358 = vld [vmem:[%s312 + $0x80] sm:$0xff]
      %v359 = vld [vmem:[%s312 + $0x88] sm:$0x1f]
      %v360 = vld [vmem:[%s312 + $0x90] sm:$0xff]
      %v361 = vld [vmem:[%s312 + $0x98] sm:$0x1f]
      %v362 = vld [vmem:[%s312 + $0xa0] sm:$0xff]
      %v363 = vld [vmem:[%s312 + $0xa8] sm:$0x1f]
      %v364 = vld [vmem:[%s312 + $0xb0] sm:$0xff]
      %v365 = vld [vmem:[%s312 + $0xb8] sm:$0x1f]
      %v366 = vld [vmem:[%s312 + $0xc0] sm:$0xff]
      %v367 = vld [vmem:[%s312 + $0xc8] sm:$0x1f]
      %v368 = vld [vmem:[%s312 + $0xd0] sm:$0xff]
      %v369 = vld [vmem:[%s312 + $0xd8] sm:$0x1f]
      %v370 = vld [vmem:[%s312 + $0xe0] sm:$0xff]
      %v371 = vld [vmem:[%s312 + $0xe8] sm:$0x1f]
      %v372 = vld [vmem:[%s312 + $0xf0] sm:$0xff]
      %v373 = vld [vmem:[%s312 + $0xf8] sm:$0x1f]
      %v374 = vld [vmem:[%s317] sm:$0xff]
      %v375 = vld [vmem:[%s317 + $0x8] sm:$0x1f]
      %v376 = vld [vmem:[%s317 + $0x10] sm:$0xff]
      %v377 = vld [vmem:[%s317 + $0x18] sm:$0x1f]
      %v378 = vld [vmem:[%s317 + $0x20] sm:$0xff]
      %v379 = vld [vmem:[%s317 + $0x28] sm:$0x1f]
      %v380 = vld [vmem:[%s317 + $0x30] sm:$0xff]
      %v381 = vld [vmem:[%s317 + $0x38] sm:$0x1f]
      %v382 = vld [vmem:[%s317 + $0x40] sm:$0xff]
      %v383 = vld [vmem:[%s317 + $0x48] sm:$0x1f]
      %v384 = vld [vmem:[%s317 + $0x50] sm:$0xff]
      %v385 = vld [vmem:[%s317 + $0x58] sm:$0x1f]
      %v386 = vld [vmem:[%s317 + $0x60] sm:$0xff]
      %v387 = vld [vmem:[%s317 + $0x68] sm:$0x1f]
      %v388 = vld [vmem:[%s317 + $0x70] sm:$0xff]
      %v389 = vld [vmem:[%s317 + $0x78] sm:$0x1f]
      %v390 = vld [vmem:[%s317 + $0x80] sm:$0xff]
      %v391 = vld [vmem:[%s317 + $0x88] sm:$0x1f]
      %v392 = vld [vmem:[%s317 + $0x90] sm:$0xff]
      %v393 = vld [vmem:[%s317 + $0x98] sm:$0x1f]
      %v394 = vld [vmem:[%s317 + $0xa0] sm:$0xff]
      %v395 = vld [vmem:[%s317 + $0xa8] sm:$0x1f]
      %v396 = vld [vmem:[%s317 + $0xb0] sm:$0xff]
      %v397 = vld [vmem:[%s317 + $0xb8] sm:$0x1f]
      %v398 = vld [vmem:[%s317 + $0xc0] sm:$0xff]
      %v399 = vld [vmem:[%s317 + $0xc8] sm:$0x1f]
      %v400 = vld [vmem:[%s317 + $0xd0] sm:$0xff]
      %v401 = vld [vmem:[%s317 + $0xd8] sm:$0x1f]
      %v402 = vld [vmem:[%s317 + $0xe0] sm:$0xff]
      %v403 = vld [vmem:[%s317 + $0xe8] sm:$0x1f]
      %v404 = vld [vmem:[%s317 + $0xf0] sm:$0xff]
      %v405 = vld [vmem:[%s317 + $0xf8] sm:$0x1f]
      %v406 = vld [vmem:[%s321] sm:$0x1]
      %v407 = vld [vmem:[%s321 + $0x1] sm:$0x1]
      %v408 = vld [vmem:[%s321 + $0x2] sm:$0x1]
      %v409 = vld [vmem:[%s321 + $0x3] sm:$0x1]
      %v410 = vld [vmem:[%s321 + $0x4] sm:$0x1]
      %v411 = vld [vmem:[%s321 + $0x5] sm:$0x1]
      %v412 = vld [vmem:[%s321 + $0x6] sm:$0x1]
      %v413 = vld [vmem:[%s321 + $0x7] sm:$0x1]
      %v414 = vld [vmem:[%s321 + $0x8] sm:$0x1]
      %v415 = vld [vmem:[%s321 + $0x9] sm:$0x1]
      %v416 = vld [vmem:[%s321 + $0xa] sm:$0x1]
      %v417 = vld [vmem:[%s321 + $0xb] sm:$0x1]
      %v418 = vld [vmem:[%s321 + $0xc] sm:$0x1]
      %v419 = vld [vmem:[%s321 + $0xd] sm:$0x1]
      %v420 = vld [vmem:[%s321 + $0xe] sm:$0x1]
      %v421 = vld [vmem:[%s321 + $0xf] sm:$0x1]
      %v422 = vld [vmem:[%s326] sm:$0xff]
      %v423 = vld [vmem:[%s326 + $0x8] sm:$0x1f]
      %v424 = vld [vmem:[%s326 + $0x10] sm:$0xff]
      %v425 = vld [vmem:[%s326 + $0x18] sm:$0x1f]
      %v426 = vld [vmem:[%s326 + $0x20] sm:$0xff]
      %v427 = vld [vmem:[%s326 + $0x28] sm:$0x1f]
      %v428 = vld [vmem:[%s326 + $0x30] sm:$0xff]
      %v429 = vld [vmem:[%s326 + $0x38] sm:$0x1f]
      %v430 = vld [vmem:[%s326 + $0x40] sm:$0xff]
      %v431 = vld [vmem:[%s326 + $0x48] sm:$0x1f]
      %v432 = vld [vmem:[%s326 + $0x50] sm:$0xff]
      %v433 = vld [vmem:[%s326 + $0x58] sm:$0x1f]
      %v434 = vld [vmem:[%s326 + $0x60] sm:$0xff]
      %v435 = vld [vmem:[%s326 + $0x68] sm:$0x1f]
      %v436 = vld [vmem:[%s326 + $0x70] sm:$0xff]
      %v437 = vld [vmem:[%s326 + $0x78] sm:$0x1f]
      %v438 = vld [vmem:[%s326 + $0x80] sm:$0xff]
      %v439 = vld [vmem:[%s326 + $0x88] sm:$0x1f]
      %v440 = vld [vmem:[%s326 + $0x90] sm:$0xff]
      %v441 = vld [vmem:[%s326 + $0x98] sm:$0x1f]
      %v442 = vld [vmem:[%s326 + $0xa0] sm:$0xff]
      %v443 = vld [vmem:[%s326 + $0xa8] sm:$0x1f]
      %v444 = vld [vmem:[%s326 + $0xb0] sm:$0xff]
      %v445 = vld [vmem:[%s326 + $0xb8] sm:$0x1f]
      %v446 = vld [vmem:[%s326 + $0xc0] sm:$0xff]
      %v447 = vld [vmem:[%s326 + $0xc8] sm:$0x1f]
      %v448 = vld [vmem:[%s326 + $0xd0] sm:$0xff]
      %v449 = vld [vmem:[%s326 + $0xd8] sm:$0x1f]
      %v450 = vld [vmem:[%s326 + $0xe0] sm:$0xff]
      %v451 = vld [vmem:[%s326 + $0xe8] sm:$0x1f]
      %v452 = vld [vmem:[%s326 + $0xf0] sm:$0xff]
      %v453 = vld [vmem:[%s326 + $0xf8] sm:$0x1f]
      %v454 = vld [vmem:[%s331] sm:$0xff]
      %v455 = vld [vmem:[%s331 + $0x8] sm:$0x1f]
      %v456 = vld [vmem:[%s331 + $0x10] sm:$0xff]
      %v457 = vld [vmem:[%s331 + $0x18] sm:$0x1f]
      %v458 = vld [vmem:[%s331 + $0x20] sm:$0xff]
      %v459 = vld [vmem:[%s331 + $0x28] sm:$0x1f]
      %v460 = vld [vmem:[%s331 + $0x30] sm:$0xff]
      %v461 = vld [vmem:[%s331 + $0x38] sm:$0x1f]
      %v462 = vld [vmem:[%s331 + $0x40] sm:$0xff]
      %v463 = vld [vmem:[%s331 + $0x48] sm:$0x1f]
      %v464 = vld [vmem:[%s331 + $0x50] sm:$0xff]
      %v465 = vld [vmem:[%s331 + $0x58] sm:$0x1f]
      %v466 = vld [vmem:[%s331 + $0x60] sm:$0xff]
      %v467 = vld [vmem:[%s331 + $0x68] sm:$0x1f]
      %v468 = vld [vmem:[%s331 + $0x70] sm:$0xff]
      %v469 = vld [vmem:[%s331 + $0x78] sm:$0x1f]
      %v470 = vld [vmem:[%s331 + $0x80] sm:$0xff]
      %v471 = vld [vmem:[%s331 + $0x88] sm:$0x1f]
      %v472 = vld [vmem:[%s331 + $0x90] sm:$0xff]
      %v473 = vld [vmem:[%s331 + $0x98] sm:$0x1f]
      %v474 = vld [vmem:[%s331 + $0xa0] sm:$0xff]
      %v475 = vld [vmem:[%s331 + $0xa8] sm:$0x1f]
      %v476 = vld [vmem:[%s331 + $0xb0] sm:$0xff]
      %v477 = vld [vmem:[%s331 + $0xb8] sm:$0x1f]
      %v478 = vld [vmem:[%s331 + $0xc0] sm:$0xff]
      %v479 = vld [vmem:[%s331 + $0xc8] sm:$0x1f]
      %v480 = vld [vmem:[%s331 + $0xd0] sm:$0xff]
      %v481 = vld [vmem:[%s331 + $0xd8] sm:$0x1f]
      %v482 = vld [vmem:[%s331 + $0xe0] sm:$0xff]
      %v483 = vld [vmem:[%s331 + $0xe8] sm:$0x1f]
      %v484 = vld [vmem:[%s331 + $0xf0] sm:$0xff]
      %v485 = vld [vmem:[%s331 + $0xf8] sm:$0x1f]
      %v486 = vlaneseq
      %v487 = vand.u32 %v486, 127
      %v488 = vcvt.s32.f32 %v487
      %490 = vset.pattern.permute.xlu0 0
      %491 = vperm.xlu0 %490, %v406
      %v492 = vpop.permute.xlu0 %491
      %v494 = vperm.slane %v492, 0
      %496 = vset.pattern.permute.xlu0 0
      %497 = vperm.xlu0 %496, %v407
      %v498 = vpop.permute.xlu0 %497
      %v500 = vperm.slane %v498, 0
      %502 = vset.pattern.permute.xlu0 0
      %503 = vperm.xlu0 %502, %v408
      %v504 = vpop.permute.xlu0 %503
      %v506 = vperm.slane %v504, 0
      %508 = vset.pattern.permute.xlu0 0
      %509 = vperm.xlu0 %508, %v409
      %v510 = vpop.permute.xlu0 %509
      %v512 = vperm.slane %v510, 0
      %514 = vset.pattern.permute.xlu0 0
      %515 = vperm.xlu0 %514, %v410
      %v516 = vpop.permute.xlu0 %515
      %v518 = vperm.slane %v516, 0
      %520 = vset.pattern.permute.xlu0 0
      %521 = vperm.xlu0 %520, %v411
      %v522 = vpop.permute.xlu0 %521
      %v524 = vperm.slane %v522, 0
      %526 = vset.pattern.permute.xlu0 0
      %527 = vperm.xlu0 %526, %v412
      %v528 = vpop.permute.xlu0 %527
      %v530 = vperm.slane %v528, 0
      %532 = vset.pattern.permute.xlu0 0
      %533 = vperm.xlu0 %532, %v413
      %v534 = vpop.permute.xlu0 %533
      %v536 = vperm.slane %v534, 0
      %538 = vset.pattern.permute.xlu0 0
      %539 = vperm.xlu0 %538, %v414
      %v540 = vpop.permute.xlu0 %539
      %v542 = vperm.slane %v540, 0
      %544 = vset.pattern.permute.xlu0 0
      %545 = vperm.xlu0 %544, %v415
      %v546 = vpop.permute.xlu0 %545
      %v548 = vperm.slane %v546, 0
      %550 = vset.pattern.permute.xlu0 0
      %551 = vperm.xlu0 %550, %v416
      %v552 = vpop.permute.xlu0 %551
      %v554 = vperm.slane %v552, 0
      %556 = vset.pattern.permute.xlu0 0
      %557 = vperm.xlu0 %556, %v417
      %v558 = vpop.permute.xlu0 %557
      %v560 = vperm.slane %v558, 0
      %562 = vset.pattern.permute.xlu0 0
      %563 = vperm.xlu0 %562, %v418
      %v564 = vpop.permute.xlu0 %563
      %v566 = vperm.slane %v564, 0
      %568 = vset.pattern.permute.xlu0 0
      %569 = vperm.xlu0 %568, %v419
      %v570 = vpop.permute.xlu0 %569
      %v572 = vperm.slane %v570, 0
      %574 = vset.pattern.permute.xlu0 0
      %575 = vperm.xlu0 %574, %v420
      %v576 = vpop.permute.xlu0 %575
      %v578 = vperm.slane %v576, 0
      %580 = vset.pattern.permute.xlu0 0
      %581 = vperm.xlu0 %580, %v421
      %v582 = vpop.permute.xlu0 %581
      %v584 = vperm.slane %v582, 0
      %v585 = vmul.f32 %v488, %v494
      %v586 = vmul.f32 %v488, %v500
      %v587 = vmul.f32 %v488, %v506
      %v588 = vmul.f32 %v488, %v512
      %v589 = vmul.f32 %v488, %v518
      %v590 = vmul.f32 %v488, %v524
      %v591 = vmul.f32 %v488, %v530
      %v592 = vmul.f32 %v488, %v536
      %v593 = vmul.f32 %v488, %v542
      %v594 = vmul.f32 %v488, %v548
      %v595 = vmul.f32 %v488, %v554
      %v596 = vmul.f32 %v488, %v560
      %v597 = vmul.f32 %v488, %v566
      %v598 = vmul.f32 %v488, %v572
      %v599 = vmul.f32 %v488, %v578
      %v600 = vmul.f32 %v488, %v584
      %v601 = vfloor.f32 %v585
      %v602 = vfloor.f32 %v586
      %v603 = vfloor.f32 %v587
      %v604 = vfloor.f32 %v588
      %v605 = vfloor.f32 %v589
      %v606 = vfloor.f32 %v590
      %v607 = vfloor.f32 %v591
      %v608 = vfloor.f32 %v592
      %v609 = vfloor.f32 %v593
      %v610 = vfloor.f32 %v594
      %v611 = vfloor.f32 %v595
      %v612 = vfloor.f32 %v596
      %v613 = vfloor.f32 %v597
      %v614 = vfloor.f32 %v598
      %v615 = vfloor.f32 %v599
      %v616 = vfloor.f32 %v600
      %v617 = vsub.f32 %v585, %v601
      %v618 = vsub.f32 %v586, %v602
      %v619 = vsub.f32 %v587, %v603
      %v620 = vsub.f32 %v588, %v604
      %v621 = vsub.f32 %v589, %v605
      %v622 = vsub.f32 %v590, %v606
      %v623 = vsub.f32 %v591, %v607
      %v624 = vsub.f32 %v592, %v608
      %v625 = vsub.f32 %v593, %v609
      %v626 = vsub.f32 %v594, %v610
      %v627 = vsub.f32 %v595, %v611
      %v628 = vsub.f32 %v596, %v612
      %v629 = vsub.f32 %v597, %v613
      %v630 = vsub.f32 %v598, %v614
      %v631 = vsub.f32 %v599, %v615
      %v632 = vsub.f32 %v600, %v616
      %v633 = vmul.f32 %v617, 6.2831855
      %v634 = vmul.f32 %v618, 6.2831855
      %v635 = vmul.f32 %v619, 6.2831855
      %v636 = vmul.f32 %v620, 6.2831855
      %v637 = vmul.f32 %v621, 6.2831855
      %v638 = vmul.f32 %v622, 6.2831855
      %v639 = vmul.f32 %v623, 6.2831855
      %v640 = vmul.f32 %v624, 6.2831855
      %v641 = vmul.f32 %v625, 6.2831855
      %v642 = vmul.f32 %v626, 6.2831855
      %v643 = vmul.f32 %v627, 6.2831855
      %v644 = vmul.f32 %v628, 6.2831855
      %v645 = vmul.f32 %v629, 6.2831855
      %v646 = vmul.f32 %v630, 6.2831855
      %v647 = vmul.f32 %v631, 6.2831855
      %v648 = vmul.f32 %v632, 6.2831855
      %v649 = vand.u32 2147483647, %v633
      %vm650 = vcmp.le.f32.partialorder %v649, 0.7853982
      %vm651 = vcmp.lt.s32.totalorder %v633, 0
      %v652 = vand.u32 %v633, 2139095040
      %v653 = vshrl.u32 %v652, 23
      %v654 = vsub.s32 %v653, 127
      %v655 = vand.u32 2147483647, %v633
      %v656 = vand.u32 %v655, 8388607
      %v657 = vor.u32 %v656, 8388608
      %v658 = vsub.s32 0, %v657
      %v659 = vadd.s32 %v654, 1
      %vm660 = vcmp.gt.s32.totalorder %v659, 0
      %v661 = vsel %vm660, %v659, 0
      %v662 = vshrl.u32 %v661, 5
      %v663 = vand.u32 %v661, 31
      %v664 = vsub.s32 32, %v663
      %v665 = vshrl.u32 683565275, %v664
      %v666 = vshll.u32 683565275, %v663
      %v667 = vshrl.u32 2475754826, %v664
      %v668 = vor.u32 %v666, %v667
      %v669 = vshll.u32 2475754826, %v663
      %v670 = vshrl.u32 2131351028, %v664
      %v671 = vor.u32 %v669, %v670
      %v672 = vshll.u32 2131351028, %v663
      %v673 = vshrl.u32 2102212464, %v664
      %v674 = vor.u32 %v672, %v673
      %v675 = vshll.u32 2102212464, %v663
      %v676 = vshrl.u32 920167782, %v664
      %v677 = vor.u32 %v675, %v676
      %v678 = vshll.u32 920167782, %v663
      %v679 = vshrl.u32 1326507024, %v664
      %v680 = vor.u32 %v678, %v679
      %vm681 = vcmp.lt.s32.totalorder %v662, 1
      %vm682 = vcmp.lt.s32.totalorder %v662, 2
      %vm683 = vcmp.lt.s32.totalorder %v662, 3
      %vm684 = vcmp.lt.s32.totalorder %v662, 4
      %v685 = vsel %vm681, %v665, %v668
      %v686 = vsel %vm684, %v674, 2102212464
      %v687 = vsel %vm683, %v671, %v686
      %v688 = vsel %vm682, %v685, %v687
      %v689 = vsel %vm681, %v668, %v671
      %v690 = vsel %vm684, %v677, 920167782
      %v691 = vsel %vm683, %v674, %v690
      %v692 = vsel %vm682, %v689, %v691
      %v693 = vsel %vm681, %v671, %v674
      %v694 = vsel %vm684, %v680, 1326507024
      %v695 = vsel %vm683, %v677, %v694
      %v696 = vsel %vm682, %v693, %v695
      %v697 = vshll.u32 %v657, 8
      %v698 = vand.u32 %v697, 65535
      %v699 = vshrl.u32 %v697, 16
      %v700 = vand.u32 %v696, 65535
      %v701 = vshrl.u32 %v696, 16
      %v702 = vmul.u32 %v698, %v700
      %v703 = vmul.u32 %v698, %v701
      %v704 = vmul.u32 %v699, %v700
      %v705 = vmul.u32 %v699, %v701
      %v706 = vshll.u32 %v703, 16
      %v707 = vshrl.u32 %v703, 16
      %v708 = vshll.u32 %v704, 16
      %v709 = vshrl.u32 %v704, 16
      %vm710 = vc.u32 %v702, %v706
      %v711 = vsel %vm710, 1, 0
      %v712 = vadd.s32 %v702, %v706
      %v713 = vadd.s32 %v705, %v711
      %vm714 = vc.u32 %v712, %v708
      %v715 = vsel %vm714, 1, 0
      %v716 = vadd.s32 %v712, %v708
      %v717 = vadd.s32 %v713, %v715
      %v718 = vadd.s32 %v717, %v707
      %v719 = vadd.s32 %v718, %v709
      %v720 = vand.u32 %v697, 65535
      %v721 = vshrl.u32 %v697, 16
      %v722 = vand.u32 %v692, 65535
      %v723 = vshrl.u32 %v692, 16
      %v724 = vmul.u32 %v720, %v722
      %v725 = vmul.u32 %v720, %v723
      %v726 = vmul.u32 %v721, %v722
      %v727 = vmul.u32 %v721, %v723
      %v728 = vshll.u32 %v725, 16
      %v729 = vshrl.u32 %v725, 16
      %v730 = vshll.u32 %v726, 16
      %v731 = vshrl.u32 %v726, 16
      %vm732 = vc.u32 %v724, %v728
      %v733 = vsel %vm732, 1, 0
      %v734 = vadd.s32 %v724, %v728
      %v735 = vadd.s32 %v727, %v733
      %vm736 = vc.u32 %v734, %v730
      %v737 = vsel %vm736, 1, 0
      %v738 = vadd.s32 %v734, %v730
      %v739 = vadd.s32 %v735, %v737
      %v740 = vadd.s32 %v739, %v729
      %v741 = vadd.s32 %v740, %v731
      %v742 = vmul.u32 %v697, %v688
      %v743 = vadd.s32 %v719, %v738
      %vm744 = vc.u32 %v719, %v738
      %v745 = vadd.s32 %v741, 1
      %v746 = vsel %vm744, %v745, %v741
      %v747 = vadd.s32 %v742, %v746
      %v748 = vadd.s32 %v747, 536870912
      %v749 = vshrl.u32 %v748, 30
      %v750 = vshll.u32 %v749, 30
      %v751 = vsub.s32 %v747, %v750
      %vm752 = vcmp.lt.s32.totalorder %v751, 0
      %v753 = vsub.s32 0, %v751
      %v754 = vsel %vm752, %v753, %v751
      %v755 = vclz %v754
      %v756 = vsub.s32 %v755, 2
      %vm757 = vcmp.gt.s32.totalorder 0, %v756
      %v758 = vsel %vm757, 0, %v756
      %v759 = vsub.s32 32, %v758
      %v760 = vshll.u32 %v751, %v758
      %v761 = vshrl.u32 %v743, %v759
      %v762 = vor.u32 %v760, %v761
      %v763 = vsub.s32 4294967266, %v758
      %v764 = vadd.s32 %v763, 127
      %v765 = vshll.u32 %v764, 23
      %v766 = vor.u32 4788187, %v765
      %v767 = vand.u32 2147483647, %v766
      %v769 = vcvt.s32.f32 %v762
      %v770 = vmul.f32 %v769, %v767
      %v771 = vxor.u32 %v770, 2147483648
      %v772 = vsel %vm651, %v771, %v770
      %v773 = vsub.s32 4, %v749
      %v774 = vsel %vm651, %v773, %v749
      %v775 = vsel %vm650, %v633, %v772
      %v776 = vsel %vm650, 0, %v774
      %v777 = vmul.f32 %v775, %v775
      %v778 = vmul.f32 %v777, -0.001358992
      %v779 = vadd.f32 %v778, 0.041655596
      %v780 = vmul.f32 %v777, %v779
      %v781 = vadd.f32 %v780, -0.4999988
      %v782 = vmul.f32 %v777, %v781
      %v783 = vadd.f32 1.0, %v782
      %v784 = vmul.f32 %v775, %v775
      %v785 = vmul.f32 %v784, -0.00019511016
      %v786 = vadd.f32 %v785, 0.008332121
      %v787 = vmul.f32 %v784, %v786
      %v788 = vadd.f32 %v787, -0.16666654
      %v789 = vmul.f32 %v784, %v788
      %v790 = vadd.f32 %v789, 1.0
      %v791 = vmul.f32 %v790, %v775
      %vm792 = vweird.f32 %v633
      %v793 = vand.u32 %v776, 3
      %vm794 = vcmp.lt.s32.totalorder %v793, 2
      %vm795 = vcmp.eq.s32.totalorder %v793, 0
      %v796 = vxor.u32 %v791, 2147483648
      %v797 = vsel %vm795, %v783, %v796
      %vm798 = vcmp.eq.s32.totalorder %v793, 2
      %v799 = vxor.u32 %v783, 2147483648
      %v800 = vsel %vm798, %v799, %v791
      %v801 = vsel %vm794, %v797, %v800
      %v802 = vsel %vm792, nan, %v801
      %v803 = vand.u32 2147483647, %v634
      %vm804 = vcmp.le.f32.partialorder %v803, 0.7853982
      %vm805 = vcmp.lt.s32.totalorder %v634, 0
      %v806 = vand.u32 %v634, 2139095040
      %v807 = vshrl.u32 %v806, 23
      %v808 = vsub.s32 %v807, 127
      %v809 = vand.u32 2147483647, %v634
      %v810 = vand.u32 %v809, 8388607
      %v811 = vor.u32 %v810, 8388608
      %v812 = vsub.s32 0, %v811
      %v813 = vadd.s32 %v808, 1
      %vm814 = vcmp.gt.s32.totalorder %v813, 0
      %v815 = vsel %vm814, %v813, 0
      %v816 = vshrl.u32 %v815, 5
      %v817 = vand.u32 %v815, 31
      %v818 = vsub.s32 32, %v817
      %v819 = vshrl.u32 683565275, %v818
      %v820 = vshll.u32 683565275, %v817
      %v821 = vshrl.u32 2475754826, %v818
      %v822 = vor.u32 %v820, %v821
      %v823 = vshll.u32 2475754826, %v817
      %v824 = vshrl.u32 2131351028, %v818
      %v825 = vor.u32 %v823, %v824
      %v826 = vshll.u32 2131351028, %v817
      %v827 = vshrl.u32 2102212464, %v818
      %v828 = vor.u32 %v826, %v827
      %v829 = vshll.u32 2102212464, %v817
      %v830 = vshrl.u32 920167782, %v818
      %v831 = vor.u32 %v829, %v830
      %v832 = vshll.u32 920167782, %v817
      %v833 = vshrl.u32 1326507024, %v818
      %v834 = vor.u32 %v832, %v833
      %vm835 = vcmp.lt.s32.totalorder %v816, 1
      %vm836 = vcmp.lt.s32.totalorder %v816, 2
      %vm837 = vcmp.lt.s32.totalorder %v816, 3
      %vm838 = vcmp.lt.s32.totalorder %v816, 4
      %v839 = vsel %vm835, %v819, %v822
      %v840 = vsel %vm838, %v828, 2102212464
      %v841 = vsel %vm837, %v825, %v840
      %v842 = vsel %vm836, %v839, %v841
      %v843 = vsel %vm835, %v822, %v825
      %v844 = vsel %vm838, %v831, 920167782
      %v845 = vsel %vm837, %v828, %v844
      %v846 = vsel %vm836, %v843, %v845
      %v847 = vsel %vm835, %v825, %v828
      %v848 = vsel %vm838, %v834, 1326507024
      %v849 = vsel %vm837, %v831, %v848
      %v850 = vsel %vm836, %v847, %v849
      %v851 = vshll.u32 %v811, 8
      %v852 = vand.u32 %v851, 65535
      %v853 = vshrl.u32 %v851, 16
      %v854 = vand.u32 %v850, 65535
      %v855 = vshrl.u32 %v850, 16
      %v856 = vmul.u32 %v852, %v854
      %v857 = vmul.u32 %v852, %v855
      %v858 = vmul.u32 %v853, %v854
      %v859 = vmul.u32 %v853, %v855
      %v860 = vshll.u32 %v857, 16
      %v861 = vshrl.u32 %v857, 16
      %v862 = vshll.u32 %v858, 16
      %v863 = vshrl.u32 %v858, 16
      %vm864 = vc.u32 %v856, %v860
      %v865 = vsel %vm864, 1, 0
      %v866 = vadd.s32 %v856, %v860
      %v867 = vadd.s32 %v859, %v865
      %vm868 = vc.u32 %v866, %v862
      %v869 = vsel %vm868, 1, 0
      %v870 = vadd.s32 %v866, %v862
      %v871 = vadd.s32 %v867, %v869
      %v872 = vadd.s32 %v871, %v861
      %v873 = vadd.s32 %v872, %v863
      %v874 = vand.u32 %v851, 65535
      %v875 = vshrl.u32 %v851, 16
      %v876 = vand.u32 %v846, 65535
      %v877 = vshrl.u32 %v846, 16
      %v878 = vmul.u32 %v874, %v876
      %v879 = vmul.u32 %v874, %v877
      %v880 = vmul.u32 %v875, %v876
      %v881 = vmul.u32 %v875, %v877
      %v882 = vshll.u32 %v879, 16
      %v883 = vshrl.u32 %v879, 16
      %v884 = vshll.u32 %v880, 16
      %v885 = vshrl.u32 %v880, 16
      %vm886 = vc.u32 %v878, %v882
      %v887 = vsel %vm886, 1, 0
      %v888 = vadd.s32 %v878, %v882
      %v889 = vadd.s32 %v881, %v887
      %vm890 = vc.u32 %v888, %v884
      %v891 = vsel %vm890, 1, 0
      %v892 = vadd.s32 %v888, %v884
      %v893 = vadd.s32 %v889, %v891
      %v894 = vadd.s32 %v893, %v883
      %v895 = vadd.s32 %v894, %v885
      %v896 = vmul.u32 %v851, %v842
      %v897 = vadd.s32 %v873, %v892
      %vm898 = vc.u32 %v873, %v892
      %v899 = vadd.s32 %v895, 1
      %v900 = vsel %vm898, %v899, %v895
      %v901 = vadd.s32 %v896, %v900
      %v902 = vadd.s32 %v901, 536870912
      %v903 = vshrl.u32 %v902, 30
      %v904 = vshll.u32 %v903, 30
      %v905 = vsub.s32 %v901, %v904
      %vm906 = vcmp.lt.s32.totalorder %v905, 0
      %v907 = vsub.s32 0, %v905
      %v908 = vsel %vm906, %v907, %v905
      %v909 = vclz %v908
      %v910 = vsub.s32 %v909, 2
      %vm911 = vcmp.gt.s32.totalorder 0, %v910
      %v912 = vsel %vm911, 0, %v910
      %v913 = vsub.s32 32, %v912
      %v914 = vshll.u32 %v905, %v912
      %v915 = vshrl.u32 %v897, %v913
      %v916 = vor.u32 %v914, %v915
      %v917 = vsub.s32 4294967266, %v912
      %v918 = vadd.s32 %v917, 127
      %v919 = vshll.u32 %v918, 23
      %v920 = vor.u32 4788187, %v919
      %v921 = vand.u32 2147483647, %v920
      %v923 = vcvt.s32.f32 %v916
      %v924 = vmul.f32 %v923, %v921
      %v925 = vxor.u32 %v924, 2147483648
      %v926 = vsel %vm805, %v925, %v924
      %v927 = vsub.s32 4, %v903
      %v928 = vsel %vm805, %v927, %v903
      %v929 = vsel %vm804, %v634, %v926
      %v930 = vsel %vm804, 0, %v928
      %v931 = vmul.f32 %v929, %v929
      %v932 = vmul.f32 %v931, -0.001358992
      %v933 = vadd.f32 %v932, 0.041655596
      %v934 = vmul.f32 %v931, %v933
      %v935 = vadd.f32 %v934, -0.4999988
      %v936 = vmul.f32 %v931, %v935
      %v937 = vadd.f32 1.0, %v936
      %v938 = vmul.f32 %v929, %v929
      %v939 = vmul.f32 %v938, -0.00019511016
      %v940 = vadd.f32 %v939, 0.008332121
      %v941 = vmul.f32 %v938, %v940
      %v942 = vadd.f32 %v941, -0.16666654
      %v943 = vmul.f32 %v938, %v942
      %v944 = vadd.f32 %v943, 1.0
      %v945 = vmul.f32 %v944, %v929
      %vm946 = vweird.f32 %v634
      %v947 = vand.u32 %v930, 3
      %vm948 = vcmp.lt.s32.totalorder %v947, 2
      %vm949 = vcmp.eq.s32.totalorder %v947, 0
      %v950 = vxor.u32 %v945, 2147483648
      %v951 = vsel %vm949, %v937, %v950
      %vm952 = vcmp.eq.s32.totalorder %v947, 2
      %v953 = vxor.u32 %v937, 2147483648
      %v954 = vsel %vm952, %v953, %v945
      %v955 = vsel %vm948, %v951, %v954
      %v956 = vsel %vm946, nan, %v955
      %v957 = vand.u32 2147483647, %v635
      %vm958 = vcmp.le.f32.partialorder %v957, 0.7853982
      %vm959 = vcmp.lt.s32.totalorder %v635, 0
      %v960 = vand.u32 %v635, 2139095040
      %v961 = vshrl.u32 %v960, 23
      %v962 = vsub.s32 %v961, 127
      %v963 = vand.u32 2147483647, %v635
      %v964 = vand.u32 %v963, 8388607
      %v965 = vor.u32 %v964, 8388608
      %v966 = vsub.s32 0, %v965
      %v967 = vadd.s32 %v962, 1
      %vm968 = vcmp.gt.s32.totalorder %v967, 0
      %v969 = vsel %vm968, %v967, 0
      %v970 = vshrl.u32 %v969, 5
      %v971 = vand.u32 %v969, 31
      %v972 = vsub.s32 32, %v971
      %v973 = vshrl.u32 683565275, %v972
      %v974 = vshll.u32 683565275, %v971
      %v975 = vshrl.u32 2475754826, %v972
      %v976 = vor.u32 %v974, %v975
      %v977 = vshll.u32 2475754826, %v971
      %v978 = vshrl.u32 2131351028, %v972
      %v979 = vor.u32 %v977, %v978
      %v980 = vshll.u32 2131351028, %v971
      %v981 = vshrl.u32 2102212464, %v972
      %v982 = vor.u32 %v980, %v981
      %v983 = vshll.u32 2102212464, %v971
      %v984 = vshrl.u32 920167782, %v972
      %v985 = vor.u32 %v983, %v984
      %v986 = vshll.u32 920167782, %v971
      %v987 = vshrl.u32 1326507024, %v972
      %v988 = vor.u32 %v986, %v987
      %vm989 = vcmp.lt.s32.totalorder %v970, 1
      %vm990 = vcmp.lt.s32.totalorder %v970, 2
      %vm991 = vcmp.lt.s32.totalorder %v970, 3
      %vm992 = vcmp.lt.s32.totalorder %v970, 4
      %v993 = vsel %vm989, %v973, %v976
      %v994 = vsel %vm992, %v982, 2102212464
      %v995 = vsel %vm991, %v979, %v994
      %v996 = vsel %vm990, %v993, %v995
      %v997 = vsel %vm989, %v976, %v979
      %v998 = vsel %vm992, %v985, 920167782
      %v999 = vsel %vm991, %v982, %v998
      %v1000 = vsel %vm990, %v997, %v999
      %v1001 = vsel %vm989, %v979, %v982
      %v1002 = vsel %vm992, %v988, 1326507024
      %v1003 = vsel %vm991, %v985, %v1002
      %v1004 = vsel %vm990, %v1001, %v1003
      %v1005 = vshll.u32 %v965, 8
      %v1006 = vand.u32 %v1005, 65535
      %v1007 = vshrl.u32 %v1005, 16
      %v1008 = vand.u32 %v1004, 65535
      %v1009 = vshrl.u32 %v1004, 16
      %v1010 = vmul.u32 %v1006, %v1008
      %v1011 = vmul.u32 %v1006, %v1009
      %v1012 = vmul.u32 %v1007, %v1008
      %v1013 = vmul.u32 %v1007, %v1009
      %v1014 = vshll.u32 %v1011, 16
      %v1015 = vshrl.u32 %v1011, 16
      %v1016 = vshll.u32 %v1012, 16
      %v1017 = vshrl.u32 %v1012, 16
      %vm1018 = vc.u32 %v1010, %v1014
      %v1019 = vsel %vm1018, 1, 0
      %v1020 = vadd.s32 %v1010, %v1014
      %v1021 = vadd.s32 %v1013, %v1019
      %vm1022 = vc.u32 %v1020, %v1016
      %v1023 = vsel %vm1022, 1, 0
      %v1024 = vadd.s32 %v1020, %v1016
      %v1025 = vadd.s32 %v1021, %v1023
      %v1026 = vadd.s32 %v1025, %v1015
      %v1027 = vadd.s32 %v1026, %v1017
      %v1028 = vand.u32 %v1005, 65535
      %v1029 = vshrl.u32 %v1005, 16
      %v1030 = vand.u32 %v1000, 65535
      %v1031 = vshrl.u32 %v1000, 16
      %v1032 = vmul.u32 %v1028, %v1030
      %v1033 = vmul.u32 %v1028, %v1031
      %v1034 = vmul.u32 %v1029, %v1030
      %v1035 = vmul.u32 %v1029, %v1031
      %v1036 = vshll.u32 %v1033, 16
      %v1037 = vshrl.u32 %v1033, 16
      %v1038 = vshll.u32 %v1034, 16
      %v1039 = vshrl.u32 %v1034, 16
      %vm1040 = vc.u32 %v1032, %v1036
      %v1041 = vsel %vm1040, 1, 0
      %v1042 = vadd.s32 %v1032, %v1036
      %v1043 = vadd.s32 %v1035, %v1041
      %vm1044 = vc.u32 %v1042, %v1038
      %v1045 = vsel %vm1044, 1, 0
      %v1046 = vadd.s32 %v1042, %v1038
      %v1047 = vadd.s32 %v1043, %v1045
      %v1048 = vadd.s32 %v1047, %v1037
      %v1049 = vadd.s32 %v1048, %v1039
      %v1050 = vmul.u32 %v1005, %v996
      %v1051 = vadd.s32 %v1027, %v1046
      %vm1052 = vc.u32 %v1027, %v1046
      %v1053 = vadd.s32 %v1049, 1
      %v1054 = vsel %vm1052, %v1053, %v1049
      %v1055 = vadd.s32 %v1050, %v1054
      %v1056 = vadd.s32 %v1055, 536870912
      %v1057 = vshrl.u32 %v1056, 30
      %v1058 = vshll.u32 %v1057, 30
      %v1059 = vsub.s32 %v1055, %v1058
      %vm1060 = vcmp.lt.s32.totalorder %v1059, 0
      %v1061 = vsub.s32 0, %v1059
      %v1062 = vsel %vm1060, %v1061, %v1059
      %v1063 = vclz %v1062
      %v1064 = vsub.s32 %v1063, 2
      %vm1065 = vcmp.gt.s32.totalorder 0, %v1064
      %v1066 = vsel %vm1065, 0, %v1064
      %v1067 = vsub.s32 32, %v1066
      %v1068 = vshll.u32 %v1059, %v1066
      %v1069 = vshrl.u32 %v1051, %v1067
      %v1070 = vor.u32 %v1068, %v1069
      %v1071 = vsub.s32 4294967266, %v1066
      %v1072 = vadd.s32 %v1071, 127
      %v1073 = vshll.u32 %v1072, 23
      %v1074 = vor.u32 4788187, %v1073
      %v1075 = vand.u32 2147483647, %v1074
      %v1077 = vcvt.s32.f32 %v1070
      %v1078 = vmul.f32 %v1077, %v1075
      %v1079 = vxor.u32 %v1078, 2147483648
      %v1080 = vsel %vm959, %v1079, %v1078
      %v1081 = vsub.s32 4, %v1057
      %v1082 = vsel %vm959, %v1081, %v1057
      %v1083 = vsel %vm958, %v635, %v1080
      %v1084 = vsel %vm958, 0, %v1082
      %v1085 = vmul.f32 %v1083, %v1083
      %v1086 = vmul.f32 %v1085, -0.001358992
      %v1087 = vadd.f32 %v1086, 0.041655596
      %v1088 = vmul.f32 %v1085, %v1087
      %v1089 = vadd.f32 %v1088, -0.4999988
      %v1090 = vmul.f32 %v1085, %v1089
      %v1091 = vadd.f32 1.0, %v1090
      %v1092 = vmul.f32 %v1083, %v1083
      %v1093 = vmul.f32 %v1092, -0.00019511016
      %v1094 = vadd.f32 %v1093, 0.008332121
      %v1095 = vmul.f32 %v1092, %v1094
      %v1096 = vadd.f32 %v1095, -0.16666654
      %v1097 = vmul.f32 %v1092, %v1096
      %v1098 = vadd.f32 %v1097, 1.0
      %v1099 = vmul.f32 %v1098, %v1083
      %vm1100 = vweird.f32 %v635
      %v1101 = vand.u32 %v1084, 3
      %vm1102 = vcmp.lt.s32.totalorder %v1101, 2
      %vm1103 = vcmp.eq.s32.totalorder %v1101, 0
      %v1104 = vxor.u32 %v1099, 2147483648
      %v1105 = vsel %vm1103, %v1091, %v1104
      %vm1106 = vcmp.eq.s32.totalorder %v1101, 2
      %v1107 = vxor.u32 %v1091, 2147483648
      %v1108 = vsel %vm1106, %v1107, %v1099
      %v1109 = vsel %vm1102, %v1105, %v1108
      %v1110 = vsel %vm1100, nan, %v1109
      %v1111 = vand.u32 2147483647, %v636
      %vm1112 = vcmp.le.f32.partialorder %v1111, 0.7853982
      %vm1113 = vcmp.lt.s32.totalorder %v636, 0
      %v1114 = vand.u32 %v636, 2139095040
      %v1115 = vshrl.u32 %v1114, 23
      %v1116 = vsub.s32 %v1115, 127
      %v1117 = vand.u32 2147483647, %v636
      %v1118 = vand.u32 %v1117, 8388607
      %v1119 = vor.u32 %v1118, 8388608
      %v1120 = vsub.s32 0, %v1119
      %v1121 = vadd.s32 %v1116, 1
      %vm1122 = vcmp.gt.s32.totalorder %v1121, 0
      %v1123 = vsel %vm1122, %v1121, 0
      %v1124 = vshrl.u32 %v1123, 5
      %v1125 = vand.u32 %v1123, 31
      %v1126 = vsub.s32 32, %v1125
      %v1127 = vshrl.u32 683565275, %v1126
      %v1128 = vshll.u32 683565275, %v1125
      %v1129 = vshrl.u32 2475754826, %v1126
      %v1130 = vor.u32 %v1128, %v1129
      %v1131 = vshll.u32 2475754826, %v1125
      %v1132 = vshrl.u32 2131351028, %v1126
      %v1133 = vor.u32 %v1131, %v1132
      %v1134 = vshll.u32 2131351028, %v1125
      %v1135 = vshrl.u32 2102212464, %v1126
      %v1136 = vor.u32 %v1134, %v1135
      %v1137 = vshll.u32 2102212464, %v1125
      %v1138 = vshrl.u32 920167782, %v1126
      %v1139 = vor.u32 %v1137, %v1138
      %v1140 = vshll.u32 920167782, %v1125
      %v1141 = vshrl.u32 1326507024, %v1126
      %v1142 = vor.u32 %v1140, %v1141
      %vm1143 = vcmp.lt.s32.totalorder %v1124, 1
      %vm1144 = vcmp.lt.s32.totalorder %v1124, 2
      %vm1145 = vcmp.lt.s32.totalorder %v1124, 3
      %vm1146 = vcmp.lt.s32.totalorder %v1124, 4
      %v1147 = vsel %vm1143, %v1127, %v1130
      %v1148 = vsel %vm1146, %v1136, 2102212464
      %v1149 = vsel %vm1145, %v1133, %v1148
      %v1150 = vsel %vm1144, %v1147, %v1149
      %v1151 = vsel %vm1143, %v1130, %v1133
      %v1152 = vsel %vm1146, %v1139, 920167782
      %v1153 = vsel %vm1145, %v1136, %v1152
      %v1154 = vsel %vm1144, %v1151, %v1153
      %v1155 = vsel %vm1143, %v1133, %v1136
      %v1156 = vsel %vm1146, %v1142, 1326507024
      %v1157 = vsel %vm1145, %v1139, %v1156
      %v1158 = vsel %vm1144, %v1155, %v1157
      %v1159 = vshll.u32 %v1119, 8
      %v1160 = vand.u32 %v1159, 65535
      %v1161 = vshrl.u32 %v1159, 16
      %v1162 = vand.u32 %v1158, 65535
      %v1163 = vshrl.u32 %v1158, 16
      %v1164 = vmul.u32 %v1160, %v1162
      %v1165 = vmul.u32 %v1160, %v1163
      %v1166 = vmul.u32 %v1161, %v1162
      %v1167 = vmul.u32 %v1161, %v1163
      %v1168 = vshll.u32 %v1165, 16
      %v1169 = vshrl.u32 %v1165, 16
      %v1170 = vshll.u32 %v1166, 16
      %v1171 = vshrl.u32 %v1166, 16
      %vm1172 = vc.u32 %v1164, %v1168
      %v1173 = vsel %vm1172, 1, 0
      %v1174 = vadd.s32 %v1164, %v1168
      %v1175 = vadd.s32 %v1167, %v1173
      %vm1176 = vc.u32 %v1174, %v1170
      %v1177 = vsel %vm1176, 1, 0
      %v1178 = vadd.s32 %v1174, %v1170
      %v1179 = vadd.s32 %v1175, %v1177
      %v1180 = vadd.s32 %v1179, %v1169
      %v1181 = vadd.s32 %v1180, %v1171
      %v1182 = vand.u32 %v1159, 65535
      %v1183 = vshrl.u32 %v1159, 16
      %v1184 = vand.u32 %v1154, 65535
      %v1185 = vshrl.u32 %v1154, 16
      %v1186 = vmul.u32 %v1182, %v1184
      %v1187 = vmul.u32 %v1182, %v1185
      %v1188 = vmul.u32 %v1183, %v1184
      %v1189 = vmul.u32 %v1183, %v1185
      %v1190 = vshll.u32 %v1187, 16
      %v1191 = vshrl.u32 %v1187, 16
      %v1192 = vshll.u32 %v1188, 16
      %v1193 = vshrl.u32 %v1188, 16
      %vm1194 = vc.u32 %v1186, %v1190
      %v1195 = vsel %vm1194, 1, 0
      %v1196 = vadd.s32 %v1186, %v1190
      %v1197 = vadd.s32 %v1189, %v1195
      %vm1198 = vc.u32 %v1196, %v1192
      %v1199 = vsel %vm1198, 1, 0
      %v1200 = vadd.s32 %v1196, %v1192
      %v1201 = vadd.s32 %v1197, %v1199
      %v1202 = vadd.s32 %v1201, %v1191
      %v1203 = vadd.s32 %v1202, %v1193
      %v1204 = vmul.u32 %v1159, %v1150
      %v1205 = vadd.s32 %v1181, %v1200
      %vm1206 = vc.u32 %v1181, %v1200
      %v1207 = vadd.s32 %v1203, 1
      %v1208 = vsel %vm1206, %v1207, %v1203
      %v1209 = vadd.s32 %v1204, %v1208
      %v1210 = vadd.s32 %v1209, 536870912
      %v1211 = vshrl.u32 %v1210, 30
      %v1212 = vshll.u32 %v1211, 30
      %v1213 = vsub.s32 %v1209, %v1212
      %vm1214 = vcmp.lt.s32.totalorder %v1213, 0
      %v1215 = vsub.s32 0, %v1213
      %v1216 = vsel %vm1214, %v1215, %v1213
      %v1217 = vclz %v1216
      %v1218 = vsub.s32 %v1217, 2
      %vm1219 = vcmp.gt.s32.totalorder 0, %v1218
      %v1220 = vsel %vm1219, 0, %v1218
      %v1221 = vsub.s32 32, %v1220
      %v1222 = vshll.u32 %v1213, %v1220
      %v1223 = vshrl.u32 %v1205, %v1221
      %v1224 = vor.u32 %v1222, %v1223
      %v1225 = vsub.s32 4294967266, %v1220
      %v1226 = vadd.s32 %v1225, 127
      %v1227 = vshll.u32 %v1226, 23
      %v1228 = vor.u32 4788187, %v1227
      %v1229 = vand.u32 2147483647, %v1228
      %v1231 = vcvt.s32.f32 %v1224
      %v1232 = vmul.f32 %v1231, %v1229
      %v1233 = vxor.u32 %v1232, 2147483648
      %v1234 = vsel %vm1113, %v1233, %v1232
      %v1235 = vsub.s32 4, %v1211
      %v1236 = vsel %vm1113, %v1235, %v1211
      %v1237 = vsel %vm1112, %v636, %v1234
      %v1238 = vsel %vm1112, 0, %v1236
      %v1239 = vmul.f32 %v1237, %v1237
      %v1240 = vmul.f32 %v1239, -0.001358992
      %v1241 = vadd.f32 %v1240, 0.041655596
      %v1242 = vmul.f32 %v1239, %v1241
      %v1243 = vadd.f32 %v1242, -0.4999988
      %v1244 = vmul.f32 %v1239, %v1243
      %v1245 = vadd.f32 1.0, %v1244
      %v1246 = vmul.f32 %v1237, %v1237
      %v1247 = vmul.f32 %v1246, -0.00019511016
      %v1248 = vadd.f32 %v1247, 0.008332121
      %v1249 = vmul.f32 %v1246, %v1248
      %v1250 = vadd.f32 %v1249, -0.16666654
      %v1251 = vmul.f32 %v1246, %v1250
      %v1252 = vadd.f32 %v1251, 1.0
      %v1253 = vmul.f32 %v1252, %v1237
      %vm1254 = vweird.f32 %v636
      %v1255 = vand.u32 %v1238, 3
      %vm1256 = vcmp.lt.s32.totalorder %v1255, 2
      %vm1257 = vcmp.eq.s32.totalorder %v1255, 0
      %v1258 = vxor.u32 %v1253, 2147483648
      %v1259 = vsel %vm1257, %v1245, %v1258
      %vm1260 = vcmp.eq.s32.totalorder %v1255, 2
      %v1261 = vxor.u32 %v1245, 2147483648
      %v1262 = vsel %vm1260, %v1261, %v1253
      %v1263 = vsel %vm1256, %v1259, %v1262
      %v1264 = vsel %vm1254, nan, %v1263
      %v1265 = vand.u32 2147483647, %v637
      %vm1266 = vcmp.le.f32.partialorder %v1265, 0.7853982
      %vm1267 = vcmp.lt.s32.totalorder %v637, 0
      %v1268 = vand.u32 %v637, 2139095040
      %v1269 = vshrl.u32 %v1268, 23
      %v1270 = vsub.s32 %v1269, 127
      %v1271 = vand.u32 2147483647, %v637
      %v1272 = vand.u32 %v1271, 8388607
      %v1273 = vor.u32 %v1272, 8388608
      %v1274 = vsub.s32 0, %v1273
      %v1275 = vadd.s32 %v1270, 1
      %vm1276 = vcmp.gt.s32.totalorder %v1275, 0
      %v1277 = vsel %vm1276, %v1275, 0
      %v1278 = vshrl.u32 %v1277, 5
      %v1279 = vand.u32 %v1277, 31
      %v1280 = vsub.s32 32, %v1279
      %v1281 = vshrl.u32 683565275, %v1280
      %v1282 = vshll.u32 683565275, %v1279
      %v1283 = vshrl.u32 2475754826, %v1280
      %v1284 = vor.u32 %v1282, %v1283
      %v1285 = vshll.u32 2475754826, %v1279
      %v1286 = vshrl.u32 2131351028, %v1280
      %v1287 = vor.u32 %v1285, %v1286
      %v1288 = vshll.u32 2131351028, %v1279
      %v1289 = vshrl.u32 2102212464, %v1280
      %v1290 = vor.u32 %v1288, %v1289
      %v1291 = vshll.u32 2102212464, %v1279
      %v1292 = vshrl.u32 920167782, %v1280
      %v1293 = vor.u32 %v1291, %v1292
      %v1294 = vshll.u32 920167782, %v1279
      %v1295 = vshrl.u32 1326507024, %v1280
      %v1296 = vor.u32 %v1294, %v1295
      %vm1297 = vcmp.lt.s32.totalorder %v1278, 1
      %vm1298 = vcmp.lt.s32.totalorder %v1278, 2
      %vm1299 = vcmp.lt.s32.totalorder %v1278, 3
      %vm1300 = vcmp.lt.s32.totalorder %v1278, 4
      %v1301 = vsel %vm1297, %v1281, %v1284
      %v1302 = vsel %vm1300, %v1290, 2102212464
      %v1303 = vsel %vm1299, %v1287, %v1302
      %v1304 = vsel %vm1298, %v1301, %v1303
      %v1305 = vsel %vm1297, %v1284, %v1287
      %v1306 = vsel %vm1300, %v1293, 920167782
      %v1307 = vsel %vm1299, %v1290, %v1306
      %v1308 = vsel %vm1298, %v1305, %v1307
      %v1309 = vsel %vm1297, %v1287, %v1290
      %v1310 = vsel %vm1300, %v1296, 1326507024
      %v1311 = vsel %vm1299, %v1293, %v1310
      %v1312 = vsel %vm1298, %v1309, %v1311
      %v1313 = vshll.u32 %v1273, 8
      %v1314 = vand.u32 %v1313, 65535
      %v1315 = vshrl.u32 %v1313, 16
      %v1316 = vand.u32 %v1312, 65535
      %v1317 = vshrl.u32 %v1312, 16
      %v1318 = vmul.u32 %v1314, %v1316
      %v1319 = vmul.u32 %v1314, %v1317
      %v1320 = vmul.u32 %v1315, %v1316
      %v1321 = vmul.u32 %v1315, %v1317
      %v1322 = vshll.u32 %v1319, 16
      %v1323 = vshrl.u32 %v1319, 16
      %v1324 = vshll.u32 %v1320, 16
      %v1325 = vshrl.u32 %v1320, 16
      %vm1326 = vc.u32 %v1318, %v1322
      %v1327 = vsel %vm1326, 1, 0
      %v1328 = vadd.s32 %v1318, %v1322
      %v1329 = vadd.s32 %v1321, %v1327
      %vm1330 = vc.u32 %v1328, %v1324
      %v1331 = vsel %vm1330, 1, 0
      %v1332 = vadd.s32 %v1328, %v1324
      %v1333 = vadd.s32 %v1329, %v1331
      %v1334 = vadd.s32 %v1333, %v1323
      %v1335 = vadd.s32 %v1334, %v1325
      %v1336 = vand.u32 %v1313, 65535
      %v1337 = vshrl.u32 %v1313, 16
      %v1338 = vand.u32 %v1308, 65535
      %v1339 = vshrl.u32 %v1308, 16
      %v1340 = vmul.u32 %v1336, %v1338
      %v1341 = vmul.u32 %v1336, %v1339
      %v1342 = vmul.u32 %v1337, %v1338
      %v1343 = vmul.u32 %v1337, %v1339
      %v1344 = vshll.u32 %v1341, 16
      %v1345 = vshrl.u32 %v1341, 16
      %v1346 = vshll.u32 %v1342, 16
      %v1347 = vshrl.u32 %v1342, 16
      %vm1348 = vc.u32 %v1340, %v1344
      %v1349 = vsel %vm1348, 1, 0
      %v1350 = vadd.s32 %v1340, %v1344
      %v1351 = vadd.s32 %v1343, %v1349
      %vm1352 = vc.u32 %v1350, %v1346
      %v1353 = vsel %vm1352, 1, 0
      %v1354 = vadd.s32 %v1350, %v1346
      %v1355 = vadd.s32 %v1351, %v1353
      %v1356 = vadd.s32 %v1355, %v1345
      %v1357 = vadd.s32 %v1356, %v1347
      %v1358 = vmul.u32 %v1313, %v1304
      %v1359 = vadd.s32 %v1335, %v1354
      %vm1360 = vc.u32 %v1335, %v1354
      %v1361 = vadd.s32 %v1357, 1
      %v1362 = vsel %vm1360, %v1361, %v1357
      %v1363 = vadd.s32 %v1358, %v1362
      %v1364 = vadd.s32 %v1363, 536870912
      %v1365 = vshrl.u32 %v1364, 30
      %v1366 = vshll.u32 %v1365, 30
      %v1367 = vsub.s32 %v1363, %v1366
      %vm1368 = vcmp.lt.s32.totalorder %v1367, 0
      %v1369 = vsub.s32 0, %v1367
      %v1370 = vsel %vm1368, %v1369, %v1367
      %v1371 = vclz %v1370
      %v1372 = vsub.s32 %v1371, 2
      %vm1373 = vcmp.gt.s32.totalorder 0, %v1372
      %v1374 = vsel %vm1373, 0, %v1372
      %v1375 = vsub.s32 32, %v1374
      %v1376 = vshll.u32 %v1367, %v1374
      %v1377 = vshrl.u32 %v1359, %v1375
      %v1378 = vor.u32 %v1376, %v1377
      %v1379 = vsub.s32 4294967266, %v1374
      %v1380 = vadd.s32 %v1379, 127
      %v1381 = vshll.u32 %v1380, 23
      %v1382 = vor.u32 4788187, %v1381
      %v1383 = vand.u32 2147483647, %v1382
      %v1385 = vcvt.s32.f32 %v1378
      %v1386 = vmul.f32 %v1385, %v1383
      %v1387 = vxor.u32 %v1386, 2147483648
      %v1388 = vsel %vm1267, %v1387, %v1386
      %v1389 = vsub.s32 4, %v1365
      %v1390 = vsel %vm1267, %v1389, %v1365
      %v1391 = vsel %vm1266, %v637, %v1388
      %v1392 = vsel %vm1266, 0, %v1390
      %v1393 = vmul.f32 %v1391, %v1391
      %v1394 = vmul.f32 %v1393, -0.001358992
      %v1395 = vadd.f32 %v1394, 0.041655596
      %v1396 = vmul.f32 %v1393, %v1395
      %v1397 = vadd.f32 %v1396, -0.4999988
      %v1398 = vmul.f32 %v1393, %v1397
      %v1399 = vadd.f32 1.0, %v1398
      %v1400 = vmul.f32 %v1391, %v1391
      %v1401 = vmul.f32 %v1400, -0.00019511016
      %v1402 = vadd.f32 %v1401, 0.008332121
      %v1403 = vmul.f32 %v1400, %v1402
      %v1404 = vadd.f32 %v1403, -0.16666654
      %v1405 = vmul.f32 %v1400, %v1404
      %v1406 = vadd.f32 %v1405, 1.0
      %v1407 = vmul.f32 %v1406, %v1391
      %vm1408 = vweird.f32 %v637
      %v1409 = vand.u32 %v1392, 3
      %vm1410 = vcmp.lt.s32.totalorder %v1409, 2
      %vm1411 = vcmp.eq.s32.totalorder %v1409, 0
      %v1412 = vxor.u32 %v1407, 2147483648
      %v1413 = vsel %vm1411, %v1399, %v1412
      %vm1414 = vcmp.eq.s32.totalorder %v1409, 2
      %v1415 = vxor.u32 %v1399, 2147483648
      %v1416 = vsel %vm1414, %v1415, %v1407
      %v1417 = vsel %vm1410, %v1413, %v1416
      %v1418 = vsel %vm1408, nan, %v1417
      %v1419 = vand.u32 2147483647, %v638
      %vm1420 = vcmp.le.f32.partialorder %v1419, 0.7853982
      %vm1421 = vcmp.lt.s32.totalorder %v638, 0
      %v1422 = vand.u32 %v638, 2139095040
      %v1423 = vshrl.u32 %v1422, 23
      %v1424 = vsub.s32 %v1423, 127
      %v1425 = vand.u32 2147483647, %v638
      %v1426 = vand.u32 %v1425, 8388607
      %v1427 = vor.u32 %v1426, 8388608
      %v1428 = vsub.s32 0, %v1427
      %v1429 = vadd.s32 %v1424, 1
      %vm1430 = vcmp.gt.s32.totalorder %v1429, 0
      %v1431 = vsel %vm1430, %v1429, 0
      %v1432 = vshrl.u32 %v1431, 5
      %v1433 = vand.u32 %v1431, 31
      %v1434 = vsub.s32 32, %v1433
      %v1435 = vshrl.u32 683565275, %v1434
      %v1436 = vshll.u32 683565275, %v1433
      %v1437 = vshrl.u32 2475754826, %v1434
      %v1438 = vor.u32 %v1436, %v1437
      %v1439 = vshll.u32 2475754826, %v1433
      %v1440 = vshrl.u32 2131351028, %v1434
      %v1441 = vor.u32 %v1439, %v1440
      %v1442 = vshll.u32 2131351028, %v1433
      %v1443 = vshrl.u32 2102212464, %v1434
      %v1444 = vor.u32 %v1442, %v1443
      %v1445 = vshll.u32 2102212464, %v1433
      %v1446 = vshrl.u32 920167782, %v1434
      %v1447 = vor.u32 %v1445, %v1446
      %v1448 = vshll.u32 920167782, %v1433
      %v1449 = vshrl.u32 1326507024, %v1434
      %v1450 = vor.u32 %v1448, %v1449
      %vm1451 = vcmp.lt.s32.totalorder %v1432, 1
      %vm1452 = vcmp.lt.s32.totalorder %v1432, 2
      %vm1453 = vcmp.lt.s32.totalorder %v1432, 3
      %vm1454 = vcmp.lt.s32.totalorder %v1432, 4
      %v1455 = vsel %vm1451, %v1435, %v1438
      %v1456 = vsel %vm1454, %v1444, 2102212464
      %v1457 = vsel %vm1453, %v1441, %v1456
      %v1458 = vsel %vm1452, %v1455, %v1457
      %v1459 = vsel %vm1451, %v1438, %v1441
      %v1460 = vsel %vm1454, %v1447, 920167782
      %v1461 = vsel %vm1453, %v1444, %v1460
      %v1462 = vsel %vm1452, %v1459, %v1461
      %v1463 = vsel %vm1451, %v1441, %v1444
      %v1464 = vsel %vm1454, %v1450, 1326507024
      %v1465 = vsel %vm1453, %v1447, %v1464
      %v1466 = vsel %vm1452, %v1463, %v1465
      %v1467 = vshll.u32 %v1427, 8
      %v1468 = vand.u32 %v1467, 65535
      %v1469 = vshrl.u32 %v1467, 16
      %v1470 = vand.u32 %v1466, 65535
      %v1471 = vshrl.u32 %v1466, 16
      %v1472 = vmul.u32 %v1468, %v1470
      %v1473 = vmul.u32 %v1468, %v1471
      %v1474 = vmul.u32 %v1469, %v1470
      %v1475 = vmul.u32 %v1469, %v1471
      %v1476 = vshll.u32 %v1473, 16
      %v1477 = vshrl.u32 %v1473, 16
      %v1478 = vshll.u32 %v1474, 16
      %v1479 = vshrl.u32 %v1474, 16
      %vm1480 = vc.u32 %v1472, %v1476
      %v1481 = vsel %vm1480, 1, 0
      %v1482 = vadd.s32 %v1472, %v1476
      %v1483 = vadd.s32 %v1475, %v1481
      %vm1484 = vc.u32 %v1482, %v1478
      %v1485 = vsel %vm1484, 1, 0
      %v1486 = vadd.s32 %v1482, %v1478
      %v1487 = vadd.s32 %v1483, %v1485
      %v1488 = vadd.s32 %v1487, %v1477
      %v1489 = vadd.s32 %v1488, %v1479
      %v1490 = vand.u32 %v1467, 65535
      %v1491 = vshrl.u32 %v1467, 16
      %v1492 = vand.u32 %v1462, 65535
      %v1493 = vshrl.u32 %v1462, 16
      %v1494 = vmul.u32 %v1490, %v1492
      %v1495 = vmul.u32 %v1490, %v1493
      %v1496 = vmul.u32 %v1491, %v1492
      %v1497 = vmul.u32 %v1491, %v1493
      %v1498 = vshll.u32 %v1495, 16
      %v1499 = vshrl.u32 %v1495, 16
      %v1500 = vshll.u32 %v1496, 16
      %v1501 = vshrl.u32 %v1496, 16
      %vm1502 = vc.u32 %v1494, %v1498
      %v1503 = vsel %vm1502, 1, 0
      %v1504 = vadd.s32 %v1494, %v1498
      %v1505 = vadd.s32 %v1497, %v1503
      %vm1506 = vc.u32 %v1504, %v1500
      %v1507 = vsel %vm1506, 1, 0
      %v1508 = vadd.s32 %v1504, %v1500
      %v1509 = vadd.s32 %v1505, %v1507
      %v1510 = vadd.s32 %v1509, %v1499
      %v1511 = vadd.s32 %v1510, %v1501
      %v1512 = vmul.u32 %v1467, %v1458
      %v1513 = vadd.s32 %v1489, %v1508
      %vm1514 = vc.u32 %v1489, %v1508
      %v1515 = vadd.s32 %v1511, 1
      %v1516 = vsel %vm1514, %v1515, %v1511
      %v1517 = vadd.s32 %v1512, %v1516
      %v1518 = vadd.s32 %v1517, 536870912
      %v1519 = vshrl.u32 %v1518, 30
      %v1520 = vshll.u32 %v1519, 30
      %v1521 = vsub.s32 %v1517, %v1520
      %vm1522 = vcmp.lt.s32.totalorder %v1521, 0
      %v1523 = vsub.s32 0, %v1521
      %v1524 = vsel %vm1522, %v1523, %v1521
      %v1525 = vclz %v1524
      %v1526 = vsub.s32 %v1525, 2
      %vm1527 = vcmp.gt.s32.totalorder 0, %v1526
      %v1528 = vsel %vm1527, 0, %v1526
      %v1529 = vsub.s32 32, %v1528
      %v1530 = vshll.u32 %v1521, %v1528
      %v1531 = vshrl.u32 %v1513, %v1529
      %v1532 = vor.u32 %v1530, %v1531
      %v1533 = vsub.s32 4294967266, %v1528
      %v1534 = vadd.s32 %v1533, 127
      %v1535 = vshll.u32 %v1534, 23
      %v1536 = vor.u32 4788187, %v1535
      %v1537 = vand.u32 2147483647, %v1536
      %v1539 = vcvt.s32.f32 %v1532
      %v1540 = vmul.f32 %v1539, %v1537
      %v1541 = vxor.u32 %v1540, 2147483648
      %v1542 = vsel %vm1421, %v1541, %v1540
      %v1543 = vsub.s32 4, %v1519
      %v1544 = vsel %vm1421, %v1543, %v1519
      %v1545 = vsel %vm1420, %v638, %v1542
      %v1546 = vsel %vm1420, 0, %v1544
      %v1547 = vmul.f32 %v1545, %v1545
      %v1548 = vmul.f32 %v1547, -0.001358992
      %v1549 = vadd.f32 %v1548, 0.041655596
      %v1550 = vmul.f32 %v1547, %v1549
      %v1551 = vadd.f32 %v1550, -0.4999988
      %v1552 = vmul.f32 %v1547, %v1551
      %v1553 = vadd.f32 1.0, %v1552
      %v1554 = vmul.f32 %v1545, %v1545
      %v1555 = vmul.f32 %v1554, -0.00019511016
      %v1556 = vadd.f32 %v1555, 0.008332121
      %v1557 = vmul.f32 %v1554, %v1556
      %v1558 = vadd.f32 %v1557, -0.16666654
      %v1559 = vmul.f32 %v1554, %v1558
      %v1560 = vadd.f32 %v1559, 1.0
      %v1561 = vmul.f32 %v1560, %v1545
      %vm1562 = vweird.f32 %v638
      %v1563 = vand.u32 %v1546, 3
      %vm1564 = vcmp.lt.s32.totalorder %v1563, 2
      %vm1565 = vcmp.eq.s32.totalorder %v1563, 0
      %v1566 = vxor.u32 %v1561, 2147483648
      %v1567 = vsel %vm1565, %v1553, %v1566
      %vm1568 = vcmp.eq.s32.totalorder %v1563, 2
      %v1569 = vxor.u32 %v1553, 2147483648
      %v1570 = vsel %vm1568, %v1569, %v1561
      %v1571 = vsel %vm1564, %v1567, %v1570
      %v1572 = vsel %vm1562, nan, %v1571
      %v1573 = vand.u32 2147483647, %v639
      %vm1574 = vcmp.le.f32.partialorder %v1573, 0.7853982
      %vm1575 = vcmp.lt.s32.totalorder %v639, 0
      %v1576 = vand.u32 %v639, 2139095040
      %v1577 = vshrl.u32 %v1576, 23
      %v1578 = vsub.s32 %v1577, 127
      %v1579 = vand.u32 2147483647, %v639
      %v1580 = vand.u32 %v1579, 8388607
      %v1581 = vor.u32 %v1580, 8388608
      %v1582 = vsub.s32 0, %v1581
      %v1583 = vadd.s32 %v1578, 1
      %vm1584 = vcmp.gt.s32.totalorder %v1583, 0
      %v1585 = vsel %vm1584, %v1583, 0
      %v1586 = vshrl.u32 %v1585, 5
      %v1587 = vand.u32 %v1585, 31
      %v1588 = vsub.s32 32, %v1587
      %v1589 = vshrl.u32 683565275, %v1588
      %v1590 = vshll.u32 683565275, %v1587
      %v1591 = vshrl.u32 2475754826, %v1588
      %v1592 = vor.u32 %v1590, %v1591
      %v1593 = vshll.u32 2475754826, %v1587
      %v1594 = vshrl.u32 2131351028, %v1588
      %v1595 = vor.u32 %v1593, %v1594
      %v1596 = vshll.u32 2131351028, %v1587
      %v1597 = vshrl.u32 2102212464, %v1588
      %v1598 = vor.u32 %v1596, %v1597
      %v1599 = vshll.u32 2102212464, %v1587
      %v1600 = vshrl.u32 920167782, %v1588
      %v1601 = vor.u32 %v1599, %v1600
      %v1602 = vshll.u32 920167782, %v1587
      %v1603 = vshrl.u32 1326507024, %v1588
      %v1604 = vor.u32 %v1602, %v1603
      %vm1605 = vcmp.lt.s32.totalorder %v1586, 1
      %vm1606 = vcmp.lt.s32.totalorder %v1586, 2
      %vm1607 = vcmp.lt.s32.totalorder %v1586, 3
      %vm1608 = vcmp.lt.s32.totalorder %v1586, 4
      %v1609 = vsel %vm1605, %v1589, %v1592
      %v1610 = vsel %vm1608, %v1598, 2102212464
      %v1611 = vsel %vm1607, %v1595, %v1610
      %v1612 = vsel %vm1606, %v1609, %v1611
      %v1613 = vsel %vm1605, %v1592, %v1595
      %v1614 = vsel %vm1608, %v1601, 920167782
      %v1615 = vsel %vm1607, %v1598, %v1614
      %v1616 = vsel %vm1606, %v1613, %v1615
      %v1617 = vsel %vm1605, %v1595, %v1598
      %v1618 = vsel %vm1608, %v1604, 1326507024
      %v1619 = vsel %vm1607, %v1601, %v1618
      %v1620 = vsel %vm1606, %v1617, %v1619
      %v1621 = vshll.u32 %v1581, 8
      %v1622 = vand.u32 %v1621, 65535
      %v1623 = vshrl.u32 %v1621, 16
      %v1624 = vand.u32 %v1620, 65535
      %v1625 = vshrl.u32 %v1620, 16
      %v1626 = vmul.u32 %v1622, %v1624
      %v1627 = vmul.u32 %v1622, %v1625
      %v1628 = vmul.u32 %v1623, %v1624
      %v1629 = vmul.u32 %v1623, %v1625
      %v1630 = vshll.u32 %v1627, 16
      %v1631 = vshrl.u32 %v1627, 16
      %v1632 = vshll.u32 %v1628, 16
      %v1633 = vshrl.u32 %v1628, 16
      %vm1634 = vc.u32 %v1626, %v1630
      %v1635 = vsel %vm1634, 1, 0
      %v1636 = vadd.s32 %v1626, %v1630
      %v1637 = vadd.s32 %v1629, %v1635
      %vm1638 = vc.u32 %v1636, %v1632
      %v1639 = vsel %vm1638, 1, 0
      %v1640 = vadd.s32 %v1636, %v1632
      %v1641 = vadd.s32 %v1637, %v1639
      %v1642 = vadd.s32 %v1641, %v1631
      %v1643 = vadd.s32 %v1642, %v1633
      %v1644 = vand.u32 %v1621, 65535
      %v1645 = vshrl.u32 %v1621, 16
      %v1646 = vand.u32 %v1616, 65535
      %v1647 = vshrl.u32 %v1616, 16
      %v1648 = vmul.u32 %v1644, %v1646
      %v1649 = vmul.u32 %v1644, %v1647
      %v1650 = vmul.u32 %v1645, %v1646
      %v1651 = vmul.u32 %v1645, %v1647
      %v1652 = vshll.u32 %v1649, 16
      %v1653 = vshrl.u32 %v1649, 16
      %v1654 = vshll.u32 %v1650, 16
      %v1655 = vshrl.u32 %v1650, 16
      %vm1656 = vc.u32 %v1648, %v1652
      %v1657 = vsel %vm1656, 1, 0
      %v1658 = vadd.s32 %v1648, %v1652
      %v1659 = vadd.s32 %v1651, %v1657
      %vm1660 = vc.u32 %v1658, %v1654
      %v1661 = vsel %vm1660, 1, 0
      %v1662 = vadd.s32 %v1658, %v1654
      %v1663 = vadd.s32 %v1659, %v1661
      %v1664 = vadd.s32 %v1663, %v1653
      %v1665 = vadd.s32 %v1664, %v1655
      %v1666 = vmul.u32 %v1621, %v1612
      %v1667 = vadd.s32 %v1643, %v1662
      %vm1668 = vc.u32 %v1643, %v1662
      %v1669 = vadd.s32 %v1665, 1
      %v1670 = vsel %vm1668, %v1669, %v1665
      %v1671 = vadd.s32 %v1666, %v1670
      %v1672 = vadd.s32 %v1671, 536870912
      %v1673 = vshrl.u32 %v1672, 30
      %v1674 = vshll.u32 %v1673, 30
      %v1675 = vsub.s32 %v1671, %v1674
      %vm1676 = vcmp.lt.s32.totalorder %v1675, 0
      %v1677 = vsub.s32 0, %v1675
      %v1678 = vsel %vm1676, %v1677, %v1675
      %v1679 = vclz %v1678
      %v1680 = vsub.s32 %v1679, 2
      %vm1681 = vcmp.gt.s32.totalorder 0, %v1680
      %v1682 = vsel %vm1681, 0, %v1680
      %v1683 = vsub.s32 32, %v1682
      %v1684 = vshll.u32 %v1675, %v1682
      %v1685 = vshrl.u32 %v1667, %v1683
      %v1686 = vor.u32 %v1684, %v1685
      %v1687 = vsub.s32 4294967266, %v1682
      %v1688 = vadd.s32 %v1687, 127
      %v1689 = vshll.u32 %v1688, 23
      %v1690 = vor.u32 4788187, %v1689
      %v1691 = vand.u32 2147483647, %v1690
      %v1693 = vcvt.s32.f32 %v1686
      %v1694 = vmul.f32 %v1693, %v1691
      %v1695 = vxor.u32 %v1694, 2147483648
      %v1696 = vsel %vm1575, %v1695, %v1694
      %v1697 = vsub.s32 4, %v1673
      %v1698 = vsel %vm1575, %v1697, %v1673
      %v1699 = vsel %vm1574, %v639, %v1696
      %v1700 = vsel %vm1574, 0, %v1698
      %v1701 = vmul.f32 %v1699, %v1699
      %v1702 = vmul.f32 %v1701, -0.001358992
      %v1703 = vadd.f32 %v1702, 0.041655596
      %v1704 = vmul.f32 %v1701, %v1703
      %v1705 = vadd.f32 %v1704, -0.4999988
      %v1706 = vmul.f32 %v1701, %v1705
      %v1707 = vadd.f32 1.0, %v1706
      %v1708 = vmul.f32 %v1699, %v1699
      %v1709 = vmul.f32 %v1708, -0.00019511016
      %v1710 = vadd.f32 %v1709, 0.008332121
      %v1711 = vmul.f32 %v1708, %v1710
      %v1712 = vadd.f32 %v1711, -0.16666654
      %v1713 = vmul.f32 %v1708, %v1712
      %v1714 = vadd.f32 %v1713, 1.0
      %v1715 = vmul.f32 %v1714, %v1699
      %vm1716 = vweird.f32 %v639
      %v1717 = vand.u32 %v1700, 3
      %vm1718 = vcmp.lt.s32.totalorder %v1717, 2
      %vm1719 = vcmp.eq.s32.totalorder %v1717, 0
      %v1720 = vxor.u32 %v1715, 2147483648
      %v1721 = vsel %vm1719, %v1707, %v1720
      %vm1722 = vcmp.eq.s32.totalorder %v1717, 2
      %v1723 = vxor.u32 %v1707, 2147483648
      %v1724 = vsel %vm1722, %v1723, %v1715
      %v1725 = vsel %vm1718, %v1721, %v1724
      %v1726 = vsel %vm1716, nan, %v1725
      %v1727 = vand.u32 2147483647, %v640
      %vm1728 = vcmp.le.f32.partialorder %v1727, 0.7853982
      %vm1729 = vcmp.lt.s32.totalorder %v640, 0
      %v1730 = vand.u32 %v640, 2139095040
      %v1731 = vshrl.u32 %v1730, 23
      %v1732 = vsub.s32 %v1731, 127
      %v1733 = vand.u32 2147483647, %v640
      %v1734 = vand.u32 %v1733, 8388607
      %v1735 = vor.u32 %v1734, 8388608
      %v1736 = vsub.s32 0, %v1735
      %v1737 = vadd.s32 %v1732, 1
      %vm1738 = vcmp.gt.s32.totalorder %v1737, 0
      %v1739 = vsel %vm1738, %v1737, 0
      %v1740 = vshrl.u32 %v1739, 5
      %v1741 = vand.u32 %v1739, 31
      %v1742 = vsub.s32 32, %v1741
      %v1743 = vshrl.u32 683565275, %v1742
      %v1744 = vshll.u32 683565275, %v1741
      %v1745 = vshrl.u32 2475754826, %v1742
      %v1746 = vor.u32 %v1744, %v1745
      %v1747 = vshll.u32 2475754826, %v1741
      %v1748 = vshrl.u32 2131351028, %v1742
      %v1749 = vor.u32 %v1747, %v1748
      %v1750 = vshll.u32 2131351028, %v1741
      %v1751 = vshrl.u32 2102212464, %v1742
      %v1752 = vor.u32 %v1750, %v1751
      %v1753 = vshll.u32 2102212464, %v1741
      %v1754 = vshrl.u32 920167782, %v1742
      %v1755 = vor.u32 %v1753, %v1754
      %v1756 = vshll.u32 920167782, %v1741
      %v1757 = vshrl.u32 1326507024, %v1742
      %v1758 = vor.u32 %v1756, %v1757
      %vm1759 = vcmp.lt.s32.totalorder %v1740, 1
      %vm1760 = vcmp.lt.s32.totalorder %v1740, 2
      %vm1761 = vcmp.lt.s32.totalorder %v1740, 3
      %vm1762 = vcmp.lt.s32.totalorder %v1740, 4
      %v1763 = vsel %vm1759, %v1743, %v1746
      %v1764 = vsel %vm1762, %v1752, 2102212464
      %v1765 = vsel %vm1761, %v1749, %v1764
      %v1766 = vsel %vm1760, %v1763, %v1765
      %v1767 = vsel %vm1759, %v1746, %v1749
      %v1768 = vsel %vm1762, %v1755, 920167782
      %v1769 = vsel %vm1761, %v1752, %v1768
      %v1770 = vsel %vm1760, %v1767, %v1769
      %v1771 = vsel %vm1759, %v1749, %v1752
      %v1772 = vsel %vm1762, %v1758, 1326507024
      %v1773 = vsel %vm1761, %v1755, %v1772
      %v1774 = vsel %vm1760, %v1771, %v1773
      %v1775 = vshll.u32 %v1735, 8
      %v1776 = vand.u32 %v1775, 65535
      %v1777 = vshrl.u32 %v1775, 16
      %v1778 = vand.u32 %v1774, 65535
      %v1779 = vshrl.u32 %v1774, 16
      %v1780 = vmul.u32 %v1776, %v1778
      %v1781 = vmul.u32 %v1776, %v1779
      %v1782 = vmul.u32 %v1777, %v1778
      %v1783 = vmul.u32 %v1777, %v1779
      %v1784 = vshll.u32 %v1781, 16
      %v1785 = vshrl.u32 %v1781, 16
      %v1786 = vshll.u32 %v1782, 16
      %v1787 = vshrl.u32 %v1782, 16
      %vm1788 = vc.u32 %v1780, %v1784
      %v1789 = vsel %vm1788, 1, 0
      %v1790 = vadd.s32 %v1780, %v1784
      %v1791 = vadd.s32 %v1783, %v1789
      %vm1792 = vc.u32 %v1790, %v1786
      %v1793 = vsel %vm1792, 1, 0
      %v1794 = vadd.s32 %v1790, %v1786
      %v1795 = vadd.s32 %v1791, %v1793
      %v1796 = vadd.s32 %v1795, %v1785
      %v1797 = vadd.s32 %v1796, %v1787
      %v1798 = vand.u32 %v1775, 65535
      %v1799 = vshrl.u32 %v1775, 16
      %v1800 = vand.u32 %v1770, 65535
      %v1801 = vshrl.u32 %v1770, 16
      %v1802 = vmul.u32 %v1798, %v1800
      %v1803 = vmul.u32 %v1798, %v1801
      %v1804 = vmul.u32 %v1799, %v1800
      %v1805 = vmul.u32 %v1799, %v1801
      %v1806 = vshll.u32 %v1803, 16
      %v1807 = vshrl.u32 %v1803, 16
      %v1808 = vshll.u32 %v1804, 16
      %v1809 = vshrl.u32 %v1804, 16
      %vm1810 = vc.u32 %v1802, %v1806
      %v1811 = vsel %vm1810, 1, 0
      %v1812 = vadd.s32 %v1802, %v1806
      %v1813 = vadd.s32 %v1805, %v1811
      %vm1814 = vc.u32 %v1812, %v1808
      %v1815 = vsel %vm1814, 1, 0
      %v1816 = vadd.s32 %v1812, %v1808
      %v1817 = vadd.s32 %v1813, %v1815
      %v1818 = vadd.s32 %v1817, %v1807
      %v1819 = vadd.s32 %v1818, %v1809
      %v1820 = vmul.u32 %v1775, %v1766
      %v1821 = vadd.s32 %v1797, %v1816
      %vm1822 = vc.u32 %v1797, %v1816
      %v1823 = vadd.s32 %v1819, 1
      %v1824 = vsel %vm1822, %v1823, %v1819
      %v1825 = vadd.s32 %v1820, %v1824
      %v1826 = vadd.s32 %v1825, 536870912
      %v1827 = vshrl.u32 %v1826, 30
      %v1828 = vshll.u32 %v1827, 30
      %v1829 = vsub.s32 %v1825, %v1828
      %vm1830 = vcmp.lt.s32.totalorder %v1829, 0
      %v1831 = vsub.s32 0, %v1829
      %v1832 = vsel %vm1830, %v1831, %v1829
      %v1833 = vclz %v1832
      %v1834 = vsub.s32 %v1833, 2
      %vm1835 = vcmp.gt.s32.totalorder 0, %v1834
      %v1836 = vsel %vm1835, 0, %v1834
      %v1837 = vsub.s32 32, %v1836
      %v1838 = vshll.u32 %v1829, %v1836
      %v1839 = vshrl.u32 %v1821, %v1837
      %v1840 = vor.u32 %v1838, %v1839
      %v1841 = vsub.s32 4294967266, %v1836
      %v1842 = vadd.s32 %v1841, 127
      %v1843 = vshll.u32 %v1842, 23
      %v1844 = vor.u32 4788187, %v1843
      %v1845 = vand.u32 2147483647, %v1844
      %v1847 = vcvt.s32.f32 %v1840
      %v1848 = vmul.f32 %v1847, %v1845
      %v1849 = vxor.u32 %v1848, 2147483648
      %v1850 = vsel %vm1729, %v1849, %v1848
      %v1851 = vsub.s32 4, %v1827
      %v1852 = vsel %vm1729, %v1851, %v1827
      %v1853 = vsel %vm1728, %v640, %v1850
      %v1854 = vsel %vm1728, 0, %v1852
      %v1855 = vmul.f32 %v1853, %v1853
      %v1856 = vmul.f32 %v1855, -0.001358992
      %v1857 = vadd.f32 %v1856, 0.041655596
      %v1858 = vmul.f32 %v1855, %v1857
      %v1859 = vadd.f32 %v1858, -0.4999988
      %v1860 = vmul.f32 %v1855, %v1859
      %v1861 = vadd.f32 1.0, %v1860
      %v1862 = vmul.f32 %v1853, %v1853
      %v1863 = vmul.f32 %v1862, -0.00019511016
      %v1864 = vadd.f32 %v1863, 0.008332121
      %v1865 = vmul.f32 %v1862, %v1864
      %v1866 = vadd.f32 %v1865, -0.16666654
      %v1867 = vmul.f32 %v1862, %v1866
      %v1868 = vadd.f32 %v1867, 1.0
      %v1869 = vmul.f32 %v1868, %v1853
      %vm1870 = vweird.f32 %v640
      %v1871 = vand.u32 %v1854, 3
      %vm1872 = vcmp.lt.s32.totalorder %v1871, 2
      %vm1873 = vcmp.eq.s32.totalorder %v1871, 0
      %v1874 = vxor.u32 %v1869, 2147483648
      %v1875 = vsel %vm1873, %v1861, %v1874
      %vm1876 = vcmp.eq.s32.totalorder %v1871, 2
      %v1877 = vxor.u32 %v1861, 2147483648
      %v1878 = vsel %vm1876, %v1877, %v1869
      %v1879 = vsel %vm1872, %v1875, %v1878
      %v1880 = vsel %vm1870, nan, %v1879
      %v1881 = vand.u32 2147483647, %v641
      %vm1882 = vcmp.le.f32.partialorder %v1881, 0.7853982
      %vm1883 = vcmp.lt.s32.totalorder %v641, 0
      %v1884 = vand.u32 %v641, 2139095040
      %v1885 = vshrl.u32 %v1884, 23
      %v1886 = vsub.s32 %v1885, 127
      %v1887 = vand.u32 2147483647, %v641
      %v1888 = vand.u32 %v1887, 8388607
      %v1889 = vor.u32 %v1888, 8388608
      %v1890 = vsub.s32 0, %v1889
      %v1891 = vadd.s32 %v1886, 1
      %vm1892 = vcmp.gt.s32.totalorder %v1891, 0
      %v1893 = vsel %vm1892, %v1891, 0
      %v1894 = vshrl.u32 %v1893, 5
      %v1895 = vand.u32 %v1893, 31
      %v1896 = vsub.s32 32, %v1895
      %v1897 = vshrl.u32 683565275, %v1896
      %v1898 = vshll.u32 683565275, %v1895
      %v1899 = vshrl.u32 2475754826, %v1896
      %v1900 = vor.u32 %v1898, %v1899
      %v1901 = vshll.u32 2475754826, %v1895
      %v1902 = vshrl.u32 2131351028, %v1896
      %v1903 = vor.u32 %v1901, %v1902
      %v1904 = vshll.u32 2131351028, %v1895
      %v1905 = vshrl.u32 2102212464, %v1896
      %v1906 = vor.u32 %v1904, %v1905
      %v1907 = vshll.u32 2102212464, %v1895
      %v1908 = vshrl.u32 920167782, %v1896
      %v1909 = vor.u32 %v1907, %v1908
      %v1910 = vshll.u32 920167782, %v1895
      %v1911 = vshrl.u32 1326507024, %v1896
      %v1912 = vor.u32 %v1910, %v1911
      %vm1913 = vcmp.lt.s32.totalorder %v1894, 1
      %vm1914 = vcmp.lt.s32.totalorder %v1894, 2
      %vm1915 = vcmp.lt.s32.totalorder %v1894, 3
      %vm1916 = vcmp.lt.s32.totalorder %v1894, 4
      %v1917 = vsel %vm1913, %v1897, %v1900
      %v1918 = vsel %vm1916, %v1906, 2102212464
      %v1919 = vsel %vm1915, %v1903, %v1918
      %v1920 = vsel %vm1914, %v1917, %v1919
      %v1921 = vsel %vm1913, %v1900, %v1903
      %v1922 = vsel %vm1916, %v1909, 920167782
      %v1923 = vsel %vm1915, %v1906, %v1922
      %v1924 = vsel %vm1914, %v1921, %v1923
      %v1925 = vsel %vm1913, %v1903, %v1906
      %v1926 = vsel %vm1916, %v1912, 1326507024
      %v1927 = vsel %vm1915, %v1909, %v1926
      %v1928 = vsel %vm1914, %v1925, %v1927
      %v1929 = vshll.u32 %v1889, 8
      %v1930 = vand.u32 %v1929, 65535
      %v1931 = vshrl.u32 %v1929, 16
      %v1932 = vand.u32 %v1928, 65535
      %v1933 = vshrl.u32 %v1928, 16
      %v1934 = vmul.u32 %v1930, %v1932
      %v1935 = vmul.u32 %v1930, %v1933
      %v1936 = vmul.u32 %v1931, %v1932
      %v1937 = vmul.u32 %v1931, %v1933
      %v1938 = vshll.u32 %v1935, 16
      %v1939 = vshrl.u32 %v1935, 16
      %v1940 = vshll.u32 %v1936, 16
      %v1941 = vshrl.u32 %v1936, 16
      %vm1942 = vc.u32 %v1934, %v1938
      %v1943 = vsel %vm1942, 1, 0
      %v1944 = vadd.s32 %v1934, %v1938
      %v1945 = vadd.s32 %v1937, %v1943
      %vm1946 = vc.u32 %v1944, %v1940
      %v1947 = vsel %vm1946, 1, 0
      %v1948 = vadd.s32 %v1944, %v1940
      %v1949 = vadd.s32 %v1945, %v1947
      %v1950 = vadd.s32 %v1949, %v1939
      %v1951 = vadd.s32 %v1950, %v1941
      %v1952 = vand.u32 %v1929, 65535
      %v1953 = vshrl.u32 %v1929, 16
      %v1954 = vand.u32 %v1924, 65535
      %v1955 = vshrl.u32 %v1924, 16
      %v1956 = vmul.u32 %v1952, %v1954
      %v1957 = vmul.u32 %v1952, %v1955
      %v1958 = vmul.u32 %v1953, %v1954
      %v1959 = vmul.u32 %v1953, %v1955
      %v1960 = vshll.u32 %v1957, 16
      %v1961 = vshrl.u32 %v1957, 16
      %v1962 = vshll.u32 %v1958, 16
      %v1963 = vshrl.u32 %v1958, 16
      %vm1964 = vc.u32 %v1956, %v1960
      %v1965 = vsel %vm1964, 1, 0
      %v1966 = vadd.s32 %v1956, %v1960
      %v1967 = vadd.s32 %v1959, %v1965
      %vm1968 = vc.u32 %v1966, %v1962
      %v1969 = vsel %vm1968, 1, 0
      %v1970 = vadd.s32 %v1966, %v1962
      %v1971 = vadd.s32 %v1967, %v1969
      %v1972 = vadd.s32 %v1971, %v1961
      %v1973 = vadd.s32 %v1972, %v1963
      %v1974 = vmul.u32 %v1929, %v1920
      %v1975 = vadd.s32 %v1951, %v1970
      %vm1976 = vc.u32 %v1951, %v1970
      %v1977 = vadd.s32 %v1973, 1
      %v1978 = vsel %vm1976, %v1977, %v1973
      %v1979 = vadd.s32 %v1974, %v1978
      %v1980 = vadd.s32 %v1979, 536870912
      %v1981 = vshrl.u32 %v1980, 30
      %v1982 = vshll.u32 %v1981, 30
      %v1983 = vsub.s32 %v1979, %v1982
      %vm1984 = vcmp.lt.s32.totalorder %v1983, 0
      %v1985 = vsub.s32 0, %v1983
      %v1986 = vsel %vm1984, %v1985, %v1983
      %v1987 = vclz %v1986
      %v1988 = vsub.s32 %v1987, 2
      %vm1989 = vcmp.gt.s32.totalorder 0, %v1988
      %v1990 = vsel %vm1989, 0, %v1988
      %v1991 = vsub.s32 32, %v1990
      %v1992 = vshll.u32 %v1983, %v1990
      %v1993 = vshrl.u32 %v1975, %v1991
      %v1994 = vor.u32 %v1992, %v1993
      %v1995 = vsub.s32 4294967266, %v1990
      %v1996 = vadd.s32 %v1995, 127
      %v1997 = vshll.u32 %v1996, 23
      %v1998 = vor.u32 4788187, %v1997
      %v1999 = vand.u32 2147483647, %v1998
      %v2001 = vcvt.s32.f32 %v1994
      %v2002 = vmul.f32 %v2001, %v1999
      %v2003 = vxor.u32 %v2002, 2147483648
      %v2004 = vsel %vm1883, %v2003, %v2002
      %v2005 = vsub.s32 4, %v1981
      %v2006 = vsel %vm1883, %v2005, %v1981
      %v2007 = vsel %vm1882, %v641, %v2004
      %v2008 = vsel %vm1882, 0, %v2006
      %v2009 = vmul.f32 %v2007, %v2007
      %v2010 = vmul.f32 %v2009, -0.001358992
      %v2011 = vadd.f32 %v2010, 0.041655596
      %v2012 = vmul.f32 %v2009, %v2011
      %v2013 = vadd.f32 %v2012, -0.4999988
      %v2014 = vmul.f32 %v2009, %v2013
      %v2015 = vadd.f32 1.0, %v2014
      %v2016 = vmul.f32 %v2007, %v2007
      %v2017 = vmul.f32 %v2016, -0.00019511016
      %v2018 = vadd.f32 %v2017, 0.008332121
      %v2019 = vmul.f32 %v2016, %v2018
      %v2020 = vadd.f32 %v2019, -0.16666654
      %v2021 = vmul.f32 %v2016, %v2020
      %v2022 = vadd.f32 %v2021, 1.0
      %v2023 = vmul.f32 %v2022, %v2007
      %vm2024 = vweird.f32 %v641
      %v2025 = vand.u32 %v2008, 3
      %vm2026 = vcmp.lt.s32.totalorder %v2025, 2
      %vm2027 = vcmp.eq.s32.totalorder %v2025, 0
      %v2028 = vxor.u32 %v2023, 2147483648
      %v2029 = vsel %vm2027, %v2015, %v2028
      %vm2030 = vcmp.eq.s32.totalorder %v2025, 2
      %v2031 = vxor.u32 %v2015, 2147483648
      %v2032 = vsel %vm2030, %v2031, %v2023
      %v2033 = vsel %vm2026, %v2029, %v2032
      %v2034 = vsel %vm2024, nan, %v2033
      %v2035 = vand.u32 2147483647, %v642
      %vm2036 = vcmp.le.f32.partialorder %v2035, 0.7853982
      %vm2037 = vcmp.lt.s32.totalorder %v642, 0
      %v2038 = vand.u32 %v642, 2139095040
      %v2039 = vshrl.u32 %v2038, 23
      %v2040 = vsub.s32 %v2039, 127
      %v2041 = vand.u32 2147483647, %v642
      %v2042 = vand.u32 %v2041, 8388607
      %v2043 = vor.u32 %v2042, 8388608
      %v2044 = vsub.s32 0, %v2043
      %v2045 = vadd.s32 %v2040, 1
      %vm2046 = vcmp.gt.s32.totalorder %v2045, 0
      %v2047 = vsel %vm2046, %v2045, 0
      %v2048 = vshrl.u32 %v2047, 5
      %v2049 = vand.u32 %v2047, 31
      %v2050 = vsub.s32 32, %v2049
      %v2051 = vshrl.u32 683565275, %v2050
      %v2052 = vshll.u32 683565275, %v2049
      %v2053 = vshrl.u32 2475754826, %v2050
      %v2054 = vor.u32 %v2052, %v2053
      %v2055 = vshll.u32 2475754826, %v2049
      %v2056 = vshrl.u32 2131351028, %v2050
      %v2057 = vor.u32 %v2055, %v2056
      %v2058 = vshll.u32 2131351028, %v2049
      %v2059 = vshrl.u32 2102212464, %v2050
      %v2060 = vor.u32 %v2058, %v2059
      %v2061 = vshll.u32 2102212464, %v2049
      %v2062 = vshrl.u32 920167782, %v2050
      %v2063 = vor.u32 %v2061, %v2062
      %v2064 = vshll.u32 920167782, %v2049
      %v2065 = vshrl.u32 1326507024, %v2050
      %v2066 = vor.u32 %v2064, %v2065
      %vm2067 = vcmp.lt.s32.totalorder %v2048, 1
      %vm2068 = vcmp.lt.s32.totalorder %v2048, 2
      %vm2069 = vcmp.lt.s32.totalorder %v2048, 3
      %vm2070 = vcmp.lt.s32.totalorder %v2048, 4
      %v2071 = vsel %vm2067, %v2051, %v2054
      %v2072 = vsel %vm2070, %v2060, 2102212464
      %v2073 = vsel %vm2069, %v2057, %v2072
      %v2074 = vsel %vm2068, %v2071, %v2073
      %v2075 = vsel %vm2067, %v2054, %v2057
      %v2076 = vsel %vm2070, %v2063, 920167782
      %v2077 = vsel %vm2069, %v2060, %v2076
      %v2078 = vsel %vm2068, %v2075, %v2077
      %v2079 = vsel %vm2067, %v2057, %v2060
      %v2080 = vsel %vm2070, %v2066, 1326507024
      %v2081 = vsel %vm2069, %v2063, %v2080
      %v2082 = vsel %vm2068, %v2079, %v2081
      %v2083 = vshll.u32 %v2043, 8
      %v2084 = vand.u32 %v2083, 65535
      %v2085 = vshrl.u32 %v2083, 16
      %v2086 = vand.u32 %v2082, 65535
      %v2087 = vshrl.u32 %v2082, 16
      %v2088 = vmul.u32 %v2084, %v2086
      %v2089 = vmul.u32 %v2084, %v2087
      %v2090 = vmul.u32 %v2085, %v2086
      %v2091 = vmul.u32 %v2085, %v2087
      %v2092 = vshll.u32 %v2089, 16
      %v2093 = vshrl.u32 %v2089, 16
      %v2094 = vshll.u32 %v2090, 16
      %v2095 = vshrl.u32 %v2090, 16
      %vm2096 = vc.u32 %v2088, %v2092
      %v2097 = vsel %vm2096, 1, 0
      %v2098 = vadd.s32 %v2088, %v2092
      %v2099 = vadd.s32 %v2091, %v2097
      %vm2100 = vc.u32 %v2098, %v2094
      %v2101 = vsel %vm2100, 1, 0
      %v2102 = vadd.s32 %v2098, %v2094
      %v2103 = vadd.s32 %v2099, %v2101
      %v2104 = vadd.s32 %v2103, %v2093
      %v2105 = vadd.s32 %v2104, %v2095
      %v2106 = vand.u32 %v2083, 65535
      %v2107 = vshrl.u32 %v2083, 16
      %v2108 = vand.u32 %v2078, 65535
      %v2109 = vshrl.u32 %v2078, 16
      %v2110 = vmul.u32 %v2106, %v2108
      %v2111 = vmul.u32 %v2106, %v2109
      %v2112 = vmul.u32 %v2107, %v2108
      %v2113 = vmul.u32 %v2107, %v2109
      %v2114 = vshll.u32 %v2111, 16
      %v2115 = vshrl.u32 %v2111, 16
      %v2116 = vshll.u32 %v2112, 16
      %v2117 = vshrl.u32 %v2112, 16
      %vm2118 = vc.u32 %v2110, %v2114
      %v2119 = vsel %vm2118, 1, 0
      %v2120 = vadd.s32 %v2110, %v2114
      %v2121 = vadd.s32 %v2113, %v2119
      %vm2122 = vc.u32 %v2120, %v2116
      %v2123 = vsel %vm2122, 1, 0
      %v2124 = vadd.s32 %v2120, %v2116
      %v2125 = vadd.s32 %v2121, %v2123
      %v2126 = vadd.s32 %v2125, %v2115
      %v2127 = vadd.s32 %v2126, %v2117
      %v2128 = vmul.u32 %v2083, %v2074
      %v2129 = vadd.s32 %v2105, %v2124
      %vm2130 = vc.u32 %v2105, %v2124
      %v2131 = vadd.s32 %v2127, 1
      %v2132 = vsel %vm2130, %v2131, %v2127
      %v2133 = vadd.s32 %v2128, %v2132
      %v2134 = vadd.s32 %v2133, 536870912
      %v2135 = vshrl.u32 %v2134, 30
      %v2136 = vshll.u32 %v2135, 30
      %v2137 = vsub.s32 %v2133, %v2136
      %vm2138 = vcmp.lt.s32.totalorder %v2137, 0
      %v2139 = vsub.s32 0, %v2137
      %v2140 = vsel %vm2138, %v2139, %v2137
      %v2141 = vclz %v2140
      %v2142 = vsub.s32 %v2141, 2
      %vm2143 = vcmp.gt.s32.totalorder 0, %v2142
      %v2144 = vsel %vm2143, 0, %v2142
      %v2145 = vsub.s32 32, %v2144
      %v2146 = vshll.u32 %v2137, %v2144
      %v2147 = vshrl.u32 %v2129, %v2145
      %v2148 = vor.u32 %v2146, %v2147
      %v2149 = vsub.s32 4294967266, %v2144
      %v2150 = vadd.s32 %v2149, 127
      %v2151 = vshll.u32 %v2150, 23
      %v2152 = vor.u32 4788187, %v2151
      %v2153 = vand.u32 2147483647, %v2152
      %v2155 = vcvt.s32.f32 %v2148
      %v2156 = vmul.f32 %v2155, %v2153
      %v2157 = vxor.u32 %v2156, 2147483648
      %v2158 = vsel %vm2037, %v2157, %v2156
      %v2159 = vsub.s32 4, %v2135
      %v2160 = vsel %vm2037, %v2159, %v2135
      %v2161 = vsel %vm2036, %v642, %v2158
      %v2162 = vsel %vm2036, 0, %v2160
      %v2163 = vmul.f32 %v2161, %v2161
      %v2164 = vmul.f32 %v2163, -0.001358992
      %v2165 = vadd.f32 %v2164, 0.041655596
      %v2166 = vmul.f32 %v2163, %v2165
      %v2167 = vadd.f32 %v2166, -0.4999988
      %v2168 = vmul.f32 %v2163, %v2167
      %v2169 = vadd.f32 1.0, %v2168
      %v2170 = vmul.f32 %v2161, %v2161
      %v2171 = vmul.f32 %v2170, -0.00019511016
      %v2172 = vadd.f32 %v2171, 0.008332121
      %v2173 = vmul.f32 %v2170, %v2172
      %v2174 = vadd.f32 %v2173, -0.16666654
      %v2175 = vmul.f32 %v2170, %v2174
      %v2176 = vadd.f32 %v2175, 1.0
      %v2177 = vmul.f32 %v2176, %v2161
      %vm2178 = vweird.f32 %v642
      %v2179 = vand.u32 %v2162, 3
      %vm2180 = vcmp.lt.s32.totalorder %v2179, 2
      %vm2181 = vcmp.eq.s32.totalorder %v2179, 0
      %v2182 = vxor.u32 %v2177, 2147483648
      %v2183 = vsel %vm2181, %v2169, %v2182
      %vm2184 = vcmp.eq.s32.totalorder %v2179, 2
      %v2185 = vxor.u32 %v2169, 2147483648
      %v2186 = vsel %vm2184, %v2185, %v2177
      %v2187 = vsel %vm2180, %v2183, %v2186
      %v2188 = vsel %vm2178, nan, %v2187
      %v2189 = vand.u32 2147483647, %v643
      %vm2190 = vcmp.le.f32.partialorder %v2189, 0.7853982
      %vm2191 = vcmp.lt.s32.totalorder %v643, 0
      %v2192 = vand.u32 %v643, 2139095040
      %v2193 = vshrl.u32 %v2192, 23
      %v2194 = vsub.s32 %v2193, 127
      %v2195 = vand.u32 2147483647, %v643
      %v2196 = vand.u32 %v2195, 8388607
      %v2197 = vor.u32 %v2196, 8388608
      %v2198 = vsub.s32 0, %v2197
      %v2199 = vadd.s32 %v2194, 1
      %vm2200 = vcmp.gt.s32.totalorder %v2199, 0
      %v2201 = vsel %vm2200, %v2199, 0
      %v2202 = vshrl.u32 %v2201, 5
      %v2203 = vand.u32 %v2201, 31
      %v2204 = vsub.s32 32, %v2203
      %v2205 = vshrl.u32 683565275, %v2204
      %v2206 = vshll.u32 683565275, %v2203
      %v2207 = vshrl.u32 2475754826, %v2204
      %v2208 = vor.u32 %v2206, %v2207
      %v2209 = vshll.u32 2475754826, %v2203
      %v2210 = vshrl.u32 2131351028, %v2204
      %v2211 = vor.u32 %v2209, %v2210
      %v2212 = vshll.u32 2131351028, %v2203
      %v2213 = vshrl.u32 2102212464, %v2204
      %v2214 = vor.u32 %v2212, %v2213
      %v2215 = vshll.u32 2102212464, %v2203
      %v2216 = vshrl.u32 920167782, %v2204
      %v2217 = vor.u32 %v2215, %v2216
      %v2218 = vshll.u32 920167782, %v2203
      %v2219 = vshrl.u32 1326507024, %v2204
      %v2220 = vor.u32 %v2218, %v2219
      %vm2221 = vcmp.lt.s32.totalorder %v2202, 1
      %vm2222 = vcmp.lt.s32.totalorder %v2202, 2
      %vm2223 = vcmp.lt.s32.totalorder %v2202, 3
      %vm2224 = vcmp.lt.s32.totalorder %v2202, 4
      %v2225 = vsel %vm2221, %v2205, %v2208
      %v2226 = vsel %vm2224, %v2214, 2102212464
      %v2227 = vsel %vm2223, %v2211, %v2226
      %v2228 = vsel %vm2222, %v2225, %v2227
      %v2229 = vsel %vm2221, %v2208, %v2211
      %v2230 = vsel %vm2224, %v2217, 920167782
      %v2231 = vsel %vm2223, %v2214, %v2230
      %v2232 = vsel %vm2222, %v2229, %v2231
      %v2233 = vsel %vm2221, %v2211, %v2214
      %v2234 = vsel %vm2224, %v2220, 1326507024
      %v2235 = vsel %vm2223, %v2217, %v2234
      %v2236 = vsel %vm2222, %v2233, %v2235
      %v2237 = vshll.u32 %v2197, 8
      %v2238 = vand.u32 %v2237, 65535
      %v2239 = vshrl.u32 %v2237, 16
      %v2240 = vand.u32 %v2236, 65535
      %v2241 = vshrl.u32 %v2236, 16
      %v2242 = vmul.u32 %v2238, %v2240
      %v2243 = vmul.u32 %v2238, %v2241
      %v2244 = vmul.u32 %v2239, %v2240
      %v2245 = vmul.u32 %v2239, %v2241
      %v2246 = vshll.u32 %v2243, 16
      %v2247 = vshrl.u32 %v2243, 16
      %v2248 = vshll.u32 %v2244, 16
      %v2249 = vshrl.u32 %v2244, 16
      %vm2250 = vc.u32 %v2242, %v2246
      %v2251 = vsel %vm2250, 1, 0
      %v2252 = vadd.s32 %v2242, %v2246
      %v2253 = vadd.s32 %v2245, %v2251
      %vm2254 = vc.u32 %v2252, %v2248
      %v2255 = vsel %vm2254, 1, 0
      %v2256 = vadd.s32 %v2252, %v2248
      %v2257 = vadd.s32 %v2253, %v2255
      %v2258 = vadd.s32 %v2257, %v2247
      %v2259 = vadd.s32 %v2258, %v2249
      %v2260 = vand.u32 %v2237, 65535
      %v2261 = vshrl.u32 %v2237, 16
      %v2262 = vand.u32 %v2232, 65535
      %v2263 = vshrl.u32 %v2232, 16
      %v2264 = vmul.u32 %v2260, %v2262
      %v2265 = vmul.u32 %v2260, %v2263
      %v2266 = vmul.u32 %v2261, %v2262
      %v2267 = vmul.u32 %v2261, %v2263
      %v2268 = vshll.u32 %v2265, 16
      %v2269 = vshrl.u32 %v2265, 16
      %v2270 = vshll.u32 %v2266, 16
      %v2271 = vshrl.u32 %v2266, 16
      %vm2272 = vc.u32 %v2264, %v2268
      %v2273 = vsel %vm2272, 1, 0
      %v2274 = vadd.s32 %v2264, %v2268
      %v2275 = vadd.s32 %v2267, %v2273
      %vm2276 = vc.u32 %v2274, %v2270
      %v2277 = vsel %vm2276, 1, 0
      %v2278 = vadd.s32 %v2274, %v2270
      %v2279 = vadd.s32 %v2275, %v2277
      %v2280 = vadd.s32 %v2279, %v2269
      %v2281 = vadd.s32 %v2280, %v2271
      %v2282 = vmul.u32 %v2237, %v2228
      %v2283 = vadd.s32 %v2259, %v2278
      %vm2284 = vc.u32 %v2259, %v2278
      %v2285 = vadd.s32 %v2281, 1
      %v2286 = vsel %vm2284, %v2285, %v2281
      %v2287 = vadd.s32 %v2282, %v2286
      %v2288 = vadd.s32 %v2287, 536870912
      %v2289 = vshrl.u32 %v2288, 30
      %v2290 = vshll.u32 %v2289, 30
      %v2291 = vsub.s32 %v2287, %v2290
      %vm2292 = vcmp.lt.s32.totalorder %v2291, 0
      %v2293 = vsub.s32 0, %v2291
      %v2294 = vsel %vm2292, %v2293, %v2291
      %v2295 = vclz %v2294
      %v2296 = vsub.s32 %v2295, 2
      %vm2297 = vcmp.gt.s32.totalorder 0, %v2296
      %v2298 = vsel %vm2297, 0, %v2296
      %v2299 = vsub.s32 32, %v2298
      %v2300 = vshll.u32 %v2291, %v2298
      %v2301 = vshrl.u32 %v2283, %v2299
      %v2302 = vor.u32 %v2300, %v2301
      %v2303 = vsub.s32 4294967266, %v2298
      %v2304 = vadd.s32 %v2303, 127
      %v2305 = vshll.u32 %v2304, 23
      %v2306 = vor.u32 4788187, %v2305
      %v2307 = vand.u32 2147483647, %v2306
      %v2309 = vcvt.s32.f32 %v2302
      %v2310 = vmul.f32 %v2309, %v2307
      %v2311 = vxor.u32 %v2310, 2147483648
      %v2312 = vsel %vm2191, %v2311, %v2310
      %v2313 = vsub.s32 4, %v2289
      %v2314 = vsel %vm2191, %v2313, %v2289
      %v2315 = vsel %vm2190, %v643, %v2312
      %v2316 = vsel %vm2190, 0, %v2314
      %v2317 = vmul.f32 %v2315, %v2315
      %v2318 = vmul.f32 %v2317, -0.001358992
      %v2319 = vadd.f32 %v2318, 0.041655596
      %v2320 = vmul.f32 %v2317, %v2319
      %v2321 = vadd.f32 %v2320, -0.4999988
      %v2322 = vmul.f32 %v2317, %v2321
      %v2323 = vadd.f32 1.0, %v2322
      %v2324 = vmul.f32 %v2315, %v2315
      %v2325 = vmul.f32 %v2324, -0.00019511016
      %v2326 = vadd.f32 %v2325, 0.008332121
      %v2327 = vmul.f32 %v2324, %v2326
      %v2328 = vadd.f32 %v2327, -0.16666654
      %v2329 = vmul.f32 %v2324, %v2328
      %v2330 = vadd.f32 %v2329, 1.0
      %v2331 = vmul.f32 %v2330, %v2315
      %vm2332 = vweird.f32 %v643
      %v2333 = vand.u32 %v2316, 3
      %vm2334 = vcmp.lt.s32.totalorder %v2333, 2
      %vm2335 = vcmp.eq.s32.totalorder %v2333, 0
      %v2336 = vxor.u32 %v2331, 2147483648
      %v2337 = vsel %vm2335, %v2323, %v2336
      %vm2338 = vcmp.eq.s32.totalorder %v2333, 2
      %v2339 = vxor.u32 %v2323, 2147483648
      %v2340 = vsel %vm2338, %v2339, %v2331
      %v2341 = vsel %vm2334, %v2337, %v2340
      %v2342 = vsel %vm2332, nan, %v2341
      %v2343 = vand.u32 2147483647, %v644
      %vm2344 = vcmp.le.f32.partialorder %v2343, 0.7853982
      %vm2345 = vcmp.lt.s32.totalorder %v644, 0
      %v2346 = vand.u32 %v644, 2139095040
      %v2347 = vshrl.u32 %v2346, 23
      %v2348 = vsub.s32 %v2347, 127
      %v2349 = vand.u32 2147483647, %v644
      %v2350 = vand.u32 %v2349, 8388607
      %v2351 = vor.u32 %v2350, 8388608
      %v2352 = vsub.s32 0, %v2351
      %v2353 = vadd.s32 %v2348, 1
      %vm2354 = vcmp.gt.s32.totalorder %v2353, 0
      %v2355 = vsel %vm2354, %v2353, 0
      %v2356 = vshrl.u32 %v2355, 5
      %v2357 = vand.u32 %v2355, 31
      %v2358 = vsub.s32 32, %v2357
      %v2359 = vshrl.u32 683565275, %v2358
      %v2360 = vshll.u32 683565275, %v2357
      %v2361 = vshrl.u32 2475754826, %v2358
      %v2362 = vor.u32 %v2360, %v2361
      %v2363 = vshll.u32 2475754826, %v2357
      %v2364 = vshrl.u32 2131351028, %v2358
      %v2365 = vor.u32 %v2363, %v2364
      %v2366 = vshll.u32 2131351028, %v2357
      %v2367 = vshrl.u32 2102212464, %v2358
      %v2368 = vor.u32 %v2366, %v2367
      %v2369 = vshll.u32 2102212464, %v2357
      %v2370 = vshrl.u32 920167782, %v2358
      %v2371 = vor.u32 %v2369, %v2370
      %v2372 = vshll.u32 920167782, %v2357
      %v2373 = vshrl.u32 1326507024, %v2358
      %v2374 = vor.u32 %v2372, %v2373
      %vm2375 = vcmp.lt.s32.totalorder %v2356, 1
      %vm2376 = vcmp.lt.s32.totalorder %v2356, 2
      %vm2377 = vcmp.lt.s32.totalorder %v2356, 3
      %vm2378 = vcmp.lt.s32.totalorder %v2356, 4
      %v2379 = vsel %vm2375, %v2359, %v2362
      %v2380 = vsel %vm2378, %v2368, 2102212464
      %v2381 = vsel %vm2377, %v2365, %v2380
      %v2382 = vsel %vm2376, %v2379, %v2381
      %v2383 = vsel %vm2375, %v2362, %v2365
      %v2384 = vsel %vm2378, %v2371, 920167782
      %v2385 = vsel %vm2377, %v2368, %v2384
      %v2386 = vsel %vm2376, %v2383, %v2385
      %v2387 = vsel %vm2375, %v2365, %v2368
      %v2388 = vsel %vm2378, %v2374, 1326507024
      %v2389 = vsel %vm2377, %v2371, %v2388
      %v2390 = vsel %vm2376, %v2387, %v2389
      %v2391 = vshll.u32 %v2351, 8
      %v2392 = vand.u32 %v2391, 65535
      %v2393 = vshrl.u32 %v2391, 16
      %v2394 = vand.u32 %v2390, 65535
      %v2395 = vshrl.u32 %v2390, 16
      %v2396 = vmul.u32 %v2392, %v2394
      %v2397 = vmul.u32 %v2392, %v2395
      %v2398 = vmul.u32 %v2393, %v2394
      %v2399 = vmul.u32 %v2393, %v2395
      %v2400 = vshll.u32 %v2397, 16
      %v2401 = vshrl.u32 %v2397, 16
      %v2402 = vshll.u32 %v2398, 16
      %v2403 = vshrl.u32 %v2398, 16
      %vm2404 = vc.u32 %v2396, %v2400
      %v2405 = vsel %vm2404, 1, 0
      %v2406 = vadd.s32 %v2396, %v2400
      %v2407 = vadd.s32 %v2399, %v2405
      %vm2408 = vc.u32 %v2406, %v2402
      %v2409 = vsel %vm2408, 1, 0
      %v2410 = vadd.s32 %v2406, %v2402
      %v2411 = vadd.s32 %v2407, %v2409
      %v2412 = vadd.s32 %v2411, %v2401
      %v2413 = vadd.s32 %v2412, %v2403
      %v2414 = vand.u32 %v2391, 65535
      %v2415 = vshrl.u32 %v2391, 16
      %v2416 = vand.u32 %v2386, 65535
      %v2417 = vshrl.u32 %v2386, 16
      %v2418 = vmul.u32 %v2414, %v2416
      %v2419 = vmul.u32 %v2414, %v2417
      %v2420 = vmul.u32 %v2415, %v2416
      %v2421 = vmul.u32 %v2415, %v2417
      %v2422 = vshll.u32 %v2419, 16
      %v2423 = vshrl.u32 %v2419, 16
      %v2424 = vshll.u32 %v2420, 16
      %v2425 = vshrl.u32 %v2420, 16
      %vm2426 = vc.u32 %v2418, %v2422
      %v2427 = vsel %vm2426, 1, 0
      %v2428 = vadd.s32 %v2418, %v2422
      %v2429 = vadd.s32 %v2421, %v2427
      %vm2430 = vc.u32 %v2428, %v2424
      %v2431 = vsel %vm2430, 1, 0
      %v2432 = vadd.s32 %v2428, %v2424
      %v2433 = vadd.s32 %v2429, %v2431
      %v2434 = vadd.s32 %v2433, %v2423
      %v2435 = vadd.s32 %v2434, %v2425
      %v2436 = vmul.u32 %v2391, %v2382
      %v2437 = vadd.s32 %v2413, %v2432
      %vm2438 = vc.u32 %v2413, %v2432
      %v2439 = vadd.s32 %v2435, 1
      %v2440 = vsel %vm2438, %v2439, %v2435
      %v2441 = vadd.s32 %v2436, %v2440
      %v2442 = vadd.s32 %v2441, 536870912
      %v2443 = vshrl.u32 %v2442, 30
      %v2444 = vshll.u32 %v2443, 30
      %v2445 = vsub.s32 %v2441, %v2444
      %vm2446 = vcmp.lt.s32.totalorder %v2445, 0
      %v2447 = vsub.s32 0, %v2445
      %v2448 = vsel %vm2446, %v2447, %v2445
      %v2449 = vclz %v2448
      %v2450 = vsub.s32 %v2449, 2
      %vm2451 = vcmp.gt.s32.totalorder 0, %v2450
      %v2452 = vsel %vm2451, 0, %v2450
      %v2453 = vsub.s32 32, %v2452
      %v2454 = vshll.u32 %v2445, %v2452
      %v2455 = vshrl.u32 %v2437, %v2453
      %v2456 = vor.u32 %v2454, %v2455
      %v2457 = vsub.s32 4294967266, %v2452
      %v2458 = vadd.s32 %v2457, 127
      %v2459 = vshll.u32 %v2458, 23
      %v2460 = vor.u32 4788187, %v2459
      %v2461 = vand.u32 2147483647, %v2460
      %v2463 = vcvt.s32.f32 %v2456
      %v2464 = vmul.f32 %v2463, %v2461
      %v2465 = vxor.u32 %v2464, 2147483648
      %v2466 = vsel %vm2345, %v2465, %v2464
      %v2467 = vsub.s32 4, %v2443
      %v2468 = vsel %vm2345, %v2467, %v2443
      %v2469 = vsel %vm2344, %v644, %v2466
      %v2470 = vsel %vm2344, 0, %v2468
      %v2471 = vmul.f32 %v2469, %v2469
      %v2472 = vmul.f32 %v2471, -0.001358992
      %v2473 = vadd.f32 %v2472, 0.041655596
      %v2474 = vmul.f32 %v2471, %v2473
      %v2475 = vadd.f32 %v2474, -0.4999988
      %v2476 = vmul.f32 %v2471, %v2475
      %v2477 = vadd.f32 1.0, %v2476
      %v2478 = vmul.f32 %v2469, %v2469
      %v2479 = vmul.f32 %v2478, -0.00019511016
      %v2480 = vadd.f32 %v2479, 0.008332121
      %v2481 = vmul.f32 %v2478, %v2480
      %v2482 = vadd.f32 %v2481, -0.16666654
      %v2483 = vmul.f32 %v2478, %v2482
      %v2484 = vadd.f32 %v2483, 1.0
      %v2485 = vmul.f32 %v2484, %v2469
      %vm2486 = vweird.f32 %v644
      %v2487 = vand.u32 %v2470, 3
      %vm2488 = vcmp.lt.s32.totalorder %v2487, 2
      %vm2489 = vcmp.eq.s32.totalorder %v2487, 0
      %v2490 = vxor.u32 %v2485, 2147483648
      %v2491 = vsel %vm2489, %v2477, %v2490
      %vm2492 = vcmp.eq.s32.totalorder %v2487, 2
      %v2493 = vxor.u32 %v2477, 2147483648
      %v2494 = vsel %vm2492, %v2493, %v2485
      %v2495 = vsel %vm2488, %v2491, %v2494
      %v2496 = vsel %vm2486, nan, %v2495
      %v2497 = vand.u32 2147483647, %v645
      %vm2498 = vcmp.le.f32.partialorder %v2497, 0.7853982
      %vm2499 = vcmp.lt.s32.totalorder %v645, 0
      %v2500 = vand.u32 %v645, 2139095040
      %v2501 = vshrl.u32 %v2500, 23
      %v2502 = vsub.s32 %v2501, 127
      %v2503 = vand.u32 2147483647, %v645
      %v2504 = vand.u32 %v2503, 8388607
      %v2505 = vor.u32 %v2504, 8388608
      %v2506 = vsub.s32 0, %v2505
      %v2507 = vadd.s32 %v2502, 1
      %vm2508 = vcmp.gt.s32.totalorder %v2507, 0
      %v2509 = vsel %vm2508, %v2507, 0
      %v2510 = vshrl.u32 %v2509, 5
      %v2511 = vand.u32 %v2509, 31
      %v2512 = vsub.s32 32, %v2511
      %v2513 = vshrl.u32 683565275, %v2512
      %v2514 = vshll.u32 683565275, %v2511
      %v2515 = vshrl.u32 2475754826, %v2512
      %v2516 = vor.u32 %v2514, %v2515
      %v2517 = vshll.u32 2475754826, %v2511
      %v2518 = vshrl.u32 2131351028, %v2512
      %v2519 = vor.u32 %v2517, %v2518
      %v2520 = vshll.u32 2131351028, %v2511
      %v2521 = vshrl.u32 2102212464, %v2512
      %v2522 = vor.u32 %v2520, %v2521
      %v2523 = vshll.u32 2102212464, %v2511
      %v2524 = vshrl.u32 920167782, %v2512
      %v2525 = vor.u32 %v2523, %v2524
      %v2526 = vshll.u32 920167782, %v2511
      %v2527 = vshrl.u32 1326507024, %v2512
      %v2528 = vor.u32 %v2526, %v2527
      %vm2529 = vcmp.lt.s32.totalorder %v2510, 1
      %vm2530 = vcmp.lt.s32.totalorder %v2510, 2
      %vm2531 = vcmp.lt.s32.totalorder %v2510, 3
      %vm2532 = vcmp.lt.s32.totalorder %v2510, 4
      %v2533 = vsel %vm2529, %v2513, %v2516
      %v2534 = vsel %vm2532, %v2522, 2102212464
      %v2535 = vsel %vm2531, %v2519, %v2534
      %v2536 = vsel %vm2530, %v2533, %v2535
      %v2537 = vsel %vm2529, %v2516, %v2519
      %v2538 = vsel %vm2532, %v2525, 920167782
      %v2539 = vsel %vm2531, %v2522, %v2538
      %v2540 = vsel %vm2530, %v2537, %v2539
      %v2541 = vsel %vm2529, %v2519, %v2522
      %v2542 = vsel %vm2532, %v2528, 1326507024
      %v2543 = vsel %vm2531, %v2525, %v2542
      %v2544 = vsel %vm2530, %v2541, %v2543
      %v2545 = vshll.u32 %v2505, 8
      %v2546 = vand.u32 %v2545, 65535
      %v2547 = vshrl.u32 %v2545, 16
      %v2548 = vand.u32 %v2544, 65535
      %v2549 = vshrl.u32 %v2544, 16
      %v2550 = vmul.u32 %v2546, %v2548
      %v2551 = vmul.u32 %v2546, %v2549
      %v2552 = vmul.u32 %v2547, %v2548
      %v2553 = vmul.u32 %v2547, %v2549
      %v2554 = vshll.u32 %v2551, 16
      %v2555 = vshrl.u32 %v2551, 16
      %v2556 = vshll.u32 %v2552, 16
      %v2557 = vshrl.u32 %v2552, 16
      %vm2558 = vc.u32 %v2550, %v2554
      %v2559 = vsel %vm2558, 1, 0
      %v2560 = vadd.s32 %v2550, %v2554
      %v2561 = vadd.s32 %v2553, %v2559
      %vm2562 = vc.u32 %v2560, %v2556
      %v2563 = vsel %vm2562, 1, 0
      %v2564 = vadd.s32 %v2560, %v2556
      %v2565 = vadd.s32 %v2561, %v2563
      %v2566 = vadd.s32 %v2565, %v2555
      %v2567 = vadd.s32 %v2566, %v2557
      %v2568 = vand.u32 %v2545, 65535
      %v2569 = vshrl.u32 %v2545, 16
      %v2570 = vand.u32 %v2540, 65535
      %v2571 = vshrl.u32 %v2540, 16
      %v2572 = vmul.u32 %v2568, %v2570
      %v2573 = vmul.u32 %v2568, %v2571
      %v2574 = vmul.u32 %v2569, %v2570
      %v2575 = vmul.u32 %v2569, %v2571
      %v2576 = vshll.u32 %v2573, 16
      %v2577 = vshrl.u32 %v2573, 16
      %v2578 = vshll.u32 %v2574, 16
      %v2579 = vshrl.u32 %v2574, 16
      %vm2580 = vc.u32 %v2572, %v2576
      %v2581 = vsel %vm2580, 1, 0
      %v2582 = vadd.s32 %v2572, %v2576
      %v2583 = vadd.s32 %v2575, %v2581
      %vm2584 = vc.u32 %v2582, %v2578
      %v2585 = vsel %vm2584, 1, 0
      %v2586 = vadd.s32 %v2582, %v2578
      %v2587 = vadd.s32 %v2583, %v2585
      %v2588 = vadd.s32 %v2587, %v2577
      %v2589 = vadd.s32 %v2588, %v2579
      %v2590 = vmul.u32 %v2545, %v2536
      %v2591 = vadd.s32 %v2567, %v2586
      %vm2592 = vc.u32 %v2567, %v2586
      %v2593 = vadd.s32 %v2589, 1
      %v2594 = vsel %vm2592, %v2593, %v2589
      %v2595 = vadd.s32 %v2590, %v2594
      %v2596 = vadd.s32 %v2595, 536870912
      %v2597 = vshrl.u32 %v2596, 30
      %v2598 = vshll.u32 %v2597, 30
      %v2599 = vsub.s32 %v2595, %v2598
      %vm2600 = vcmp.lt.s32.totalorder %v2599, 0
      %v2601 = vsub.s32 0, %v2599
      %v2602 = vsel %vm2600, %v2601, %v2599
      %v2603 = vclz %v2602
      %v2604 = vsub.s32 %v2603, 2
      %vm2605 = vcmp.gt.s32.totalorder 0, %v2604
      %v2606 = vsel %vm2605, 0, %v2604
      %v2607 = vsub.s32 32, %v2606
      %v2608 = vshll.u32 %v2599, %v2606
      %v2609 = vshrl.u32 %v2591, %v2607
      %v2610 = vor.u32 %v2608, %v2609
      %v2611 = vsub.s32 4294967266, %v2606
      %v2612 = vadd.s32 %v2611, 127
      %v2613 = vshll.u32 %v2612, 23
      %v2614 = vor.u32 4788187, %v2613
      %v2615 = vand.u32 2147483647, %v2614
      %v2617 = vcvt.s32.f32 %v2610
      %v2618 = vmul.f32 %v2617, %v2615
      %v2619 = vxor.u32 %v2618, 2147483648
      %v2620 = vsel %vm2499, %v2619, %v2618
      %v2621 = vsub.s32 4, %v2597
      %v2622 = vsel %vm2499, %v2621, %v2597
      %v2623 = vsel %vm2498, %v645, %v2620
      %v2624 = vsel %vm2498, 0, %v2622
      %v2625 = vmul.f32 %v2623, %v2623
      %v2626 = vmul.f32 %v2625, -0.001358992
      %v2627 = vadd.f32 %v2626, 0.041655596
      %v2628 = vmul.f32 %v2625, %v2627
      %v2629 = vadd.f32 %v2628, -0.4999988
      %v2630 = vmul.f32 %v2625, %v2629
      %v2631 = vadd.f32 1.0, %v2630
      %v2632 = vmul.f32 %v2623, %v2623
      %v2633 = vmul.f32 %v2632, -0.00019511016
      %v2634 = vadd.f32 %v2633, 0.008332121
      %v2635 = vmul.f32 %v2632, %v2634
      %v2636 = vadd.f32 %v2635, -0.16666654
      %v2637 = vmul.f32 %v2632, %v2636
      %v2638 = vadd.f32 %v2637, 1.0
      %v2639 = vmul.f32 %v2638, %v2623
      %vm2640 = vweird.f32 %v645
      %v2641 = vand.u32 %v2624, 3
      %vm2642 = vcmp.lt.s32.totalorder %v2641, 2
      %vm2643 = vcmp.eq.s32.totalorder %v2641, 0
      %v2644 = vxor.u32 %v2639, 2147483648
      %v2645 = vsel %vm2643, %v2631, %v2644
      %vm2646 = vcmp.eq.s32.totalorder %v2641, 2
      %v2647 = vxor.u32 %v2631, 2147483648
      %v2648 = vsel %vm2646, %v2647, %v2639
      %v2649 = vsel %vm2642, %v2645, %v2648
      %v2650 = vsel %vm2640, nan, %v2649
      %v2651 = vand.u32 2147483647, %v646
      %vm2652 = vcmp.le.f32.partialorder %v2651, 0.7853982
      %vm2653 = vcmp.lt.s32.totalorder %v646, 0
      %v2654 = vand.u32 %v646, 2139095040
      %v2655 = vshrl.u32 %v2654, 23
      %v2656 = vsub.s32 %v2655, 127
      %v2657 = vand.u32 2147483647, %v646
      %v2658 = vand.u32 %v2657, 8388607
      %v2659 = vor.u32 %v2658, 8388608
      %v2660 = vsub.s32 0, %v2659
      %v2661 = vadd.s32 %v2656, 1
      %vm2662 = vcmp.gt.s32.totalorder %v2661, 0
      %v2663 = vsel %vm2662, %v2661, 0
      %v2664 = vshrl.u32 %v2663, 5
      %v2665 = vand.u32 %v2663, 31
      %v2666 = vsub.s32 32, %v2665
      %v2667 = vshrl.u32 683565275, %v2666
      %v2668 = vshll.u32 683565275, %v2665
      %v2669 = vshrl.u32 2475754826, %v2666
      %v2670 = vor.u32 %v2668, %v2669
      %v2671 = vshll.u32 2475754826, %v2665
      %v2672 = vshrl.u32 2131351028, %v2666
      %v2673 = vor.u32 %v2671, %v2672
      %v2674 = vshll.u32 2131351028, %v2665
      %v2675 = vshrl.u32 2102212464, %v2666
      %v2676 = vor.u32 %v2674, %v2675
      %v2677 = vshll.u32 2102212464, %v2665
      %v2678 = vshrl.u32 920167782, %v2666
      %v2679 = vor.u32 %v2677, %v2678
      %v2680 = vshll.u32 920167782, %v2665
      %v2681 = vshrl.u32 1326507024, %v2666
      %v2682 = vor.u32 %v2680, %v2681
      %vm2683 = vcmp.lt.s32.totalorder %v2664, 1
      %vm2684 = vcmp.lt.s32.totalorder %v2664, 2
      %vm2685 = vcmp.lt.s32.totalorder %v2664, 3
      %vm2686 = vcmp.lt.s32.totalorder %v2664, 4
      %v2687 = vsel %vm2683, %v2667, %v2670
      %v2688 = vsel %vm2686, %v2676, 2102212464
      %v2689 = vsel %vm2685, %v2673, %v2688
      %v2690 = vsel %vm2684, %v2687, %v2689
      %v2691 = vsel %vm2683, %v2670, %v2673
      %v2692 = vsel %vm2686, %v2679, 920167782
      %v2693 = vsel %vm2685, %v2676, %v2692
      %v2694 = vsel %vm2684, %v2691, %v2693
      %v2695 = vsel %vm2683, %v2673, %v2676
      %v2696 = vsel %vm2686, %v2682, 1326507024
      %v2697 = vsel %vm2685, %v2679, %v2696
      %v2698 = vsel %vm2684, %v2695, %v2697
      %v2699 = vshll.u32 %v2659, 8
      %v2700 = vand.u32 %v2699, 65535
      %v2701 = vshrl.u32 %v2699, 16
      %v2702 = vand.u32 %v2698, 65535
      %v2703 = vshrl.u32 %v2698, 16
      %v2704 = vmul.u32 %v2700, %v2702
      %v2705 = vmul.u32 %v2700, %v2703
      %v2706 = vmul.u32 %v2701, %v2702
      %v2707 = vmul.u32 %v2701, %v2703
      %v2708 = vshll.u32 %v2705, 16
      %v2709 = vshrl.u32 %v2705, 16
      %v2710 = vshll.u32 %v2706, 16
      %v2711 = vshrl.u32 %v2706, 16
      %vm2712 = vc.u32 %v2704, %v2708
      %v2713 = vsel %vm2712, 1, 0
      %v2714 = vadd.s32 %v2704, %v2708
      %v2715 = vadd.s32 %v2707, %v2713
      %vm2716 = vc.u32 %v2714, %v2710
      %v2717 = vsel %vm2716, 1, 0
      %v2718 = vadd.s32 %v2714, %v2710
      %v2719 = vadd.s32 %v2715, %v2717
      %v2720 = vadd.s32 %v2719, %v2709
      %v2721 = vadd.s32 %v2720, %v2711
      %v2722 = vand.u32 %v2699, 65535
      %v2723 = vshrl.u32 %v2699, 16
      %v2724 = vand.u32 %v2694, 65535
      %v2725 = vshrl.u32 %v2694, 16
      %v2726 = vmul.u32 %v2722, %v2724
      %v2727 = vmul.u32 %v2722, %v2725
      %v2728 = vmul.u32 %v2723, %v2724
      %v2729 = vmul.u32 %v2723, %v2725
      %v2730 = vshll.u32 %v2727, 16
      %v2731 = vshrl.u32 %v2727, 16
      %v2732 = vshll.u32 %v2728, 16
      %v2733 = vshrl.u32 %v2728, 16
      %vm2734 = vc.u32 %v2726, %v2730
      %v2735 = vsel %vm2734, 1, 0
      %v2736 = vadd.s32 %v2726, %v2730
      %v2737 = vadd.s32 %v2729, %v2735
      %vm2738 = vc.u32 %v2736, %v2732
      %v2739 = vsel %vm2738, 1, 0
      %v2740 = vadd.s32 %v2736, %v2732
      %v2741 = vadd.s32 %v2737, %v2739
      %v2742 = vadd.s32 %v2741, %v2731
      %v2743 = vadd.s32 %v2742, %v2733
      %v2744 = vmul.u32 %v2699, %v2690
      %v2745 = vadd.s32 %v2721, %v2740
      %vm2746 = vc.u32 %v2721, %v2740
      %v2747 = vadd.s32 %v2743, 1
      %v2748 = vsel %vm2746, %v2747, %v2743
      %v2749 = vadd.s32 %v2744, %v2748
      %v2750 = vadd.s32 %v2749, 536870912
      %v2751 = vshrl.u32 %v2750, 30
      %v2752 = vshll.u32 %v2751, 30
      %v2753 = vsub.s32 %v2749, %v2752
      %vm2754 = vcmp.lt.s32.totalorder %v2753, 0
      %v2755 = vsub.s32 0, %v2753
      %v2756 = vsel %vm2754, %v2755, %v2753
      %v2757 = vclz %v2756
      %v2758 = vsub.s32 %v2757, 2
      %vm2759 = vcmp.gt.s32.totalorder 0, %v2758
      %v2760 = vsel %vm2759, 0, %v2758
      %v2761 = vsub.s32 32, %v2760
      %v2762 = vshll.u32 %v2753, %v2760
      %v2763 = vshrl.u32 %v2745, %v2761
      %v2764 = vor.u32 %v2762, %v2763
      %v2765 = vsub.s32 4294967266, %v2760
      %v2766 = vadd.s32 %v2765, 127
      %v2767 = vshll.u32 %v2766, 23
      %v2768 = vor.u32 4788187, %v2767
      %v2769 = vand.u32 2147483647, %v2768
      %v2771 = vcvt.s32.f32 %v2764
      %v2772 = vmul.f32 %v2771, %v2769
      %v2773 = vxor.u32 %v2772, 2147483648
      %v2774 = vsel %vm2653, %v2773, %v2772
      %v2775 = vsub.s32 4, %v2751
      %v2776 = vsel %vm2653, %v2775, %v2751
      %v2777 = vsel %vm2652, %v646, %v2774
      %v2778 = vsel %vm2652, 0, %v2776
      %v2779 = vmul.f32 %v2777, %v2777
      %v2780 = vmul.f32 %v2779, -0.001358992
      %v2781 = vadd.f32 %v2780, 0.041655596
      %v2782 = vmul.f32 %v2779, %v2781
      %v2783 = vadd.f32 %v2782, -0.4999988
      %v2784 = vmul.f32 %v2779, %v2783
      %v2785 = vadd.f32 1.0, %v2784
      %v2786 = vmul.f32 %v2777, %v2777
      %v2787 = vmul.f32 %v2786, -0.00019511016
      %v2788 = vadd.f32 %v2787, 0.008332121
      %v2789 = vmul.f32 %v2786, %v2788
      %v2790 = vadd.f32 %v2789, -0.16666654
      %v2791 = vmul.f32 %v2786, %v2790
      %v2792 = vadd.f32 %v2791, 1.0
      %v2793 = vmul.f32 %v2792, %v2777
      %vm2794 = vweird.f32 %v646
      %v2795 = vand.u32 %v2778, 3
      %vm2796 = vcmp.lt.s32.totalorder %v2795, 2
      %vm2797 = vcmp.eq.s32.totalorder %v2795, 0
      %v2798 = vxor.u32 %v2793, 2147483648
      %v2799 = vsel %vm2797, %v2785, %v2798
      %vm2800 = vcmp.eq.s32.totalorder %v2795, 2
      %v2801 = vxor.u32 %v2785, 2147483648
      %v2802 = vsel %vm2800, %v2801, %v2793
      %v2803 = vsel %vm2796, %v2799, %v2802
      %v2804 = vsel %vm2794, nan, %v2803
      %v2805 = vand.u32 2147483647, %v647
      %vm2806 = vcmp.le.f32.partialorder %v2805, 0.7853982
      %vm2807 = vcmp.lt.s32.totalorder %v647, 0
      %v2808 = vand.u32 %v647, 2139095040
      %v2809 = vshrl.u32 %v2808, 23
      %v2810 = vsub.s32 %v2809, 127
      %v2811 = vand.u32 2147483647, %v647
      %v2812 = vand.u32 %v2811, 8388607
      %v2813 = vor.u32 %v2812, 8388608
      %v2814 = vsub.s32 0, %v2813
      %v2815 = vadd.s32 %v2810, 1
      %vm2816 = vcmp.gt.s32.totalorder %v2815, 0
      %v2817 = vsel %vm2816, %v2815, 0
      %v2818 = vshrl.u32 %v2817, 5
      %v2819 = vand.u32 %v2817, 31
      %v2820 = vsub.s32 32, %v2819
      %v2821 = vshrl.u32 683565275, %v2820
      %v2822 = vshll.u32 683565275, %v2819
      %v2823 = vshrl.u32 2475754826, %v2820
      %v2824 = vor.u32 %v2822, %v2823
      %v2825 = vshll.u32 2475754826, %v2819
      %v2826 = vshrl.u32 2131351028, %v2820
      %v2827 = vor.u32 %v2825, %v2826
      %v2828 = vshll.u32 2131351028, %v2819
      %v2829 = vshrl.u32 2102212464, %v2820
      %v2830 = vor.u32 %v2828, %v2829
      %v2831 = vshll.u32 2102212464, %v2819
      %v2832 = vshrl.u32 920167782, %v2820
      %v2833 = vor.u32 %v2831, %v2832
      %v2834 = vshll.u32 920167782, %v2819
      %v2835 = vshrl.u32 1326507024, %v2820
      %v2836 = vor.u32 %v2834, %v2835
      %vm2837 = vcmp.lt.s32.totalorder %v2818, 1
      %vm2838 = vcmp.lt.s32.totalorder %v2818, 2
      %vm2839 = vcmp.lt.s32.totalorder %v2818, 3
      %vm2840 = vcmp.lt.s32.totalorder %v2818, 4
      %v2841 = vsel %vm2837, %v2821, %v2824
      %v2842 = vsel %vm2840, %v2830, 2102212464
      %v2843 = vsel %vm2839, %v2827, %v2842
      %v2844 = vsel %vm2838, %v2841, %v2843
      %v2845 = vsel %vm2837, %v2824, %v2827
      %v2846 = vsel %vm2840, %v2833, 920167782
      %v2847 = vsel %vm2839, %v2830, %v2846
      %v2848 = vsel %vm2838, %v2845, %v2847
      %v2849 = vsel %vm2837, %v2827, %v2830
      %v2850 = vsel %vm2840, %v2836, 1326507024
      %v2851 = vsel %vm2839, %v2833, %v2850
      %v2852 = vsel %vm2838, %v2849, %v2851
      %v2853 = vshll.u32 %v2813, 8
      %v2854 = vand.u32 %v2853, 65535
      %v2855 = vshrl.u32 %v2853, 16
      %v2856 = vand.u32 %v2852, 65535
      %v2857 = vshrl.u32 %v2852, 16
      %v2858 = vmul.u32 %v2854, %v2856
      %v2859 = vmul.u32 %v2854, %v2857
      %v2860 = vmul.u32 %v2855, %v2856
      %v2861 = vmul.u32 %v2855, %v2857
      %v2862 = vshll.u32 %v2859, 16
      %v2863 = vshrl.u32 %v2859, 16
      %v2864 = vshll.u32 %v2860, 16
      %v2865 = vshrl.u32 %v2860, 16
      %vm2866 = vc.u32 %v2858, %v2862
      %v2867 = vsel %vm2866, 1, 0
      %v2868 = vadd.s32 %v2858, %v2862
      %v2869 = vadd.s32 %v2861, %v2867
      %vm2870 = vc.u32 %v2868, %v2864
      %v2871 = vsel %vm2870, 1, 0
      %v2872 = vadd.s32 %v2868, %v2864
      %v2873 = vadd.s32 %v2869, %v2871
      %v2874 = vadd.s32 %v2873, %v2863
      %v2875 = vadd.s32 %v2874, %v2865
      %v2876 = vand.u32 %v2853, 65535
      %v2877 = vshrl.u32 %v2853, 16
      %v2878 = vand.u32 %v2848, 65535
      %v2879 = vshrl.u32 %v2848, 16
      %v2880 = vmul.u32 %v2876, %v2878
      %v2881 = vmul.u32 %v2876, %v2879
      %v2882 = vmul.u32 %v2877, %v2878
      %v2883 = vmul.u32 %v2877, %v2879
      %v2884 = vshll.u32 %v2881, 16
      %v2885 = vshrl.u32 %v2881, 16
      %v2886 = vshll.u32 %v2882, 16
      %v2887 = vshrl.u32 %v2882, 16
      %vm2888 = vc.u32 %v2880, %v2884
      %v2889 = vsel %vm2888, 1, 0
      %v2890 = vadd.s32 %v2880, %v2884
      %v2891 = vadd.s32 %v2883, %v2889
      %vm2892 = vc.u32 %v2890, %v2886
      %v2893 = vsel %vm2892, 1, 0
      %v2894 = vadd.s32 %v2890, %v2886
      %v2895 = vadd.s32 %v2891, %v2893
      %v2896 = vadd.s32 %v2895, %v2885
      %v2897 = vadd.s32 %v2896, %v2887
      %v2898 = vmul.u32 %v2853, %v2844
      %v2899 = vadd.s32 %v2875, %v2894
      %vm2900 = vc.u32 %v2875, %v2894
      %v2901 = vadd.s32 %v2897, 1
      %v2902 = vsel %vm2900, %v2901, %v2897
      %v2903 = vadd.s32 %v2898, %v2902
      %v2904 = vadd.s32 %v2903, 536870912
      %v2905 = vshrl.u32 %v2904, 30
      %v2906 = vshll.u32 %v2905, 30
      %v2907 = vsub.s32 %v2903, %v2906
      %vm2908 = vcmp.lt.s32.totalorder %v2907, 0
      %v2909 = vsub.s32 0, %v2907
      %v2910 = vsel %vm2908, %v2909, %v2907
      %v2911 = vclz %v2910
      %v2912 = vsub.s32 %v2911, 2
      %vm2913 = vcmp.gt.s32.totalorder 0, %v2912
      %v2914 = vsel %vm2913, 0, %v2912
      %v2915 = vsub.s32 32, %v2914
      %v2916 = vshll.u32 %v2907, %v2914
      %v2917 = vshrl.u32 %v2899, %v2915
      %v2918 = vor.u32 %v2916, %v2917
      %v2919 = vsub.s32 4294967266, %v2914
      %v2920 = vadd.s32 %v2919, 127
      %v2921 = vshll.u32 %v2920, 23
      %v2922 = vor.u32 4788187, %v2921
      %v2923 = vand.u32 2147483647, %v2922
      %v2925 = vcvt.s32.f32 %v2918
      %v2926 = vmul.f32 %v2925, %v2923
      %v2927 = vxor.u32 %v2926, 2147483648
      %v2928 = vsel %vm2807, %v2927, %v2926
      %v2929 = vsub.s32 4, %v2905
      %v2930 = vsel %vm2807, %v2929, %v2905
      %v2931 = vsel %vm2806, %v647, %v2928
      %v2932 = vsel %vm2806, 0, %v2930
      %v2933 = vmul.f32 %v2931, %v2931
      %v2934 = vmul.f32 %v2933, -0.001358992
      %v2935 = vadd.f32 %v2934, 0.041655596
      %v2936 = vmul.f32 %v2933, %v2935
      %v2937 = vadd.f32 %v2936, -0.4999988
      %v2938 = vmul.f32 %v2933, %v2937
      %v2939 = vadd.f32 1.0, %v2938
      %v2940 = vmul.f32 %v2931, %v2931
      %v2941 = vmul.f32 %v2940, -0.00019511016
      %v2942 = vadd.f32 %v2941, 0.008332121
      %v2943 = vmul.f32 %v2940, %v2942
      %v2944 = vadd.f32 %v2943, -0.16666654
      %v2945 = vmul.f32 %v2940, %v2944
      %v2946 = vadd.f32 %v2945, 1.0
      %v2947 = vmul.f32 %v2946, %v2931
      %vm2948 = vweird.f32 %v647
      %v2949 = vand.u32 %v2932, 3
      %vm2950 = vcmp.lt.s32.totalorder %v2949, 2
      %vm2951 = vcmp.eq.s32.totalorder %v2949, 0
      %v2952 = vxor.u32 %v2947, 2147483648
      %v2953 = vsel %vm2951, %v2939, %v2952
      %vm2954 = vcmp.eq.s32.totalorder %v2949, 2
      %v2955 = vxor.u32 %v2939, 2147483648
      %v2956 = vsel %vm2954, %v2955, %v2947
      %v2957 = vsel %vm2950, %v2953, %v2956
      %v2958 = vsel %vm2948, nan, %v2957
      %v2959 = vand.u32 2147483647, %v648
      %vm2960 = vcmp.le.f32.partialorder %v2959, 0.7853982
      %vm2961 = vcmp.lt.s32.totalorder %v648, 0
      %v2962 = vand.u32 %v648, 2139095040
      %v2963 = vshrl.u32 %v2962, 23
      %v2964 = vsub.s32 %v2963, 127
      %v2965 = vand.u32 2147483647, %v648
      %v2966 = vand.u32 %v2965, 8388607
      %v2967 = vor.u32 %v2966, 8388608
      %v2968 = vsub.s32 0, %v2967
      %v2969 = vadd.s32 %v2964, 1
      %vm2970 = vcmp.gt.s32.totalorder %v2969, 0
      %v2971 = vsel %vm2970, %v2969, 0
      %v2972 = vshrl.u32 %v2971, 5
      %v2973 = vand.u32 %v2971, 31
      %v2974 = vsub.s32 32, %v2973
      %v2975 = vshrl.u32 683565275, %v2974
      %v2976 = vshll.u32 683565275, %v2973
      %v2977 = vshrl.u32 2475754826, %v2974
      %v2978 = vor.u32 %v2976, %v2977
      %v2979 = vshll.u32 2475754826, %v2973
      %v2980 = vshrl.u32 2131351028, %v2974
      %v2981 = vor.u32 %v2979, %v2980
      %v2982 = vshll.u32 2131351028, %v2973
      %v2983 = vshrl.u32 2102212464, %v2974
      %v2984 = vor.u32 %v2982, %v2983
      %v2985 = vshll.u32 2102212464, %v2973
      %v2986 = vshrl.u32 920167782, %v2974
      %v2987 = vor.u32 %v2985, %v2986
      %v2988 = vshll.u32 920167782, %v2973
      %v2989 = vshrl.u32 1326507024, %v2974
      %v2990 = vor.u32 %v2988, %v2989
      %vm2991 = vcmp.lt.s32.totalorder %v2972, 1
      %vm2992 = vcmp.lt.s32.totalorder %v2972, 2
      %vm2993 = vcmp.lt.s32.totalorder %v2972, 3
      %vm2994 = vcmp.lt.s32.totalorder %v2972, 4
      %v2995 = vsel %vm2991, %v2975, %v2978
      %v2996 = vsel %vm2994, %v2984, 2102212464
      %v2997 = vsel %vm2993, %v2981, %v2996
      %v2998 = vsel %vm2992, %v2995, %v2997
      %v2999 = vsel %vm2991, %v2978, %v2981
      %v3000 = vsel %vm2994, %v2987, 920167782
      %v3001 = vsel %vm2993, %v2984, %v3000
      %v3002 = vsel %vm2992, %v2999, %v3001
      %v3003 = vsel %vm2991, %v2981, %v2984
      %v3004 = vsel %vm2994, %v2990, 1326507024
      %v3005 = vsel %vm2993, %v2987, %v3004
      %v3006 = vsel %vm2992, %v3003, %v3005
      %v3007 = vshll.u32 %v2967, 8
      %v3008 = vand.u32 %v3007, 65535
      %v3009 = vshrl.u32 %v3007, 16
      %v3010 = vand.u32 %v3006, 65535
      %v3011 = vshrl.u32 %v3006, 16
      %v3012 = vmul.u32 %v3008, %v3010
      %v3013 = vmul.u32 %v3008, %v3011
      %v3014 = vmul.u32 %v3009, %v3010
      %v3015 = vmul.u32 %v3009, %v3011
      %v3016 = vshll.u32 %v3013, 16
      %v3017 = vshrl.u32 %v3013, 16
      %v3018 = vshll.u32 %v3014, 16
      %v3019 = vshrl.u32 %v3014, 16
      %vm3020 = vc.u32 %v3012, %v3016
      %v3021 = vsel %vm3020, 1, 0
      %v3022 = vadd.s32 %v3012, %v3016
      %v3023 = vadd.s32 %v3015, %v3021
      %vm3024 = vc.u32 %v3022, %v3018
      %v3025 = vsel %vm3024, 1, 0
      %v3026 = vadd.s32 %v3022, %v3018
      %v3027 = vadd.s32 %v3023, %v3025
      %v3028 = vadd.s32 %v3027, %v3017
      %v3029 = vadd.s32 %v3028, %v3019
      %v3030 = vand.u32 %v3007, 65535
      %v3031 = vshrl.u32 %v3007, 16
      %v3032 = vand.u32 %v3002, 65535
      %v3033 = vshrl.u32 %v3002, 16
      %v3034 = vmul.u32 %v3030, %v3032
      %v3035 = vmul.u32 %v3030, %v3033
      %v3036 = vmul.u32 %v3031, %v3032
      %v3037 = vmul.u32 %v3031, %v3033
      %v3038 = vshll.u32 %v3035, 16
      %v3039 = vshrl.u32 %v3035, 16
      %v3040 = vshll.u32 %v3036, 16
      %v3041 = vshrl.u32 %v3036, 16
      %vm3042 = vc.u32 %v3034, %v3038
      %v3043 = vsel %vm3042, 1, 0
      %v3044 = vadd.s32 %v3034, %v3038
      %v3045 = vadd.s32 %v3037, %v3043
      %vm3046 = vc.u32 %v3044, %v3040
      %v3047 = vsel %vm3046, 1, 0
      %v3048 = vadd.s32 %v3044, %v3040
      %v3049 = vadd.s32 %v3045, %v3047
      %v3050 = vadd.s32 %v3049, %v3039
      %v3051 = vadd.s32 %v3050, %v3041
      %v3052 = vmul.u32 %v3007, %v2998
      %v3053 = vadd.s32 %v3029, %v3048
      %vm3054 = vc.u32 %v3029, %v3048
      %v3055 = vadd.s32 %v3051, 1
      %v3056 = vsel %vm3054, %v3055, %v3051
      %v3057 = vadd.s32 %v3052, %v3056
      %v3058 = vadd.s32 %v3057, 536870912
      %v3059 = vshrl.u32 %v3058, 30
      %v3060 = vshll.u32 %v3059, 30
      %v3061 = vsub.s32 %v3057, %v3060
      %vm3062 = vcmp.lt.s32.totalorder %v3061, 0
      %v3063 = vsub.s32 0, %v3061
      %v3064 = vsel %vm3062, %v3063, %v3061
      %v3065 = vclz %v3064
      %v3066 = vsub.s32 %v3065, 2
      %vm3067 = vcmp.gt.s32.totalorder 0, %v3066
      %v3068 = vsel %vm3067, 0, %v3066
      %v3069 = vsub.s32 32, %v3068
      %v3070 = vshll.u32 %v3061, %v3068
      %v3071 = vshrl.u32 %v3053, %v3069
      %v3072 = vor.u32 %v3070, %v3071
      %v3073 = vsub.s32 4294967266, %v3068
      %v3074 = vadd.s32 %v3073, 127
      %v3075 = vshll.u32 %v3074, 23
      %v3076 = vor.u32 4788187, %v3075
      %v3077 = vand.u32 2147483647, %v3076
      %v3079 = vcvt.s32.f32 %v3072
      %v3080 = vmul.f32 %v3079, %v3077
      %v3081 = vxor.u32 %v3080, 2147483648
      %v3082 = vsel %vm2961, %v3081, %v3080
      %v3083 = vsub.s32 4, %v3059
      %v3084 = vsel %vm2961, %v3083, %v3059
      %v3085 = vsel %vm2960, %v648, %v3082
      %v3086 = vsel %vm2960, 0, %v3084
      %v3087 = vmul.f32 %v3085, %v3085
      %v3088 = vmul.f32 %v3087, -0.001358992
      %v3089 = vadd.f32 %v3088, 0.041655596
      %v3090 = vmul.f32 %v3087, %v3089
      %v3091 = vadd.f32 %v3090, -0.4999988
      %v3092 = vmul.f32 %v3087, %v3091
      %v3093 = vadd.f32 1.0, %v3092
      %v3094 = vmul.f32 %v3085, %v3085
      %v3095 = vmul.f32 %v3094, -0.00019511016
      %v3096 = vadd.f32 %v3095, 0.008332121
      %v3097 = vmul.f32 %v3094, %v3096
      %v3098 = vadd.f32 %v3097, -0.16666654
      %v3099 = vmul.f32 %v3094, %v3098
      %v3100 = vadd.f32 %v3099, 1.0
      %v3101 = vmul.f32 %v3100, %v3085
      %vm3102 = vweird.f32 %v648
      %v3103 = vand.u32 %v3086, 3
      %vm3104 = vcmp.lt.s32.totalorder %v3103, 2
      %vm3105 = vcmp.eq.s32.totalorder %v3103, 0
      %v3106 = vxor.u32 %v3101, 2147483648
      %v3107 = vsel %vm3105, %v3093, %v3106
      %vm3108 = vcmp.eq.s32.totalorder %v3103, 2
      %v3109 = vxor.u32 %v3093, 2147483648
      %v3110 = vsel %vm3108, %v3109, %v3101
      %v3111 = vsel %vm3104, %v3107, %v3110
      %v3112 = vsel %vm3102, nan, %v3111
      %v3113 = vand.u32 2147483647, %v633
      %vm3114 = vcmp.le.f32.partialorder %v3113, 0.7853982
      %vm3115 = vcmp.lt.s32.totalorder %v633, 0
      %v3116 = vand.u32 %v633, 2139095040
      %v3117 = vshrl.u32 %v3116, 23
      %v3118 = vsub.s32 %v3117, 127
      %v3119 = vand.u32 2147483647, %v633
      %v3120 = vand.u32 %v3119, 8388607
      %v3121 = vor.u32 %v3120, 8388608
      %v3122 = vsub.s32 0, %v3121
      %v3123 = vadd.s32 %v3118, 1
      %vm3124 = vcmp.gt.s32.totalorder %v3123, 0
      %v3125 = vsel %vm3124, %v3123, 0
      %v3126 = vshrl.u32 %v3125, 5
      %v3127 = vand.u32 %v3125, 31
      %v3128 = vsub.s32 32, %v3127
      %v3129 = vshrl.u32 683565275, %v3128
      %v3130 = vshll.u32 683565275, %v3127
      %v3131 = vshrl.u32 2475754826, %v3128
      %v3132 = vor.u32 %v3130, %v3131
      %v3133 = vshll.u32 2475754826, %v3127
      %v3134 = vshrl.u32 2131351028, %v3128
      %v3135 = vor.u32 %v3133, %v3134
      %v3136 = vshll.u32 2131351028, %v3127
      %v3137 = vshrl.u32 2102212464, %v3128
      %v3138 = vor.u32 %v3136, %v3137
      %v3139 = vshll.u32 2102212464, %v3127
      %v3140 = vshrl.u32 920167782, %v3128
      %v3141 = vor.u32 %v3139, %v3140
      %v3142 = vshll.u32 920167782, %v3127
      %v3143 = vshrl.u32 1326507024, %v3128
      %v3144 = vor.u32 %v3142, %v3143
      %vm3145 = vcmp.lt.s32.totalorder %v3126, 1
      %vm3146 = vcmp.lt.s32.totalorder %v3126, 2
      %vm3147 = vcmp.lt.s32.totalorder %v3126, 3
      %vm3148 = vcmp.lt.s32.totalorder %v3126, 4
      %v3149 = vsel %vm3145, %v3129, %v3132
      %v3150 = vsel %vm3148, %v3138, 2102212464
      %v3151 = vsel %vm3147, %v3135, %v3150
      %v3152 = vsel %vm3146, %v3149, %v3151
      %v3153 = vsel %vm3145, %v3132, %v3135
      %v3154 = vsel %vm3148, %v3141, 920167782
      %v3155 = vsel %vm3147, %v3138, %v3154
      %v3156 = vsel %vm3146, %v3153, %v3155
      %v3157 = vsel %vm3145, %v3135, %v3138
      %v3158 = vsel %vm3148, %v3144, 1326507024
      %v3159 = vsel %vm3147, %v3141, %v3158
      %v3160 = vsel %vm3146, %v3157, %v3159
      %v3161 = vshll.u32 %v3121, 8
      %v3162 = vand.u32 %v3161, 65535
      %v3163 = vshrl.u32 %v3161, 16
      %v3164 = vand.u32 %v3160, 65535
      %v3165 = vshrl.u32 %v3160, 16
      %v3166 = vmul.u32 %v3162, %v3164
      %v3167 = vmul.u32 %v3162, %v3165
      %v3168 = vmul.u32 %v3163, %v3164
      %v3169 = vmul.u32 %v3163, %v3165
      %v3170 = vshll.u32 %v3167, 16
      %v3171 = vshrl.u32 %v3167, 16
      %v3172 = vshll.u32 %v3168, 16
      %v3173 = vshrl.u32 %v3168, 16
      %vm3174 = vc.u32 %v3166, %v3170
      %v3175 = vsel %vm3174, 1, 0
      %v3176 = vadd.s32 %v3166, %v3170
      %v3177 = vadd.s32 %v3169, %v3175
      %vm3178 = vc.u32 %v3176, %v3172
      %v3179 = vsel %vm3178, 1, 0
      %v3180 = vadd.s32 %v3176, %v3172
      %v3181 = vadd.s32 %v3177, %v3179
      %v3182 = vadd.s32 %v3181, %v3171
      %v3183 = vadd.s32 %v3182, %v3173
      %v3184 = vand.u32 %v3161, 65535
      %v3185 = vshrl.u32 %v3161, 16
      %v3186 = vand.u32 %v3156, 65535
      %v3187 = vshrl.u32 %v3156, 16
      %v3188 = vmul.u32 %v3184, %v3186
      %v3189 = vmul.u32 %v3184, %v3187
      %v3190 = vmul.u32 %v3185, %v3186
      %v3191 = vmul.u32 %v3185, %v3187
      %v3192 = vshll.u32 %v3189, 16
      %v3193 = vshrl.u32 %v3189, 16
      %v3194 = vshll.u32 %v3190, 16
      %v3195 = vshrl.u32 %v3190, 16
      %vm3196 = vc.u32 %v3188, %v3192
      %v3197 = vsel %vm3196, 1, 0
      %v3198 = vadd.s32 %v3188, %v3192
      %v3199 = vadd.s32 %v3191, %v3197
      %vm3200 = vc.u32 %v3198, %v3194
      %v3201 = vsel %vm3200, 1, 0
      %v3202 = vadd.s32 %v3198, %v3194
      %v3203 = vadd.s32 %v3199, %v3201
      %v3204 = vadd.s32 %v3203, %v3193
      %v3205 = vadd.s32 %v3204, %v3195
      %v3206 = vmul.u32 %v3161, %v3152
      %v3207 = vadd.s32 %v3183, %v3202
      %vm3208 = vc.u32 %v3183, %v3202
      %v3209 = vadd.s32 %v3205, 1
      %v3210 = vsel %vm3208, %v3209, %v3205
      %v3211 = vadd.s32 %v3206, %v3210
      %v3212 = vadd.s32 %v3211, 536870912
      %v3213 = vshrl.u32 %v3212, 30
      %v3214 = vshll.u32 %v3213, 30
      %v3215 = vsub.s32 %v3211, %v3214
      %vm3216 = vcmp.lt.s32.totalorder %v3215, 0
      %v3217 = vsub.s32 0, %v3215
      %v3218 = vsel %vm3216, %v3217, %v3215
      %v3219 = vclz %v3218
      %v3220 = vsub.s32 %v3219, 2
      %vm3221 = vcmp.gt.s32.totalorder 0, %v3220
      %v3222 = vsel %vm3221, 0, %v3220
      %v3223 = vsub.s32 32, %v3222
      %v3224 = vshll.u32 %v3215, %v3222
      %v3225 = vshrl.u32 %v3207, %v3223
      %v3226 = vor.u32 %v3224, %v3225
      %v3227 = vsub.s32 4294967266, %v3222
      %v3228 = vadd.s32 %v3227, 127
      %v3229 = vshll.u32 %v3228, 23
      %v3230 = vor.u32 4788187, %v3229
      %v3231 = vand.u32 2147483647, %v3230
      %v3233 = vcvt.s32.f32 %v3226
      %v3234 = vmul.f32 %v3233, %v3231
      %v3235 = vxor.u32 %v3234, 2147483648
      %v3236 = vsel %vm3115, %v3235, %v3234
      %v3237 = vsub.s32 4, %v3213
      %v3238 = vsel %vm3115, %v3237, %v3213
      %v3239 = vsel %vm3114, %v633, %v3236
      %v3240 = vsel %vm3114, 0, %v3238
      %v3241 = vmul.f32 %v3239, %v3239
      %v3242 = vmul.f32 %v3241, -0.001358992
      %v3243 = vadd.f32 %v3242, 0.041655596
      %v3244 = vmul.f32 %v3241, %v3243
      %v3245 = vadd.f32 %v3244, -0.4999988
      %v3246 = vmul.f32 %v3241, %v3245
      %v3247 = vadd.f32 1.0, %v3246
      %v3248 = vmul.f32 %v3239, %v3239
      %v3249 = vmul.f32 %v3248, -0.00019511016
      %v3250 = vadd.f32 %v3249, 0.008332121
      %v3251 = vmul.f32 %v3248, %v3250
      %v3252 = vadd.f32 %v3251, -0.16666654
      %v3253 = vmul.f32 %v3248, %v3252
      %v3254 = vadd.f32 %v3253, 1.0
      %v3255 = vmul.f32 %v3254, %v3239
      %vm3256 = vweird.f32 %v633
      %v3257 = vadd.s32 %v3240, 3
      %v3258 = vand.u32 %v3257, 3
      %vm3259 = vcmp.lt.s32.totalorder %v3258, 2
      %vm3260 = vcmp.eq.s32.totalorder %v3258, 0
      %v3261 = vxor.u32 %v3255, 2147483648
      %v3262 = vsel %vm3260, %v3247, %v3261
      %vm3263 = vcmp.eq.s32.totalorder %v3258, 2
      %v3264 = vxor.u32 %v3247, 2147483648
      %v3265 = vsel %vm3263, %v3264, %v3255
      %v3266 = vsel %vm3259, %v3262, %v3265
      %v3267 = vsel %vm3256, nan, %v3266
      %v3268 = vand.u32 2147483647, %v634
      %vm3269 = vcmp.le.f32.partialorder %v3268, 0.7853982
      %vm3270 = vcmp.lt.s32.totalorder %v634, 0
      %v3271 = vand.u32 %v634, 2139095040
      %v3272 = vshrl.u32 %v3271, 23
      %v3273 = vsub.s32 %v3272, 127
      %v3274 = vand.u32 2147483647, %v634
      %v3275 = vand.u32 %v3274, 8388607
      %v3276 = vor.u32 %v3275, 8388608
      %v3277 = vsub.s32 0, %v3276
      %v3278 = vadd.s32 %v3273, 1
      %vm3279 = vcmp.gt.s32.totalorder %v3278, 0
      %v3280 = vsel %vm3279, %v3278, 0
      %v3281 = vshrl.u32 %v3280, 5
      %v3282 = vand.u32 %v3280, 31
      %v3283 = vsub.s32 32, %v3282
      %v3284 = vshrl.u32 683565275, %v3283
      %v3285 = vshll.u32 683565275, %v3282
      %v3286 = vshrl.u32 2475754826, %v3283
      %v3287 = vor.u32 %v3285, %v3286
      %v3288 = vshll.u32 2475754826, %v3282
      %v3289 = vshrl.u32 2131351028, %v3283
      %v3290 = vor.u32 %v3288, %v3289
      %v3291 = vshll.u32 2131351028, %v3282
      %v3292 = vshrl.u32 2102212464, %v3283
      %v3293 = vor.u32 %v3291, %v3292
      %v3294 = vshll.u32 2102212464, %v3282
      %v3295 = vshrl.u32 920167782, %v3283
      %v3296 = vor.u32 %v3294, %v3295
      %v3297 = vshll.u32 920167782, %v3282
      %v3298 = vshrl.u32 1326507024, %v3283
      %v3299 = vor.u32 %v3297, %v3298
      %vm3300 = vcmp.lt.s32.totalorder %v3281, 1
      %vm3301 = vcmp.lt.s32.totalorder %v3281, 2
      %vm3302 = vcmp.lt.s32.totalorder %v3281, 3
      %vm3303 = vcmp.lt.s32.totalorder %v3281, 4
      %v3304 = vsel %vm3300, %v3284, %v3287
      %v3305 = vsel %vm3303, %v3293, 2102212464
      %v3306 = vsel %vm3302, %v3290, %v3305
      %v3307 = vsel %vm3301, %v3304, %v3306
      %v3308 = vsel %vm3300, %v3287, %v3290
      %v3309 = vsel %vm3303, %v3296, 920167782
      %v3310 = vsel %vm3302, %v3293, %v3309
      %v3311 = vsel %vm3301, %v3308, %v3310
      %v3312 = vsel %vm3300, %v3290, %v3293
      %v3313 = vsel %vm3303, %v3299, 1326507024
      %v3314 = vsel %vm3302, %v3296, %v3313
      %v3315 = vsel %vm3301, %v3312, %v3314
      %v3316 = vshll.u32 %v3276, 8
      %v3317 = vand.u32 %v3316, 65535
      %v3318 = vshrl.u32 %v3316, 16
      %v3319 = vand.u32 %v3315, 65535
      %v3320 = vshrl.u32 %v3315, 16
      %v3321 = vmul.u32 %v3317, %v3319
      %v3322 = vmul.u32 %v3317, %v3320
      %v3323 = vmul.u32 %v3318, %v3319
      %v3324 = vmul.u32 %v3318, %v3320
      %v3325 = vshll.u32 %v3322, 16
      %v3326 = vshrl.u32 %v3322, 16
      %v3327 = vshll.u32 %v3323, 16
      %v3328 = vshrl.u32 %v3323, 16
      %vm3329 = vc.u32 %v3321, %v3325
      %v3330 = vsel %vm3329, 1, 0
      %v3331 = vadd.s32 %v3321, %v3325
      %v3332 = vadd.s32 %v3324, %v3330
      %vm3333 = vc.u32 %v3331, %v3327
      %v3334 = vsel %vm3333, 1, 0
      %v3335 = vadd.s32 %v3331, %v3327
      %v3336 = vadd.s32 %v3332, %v3334
      %v3337 = vadd.s32 %v3336, %v3326
      %v3338 = vadd.s32 %v3337, %v3328
      %v3339 = vand.u32 %v3316, 65535
      %v3340 = vshrl.u32 %v3316, 16
      %v3341 = vand.u32 %v3311, 65535
      %v3342 = vshrl.u32 %v3311, 16
      %v3343 = vmul.u32 %v3339, %v3341
      %v3344 = vmul.u32 %v3339, %v3342
      %v3345 = vmul.u32 %v3340, %v3341
      %v3346 = vmul.u32 %v3340, %v3342
      %v3347 = vshll.u32 %v3344, 16
      %v3348 = vshrl.u32 %v3344, 16
      %v3349 = vshll.u32 %v3345, 16
      %v3350 = vshrl.u32 %v3345, 16
      %vm3351 = vc.u32 %v3343, %v3347
      %v3352 = vsel %vm3351, 1, 0
      %v3353 = vadd.s32 %v3343, %v3347
      %v3354 = vadd.s32 %v3346, %v3352
      %vm3355 = vc.u32 %v3353, %v3349
      %v3356 = vsel %vm3355, 1, 0
      %v3357 = vadd.s32 %v3353, %v3349
      %v3358 = vadd.s32 %v3354, %v3356
      %v3359 = vadd.s32 %v3358, %v3348
      %v3360 = vadd.s32 %v3359, %v3350
      %v3361 = vmul.u32 %v3316, %v3307
      %v3362 = vadd.s32 %v3338, %v3357
      %vm3363 = vc.u32 %v3338, %v3357
      %v3364 = vadd.s32 %v3360, 1
      %v3365 = vsel %vm3363, %v3364, %v3360
      %v3366 = vadd.s32 %v3361, %v3365
      %v3367 = vadd.s32 %v3366, 536870912
      %v3368 = vshrl.u32 %v3367, 30
      %v3369 = vshll.u32 %v3368, 30
      %v3370 = vsub.s32 %v3366, %v3369
      %vm3371 = vcmp.lt.s32.totalorder %v3370, 0
      %v3372 = vsub.s32 0, %v3370
      %v3373 = vsel %vm3371, %v3372, %v3370
      %v3374 = vclz %v3373
      %v3375 = vsub.s32 %v3374, 2
      %vm3376 = vcmp.gt.s32.totalorder 0, %v3375
      %v3377 = vsel %vm3376, 0, %v3375
      %v3378 = vsub.s32 32, %v3377
      %v3379 = vshll.u32 %v3370, %v3377
      %v3380 = vshrl.u32 %v3362, %v3378
      %v3381 = vor.u32 %v3379, %v3380
      %v3382 = vsub.s32 4294967266, %v3377
      %v3383 = vadd.s32 %v3382, 127
      %v3384 = vshll.u32 %v3383, 23
      %v3385 = vor.u32 4788187, %v3384
      %v3386 = vand.u32 2147483647, %v3385
      %v3388 = vcvt.s32.f32 %v3381
      %v3389 = vmul.f32 %v3388, %v3386
      %v3390 = vxor.u32 %v3389, 2147483648
      %v3391 = vsel %vm3270, %v3390, %v3389
      %v3392 = vsub.s32 4, %v3368
      %v3393 = vsel %vm3270, %v3392, %v3368
      %v3394 = vsel %vm3269, %v634, %v3391
      %v3395 = vsel %vm3269, 0, %v3393
      %v3396 = vmul.f32 %v3394, %v3394
      %v3397 = vmul.f32 %v3396, -0.001358992
      %v3398 = vadd.f32 %v3397, 0.041655596
      %v3399 = vmul.f32 %v3396, %v3398
      %v3400 = vadd.f32 %v3399, -0.4999988
      %v3401 = vmul.f32 %v3396, %v3400
      %v3402 = vadd.f32 1.0, %v3401
      %v3403 = vmul.f32 %v3394, %v3394
      %v3404 = vmul.f32 %v3403, -0.00019511016
      %v3405 = vadd.f32 %v3404, 0.008332121
      %v3406 = vmul.f32 %v3403, %v3405
      %v3407 = vadd.f32 %v3406, -0.16666654
      %v3408 = vmul.f32 %v3403, %v3407
      %v3409 = vadd.f32 %v3408, 1.0
      %v3410 = vmul.f32 %v3409, %v3394
      %vm3411 = vweird.f32 %v634
      %v3412 = vadd.s32 %v3395, 3
      %v3413 = vand.u32 %v3412, 3
      %vm3414 = vcmp.lt.s32.totalorder %v3413, 2
      %vm3415 = vcmp.eq.s32.totalorder %v3413, 0
      %v3416 = vxor.u32 %v3410, 2147483648
      %v3417 = vsel %vm3415, %v3402, %v3416
      %vm3418 = vcmp.eq.s32.totalorder %v3413, 2
      %v3419 = vxor.u32 %v3402, 2147483648
      %v3420 = vsel %vm3418, %v3419, %v3410
      %v3421 = vsel %vm3414, %v3417, %v3420
      %v3422 = vsel %vm3411, nan, %v3421
      %v3423 = vand.u32 2147483647, %v635
      %vm3424 = vcmp.le.f32.partialorder %v3423, 0.7853982
      %vm3425 = vcmp.lt.s32.totalorder %v635, 0
      %v3426 = vand.u32 %v635, 2139095040
      %v3427 = vshrl.u32 %v3426, 23
      %v3428 = vsub.s32 %v3427, 127
      %v3429 = vand.u32 2147483647, %v635
      %v3430 = vand.u32 %v3429, 8388607
      %v3431 = vor.u32 %v3430, 8388608
      %v3432 = vsub.s32 0, %v3431
      %v3433 = vadd.s32 %v3428, 1
      %vm3434 = vcmp.gt.s32.totalorder %v3433, 0
      %v3435 = vsel %vm3434, %v3433, 0
      %v3436 = vshrl.u32 %v3435, 5
      %v3437 = vand.u32 %v3435, 31
      %v3438 = vsub.s32 32, %v3437
      %v3439 = vshrl.u32 683565275, %v3438
      %v3440 = vshll.u32 683565275, %v3437
      %v3441 = vshrl.u32 2475754826, %v3438
      %v3442 = vor.u32 %v3440, %v3441
      %v3443 = vshll.u32 2475754826, %v3437
      %v3444 = vshrl.u32 2131351028, %v3438
      %v3445 = vor.u32 %v3443, %v3444
      %v3446 = vshll.u32 2131351028, %v3437
      %v3447 = vshrl.u32 2102212464, %v3438
      %v3448 = vor.u32 %v3446, %v3447
      %v3449 = vshll.u32 2102212464, %v3437
      %v3450 = vshrl.u32 920167782, %v3438
      %v3451 = vor.u32 %v3449, %v3450
      %v3452 = vshll.u32 920167782, %v3437
      %v3453 = vshrl.u32 1326507024, %v3438
      %v3454 = vor.u32 %v3452, %v3453
      %vm3455 = vcmp.lt.s32.totalorder %v3436, 1
      %vm3456 = vcmp.lt.s32.totalorder %v3436, 2
      %vm3457 = vcmp.lt.s32.totalorder %v3436, 3
      %vm3458 = vcmp.lt.s32.totalorder %v3436, 4
      %v3459 = vsel %vm3455, %v3439, %v3442
      %v3460 = vsel %vm3458, %v3448, 2102212464
      %v3461 = vsel %vm3457, %v3445, %v3460
      %v3462 = vsel %vm3456, %v3459, %v3461
      %v3463 = vsel %vm3455, %v3442, %v3445
      %v3464 = vsel %vm3458, %v3451, 920167782
      %v3465 = vsel %vm3457, %v3448, %v3464
      %v3466 = vsel %vm3456, %v3463, %v3465
      %v3467 = vsel %vm3455, %v3445, %v3448
      %v3468 = vsel %vm3458, %v3454, 1326507024
      %v3469 = vsel %vm3457, %v3451, %v3468
      %v3470 = vsel %vm3456, %v3467, %v3469
      %v3471 = vshll.u32 %v3431, 8
      %v3472 = vand.u32 %v3471, 65535
      %v3473 = vshrl.u32 %v3471, 16
      %v3474 = vand.u32 %v3470, 65535
      %v3475 = vshrl.u32 %v3470, 16
      %v3476 = vmul.u32 %v3472, %v3474
      %v3477 = vmul.u32 %v3472, %v3475
      %v3478 = vmul.u32 %v3473, %v3474
      %v3479 = vmul.u32 %v3473, %v3475
      %v3480 = vshll.u32 %v3477, 16
      %v3481 = vshrl.u32 %v3477, 16
      %v3482 = vshll.u32 %v3478, 16
      %v3483 = vshrl.u32 %v3478, 16
      %vm3484 = vc.u32 %v3476, %v3480
      %v3485 = vsel %vm3484, 1, 0
      %v3486 = vadd.s32 %v3476, %v3480
      %v3487 = vadd.s32 %v3479, %v3485
      %vm3488 = vc.u32 %v3486, %v3482
      %v3489 = vsel %vm3488, 1, 0
      %v3490 = vadd.s32 %v3486, %v3482
      %v3491 = vadd.s32 %v3487, %v3489
      %v3492 = vadd.s32 %v3491, %v3481
      %v3493 = vadd.s32 %v3492, %v3483
      %v3494 = vand.u32 %v3471, 65535
      %v3495 = vshrl.u32 %v3471, 16
      %v3496 = vand.u32 %v3466, 65535
      %v3497 = vshrl.u32 %v3466, 16
      %v3498 = vmul.u32 %v3494, %v3496
      %v3499 = vmul.u32 %v3494, %v3497
      %v3500 = vmul.u32 %v3495, %v3496
      %v3501 = vmul.u32 %v3495, %v3497
      %v3502 = vshll.u32 %v3499, 16
      %v3503 = vshrl.u32 %v3499, 16
      %v3504 = vshll.u32 %v3500, 16
      %v3505 = vshrl.u32 %v3500, 16
      %vm3506 = vc.u32 %v3498, %v3502
      %v3507 = vsel %vm3506, 1, 0
      %v3508 = vadd.s32 %v3498, %v3502
      %v3509 = vadd.s32 %v3501, %v3507
      %vm3510 = vc.u32 %v3508, %v3504
      %v3511 = vsel %vm3510, 1, 0
      %v3512 = vadd.s32 %v3508, %v3504
      %v3513 = vadd.s32 %v3509, %v3511
      %v3514 = vadd.s32 %v3513, %v3503
      %v3515 = vadd.s32 %v3514, %v3505
      %v3516 = vmul.u32 %v3471, %v3462
      %v3517 = vadd.s32 %v3493, %v3512
      %vm3518 = vc.u32 %v3493, %v3512
      %v3519 = vadd.s32 %v3515, 1
      %v3520 = vsel %vm3518, %v3519, %v3515
      %v3521 = vadd.s32 %v3516, %v3520
      %v3522 = vadd.s32 %v3521, 536870912
      %v3523 = vshrl.u32 %v3522, 30
      %v3524 = vshll.u32 %v3523, 30
      %v3525 = vsub.s32 %v3521, %v3524
      %vm3526 = vcmp.lt.s32.totalorder %v3525, 0
      %v3527 = vsub.s32 0, %v3525
      %v3528 = vsel %vm3526, %v3527, %v3525
      %v3529 = vclz %v3528
      %v3530 = vsub.s32 %v3529, 2
      %vm3531 = vcmp.gt.s32.totalorder 0, %v3530
      %v3532 = vsel %vm3531, 0, %v3530
      %v3533 = vsub.s32 32, %v3532
      %v3534 = vshll.u32 %v3525, %v3532
      %v3535 = vshrl.u32 %v3517, %v3533
      %v3536 = vor.u32 %v3534, %v3535
      %v3537 = vsub.s32 4294967266, %v3532
      %v3538 = vadd.s32 %v3537, 127
      %v3539 = vshll.u32 %v3538, 23
      %v3540 = vor.u32 4788187, %v3539
      %v3541 = vand.u32 2147483647, %v3540
      %v3543 = vcvt.s32.f32 %v3536
      %v3544 = vmul.f32 %v3543, %v3541
      %v3545 = vxor.u32 %v3544, 2147483648
      %v3546 = vsel %vm3425, %v3545, %v3544
      %v3547 = vsub.s32 4, %v3523
      %v3548 = vsel %vm3425, %v3547, %v3523
      %v3549 = vsel %vm3424, %v635, %v3546
      %v3550 = vsel %vm3424, 0, %v3548
      %v3551 = vmul.f32 %v3549, %v3549
      %v3552 = vmul.f32 %v3551, -0.001358992
      %v3553 = vadd.f32 %v3552, 0.041655596
      %v3554 = vmul.f32 %v3551, %v3553
      %v3555 = vadd.f32 %v3554, -0.4999988
      %v3556 = vmul.f32 %v3551, %v3555
      %v3557 = vadd.f32 1.0, %v3556
      %v3558 = vmul.f32 %v3549, %v3549
      %v3559 = vmul.f32 %v3558, -0.00019511016
      %v3560 = vadd.f32 %v3559, 0.008332121
      %v3561 = vmul.f32 %v3558, %v3560
      %v3562 = vadd.f32 %v3561, -0.16666654
      %v3563 = vmul.f32 %v3558, %v3562
      %v3564 = vadd.f32 %v3563, 1.0
      %v3565 = vmul.f32 %v3564, %v3549
      %vm3566 = vweird.f32 %v635
      %v3567 = vadd.s32 %v3550, 3
      %v3568 = vand.u32 %v3567, 3
      %vm3569 = vcmp.lt.s32.totalorder %v3568, 2
      %vm3570 = vcmp.eq.s32.totalorder %v3568, 0
      %v3571 = vxor.u32 %v3565, 2147483648
      %v3572 = vsel %vm3570, %v3557, %v3571
      %vm3573 = vcmp.eq.s32.totalorder %v3568, 2
      %v3574 = vxor.u32 %v3557, 2147483648
      %v3575 = vsel %vm3573, %v3574, %v3565
      %v3576 = vsel %vm3569, %v3572, %v3575
      %v3577 = vsel %vm3566, nan, %v3576
      %v3578 = vand.u32 2147483647, %v636
      %vm3579 = vcmp.le.f32.partialorder %v3578, 0.7853982
      %vm3580 = vcmp.lt.s32.totalorder %v636, 0
      %v3581 = vand.u32 %v636, 2139095040
      %v3582 = vshrl.u32 %v3581, 23
      %v3583 = vsub.s32 %v3582, 127
      %v3584 = vand.u32 2147483647, %v636
      %v3585 = vand.u32 %v3584, 8388607
      %v3586 = vor.u32 %v3585, 8388608
      %v3587 = vsub.s32 0, %v3586
      %v3588 = vadd.s32 %v3583, 1
      %vm3589 = vcmp.gt.s32.totalorder %v3588, 0
      %v3590 = vsel %vm3589, %v3588, 0
      %v3591 = vshrl.u32 %v3590, 5
      %v3592 = vand.u32 %v3590, 31
      %v3593 = vsub.s32 32, %v3592
      %v3594 = vshrl.u32 683565275, %v3593
      %v3595 = vshll.u32 683565275, %v3592
      %v3596 = vshrl.u32 2475754826, %v3593
      %v3597 = vor.u32 %v3595, %v3596
      %v3598 = vshll.u32 2475754826, %v3592
      %v3599 = vshrl.u32 2131351028, %v3593
      %v3600 = vor.u32 %v3598, %v3599
      %v3601 = vshll.u32 2131351028, %v3592
      %v3602 = vshrl.u32 2102212464, %v3593
      %v3603 = vor.u32 %v3601, %v3602
      %v3604 = vshll.u32 2102212464, %v3592
      %v3605 = vshrl.u32 920167782, %v3593
      %v3606 = vor.u32 %v3604, %v3605
      %v3607 = vshll.u32 920167782, %v3592
      %v3608 = vshrl.u32 1326507024, %v3593
      %v3609 = vor.u32 %v3607, %v3608
      %vm3610 = vcmp.lt.s32.totalorder %v3591, 1
      %vm3611 = vcmp.lt.s32.totalorder %v3591, 2
      %vm3612 = vcmp.lt.s32.totalorder %v3591, 3
      %vm3613 = vcmp.lt.s32.totalorder %v3591, 4
      %v3614 = vsel %vm3610, %v3594, %v3597
      %v3615 = vsel %vm3613, %v3603, 2102212464
      %v3616 = vsel %vm3612, %v3600, %v3615
      %v3617 = vsel %vm3611, %v3614, %v3616
      %v3618 = vsel %vm3610, %v3597, %v3600
      %v3619 = vsel %vm3613, %v3606, 920167782
      %v3620 = vsel %vm3612, %v3603, %v3619
      %v3621 = vsel %vm3611, %v3618, %v3620
      %v3622 = vsel %vm3610, %v3600, %v3603
      %v3623 = vsel %vm3613, %v3609, 1326507024
      %v3624 = vsel %vm3612, %v3606, %v3623
      %v3625 = vsel %vm3611, %v3622, %v3624
      %v3626 = vshll.u32 %v3586, 8
      %v3627 = vand.u32 %v3626, 65535
      %v3628 = vshrl.u32 %v3626, 16
      %v3629 = vand.u32 %v3625, 65535
      %v3630 = vshrl.u32 %v3625, 16
      %v3631 = vmul.u32 %v3627, %v3629
      %v3632 = vmul.u32 %v3627, %v3630
      %v3633 = vmul.u32 %v3628, %v3629
      %v3634 = vmul.u32 %v3628, %v3630
      %v3635 = vshll.u32 %v3632, 16
      %v3636 = vshrl.u32 %v3632, 16
      %v3637 = vshll.u32 %v3633, 16
      %v3638 = vshrl.u32 %v3633, 16
      %vm3639 = vc.u32 %v3631, %v3635
      %v3640 = vsel %vm3639, 1, 0
      %v3641 = vadd.s32 %v3631, %v3635
      %v3642 = vadd.s32 %v3634, %v3640
      %vm3643 = vc.u32 %v3641, %v3637
      %v3644 = vsel %vm3643, 1, 0
      %v3645 = vadd.s32 %v3641, %v3637
      %v3646 = vadd.s32 %v3642, %v3644
      %v3647 = vadd.s32 %v3646, %v3636
      %v3648 = vadd.s32 %v3647, %v3638
      %v3649 = vand.u32 %v3626, 65535
      %v3650 = vshrl.u32 %v3626, 16
      %v3651 = vand.u32 %v3621, 65535
      %v3652 = vshrl.u32 %v3621, 16
      %v3653 = vmul.u32 %v3649, %v3651
      %v3654 = vmul.u32 %v3649, %v3652
      %v3655 = vmul.u32 %v3650, %v3651
      %v3656 = vmul.u32 %v3650, %v3652
      %v3657 = vshll.u32 %v3654, 16
      %v3658 = vshrl.u32 %v3654, 16
      %v3659 = vshll.u32 %v3655, 16
      %v3660 = vshrl.u32 %v3655, 16
      %vm3661 = vc.u32 %v3653, %v3657
      %v3662 = vsel %vm3661, 1, 0
      %v3663 = vadd.s32 %v3653, %v3657
      %v3664 = vadd.s32 %v3656, %v3662
      %vm3665 = vc.u32 %v3663, %v3659
      %v3666 = vsel %vm3665, 1, 0
      %v3667 = vadd.s32 %v3663, %v3659
      %v3668 = vadd.s32 %v3664, %v3666
      %v3669 = vadd.s32 %v3668, %v3658
      %v3670 = vadd.s32 %v3669, %v3660
      %v3671 = vmul.u32 %v3626, %v3617
      %v3672 = vadd.s32 %v3648, %v3667
      %vm3673 = vc.u32 %v3648, %v3667
      %v3674 = vadd.s32 %v3670, 1
      %v3675 = vsel %vm3673, %v3674, %v3670
      %v3676 = vadd.s32 %v3671, %v3675
      %v3677 = vadd.s32 %v3676, 536870912
      %v3678 = vshrl.u32 %v3677, 30
      %v3679 = vshll.u32 %v3678, 30
      %v3680 = vsub.s32 %v3676, %v3679
      %vm3681 = vcmp.lt.s32.totalorder %v3680, 0
      %v3682 = vsub.s32 0, %v3680
      %v3683 = vsel %vm3681, %v3682, %v3680
      %v3684 = vclz %v3683
      %v3685 = vsub.s32 %v3684, 2
      %vm3686 = vcmp.gt.s32.totalorder 0, %v3685
      %v3687 = vsel %vm3686, 0, %v3685
      %v3688 = vsub.s32 32, %v3687
      %v3689 = vshll.u32 %v3680, %v3687
      %v3690 = vshrl.u32 %v3672, %v3688
      %v3691 = vor.u32 %v3689, %v3690
      %v3692 = vsub.s32 4294967266, %v3687
      %v3693 = vadd.s32 %v3692, 127
      %v3694 = vshll.u32 %v3693, 23
      %v3695 = vor.u32 4788187, %v3694
      %v3696 = vand.u32 2147483647, %v3695
      %v3698 = vcvt.s32.f32 %v3691
      %v3699 = vmul.f32 %v3698, %v3696
      %v3700 = vxor.u32 %v3699, 2147483648
      %v3701 = vsel %vm3580, %v3700, %v3699
      %v3702 = vsub.s32 4, %v3678
      %v3703 = vsel %vm3580, %v3702, %v3678
      %v3704 = vsel %vm3579, %v636, %v3701
      %v3705 = vsel %vm3579, 0, %v3703
      %v3706 = vmul.f32 %v3704, %v3704
      %v3707 = vmul.f32 %v3706, -0.001358992
      %v3708 = vadd.f32 %v3707, 0.041655596
      %v3709 = vmul.f32 %v3706, %v3708
      %v3710 = vadd.f32 %v3709, -0.4999988
      %v3711 = vmul.f32 %v3706, %v3710
      %v3712 = vadd.f32 1.0, %v3711
      %v3713 = vmul.f32 %v3704, %v3704
      %v3714 = vmul.f32 %v3713, -0.00019511016
      %v3715 = vadd.f32 %v3714, 0.008332121
      %v3716 = vmul.f32 %v3713, %v3715
      %v3717 = vadd.f32 %v3716, -0.16666654
      %v3718 = vmul.f32 %v3713, %v3717
      %v3719 = vadd.f32 %v3718, 1.0
      %v3720 = vmul.f32 %v3719, %v3704
      %vm3721 = vweird.f32 %v636
      %v3722 = vadd.s32 %v3705, 3
      %v3723 = vand.u32 %v3722, 3
      %vm3724 = vcmp.lt.s32.totalorder %v3723, 2
      %vm3725 = vcmp.eq.s32.totalorder %v3723, 0
      %v3726 = vxor.u32 %v3720, 2147483648
      %v3727 = vsel %vm3725, %v3712, %v3726
      %vm3728 = vcmp.eq.s32.totalorder %v3723, 2
      %v3729 = vxor.u32 %v3712, 2147483648
      %v3730 = vsel %vm3728, %v3729, %v3720
      %v3731 = vsel %vm3724, %v3727, %v3730
      %v3732 = vsel %vm3721, nan, %v3731
      %v3733 = vand.u32 2147483647, %v637
      %vm3734 = vcmp.le.f32.partialorder %v3733, 0.7853982
      %vm3735 = vcmp.lt.s32.totalorder %v637, 0
      %v3736 = vand.u32 %v637, 2139095040
      %v3737 = vshrl.u32 %v3736, 23
      %v3738 = vsub.s32 %v3737, 127
      %v3739 = vand.u32 2147483647, %v637
      %v3740 = vand.u32 %v3739, 8388607
      %v3741 = vor.u32 %v3740, 8388608
      %v3742 = vsub.s32 0, %v3741
      %v3743 = vadd.s32 %v3738, 1
      %vm3744 = vcmp.gt.s32.totalorder %v3743, 0
      %v3745 = vsel %vm3744, %v3743, 0
      %v3746 = vshrl.u32 %v3745, 5
      %v3747 = vand.u32 %v3745, 31
      %v3748 = vsub.s32 32, %v3747
      %v3749 = vshrl.u32 683565275, %v3748
      %v3750 = vshll.u32 683565275, %v3747
      %v3751 = vshrl.u32 2475754826, %v3748
      %v3752 = vor.u32 %v3750, %v3751
      %v3753 = vshll.u32 2475754826, %v3747
      %v3754 = vshrl.u32 2131351028, %v3748
      %v3755 = vor.u32 %v3753, %v3754
      %v3756 = vshll.u32 2131351028, %v3747
      %v3757 = vshrl.u32 2102212464, %v3748
      %v3758 = vor.u32 %v3756, %v3757
      %v3759 = vshll.u32 2102212464, %v3747
      %v3760 = vshrl.u32 920167782, %v3748
      %v3761 = vor.u32 %v3759, %v3760
      %v3762 = vshll.u32 920167782, %v3747
      %v3763 = vshrl.u32 1326507024, %v3748
      %v3764 = vor.u32 %v3762, %v3763
      %vm3765 = vcmp.lt.s32.totalorder %v3746, 1
      %vm3766 = vcmp.lt.s32.totalorder %v3746, 2
      %vm3767 = vcmp.lt.s32.totalorder %v3746, 3
      %vm3768 = vcmp.lt.s32.totalorder %v3746, 4
      %v3769 = vsel %vm3765, %v3749, %v3752
      %v3770 = vsel %vm3768, %v3758, 2102212464
      %v3771 = vsel %vm3767, %v3755, %v3770
      %v3772 = vsel %vm3766, %v3769, %v3771
      %v3773 = vsel %vm3765, %v3752, %v3755
      %v3774 = vsel %vm3768, %v3761, 920167782
      %v3775 = vsel %vm3767, %v3758, %v3774
      %v3776 = vsel %vm3766, %v3773, %v3775
      %v3777 = vsel %vm3765, %v3755, %v3758
      %v3778 = vsel %vm3768, %v3764, 1326507024
      %v3779 = vsel %vm3767, %v3761, %v3778
      %v3780 = vsel %vm3766, %v3777, %v3779
      %v3781 = vshll.u32 %v3741, 8
      %v3782 = vand.u32 %v3781, 65535
      %v3783 = vshrl.u32 %v3781, 16
      %v3784 = vand.u32 %v3780, 65535
      %v3785 = vshrl.u32 %v3780, 16
      %v3786 = vmul.u32 %v3782, %v3784
      %v3787 = vmul.u32 %v3782, %v3785
      %v3788 = vmul.u32 %v3783, %v3784
      %v3789 = vmul.u32 %v3783, %v3785
      %v3790 = vshll.u32 %v3787, 16
      %v3791 = vshrl.u32 %v3787, 16
      %v3792 = vshll.u32 %v3788, 16
      %v3793 = vshrl.u32 %v3788, 16
      %vm3794 = vc.u32 %v3786, %v3790
      %v3795 = vsel %vm3794, 1, 0
      %v3796 = vadd.s32 %v3786, %v3790
      %v3797 = vadd.s32 %v3789, %v3795
      %vm3798 = vc.u32 %v3796, %v3792
      %v3799 = vsel %vm3798, 1, 0
      %v3800 = vadd.s32 %v3796, %v3792
      %v3801 = vadd.s32 %v3797, %v3799
      %v3802 = vadd.s32 %v3801, %v3791
      %v3803 = vadd.s32 %v3802, %v3793
      %v3804 = vand.u32 %v3781, 65535
      %v3805 = vshrl.u32 %v3781, 16
      %v3806 = vand.u32 %v3776, 65535
      %v3807 = vshrl.u32 %v3776, 16
      %v3808 = vmul.u32 %v3804, %v3806
      %v3809 = vmul.u32 %v3804, %v3807
      %v3810 = vmul.u32 %v3805, %v3806
      %v3811 = vmul.u32 %v3805, %v3807
      %v3812 = vshll.u32 %v3809, 16
      %v3813 = vshrl.u32 %v3809, 16
      %v3814 = vshll.u32 %v3810, 16
      %v3815 = vshrl.u32 %v3810, 16
      %vm3816 = vc.u32 %v3808, %v3812
      %v3817 = vsel %vm3816, 1, 0
      %v3818 = vadd.s32 %v3808, %v3812
      %v3819 = vadd.s32 %v3811, %v3817
      %vm3820 = vc.u32 %v3818, %v3814
      %v3821 = vsel %vm3820, 1, 0
      %v3822 = vadd.s32 %v3818, %v3814
      %v3823 = vadd.s32 %v3819, %v3821
      %v3824 = vadd.s32 %v3823, %v3813
      %v3825 = vadd.s32 %v3824, %v3815
      %v3826 = vmul.u32 %v3781, %v3772
      %v3827 = vadd.s32 %v3803, %v3822
      %vm3828 = vc.u32 %v3803, %v3822
      %v3829 = vadd.s32 %v3825, 1
      %v3830 = vsel %vm3828, %v3829, %v3825
      %v3831 = vadd.s32 %v3826, %v3830
      %v3832 = vadd.s32 %v3831, 536870912
      %v3833 = vshrl.u32 %v3832, 30
      %v3834 = vshll.u32 %v3833, 30
      %v3835 = vsub.s32 %v3831, %v3834
      %vm3836 = vcmp.lt.s32.totalorder %v3835, 0
      %v3837 = vsub.s32 0, %v3835
      %v3838 = vsel %vm3836, %v3837, %v3835
      %v3839 = vclz %v3838
      %v3840 = vsub.s32 %v3839, 2
      %vm3841 = vcmp.gt.s32.totalorder 0, %v3840
      %v3842 = vsel %vm3841, 0, %v3840
      %v3843 = vsub.s32 32, %v3842
      %v3844 = vshll.u32 %v3835, %v3842
      %v3845 = vshrl.u32 %v3827, %v3843
      %v3846 = vor.u32 %v3844, %v3845
      %v3847 = vsub.s32 4294967266, %v3842
      %v3848 = vadd.s32 %v3847, 127
      %v3849 = vshll.u32 %v3848, 23
      %v3850 = vor.u32 4788187, %v3849
      %v3851 = vand.u32 2147483647, %v3850
      %v3853 = vcvt.s32.f32 %v3846
      %v3854 = vmul.f32 %v3853, %v3851
      %v3855 = vxor.u32 %v3854, 2147483648
      %v3856 = vsel %vm3735, %v3855, %v3854
      %v3857 = vsub.s32 4, %v3833
      %v3858 = vsel %vm3735, %v3857, %v3833
      %v3859 = vsel %vm3734, %v637, %v3856
      %v3860 = vsel %vm3734, 0, %v3858
      %v3861 = vmul.f32 %v3859, %v3859
      %v3862 = vmul.f32 %v3861, -0.001358992
      %v3863 = vadd.f32 %v3862, 0.041655596
      %v3864 = vmul.f32 %v3861, %v3863
      %v3865 = vadd.f32 %v3864, -0.4999988
      %v3866 = vmul.f32 %v3861, %v3865
      %v3867 = vadd.f32 1.0, %v3866
      %v3868 = vmul.f32 %v3859, %v3859
      %v3869 = vmul.f32 %v3868, -0.00019511016
      %v3870 = vadd.f32 %v3869, 0.008332121
      %v3871 = vmul.f32 %v3868, %v3870
      %v3872 = vadd.f32 %v3871, -0.16666654
      %v3873 = vmul.f32 %v3868, %v3872
      %v3874 = vadd.f32 %v3873, 1.0
      %v3875 = vmul.f32 %v3874, %v3859
      %vm3876 = vweird.f32 %v637
      %v3877 = vadd.s32 %v3860, 3
      %v3878 = vand.u32 %v3877, 3
      %vm3879 = vcmp.lt.s32.totalorder %v3878, 2
      %vm3880 = vcmp.eq.s32.totalorder %v3878, 0
      %v3881 = vxor.u32 %v3875, 2147483648
      %v3882 = vsel %vm3880, %v3867, %v3881
      %vm3883 = vcmp.eq.s32.totalorder %v3878, 2
      %v3884 = vxor.u32 %v3867, 2147483648
      %v3885 = vsel %vm3883, %v3884, %v3875
      %v3886 = vsel %vm3879, %v3882, %v3885
      %v3887 = vsel %vm3876, nan, %v3886
      %v3888 = vand.u32 2147483647, %v638
      %vm3889 = vcmp.le.f32.partialorder %v3888, 0.7853982
      %vm3890 = vcmp.lt.s32.totalorder %v638, 0
      %v3891 = vand.u32 %v638, 2139095040
      %v3892 = vshrl.u32 %v3891, 23
      %v3893 = vsub.s32 %v3892, 127
      %v3894 = vand.u32 2147483647, %v638
      %v3895 = vand.u32 %v3894, 8388607
      %v3896 = vor.u32 %v3895, 8388608
      %v3897 = vsub.s32 0, %v3896
      %v3898 = vadd.s32 %v3893, 1
      %vm3899 = vcmp.gt.s32.totalorder %v3898, 0
      %v3900 = vsel %vm3899, %v3898, 0
      %v3901 = vshrl.u32 %v3900, 5
      %v3902 = vand.u32 %v3900, 31
      %v3903 = vsub.s32 32, %v3902
      %v3904 = vshrl.u32 683565275, %v3903
      %v3905 = vshll.u32 683565275, %v3902
      %v3906 = vshrl.u32 2475754826, %v3903
      %v3907 = vor.u32 %v3905, %v3906
      %v3908 = vshll.u32 2475754826, %v3902
      %v3909 = vshrl.u32 2131351028, %v3903
      %v3910 = vor.u32 %v3908, %v3909
      %v3911 = vshll.u32 2131351028, %v3902
      %v3912 = vshrl.u32 2102212464, %v3903
      %v3913 = vor.u32 %v3911, %v3912
      %v3914 = vshll.u32 2102212464, %v3902
      %v3915 = vshrl.u32 920167782, %v3903
      %v3916 = vor.u32 %v3914, %v3915
      %v3917 = vshll.u32 920167782, %v3902
      %v3918 = vshrl.u32 1326507024, %v3903
      %v3919 = vor.u32 %v3917, %v3918
      %vm3920 = vcmp.lt.s32.totalorder %v3901, 1
      %vm3921 = vcmp.lt.s32.totalorder %v3901, 2
      %vm3922 = vcmp.lt.s32.totalorder %v3901, 3
      %vm3923 = vcmp.lt.s32.totalorder %v3901, 4
      %v3924 = vsel %vm3920, %v3904, %v3907
      %v3925 = vsel %vm3923, %v3913, 2102212464
      %v3926 = vsel %vm3922, %v3910, %v3925
      %v3927 = vsel %vm3921, %v3924, %v3926
      %v3928 = vsel %vm3920, %v3907, %v3910
      %v3929 = vsel %vm3923, %v3916, 920167782
      %v3930 = vsel %vm3922, %v3913, %v3929
      %v3931 = vsel %vm3921, %v3928, %v3930
      %v3932 = vsel %vm3920, %v3910, %v3913
      %v3933 = vsel %vm3923, %v3919, 1326507024
      %v3934 = vsel %vm3922, %v3916, %v3933
      %v3935 = vsel %vm3921, %v3932, %v3934
      %v3936 = vshll.u32 %v3896, 8
      %v3937 = vand.u32 %v3936, 65535
      %v3938 = vshrl.u32 %v3936, 16
      %v3939 = vand.u32 %v3935, 65535
      %v3940 = vshrl.u32 %v3935, 16
      %v3941 = vmul.u32 %v3937, %v3939
      %v3942 = vmul.u32 %v3937, %v3940
      %v3943 = vmul.u32 %v3938, %v3939
      %v3944 = vmul.u32 %v3938, %v3940
      %v3945 = vshll.u32 %v3942, 16
      %v3946 = vshrl.u32 %v3942, 16
      %v3947 = vshll.u32 %v3943, 16
      %v3948 = vshrl.u32 %v3943, 16
      %vm3949 = vc.u32 %v3941, %v3945
      %v3950 = vsel %vm3949, 1, 0
      %v3951 = vadd.s32 %v3941, %v3945
      %v3952 = vadd.s32 %v3944, %v3950
      %vm3953 = vc.u32 %v3951, %v3947
      %v3954 = vsel %vm3953, 1, 0
      %v3955 = vadd.s32 %v3951, %v3947
      %v3956 = vadd.s32 %v3952, %v3954
      %v3957 = vadd.s32 %v3956, %v3946
      %v3958 = vadd.s32 %v3957, %v3948
      %v3959 = vand.u32 %v3936, 65535
      %v3960 = vshrl.u32 %v3936, 16
      %v3961 = vand.u32 %v3931, 65535
      %v3962 = vshrl.u32 %v3931, 16
      %v3963 = vmul.u32 %v3959, %v3961
      %v3964 = vmul.u32 %v3959, %v3962
      %v3965 = vmul.u32 %v3960, %v3961
      %v3966 = vmul.u32 %v3960, %v3962
      %v3967 = vshll.u32 %v3964, 16
      %v3968 = vshrl.u32 %v3964, 16
      %v3969 = vshll.u32 %v3965, 16
      %v3970 = vshrl.u32 %v3965, 16
      %vm3971 = vc.u32 %v3963, %v3967
      %v3972 = vsel %vm3971, 1, 0
      %v3973 = vadd.s32 %v3963, %v3967
      %v3974 = vadd.s32 %v3966, %v3972
      %vm3975 = vc.u32 %v3973, %v3969
      %v3976 = vsel %vm3975, 1, 0
      %v3977 = vadd.s32 %v3973, %v3969
      %v3978 = vadd.s32 %v3974, %v3976
      %v3979 = vadd.s32 %v3978, %v3968
      %v3980 = vadd.s32 %v3979, %v3970
      %v3981 = vmul.u32 %v3936, %v3927
      %v3982 = vadd.s32 %v3958, %v3977
      %vm3983 = vc.u32 %v3958, %v3977
      %v3984 = vadd.s32 %v3980, 1
      %v3985 = vsel %vm3983, %v3984, %v3980
      %v3986 = vadd.s32 %v3981, %v3985
      %v3987 = vadd.s32 %v3986, 536870912
      %v3988 = vshrl.u32 %v3987, 30
      %v3989 = vshll.u32 %v3988, 30
      %v3990 = vsub.s32 %v3986, %v3989
      %vm3991 = vcmp.lt.s32.totalorder %v3990, 0
      %v3992 = vsub.s32 0, %v3990
      %v3993 = vsel %vm3991, %v3992, %v3990
      %v3994 = vclz %v3993
      %v3995 = vsub.s32 %v3994, 2
      %vm3996 = vcmp.gt.s32.totalorder 0, %v3995
      %v3997 = vsel %vm3996, 0, %v3995
      %v3998 = vsub.s32 32, %v3997
      %v3999 = vshll.u32 %v3990, %v3997
      %v4000 = vshrl.u32 %v3982, %v3998
      %v4001 = vor.u32 %v3999, %v4000
      %v4002 = vsub.s32 4294967266, %v3997
      %v4003 = vadd.s32 %v4002, 127
      %v4004 = vshll.u32 %v4003, 23
      %v4005 = vor.u32 4788187, %v4004
      %v4006 = vand.u32 2147483647, %v4005
      %v4008 = vcvt.s32.f32 %v4001
      %v4009 = vmul.f32 %v4008, %v4006
      %v4010 = vxor.u32 %v4009, 2147483648
      %v4011 = vsel %vm3890, %v4010, %v4009
      %v4012 = vsub.s32 4, %v3988
      %v4013 = vsel %vm3890, %v4012, %v3988
      %v4014 = vsel %vm3889, %v638, %v4011
      %v4015 = vsel %vm3889, 0, %v4013
      %v4016 = vmul.f32 %v4014, %v4014
      %v4017 = vmul.f32 %v4016, -0.001358992
      %v4018 = vadd.f32 %v4017, 0.041655596
      %v4019 = vmul.f32 %v4016, %v4018
      %v4020 = vadd.f32 %v4019, -0.4999988
      %v4021 = vmul.f32 %v4016, %v4020
      %v4022 = vadd.f32 1.0, %v4021
      %v4023 = vmul.f32 %v4014, %v4014
      %v4024 = vmul.f32 %v4023, -0.00019511016
      %v4025 = vadd.f32 %v4024, 0.008332121
      %v4026 = vmul.f32 %v4023, %v4025
      %v4027 = vadd.f32 %v4026, -0.16666654
      %v4028 = vmul.f32 %v4023, %v4027
      %v4029 = vadd.f32 %v4028, 1.0
      %v4030 = vmul.f32 %v4029, %v4014
      %vm4031 = vweird.f32 %v638
      %v4032 = vadd.s32 %v4015, 3
      %v4033 = vand.u32 %v4032, 3
      %vm4034 = vcmp.lt.s32.totalorder %v4033, 2
      %vm4035 = vcmp.eq.s32.totalorder %v4033, 0
      %v4036 = vxor.u32 %v4030, 2147483648
      %v4037 = vsel %vm4035, %v4022, %v4036
      %vm4038 = vcmp.eq.s32.totalorder %v4033, 2
      %v4039 = vxor.u32 %v4022, 2147483648
      %v4040 = vsel %vm4038, %v4039, %v4030
      %v4041 = vsel %vm4034, %v4037, %v4040
      %v4042 = vsel %vm4031, nan, %v4041
      %v4043 = vand.u32 2147483647, %v639
      %vm4044 = vcmp.le.f32.partialorder %v4043, 0.7853982
      %vm4045 = vcmp.lt.s32.totalorder %v639, 0
      %v4046 = vand.u32 %v639, 2139095040
      %v4047 = vshrl.u32 %v4046, 23
      %v4048 = vsub.s32 %v4047, 127
      %v4049 = vand.u32 2147483647, %v639
      %v4050 = vand.u32 %v4049, 8388607
      %v4051 = vor.u32 %v4050, 8388608
      %v4052 = vsub.s32 0, %v4051
      %v4053 = vadd.s32 %v4048, 1
      %vm4054 = vcmp.gt.s32.totalorder %v4053, 0
      %v4055 = vsel %vm4054, %v4053, 0
      %v4056 = vshrl.u32 %v4055, 5
      %v4057 = vand.u32 %v4055, 31
      %v4058 = vsub.s32 32, %v4057
      %v4059 = vshrl.u32 683565275, %v4058
      %v4060 = vshll.u32 683565275, %v4057
      %v4061 = vshrl.u32 2475754826, %v4058
      %v4062 = vor.u32 %v4060, %v4061
      %v4063 = vshll.u32 2475754826, %v4057
      %v4064 = vshrl.u32 2131351028, %v4058
      %v4065 = vor.u32 %v4063, %v4064
      %v4066 = vshll.u32 2131351028, %v4057
      %v4067 = vshrl.u32 2102212464, %v4058
      %v4068 = vor.u32 %v4066, %v4067
      %v4069 = vshll.u32 2102212464, %v4057
      %v4070 = vshrl.u32 920167782, %v4058
      %v4071 = vor.u32 %v4069, %v4070
      %v4072 = vshll.u32 920167782, %v4057
      %v4073 = vshrl.u32 1326507024, %v4058
      %v4074 = vor.u32 %v4072, %v4073
      %vm4075 = vcmp.lt.s32.totalorder %v4056, 1
      %vm4076 = vcmp.lt.s32.totalorder %v4056, 2
      %vm4077 = vcmp.lt.s32.totalorder %v4056, 3
      %vm4078 = vcmp.lt.s32.totalorder %v4056, 4
      %v4079 = vsel %vm4075, %v4059, %v4062
      %v4080 = vsel %vm4078, %v4068, 2102212464
      %v4081 = vsel %vm4077, %v4065, %v4080
      %v4082 = vsel %vm4076, %v4079, %v4081
      %v4083 = vsel %vm4075, %v4062, %v4065
      %v4084 = vsel %vm4078, %v4071, 920167782
      %v4085 = vsel %vm4077, %v4068, %v4084
      %v4086 = vsel %vm4076, %v4083, %v4085
      %v4087 = vsel %vm4075, %v4065, %v4068
      %v4088 = vsel %vm4078, %v4074, 1326507024
      %v4089 = vsel %vm4077, %v4071, %v4088
      %v4090 = vsel %vm4076, %v4087, %v4089
      %v4091 = vshll.u32 %v4051, 8
      %v4092 = vand.u32 %v4091, 65535
      %v4093 = vshrl.u32 %v4091, 16
      %v4094 = vand.u32 %v4090, 65535
      %v4095 = vshrl.u32 %v4090, 16
      %v4096 = vmul.u32 %v4092, %v4094
      %v4097 = vmul.u32 %v4092, %v4095
      %v4098 = vmul.u32 %v4093, %v4094
      %v4099 = vmul.u32 %v4093, %v4095
      %v4100 = vshll.u32 %v4097, 16
      %v4101 = vshrl.u32 %v4097, 16
      %v4102 = vshll.u32 %v4098, 16
      %v4103 = vshrl.u32 %v4098, 16
      %vm4104 = vc.u32 %v4096, %v4100
      %v4105 = vsel %vm4104, 1, 0
      %v4106 = vadd.s32 %v4096, %v4100
      %v4107 = vadd.s32 %v4099, %v4105
      %vm4108 = vc.u32 %v4106, %v4102
      %v4109 = vsel %vm4108, 1, 0
      %v4110 = vadd.s32 %v4106, %v4102
      %v4111 = vadd.s32 %v4107, %v4109
      %v4112 = vadd.s32 %v4111, %v4101
      %v4113 = vadd.s32 %v4112, %v4103
      %v4114 = vand.u32 %v4091, 65535
      %v4115 = vshrl.u32 %v4091, 16
      %v4116 = vand.u32 %v4086, 65535
      %v4117 = vshrl.u32 %v4086, 16
      %v4118 = vmul.u32 %v4114, %v4116
      %v4119 = vmul.u32 %v4114, %v4117
      %v4120 = vmul.u32 %v4115, %v4116
      %v4121 = vmul.u32 %v4115, %v4117
      %v4122 = vshll.u32 %v4119, 16
      %v4123 = vshrl.u32 %v4119, 16
      %v4124 = vshll.u32 %v4120, 16
      %v4125 = vshrl.u32 %v4120, 16
      %vm4126 = vc.u32 %v4118, %v4122
      %v4127 = vsel %vm4126, 1, 0
      %v4128 = vadd.s32 %v4118, %v4122
      %v4129 = vadd.s32 %v4121, %v4127
      %vm4130 = vc.u32 %v4128, %v4124
      %v4131 = vsel %vm4130, 1, 0
      %v4132 = vadd.s32 %v4128, %v4124
      %v4133 = vadd.s32 %v4129, %v4131
      %v4134 = vadd.s32 %v4133, %v4123
      %v4135 = vadd.s32 %v4134, %v4125
      %v4136 = vmul.u32 %v4091, %v4082
      %v4137 = vadd.s32 %v4113, %v4132
      %vm4138 = vc.u32 %v4113, %v4132
      %v4139 = vadd.s32 %v4135, 1
      %v4140 = vsel %vm4138, %v4139, %v4135
      %v4141 = vadd.s32 %v4136, %v4140
      %v4142 = vadd.s32 %v4141, 536870912
      %v4143 = vshrl.u32 %v4142, 30
      %v4144 = vshll.u32 %v4143, 30
      %v4145 = vsub.s32 %v4141, %v4144
      %vm4146 = vcmp.lt.s32.totalorder %v4145, 0
      %v4147 = vsub.s32 0, %v4145
      %v4148 = vsel %vm4146, %v4147, %v4145
      %v4149 = vclz %v4148
      %v4150 = vsub.s32 %v4149, 2
      %vm4151 = vcmp.gt.s32.totalorder 0, %v4150
      %v4152 = vsel %vm4151, 0, %v4150
      %v4153 = vsub.s32 32, %v4152
      %v4154 = vshll.u32 %v4145, %v4152
      %v4155 = vshrl.u32 %v4137, %v4153
      %v4156 = vor.u32 %v4154, %v4155
      %v4157 = vsub.s32 4294967266, %v4152
      %v4158 = vadd.s32 %v4157, 127
      %v4159 = vshll.u32 %v4158, 23
      %v4160 = vor.u32 4788187, %v4159
      %v4161 = vand.u32 2147483647, %v4160
      %v4163 = vcvt.s32.f32 %v4156
      %v4164 = vmul.f32 %v4163, %v4161
      %v4165 = vxor.u32 %v4164, 2147483648
      %v4166 = vsel %vm4045, %v4165, %v4164
      %v4167 = vsub.s32 4, %v4143
      %v4168 = vsel %vm4045, %v4167, %v4143
      %v4169 = vsel %vm4044, %v639, %v4166
      %v4170 = vsel %vm4044, 0, %v4168
      %v4171 = vmul.f32 %v4169, %v4169
      %v4172 = vmul.f32 %v4171, -0.001358992
      %v4173 = vadd.f32 %v4172, 0.041655596
      %v4174 = vmul.f32 %v4171, %v4173
      %v4175 = vadd.f32 %v4174, -0.4999988
      %v4176 = vmul.f32 %v4171, %v4175
      %v4177 = vadd.f32 1.0, %v4176
      %v4178 = vmul.f32 %v4169, %v4169
      %v4179 = vmul.f32 %v4178, -0.00019511016
      %v4180 = vadd.f32 %v4179, 0.008332121
      %v4181 = vmul.f32 %v4178, %v4180
      %v4182 = vadd.f32 %v4181, -0.16666654
      %v4183 = vmul.f32 %v4178, %v4182
      %v4184 = vadd.f32 %v4183, 1.0
      %v4185 = vmul.f32 %v4184, %v4169
      %vm4186 = vweird.f32 %v639
      %v4187 = vadd.s32 %v4170, 3
      %v4188 = vand.u32 %v4187, 3
      %vm4189 = vcmp.lt.s32.totalorder %v4188, 2
      %vm4190 = vcmp.eq.s32.totalorder %v4188, 0
      %v4191 = vxor.u32 %v4185, 2147483648
      %v4192 = vsel %vm4190, %v4177, %v4191
      %vm4193 = vcmp.eq.s32.totalorder %v4188, 2
      %v4194 = vxor.u32 %v4177, 2147483648
      %v4195 = vsel %vm4193, %v4194, %v4185
      %v4196 = vsel %vm4189, %v4192, %v4195
      %v4197 = vsel %vm4186, nan, %v4196
      %v4198 = vand.u32 2147483647, %v640
      %vm4199 = vcmp.le.f32.partialorder %v4198, 0.7853982
      %vm4200 = vcmp.lt.s32.totalorder %v640, 0
      %v4201 = vand.u32 %v640, 2139095040
      %v4202 = vshrl.u32 %v4201, 23
      %v4203 = vsub.s32 %v4202, 127
      %v4204 = vand.u32 2147483647, %v640
      %v4205 = vand.u32 %v4204, 8388607
      %v4206 = vor.u32 %v4205, 8388608
      %v4207 = vsub.s32 0, %v4206
      %v4208 = vadd.s32 %v4203, 1
      %vm4209 = vcmp.gt.s32.totalorder %v4208, 0
      %v4210 = vsel %vm4209, %v4208, 0
      %v4211 = vshrl.u32 %v4210, 5
      %v4212 = vand.u32 %v4210, 31
      %v4213 = vsub.s32 32, %v4212
      %v4214 = vshrl.u32 683565275, %v4213
      %v4215 = vshll.u32 683565275, %v4212
      %v4216 = vshrl.u32 2475754826, %v4213
      %v4217 = vor.u32 %v4215, %v4216
      %v4218 = vshll.u32 2475754826, %v4212
      %v4219 = vshrl.u32 2131351028, %v4213
      %v4220 = vor.u32 %v4218, %v4219
      %v4221 = vshll.u32 2131351028, %v4212
      %v4222 = vshrl.u32 2102212464, %v4213
      %v4223 = vor.u32 %v4221, %v4222
      %v4224 = vshll.u32 2102212464, %v4212
      %v4225 = vshrl.u32 920167782, %v4213
      %v4226 = vor.u32 %v4224, %v4225
      %v4227 = vshll.u32 920167782, %v4212
      %v4228 = vshrl.u32 1326507024, %v4213
      %v4229 = vor.u32 %v4227, %v4228
      %vm4230 = vcmp.lt.s32.totalorder %v4211, 1
      %vm4231 = vcmp.lt.s32.totalorder %v4211, 2
      %vm4232 = vcmp.lt.s32.totalorder %v4211, 3
      %vm4233 = vcmp.lt.s32.totalorder %v4211, 4
      %v4234 = vsel %vm4230, %v4214, %v4217
      %v4235 = vsel %vm4233, %v4223, 2102212464
      %v4236 = vsel %vm4232, %v4220, %v4235
      %v4237 = vsel %vm4231, %v4234, %v4236
      %v4238 = vsel %vm4230, %v4217, %v4220
      %v4239 = vsel %vm4233, %v4226, 920167782
      %v4240 = vsel %vm4232, %v4223, %v4239
      %v4241 = vsel %vm4231, %v4238, %v4240
      %v4242 = vsel %vm4230, %v4220, %v4223
      %v4243 = vsel %vm4233, %v4229, 1326507024
      %v4244 = vsel %vm4232, %v4226, %v4243
      %v4245 = vsel %vm4231, %v4242, %v4244
      %v4246 = vshll.u32 %v4206, 8
      %v4247 = vand.u32 %v4246, 65535
      %v4248 = vshrl.u32 %v4246, 16
      %v4249 = vand.u32 %v4245, 65535
      %v4250 = vshrl.u32 %v4245, 16
      %v4251 = vmul.u32 %v4247, %v4249
      %v4252 = vmul.u32 %v4247, %v4250
      %v4253 = vmul.u32 %v4248, %v4249
      %v4254 = vmul.u32 %v4248, %v4250
      %v4255 = vshll.u32 %v4252, 16
      %v4256 = vshrl.u32 %v4252, 16
      %v4257 = vshll.u32 %v4253, 16
      %v4258 = vshrl.u32 %v4253, 16
      %vm4259 = vc.u32 %v4251, %v4255
      %v4260 = vsel %vm4259, 1, 0
      %v4261 = vadd.s32 %v4251, %v4255
      %v4262 = vadd.s32 %v4254, %v4260
      %vm4263 = vc.u32 %v4261, %v4257
      %v4264 = vsel %vm4263, 1, 0
      %v4265 = vadd.s32 %v4261, %v4257
      %v4266 = vadd.s32 %v4262, %v4264
      %v4267 = vadd.s32 %v4266, %v4256
      %v4268 = vadd.s32 %v4267, %v4258
      %v4269 = vand.u32 %v4246, 65535
      %v4270 = vshrl.u32 %v4246, 16
      %v4271 = vand.u32 %v4241, 65535
      %v4272 = vshrl.u32 %v4241, 16
      %v4273 = vmul.u32 %v4269, %v4271
      %v4274 = vmul.u32 %v4269, %v4272
      %v4275 = vmul.u32 %v4270, %v4271
      %v4276 = vmul.u32 %v4270, %v4272
      %v4277 = vshll.u32 %v4274, 16
      %v4278 = vshrl.u32 %v4274, 16
      %v4279 = vshll.u32 %v4275, 16
      %v4280 = vshrl.u32 %v4275, 16
      %vm4281 = vc.u32 %v4273, %v4277
      %v4282 = vsel %vm4281, 1, 0
      %v4283 = vadd.s32 %v4273, %v4277
      %v4284 = vadd.s32 %v4276, %v4282
      %vm4285 = vc.u32 %v4283, %v4279
      %v4286 = vsel %vm4285, 1, 0
      %v4287 = vadd.s32 %v4283, %v4279
      %v4288 = vadd.s32 %v4284, %v4286
      %v4289 = vadd.s32 %v4288, %v4278
      %v4290 = vadd.s32 %v4289, %v4280
      %v4291 = vmul.u32 %v4246, %v4237
      %v4292 = vadd.s32 %v4268, %v4287
      %vm4293 = vc.u32 %v4268, %v4287
      %v4294 = vadd.s32 %v4290, 1
      %v4295 = vsel %vm4293, %v4294, %v4290
      %v4296 = vadd.s32 %v4291, %v4295
      %v4297 = vadd.s32 %v4296, 536870912
      %v4298 = vshrl.u32 %v4297, 30
      %v4299 = vshll.u32 %v4298, 30
      %v4300 = vsub.s32 %v4296, %v4299
      %vm4301 = vcmp.lt.s32.totalorder %v4300, 0
      %v4302 = vsub.s32 0, %v4300
      %v4303 = vsel %vm4301, %v4302, %v4300
      %v4304 = vclz %v4303
      %v4305 = vsub.s32 %v4304, 2
      %vm4306 = vcmp.gt.s32.totalorder 0, %v4305
      %v4307 = vsel %vm4306, 0, %v4305
      %v4308 = vsub.s32 32, %v4307
      %v4309 = vshll.u32 %v4300, %v4307
      %v4310 = vshrl.u32 %v4292, %v4308
      %v4311 = vor.u32 %v4309, %v4310
      %v4312 = vsub.s32 4294967266, %v4307
      %v4313 = vadd.s32 %v4312, 127
      %v4314 = vshll.u32 %v4313, 23
      %v4315 = vor.u32 4788187, %v4314
      %v4316 = vand.u32 2147483647, %v4315
      %v4318 = vcvt.s32.f32 %v4311
      %v4319 = vmul.f32 %v4318, %v4316
      %v4320 = vxor.u32 %v4319, 2147483648
      %v4321 = vsel %vm4200, %v4320, %v4319
      %v4322 = vsub.s32 4, %v4298
      %v4323 = vsel %vm4200, %v4322, %v4298
      %v4324 = vsel %vm4199, %v640, %v4321
      %v4325 = vsel %vm4199, 0, %v4323
      %v4326 = vmul.f32 %v4324, %v4324
      %v4327 = vmul.f32 %v4326, -0.001358992
      %v4328 = vadd.f32 %v4327, 0.041655596
      %v4329 = vmul.f32 %v4326, %v4328
      %v4330 = vadd.f32 %v4329, -0.4999988
      %v4331 = vmul.f32 %v4326, %v4330
      %v4332 = vadd.f32 1.0, %v4331
      %v4333 = vmul.f32 %v4324, %v4324
      %v4334 = vmul.f32 %v4333, -0.00019511016
      %v4335 = vadd.f32 %v4334, 0.008332121
      %v4336 = vmul.f32 %v4333, %v4335
      %v4337 = vadd.f32 %v4336, -0.16666654
      %v4338 = vmul.f32 %v4333, %v4337
      %v4339 = vadd.f32 %v4338, 1.0
      %v4340 = vmul.f32 %v4339, %v4324
      %vm4341 = vweird.f32 %v640
      %v4342 = vadd.s32 %v4325, 3
      %v4343 = vand.u32 %v4342, 3
      %vm4344 = vcmp.lt.s32.totalorder %v4343, 2
      %vm4345 = vcmp.eq.s32.totalorder %v4343, 0
      %v4346 = vxor.u32 %v4340, 2147483648
      %v4347 = vsel %vm4345, %v4332, %v4346
      %vm4348 = vcmp.eq.s32.totalorder %v4343, 2
      %v4349 = vxor.u32 %v4332, 2147483648
      %v4350 = vsel %vm4348, %v4349, %v4340
      %v4351 = vsel %vm4344, %v4347, %v4350
      %v4352 = vsel %vm4341, nan, %v4351
      %v4353 = vand.u32 2147483647, %v641
      %vm4354 = vcmp.le.f32.partialorder %v4353, 0.7853982
      %vm4355 = vcmp.lt.s32.totalorder %v641, 0
      %v4356 = vand.u32 %v641, 2139095040
      %v4357 = vshrl.u32 %v4356, 23
      %v4358 = vsub.s32 %v4357, 127
      %v4359 = vand.u32 2147483647, %v641
      %v4360 = vand.u32 %v4359, 8388607
      %v4361 = vor.u32 %v4360, 8388608
      %v4362 = vsub.s32 0, %v4361
      %v4363 = vadd.s32 %v4358, 1
      %vm4364 = vcmp.gt.s32.totalorder %v4363, 0
      %v4365 = vsel %vm4364, %v4363, 0
      %v4366 = vshrl.u32 %v4365, 5
      %v4367 = vand.u32 %v4365, 31
      %v4368 = vsub.s32 32, %v4367
      %v4369 = vshrl.u32 683565275, %v4368
      %v4370 = vshll.u32 683565275, %v4367
      %v4371 = vshrl.u32 2475754826, %v4368
      %v4372 = vor.u32 %v4370, %v4371
      %v4373 = vshll.u32 2475754826, %v4367
      %v4374 = vshrl.u32 2131351028, %v4368
      %v4375 = vor.u32 %v4373, %v4374
      %v4376 = vshll.u32 2131351028, %v4367
      %v4377 = vshrl.u32 2102212464, %v4368
      %v4378 = vor.u32 %v4376, %v4377
      %v4379 = vshll.u32 2102212464, %v4367
      %v4380 = vshrl.u32 920167782, %v4368
      %v4381 = vor.u32 %v4379, %v4380
      %v4382 = vshll.u32 920167782, %v4367
      %v4383 = vshrl.u32 1326507024, %v4368
      %v4384 = vor.u32 %v4382, %v4383
      %vm4385 = vcmp.lt.s32.totalorder %v4366, 1
      %vm4386 = vcmp.lt.s32.totalorder %v4366, 2
      %vm4387 = vcmp.lt.s32.totalorder %v4366, 3
      %vm4388 = vcmp.lt.s32.totalorder %v4366, 4
      %v4389 = vsel %vm4385, %v4369, %v4372
      %v4390 = vsel %vm4388, %v4378, 2102212464
      %v4391 = vsel %vm4387, %v4375, %v4390
      %v4392 = vsel %vm4386, %v4389, %v4391
      %v4393 = vsel %vm4385, %v4372, %v4375
      %v4394 = vsel %vm4388, %v4381, 920167782
      %v4395 = vsel %vm4387, %v4378, %v4394
      %v4396 = vsel %vm4386, %v4393, %v4395
      %v4397 = vsel %vm4385, %v4375, %v4378
      %v4398 = vsel %vm4388, %v4384, 1326507024
      %v4399 = vsel %vm4387, %v4381, %v4398
      %v4400 = vsel %vm4386, %v4397, %v4399
      %v4401 = vshll.u32 %v4361, 8
      %v4402 = vand.u32 %v4401, 65535
      %v4403 = vshrl.u32 %v4401, 16
      %v4404 = vand.u32 %v4400, 65535
      %v4405 = vshrl.u32 %v4400, 16
      %v4406 = vmul.u32 %v4402, %v4404
      %v4407 = vmul.u32 %v4402, %v4405
      %v4408 = vmul.u32 %v4403, %v4404
      %v4409 = vmul.u32 %v4403, %v4405
      %v4410 = vshll.u32 %v4407, 16
      %v4411 = vshrl.u32 %v4407, 16
      %v4412 = vshll.u32 %v4408, 16
      %v4413 = vshrl.u32 %v4408, 16
      %vm4414 = vc.u32 %v4406, %v4410
      %v4415 = vsel %vm4414, 1, 0
      %v4416 = vadd.s32 %v4406, %v4410
      %v4417 = vadd.s32 %v4409, %v4415
      %vm4418 = vc.u32 %v4416, %v4412
      %v4419 = vsel %vm4418, 1, 0
      %v4420 = vadd.s32 %v4416, %v4412
      %v4421 = vadd.s32 %v4417, %v4419
      %v4422 = vadd.s32 %v4421, %v4411
      %v4423 = vadd.s32 %v4422, %v4413
      %v4424 = vand.u32 %v4401, 65535
      %v4425 = vshrl.u32 %v4401, 16
      %v4426 = vand.u32 %v4396, 65535
      %v4427 = vshrl.u32 %v4396, 16
      %v4428 = vmul.u32 %v4424, %v4426
      %v4429 = vmul.u32 %v4424, %v4427
      %v4430 = vmul.u32 %v4425, %v4426
      %v4431 = vmul.u32 %v4425, %v4427
      %v4432 = vshll.u32 %v4429, 16
      %v4433 = vshrl.u32 %v4429, 16
      %v4434 = vshll.u32 %v4430, 16
      %v4435 = vshrl.u32 %v4430, 16
      %vm4436 = vc.u32 %v4428, %v4432
      %v4437 = vsel %vm4436, 1, 0
      %v4438 = vadd.s32 %v4428, %v4432
      %v4439 = vadd.s32 %v4431, %v4437
      %vm4440 = vc.u32 %v4438, %v4434
      %v4441 = vsel %vm4440, 1, 0
      %v4442 = vadd.s32 %v4438, %v4434
      %v4443 = vadd.s32 %v4439, %v4441
      %v4444 = vadd.s32 %v4443, %v4433
      %v4445 = vadd.s32 %v4444, %v4435
      %v4446 = vmul.u32 %v4401, %v4392
      %v4447 = vadd.s32 %v4423, %v4442
      %vm4448 = vc.u32 %v4423, %v4442
      %v4449 = vadd.s32 %v4445, 1
      %v4450 = vsel %vm4448, %v4449, %v4445
      %v4451 = vadd.s32 %v4446, %v4450
      %v4452 = vadd.s32 %v4451, 536870912
      %v4453 = vshrl.u32 %v4452, 30
      %v4454 = vshll.u32 %v4453, 30
      %v4455 = vsub.s32 %v4451, %v4454
      %vm4456 = vcmp.lt.s32.totalorder %v4455, 0
      %v4457 = vsub.s32 0, %v4455
      %v4458 = vsel %vm4456, %v4457, %v4455
      %v4459 = vclz %v4458
      %v4460 = vsub.s32 %v4459, 2
      %vm4461 = vcmp.gt.s32.totalorder 0, %v4460
      %v4462 = vsel %vm4461, 0, %v4460
      %v4463 = vsub.s32 32, %v4462
      %v4464 = vshll.u32 %v4455, %v4462
      %v4465 = vshrl.u32 %v4447, %v4463
      %v4466 = vor.u32 %v4464, %v4465
      %v4467 = vsub.s32 4294967266, %v4462
      %v4468 = vadd.s32 %v4467, 127
      %v4469 = vshll.u32 %v4468, 23
      %v4470 = vor.u32 4788187, %v4469
      %v4471 = vand.u32 2147483647, %v4470
      %v4473 = vcvt.s32.f32 %v4466
      %v4474 = vmul.f32 %v4473, %v4471
      %v4475 = vxor.u32 %v4474, 2147483648
      %v4476 = vsel %vm4355, %v4475, %v4474
      %v4477 = vsub.s32 4, %v4453
      %v4478 = vsel %vm4355, %v4477, %v4453
      %v4479 = vsel %vm4354, %v641, %v4476
      %v4480 = vsel %vm4354, 0, %v4478
      %v4481 = vmul.f32 %v4479, %v4479
      %v4482 = vmul.f32 %v4481, -0.001358992
      %v4483 = vadd.f32 %v4482, 0.041655596
      %v4484 = vmul.f32 %v4481, %v4483
      %v4485 = vadd.f32 %v4484, -0.4999988
      %v4486 = vmul.f32 %v4481, %v4485
      %v4487 = vadd.f32 1.0, %v4486
      %v4488 = vmul.f32 %v4479, %v4479
      %v4489 = vmul.f32 %v4488, -0.00019511016
      %v4490 = vadd.f32 %v4489, 0.008332121
      %v4491 = vmul.f32 %v4488, %v4490
      %v4492 = vadd.f32 %v4491, -0.16666654
      %v4493 = vmul.f32 %v4488, %v4492
      %v4494 = vadd.f32 %v4493, 1.0
      %v4495 = vmul.f32 %v4494, %v4479
      %vm4496 = vweird.f32 %v641
      %v4497 = vadd.s32 %v4480, 3
      %v4498 = vand.u32 %v4497, 3
      %vm4499 = vcmp.lt.s32.totalorder %v4498, 2
      %vm4500 = vcmp.eq.s32.totalorder %v4498, 0
      %v4501 = vxor.u32 %v4495, 2147483648
      %v4502 = vsel %vm4500, %v4487, %v4501
      %vm4503 = vcmp.eq.s32.totalorder %v4498, 2
      %v4504 = vxor.u32 %v4487, 2147483648
      %v4505 = vsel %vm4503, %v4504, %v4495
      %v4506 = vsel %vm4499, %v4502, %v4505
      %v4507 = vsel %vm4496, nan, %v4506
      %v4508 = vand.u32 2147483647, %v642
      %vm4509 = vcmp.le.f32.partialorder %v4508, 0.7853982
      %vm4510 = vcmp.lt.s32.totalorder %v642, 0
      %v4511 = vand.u32 %v642, 2139095040
      %v4512 = vshrl.u32 %v4511, 23
      %v4513 = vsub.s32 %v4512, 127
      %v4514 = vand.u32 2147483647, %v642
      %v4515 = vand.u32 %v4514, 8388607
      %v4516 = vor.u32 %v4515, 8388608
      %v4517 = vsub.s32 0, %v4516
      %v4518 = vadd.s32 %v4513, 1
      %vm4519 = vcmp.gt.s32.totalorder %v4518, 0
      %v4520 = vsel %vm4519, %v4518, 0
      %v4521 = vshrl.u32 %v4520, 5
      %v4522 = vand.u32 %v4520, 31
      %v4523 = vsub.s32 32, %v4522
      %v4524 = vshrl.u32 683565275, %v4523
      %v4525 = vshll.u32 683565275, %v4522
      %v4526 = vshrl.u32 2475754826, %v4523
      %v4527 = vor.u32 %v4525, %v4526
      %v4528 = vshll.u32 2475754826, %v4522
      %v4529 = vshrl.u32 2131351028, %v4523
      %v4530 = vor.u32 %v4528, %v4529
      %v4531 = vshll.u32 2131351028, %v4522
      %v4532 = vshrl.u32 2102212464, %v4523
      %v4533 = vor.u32 %v4531, %v4532
      %v4534 = vshll.u32 2102212464, %v4522
      %v4535 = vshrl.u32 920167782, %v4523
      %v4536 = vor.u32 %v4534, %v4535
      %v4537 = vshll.u32 920167782, %v4522
      %v4538 = vshrl.u32 1326507024, %v4523
      %v4539 = vor.u32 %v4537, %v4538
      %vm4540 = vcmp.lt.s32.totalorder %v4521, 1
      %vm4541 = vcmp.lt.s32.totalorder %v4521, 2
      %vm4542 = vcmp.lt.s32.totalorder %v4521, 3
      %vm4543 = vcmp.lt.s32.totalorder %v4521, 4
      %v4544 = vsel %vm4540, %v4524, %v4527
      %v4545 = vsel %vm4543, %v4533, 2102212464
      %v4546 = vsel %vm4542, %v4530, %v4545
      %v4547 = vsel %vm4541, %v4544, %v4546
      %v4548 = vsel %vm4540, %v4527, %v4530
      %v4549 = vsel %vm4543, %v4536, 920167782
      %v4550 = vsel %vm4542, %v4533, %v4549
      %v4551 = vsel %vm4541, %v4548, %v4550
      %v4552 = vsel %vm4540, %v4530, %v4533
      %v4553 = vsel %vm4543, %v4539, 1326507024
      %v4554 = vsel %vm4542, %v4536, %v4553
      %v4555 = vsel %vm4541, %v4552, %v4554
      %v4556 = vshll.u32 %v4516, 8
      %v4557 = vand.u32 %v4556, 65535
      %v4558 = vshrl.u32 %v4556, 16
      %v4559 = vand.u32 %v4555, 65535
      %v4560 = vshrl.u32 %v4555, 16
      %v4561 = vmul.u32 %v4557, %v4559
      %v4562 = vmul.u32 %v4557, %v4560
      %v4563 = vmul.u32 %v4558, %v4559
      %v4564 = vmul.u32 %v4558, %v4560
      %v4565 = vshll.u32 %v4562, 16
      %v4566 = vshrl.u32 %v4562, 16
      %v4567 = vshll.u32 %v4563, 16
      %v4568 = vshrl.u32 %v4563, 16
      %vm4569 = vc.u32 %v4561, %v4565
      %v4570 = vsel %vm4569, 1, 0
      %v4571 = vadd.s32 %v4561, %v4565
      %v4572 = vadd.s32 %v4564, %v4570
      %vm4573 = vc.u32 %v4571, %v4567
      %v4574 = vsel %vm4573, 1, 0
      %v4575 = vadd.s32 %v4571, %v4567
      %v4576 = vadd.s32 %v4572, %v4574
      %v4577 = vadd.s32 %v4576, %v4566
      %v4578 = vadd.s32 %v4577, %v4568
      %v4579 = vand.u32 %v4556, 65535
      %v4580 = vshrl.u32 %v4556, 16
      %v4581 = vand.u32 %v4551, 65535
      %v4582 = vshrl.u32 %v4551, 16
      %v4583 = vmul.u32 %v4579, %v4581
      %v4584 = vmul.u32 %v4579, %v4582
      %v4585 = vmul.u32 %v4580, %v4581
      %v4586 = vmul.u32 %v4580, %v4582
      %v4587 = vshll.u32 %v4584, 16
      %v4588 = vshrl.u32 %v4584, 16
      %v4589 = vshll.u32 %v4585, 16
      %v4590 = vshrl.u32 %v4585, 16
      %vm4591 = vc.u32 %v4583, %v4587
      %v4592 = vsel %vm4591, 1, 0
      %v4593 = vadd.s32 %v4583, %v4587
      %v4594 = vadd.s32 %v4586, %v4592
      %vm4595 = vc.u32 %v4593, %v4589
      %v4596 = vsel %vm4595, 1, 0
      %v4597 = vadd.s32 %v4593, %v4589
      %v4598 = vadd.s32 %v4594, %v4596
      %v4599 = vadd.s32 %v4598, %v4588
      %v4600 = vadd.s32 %v4599, %v4590
      %v4601 = vmul.u32 %v4556, %v4547
      %v4602 = vadd.s32 %v4578, %v4597
      %vm4603 = vc.u32 %v4578, %v4597
      %v4604 = vadd.s32 %v4600, 1
      %v4605 = vsel %vm4603, %v4604, %v4600
      %v4606 = vadd.s32 %v4601, %v4605
      %v4607 = vadd.s32 %v4606, 536870912
      %v4608 = vshrl.u32 %v4607, 30
      %v4609 = vshll.u32 %v4608, 30
      %v4610 = vsub.s32 %v4606, %v4609
      %vm4611 = vcmp.lt.s32.totalorder %v4610, 0
      %v4612 = vsub.s32 0, %v4610
      %v4613 = vsel %vm4611, %v4612, %v4610
      %v4614 = vclz %v4613
      %v4615 = vsub.s32 %v4614, 2
      %vm4616 = vcmp.gt.s32.totalorder 0, %v4615
      %v4617 = vsel %vm4616, 0, %v4615
      %v4618 = vsub.s32 32, %v4617
      %v4619 = vshll.u32 %v4610, %v4617
      %v4620 = vshrl.u32 %v4602, %v4618
      %v4621 = vor.u32 %v4619, %v4620
      %v4622 = vsub.s32 4294967266, %v4617
      %v4623 = vadd.s32 %v4622, 127
      %v4624 = vshll.u32 %v4623, 23
      %v4625 = vor.u32 4788187, %v4624
      %v4626 = vand.u32 2147483647, %v4625
      %v4628 = vcvt.s32.f32 %v4621
      %v4629 = vmul.f32 %v4628, %v4626
      %v4630 = vxor.u32 %v4629, 2147483648
      %v4631 = vsel %vm4510, %v4630, %v4629
      %v4632 = vsub.s32 4, %v4608
      %v4633 = vsel %vm4510, %v4632, %v4608
      %v4634 = vsel %vm4509, %v642, %v4631
      %v4635 = vsel %vm4509, 0, %v4633
      %v4636 = vmul.f32 %v4634, %v4634
      %v4637 = vmul.f32 %v4636, -0.001358992
      %v4638 = vadd.f32 %v4637, 0.041655596
      %v4639 = vmul.f32 %v4636, %v4638
      %v4640 = vadd.f32 %v4639, -0.4999988
      %v4641 = vmul.f32 %v4636, %v4640
      %v4642 = vadd.f32 1.0, %v4641
      %v4643 = vmul.f32 %v4634, %v4634
      %v4644 = vmul.f32 %v4643, -0.00019511016
      %v4645 = vadd.f32 %v4644, 0.008332121
      %v4646 = vmul.f32 %v4643, %v4645
      %v4647 = vadd.f32 %v4646, -0.16666654
      %v4648 = vmul.f32 %v4643, %v4647
      %v4649 = vadd.f32 %v4648, 1.0
      %v4650 = vmul.f32 %v4649, %v4634
      %vm4651 = vweird.f32 %v642
      %v4652 = vadd.s32 %v4635, 3
      %v4653 = vand.u32 %v4652, 3
      %vm4654 = vcmp.lt.s32.totalorder %v4653, 2
      %vm4655 = vcmp.eq.s32.totalorder %v4653, 0
      %v4656 = vxor.u32 %v4650, 2147483648
      %v4657 = vsel %vm4655, %v4642, %v4656
      %vm4658 = vcmp.eq.s32.totalorder %v4653, 2
      %v4659 = vxor.u32 %v4642, 2147483648
      %v4660 = vsel %vm4658, %v4659, %v4650
      %v4661 = vsel %vm4654, %v4657, %v4660
      %v4662 = vsel %vm4651, nan, %v4661
      %v4663 = vand.u32 2147483647, %v643
      %vm4664 = vcmp.le.f32.partialorder %v4663, 0.7853982
      %vm4665 = vcmp.lt.s32.totalorder %v643, 0
      %v4666 = vand.u32 %v643, 2139095040
      %v4667 = vshrl.u32 %v4666, 23
      %v4668 = vsub.s32 %v4667, 127
      %v4669 = vand.u32 2147483647, %v643
      %v4670 = vand.u32 %v4669, 8388607
      %v4671 = vor.u32 %v4670, 8388608
      %v4672 = vsub.s32 0, %v4671
      %v4673 = vadd.s32 %v4668, 1
      %vm4674 = vcmp.gt.s32.totalorder %v4673, 0
      %v4675 = vsel %vm4674, %v4673, 0
      %v4676 = vshrl.u32 %v4675, 5
      %v4677 = vand.u32 %v4675, 31
      %v4678 = vsub.s32 32, %v4677
      %v4679 = vshrl.u32 683565275, %v4678
      %v4680 = vshll.u32 683565275, %v4677
      %v4681 = vshrl.u32 2475754826, %v4678
      %v4682 = vor.u32 %v4680, %v4681
      %v4683 = vshll.u32 2475754826, %v4677
      %v4684 = vshrl.u32 2131351028, %v4678
      %v4685 = vor.u32 %v4683, %v4684
      %v4686 = vshll.u32 2131351028, %v4677
      %v4687 = vshrl.u32 2102212464, %v4678
      %v4688 = vor.u32 %v4686, %v4687
      %v4689 = vshll.u32 2102212464, %v4677
      %v4690 = vshrl.u32 920167782, %v4678
      %v4691 = vor.u32 %v4689, %v4690
      %v4692 = vshll.u32 920167782, %v4677
      %v4693 = vshrl.u32 1326507024, %v4678
      %v4694 = vor.u32 %v4692, %v4693
      %vm4695 = vcmp.lt.s32.totalorder %v4676, 1
      %vm4696 = vcmp.lt.s32.totalorder %v4676, 2
      %vm4697 = vcmp.lt.s32.totalorder %v4676, 3
      %vm4698 = vcmp.lt.s32.totalorder %v4676, 4
      %v4699 = vsel %vm4695, %v4679, %v4682
      %v4700 = vsel %vm4698, %v4688, 2102212464
      %v4701 = vsel %vm4697, %v4685, %v4700
      %v4702 = vsel %vm4696, %v4699, %v4701
      %v4703 = vsel %vm4695, %v4682, %v4685
      %v4704 = vsel %vm4698, %v4691, 920167782
      %v4705 = vsel %vm4697, %v4688, %v4704
      %v4706 = vsel %vm4696, %v4703, %v4705
      %v4707 = vsel %vm4695, %v4685, %v4688
      %v4708 = vsel %vm4698, %v4694, 1326507024
      %v4709 = vsel %vm4697, %v4691, %v4708
      %v4710 = vsel %vm4696, %v4707, %v4709
      %v4711 = vshll.u32 %v4671, 8
      %v4712 = vand.u32 %v4711, 65535
      %v4713 = vshrl.u32 %v4711, 16
      %v4714 = vand.u32 %v4710, 65535
      %v4715 = vshrl.u32 %v4710, 16
      %v4716 = vmul.u32 %v4712, %v4714
      %v4717 = vmul.u32 %v4712, %v4715
      %v4718 = vmul.u32 %v4713, %v4714
      %v4719 = vmul.u32 %v4713, %v4715
      %v4720 = vshll.u32 %v4717, 16
      %v4721 = vshrl.u32 %v4717, 16
      %v4722 = vshll.u32 %v4718, 16
      %v4723 = vshrl.u32 %v4718, 16
      %vm4724 = vc.u32 %v4716, %v4720
      %v4725 = vsel %vm4724, 1, 0
      %v4726 = vadd.s32 %v4716, %v4720
      %v4727 = vadd.s32 %v4719, %v4725
      %vm4728 = vc.u32 %v4726, %v4722
      %v4729 = vsel %vm4728, 1, 0
      %v4730 = vadd.s32 %v4726, %v4722
      %v4731 = vadd.s32 %v4727, %v4729
      %v4732 = vadd.s32 %v4731, %v4721
      %v4733 = vadd.s32 %v4732, %v4723
      %v4734 = vand.u32 %v4711, 65535
      %v4735 = vshrl.u32 %v4711, 16
      %v4736 = vand.u32 %v4706, 65535
      %v4737 = vshrl.u32 %v4706, 16
      %v4738 = vmul.u32 %v4734, %v4736
      %v4739 = vmul.u32 %v4734, %v4737
      %v4740 = vmul.u32 %v4735, %v4736
      %v4741 = vmul.u32 %v4735, %v4737
      %v4742 = vshll.u32 %v4739, 16
      %v4743 = vshrl.u32 %v4739, 16
      %v4744 = vshll.u32 %v4740, 16
      %v4745 = vshrl.u32 %v4740, 16
      %vm4746 = vc.u32 %v4738, %v4742
      %v4747 = vsel %vm4746, 1, 0
      %v4748 = vadd.s32 %v4738, %v4742
      %v4749 = vadd.s32 %v4741, %v4747
      %vm4750 = vc.u32 %v4748, %v4744
      %v4751 = vsel %vm4750, 1, 0
      %v4752 = vadd.s32 %v4748, %v4744
      %v4753 = vadd.s32 %v4749, %v4751
      %v4754 = vadd.s32 %v4753, %v4743
      %v4755 = vadd.s32 %v4754, %v4745
      %v4756 = vmul.u32 %v4711, %v4702
      %v4757 = vadd.s32 %v4733, %v4752
      %vm4758 = vc.u32 %v4733, %v4752
      %v4759 = vadd.s32 %v4755, 1
      %v4760 = vsel %vm4758, %v4759, %v4755
      %v4761 = vadd.s32 %v4756, %v4760
      %v4762 = vadd.s32 %v4761, 536870912
      %v4763 = vshrl.u32 %v4762, 30
      %v4764 = vshll.u32 %v4763, 30
      %v4765 = vsub.s32 %v4761, %v4764
      %vm4766 = vcmp.lt.s32.totalorder %v4765, 0
      %v4767 = vsub.s32 0, %v4765
      %v4768 = vsel %vm4766, %v4767, %v4765
      %v4769 = vclz %v4768
      %v4770 = vsub.s32 %v4769, 2
      %vm4771 = vcmp.gt.s32.totalorder 0, %v4770
      %v4772 = vsel %vm4771, 0, %v4770
      %v4773 = vsub.s32 32, %v4772
      %v4774 = vshll.u32 %v4765, %v4772
      %v4775 = vshrl.u32 %v4757, %v4773
      %v4776 = vor.u32 %v4774, %v4775
      %v4777 = vsub.s32 4294967266, %v4772
      %v4778 = vadd.s32 %v4777, 127
      %v4779 = vshll.u32 %v4778, 23
      %v4780 = vor.u32 4788187, %v4779
      %v4781 = vand.u32 2147483647, %v4780
      %v4783 = vcvt.s32.f32 %v4776
      %v4784 = vmul.f32 %v4783, %v4781
      %v4785 = vxor.u32 %v4784, 2147483648
      %v4786 = vsel %vm4665, %v4785, %v4784
      %v4787 = vsub.s32 4, %v4763
      %v4788 = vsel %vm4665, %v4787, %v4763
      %v4789 = vsel %vm4664, %v643, %v4786
      %v4790 = vsel %vm4664, 0, %v4788
      %v4791 = vmul.f32 %v4789, %v4789
      %v4792 = vmul.f32 %v4791, -0.001358992
      %v4793 = vadd.f32 %v4792, 0.041655596
      %v4794 = vmul.f32 %v4791, %v4793
      %v4795 = vadd.f32 %v4794, -0.4999988
      %v4796 = vmul.f32 %v4791, %v4795
      %v4797 = vadd.f32 1.0, %v4796
      %v4798 = vmul.f32 %v4789, %v4789
      %v4799 = vmul.f32 %v4798, -0.00019511016
      %v4800 = vadd.f32 %v4799, 0.008332121
      %v4801 = vmul.f32 %v4798, %v4800
      %v4802 = vadd.f32 %v4801, -0.16666654
      %v4803 = vmul.f32 %v4798, %v4802
      %v4804 = vadd.f32 %v4803, 1.0
      %v4805 = vmul.f32 %v4804, %v4789
      %vm4806 = vweird.f32 %v643
      %v4807 = vadd.s32 %v4790, 3
      %v4808 = vand.u32 %v4807, 3
      %vm4809 = vcmp.lt.s32.totalorder %v4808, 2
      %vm4810 = vcmp.eq.s32.totalorder %v4808, 0
      %v4811 = vxor.u32 %v4805, 2147483648
      %v4812 = vsel %vm4810, %v4797, %v4811
      %vm4813 = vcmp.eq.s32.totalorder %v4808, 2
      %v4814 = vxor.u32 %v4797, 2147483648
      %v4815 = vsel %vm4813, %v4814, %v4805
      %v4816 = vsel %vm4809, %v4812, %v4815
      %v4817 = vsel %vm4806, nan, %v4816
      %v4818 = vand.u32 2147483647, %v644
      %vm4819 = vcmp.le.f32.partialorder %v4818, 0.7853982
      %vm4820 = vcmp.lt.s32.totalorder %v644, 0
      %v4821 = vand.u32 %v644, 2139095040
      %v4822 = vshrl.u32 %v4821, 23
      %v4823 = vsub.s32 %v4822, 127
      %v4824 = vand.u32 2147483647, %v644
      %v4825 = vand.u32 %v4824, 8388607
      %v4826 = vor.u32 %v4825, 8388608
      %v4827 = vsub.s32 0, %v4826
      %v4828 = vadd.s32 %v4823, 1
      %vm4829 = vcmp.gt.s32.totalorder %v4828, 0
      %v4830 = vsel %vm4829, %v4828, 0
      %v4831 = vshrl.u32 %v4830, 5
      %v4832 = vand.u32 %v4830, 31
      %v4833 = vsub.s32 32, %v4832
      %v4834 = vshrl.u32 683565275, %v4833
      %v4835 = vshll.u32 683565275, %v4832
      %v4836 = vshrl.u32 2475754826, %v4833
      %v4837 = vor.u32 %v4835, %v4836
      %v4838 = vshll.u32 2475754826, %v4832
      %v4839 = vshrl.u32 2131351028, %v4833
      %v4840 = vor.u32 %v4838, %v4839
      %v4841 = vshll.u32 2131351028, %v4832
      %v4842 = vshrl.u32 2102212464, %v4833
      %v4843 = vor.u32 %v4841, %v4842
      %v4844 = vshll.u32 2102212464, %v4832
      %v4845 = vshrl.u32 920167782, %v4833
      %v4846 = vor.u32 %v4844, %v4845
      %v4847 = vshll.u32 920167782, %v4832
      %v4848 = vshrl.u32 1326507024, %v4833
      %v4849 = vor.u32 %v4847, %v4848
      %vm4850 = vcmp.lt.s32.totalorder %v4831, 1
      %vm4851 = vcmp.lt.s32.totalorder %v4831, 2
      %vm4852 = vcmp.lt.s32.totalorder %v4831, 3
      %vm4853 = vcmp.lt.s32.totalorder %v4831, 4
      %v4854 = vsel %vm4850, %v4834, %v4837
      %v4855 = vsel %vm4853, %v4843, 2102212464
      %v4856 = vsel %vm4852, %v4840, %v4855
      %v4857 = vsel %vm4851, %v4854, %v4856
      %v4858 = vsel %vm4850, %v4837, %v4840
      %v4859 = vsel %vm4853, %v4846, 920167782
      %v4860 = vsel %vm4852, %v4843, %v4859
      %v4861 = vsel %vm4851, %v4858, %v4860
      %v4862 = vsel %vm4850, %v4840, %v4843
      %v4863 = vsel %vm4853, %v4849, 1326507024
      %v4864 = vsel %vm4852, %v4846, %v4863
      %v4865 = vsel %vm4851, %v4862, %v4864
      %v4866 = vshll.u32 %v4826, 8
      %v4867 = vand.u32 %v4866, 65535
      %v4868 = vshrl.u32 %v4866, 16
      %v4869 = vand.u32 %v4865, 65535
      %v4870 = vshrl.u32 %v4865, 16
      %v4871 = vmul.u32 %v4867, %v4869
      %v4872 = vmul.u32 %v4867, %v4870
      %v4873 = vmul.u32 %v4868, %v4869
      %v4874 = vmul.u32 %v4868, %v4870
      %v4875 = vshll.u32 %v4872, 16
      %v4876 = vshrl.u32 %v4872, 16
      %v4877 = vshll.u32 %v4873, 16
      %v4878 = vshrl.u32 %v4873, 16
      %vm4879 = vc.u32 %v4871, %v4875
      %v4880 = vsel %vm4879, 1, 0
      %v4881 = vadd.s32 %v4871, %v4875
      %v4882 = vadd.s32 %v4874, %v4880
      %vm4883 = vc.u32 %v4881, %v4877
      %v4884 = vsel %vm4883, 1, 0
      %v4885 = vadd.s32 %v4881, %v4877
      %v4886 = vadd.s32 %v4882, %v4884
      %v4887 = vadd.s32 %v4886, %v4876
      %v4888 = vadd.s32 %v4887, %v4878
      %v4889 = vand.u32 %v4866, 65535
      %v4890 = vshrl.u32 %v4866, 16
      %v4891 = vand.u32 %v4861, 65535
      %v4892 = vshrl.u32 %v4861, 16
      %v4893 = vmul.u32 %v4889, %v4891
      %v4894 = vmul.u32 %v4889, %v4892
      %v4895 = vmul.u32 %v4890, %v4891
      %v4896 = vmul.u32 %v4890, %v4892
      %v4897 = vshll.u32 %v4894, 16
      %v4898 = vshrl.u32 %v4894, 16
      %v4899 = vshll.u32 %v4895, 16
      %v4900 = vshrl.u32 %v4895, 16
      %vm4901 = vc.u32 %v4893, %v4897
      %v4902 = vsel %vm4901, 1, 0
      %v4903 = vadd.s32 %v4893, %v4897
      %v4904 = vadd.s32 %v4896, %v4902
      %vm4905 = vc.u32 %v4903, %v4899
      %v4906 = vsel %vm4905, 1, 0
      %v4907 = vadd.s32 %v4903, %v4899
      %v4908 = vadd.s32 %v4904, %v4906
      %v4909 = vadd.s32 %v4908, %v4898
      %v4910 = vadd.s32 %v4909, %v4900
      %v4911 = vmul.u32 %v4866, %v4857
      %v4912 = vadd.s32 %v4888, %v4907
      %vm4913 = vc.u32 %v4888, %v4907
      %v4914 = vadd.s32 %v4910, 1
      %v4915 = vsel %vm4913, %v4914, %v4910
      %v4916 = vadd.s32 %v4911, %v4915
      %v4917 = vadd.s32 %v4916, 536870912
      %v4918 = vshrl.u32 %v4917, 30
      %v4919 = vshll.u32 %v4918, 30
      %v4920 = vsub.s32 %v4916, %v4919
      %vm4921 = vcmp.lt.s32.totalorder %v4920, 0
      %v4922 = vsub.s32 0, %v4920
      %v4923 = vsel %vm4921, %v4922, %v4920
      %v4924 = vclz %v4923
      %v4925 = vsub.s32 %v4924, 2
      %vm4926 = vcmp.gt.s32.totalorder 0, %v4925
      %v4927 = vsel %vm4926, 0, %v4925
      %v4928 = vsub.s32 32, %v4927
      %v4929 = vshll.u32 %v4920, %v4927
      %v4930 = vshrl.u32 %v4912, %v4928
      %v4931 = vor.u32 %v4929, %v4930
      %v4932 = vsub.s32 4294967266, %v4927
      %v4933 = vadd.s32 %v4932, 127
      %v4934 = vshll.u32 %v4933, 23
      %v4935 = vor.u32 4788187, %v4934
      %v4936 = vand.u32 2147483647, %v4935
      %v4938 = vcvt.s32.f32 %v4931
      %v4939 = vmul.f32 %v4938, %v4936
      %v4940 = vxor.u32 %v4939, 2147483648
      %v4941 = vsel %vm4820, %v4940, %v4939
      %v4942 = vsub.s32 4, %v4918
      %v4943 = vsel %vm4820, %v4942, %v4918
      %v4944 = vsel %vm4819, %v644, %v4941
      %v4945 = vsel %vm4819, 0, %v4943
      %v4946 = vmul.f32 %v4944, %v4944
      %v4947 = vmul.f32 %v4946, -0.001358992
      %v4948 = vadd.f32 %v4947, 0.041655596
      %v4949 = vmul.f32 %v4946, %v4948
      %v4950 = vadd.f32 %v4949, -0.4999988
      %v4951 = vmul.f32 %v4946, %v4950
      %v4952 = vadd.f32 1.0, %v4951
      %v4953 = vmul.f32 %v4944, %v4944
      %v4954 = vmul.f32 %v4953, -0.00019511016
      %v4955 = vadd.f32 %v4954, 0.008332121
      %v4956 = vmul.f32 %v4953, %v4955
      %v4957 = vadd.f32 %v4956, -0.16666654
      %v4958 = vmul.f32 %v4953, %v4957
      %v4959 = vadd.f32 %v4958, 1.0
      %v4960 = vmul.f32 %v4959, %v4944
      %vm4961 = vweird.f32 %v644
      %v4962 = vadd.s32 %v4945, 3
      %v4963 = vand.u32 %v4962, 3
      %vm4964 = vcmp.lt.s32.totalorder %v4963, 2
      %vm4965 = vcmp.eq.s32.totalorder %v4963, 0
      %v4966 = vxor.u32 %v4960, 2147483648
      %v4967 = vsel %vm4965, %v4952, %v4966
      %vm4968 = vcmp.eq.s32.totalorder %v4963, 2
      %v4969 = vxor.u32 %v4952, 2147483648
      %v4970 = vsel %vm4968, %v4969, %v4960
      %v4971 = vsel %vm4964, %v4967, %v4970
      %v4972 = vsel %vm4961, nan, %v4971
      %v4973 = vand.u32 2147483647, %v645
      %vm4974 = vcmp.le.f32.partialorder %v4973, 0.7853982
      %vm4975 = vcmp.lt.s32.totalorder %v645, 0
      %v4976 = vand.u32 %v645, 2139095040
      %v4977 = vshrl.u32 %v4976, 23
      %v4978 = vsub.s32 %v4977, 127
      %v4979 = vand.u32 2147483647, %v645
      %v4980 = vand.u32 %v4979, 8388607
      %v4981 = vor.u32 %v4980, 8388608
      %v4982 = vsub.s32 0, %v4981
      %v4983 = vadd.s32 %v4978, 1
      %vm4984 = vcmp.gt.s32.totalorder %v4983, 0
      %v4985 = vsel %vm4984, %v4983, 0
      %v4986 = vshrl.u32 %v4985, 5
      %v4987 = vand.u32 %v4985, 31
      %v4988 = vsub.s32 32, %v4987
      %v4989 = vshrl.u32 683565275, %v4988
      %v4990 = vshll.u32 683565275, %v4987
      %v4991 = vshrl.u32 2475754826, %v4988
      %v4992 = vor.u32 %v4990, %v4991
      %v4993 = vshll.u32 2475754826, %v4987
      %v4994 = vshrl.u32 2131351028, %v4988
      %v4995 = vor.u32 %v4993, %v4994
      %v4996 = vshll.u32 2131351028, %v4987
      %v4997 = vshrl.u32 2102212464, %v4988
      %v4998 = vor.u32 %v4996, %v4997
      %v4999 = vshll.u32 2102212464, %v4987
      %v5000 = vshrl.u32 920167782, %v4988
      %v5001 = vor.u32 %v4999, %v5000
      %v5002 = vshll.u32 920167782, %v4987
      %v5003 = vshrl.u32 1326507024, %v4988
      %v5004 = vor.u32 %v5002, %v5003
      %vm5005 = vcmp.lt.s32.totalorder %v4986, 1
      %vm5006 = vcmp.lt.s32.totalorder %v4986, 2
      %vm5007 = vcmp.lt.s32.totalorder %v4986, 3
      %vm5008 = vcmp.lt.s32.totalorder %v4986, 4
      %v5009 = vsel %vm5005, %v4989, %v4992
      %v5010 = vsel %vm5008, %v4998, 2102212464
      %v5011 = vsel %vm5007, %v4995, %v5010
      %v5012 = vsel %vm5006, %v5009, %v5011
      %v5013 = vsel %vm5005, %v4992, %v4995
      %v5014 = vsel %vm5008, %v5001, 920167782
      %v5015 = vsel %vm5007, %v4998, %v5014
      %v5016 = vsel %vm5006, %v5013, %v5015
      %v5017 = vsel %vm5005, %v4995, %v4998
      %v5018 = vsel %vm5008, %v5004, 1326507024
      %v5019 = vsel %vm5007, %v5001, %v5018
      %v5020 = vsel %vm5006, %v5017, %v5019
      %v5021 = vshll.u32 %v4981, 8
      %v5022 = vand.u32 %v5021, 65535
      %v5023 = vshrl.u32 %v5021, 16
      %v5024 = vand.u32 %v5020, 65535
      %v5025 = vshrl.u32 %v5020, 16
      %v5026 = vmul.u32 %v5022, %v5024
      %v5027 = vmul.u32 %v5022, %v5025
      %v5028 = vmul.u32 %v5023, %v5024
      %v5029 = vmul.u32 %v5023, %v5025
      %v5030 = vshll.u32 %v5027, 16
      %v5031 = vshrl.u32 %v5027, 16
      %v5032 = vshll.u32 %v5028, 16
      %v5033 = vshrl.u32 %v5028, 16
      %vm5034 = vc.u32 %v5026, %v5030
      %v5035 = vsel %vm5034, 1, 0
      %v5036 = vadd.s32 %v5026, %v5030
      %v5037 = vadd.s32 %v5029, %v5035
      %vm5038 = vc.u32 %v5036, %v5032
      %v5039 = vsel %vm5038, 1, 0
      %v5040 = vadd.s32 %v5036, %v5032
      %v5041 = vadd.s32 %v5037, %v5039
      %v5042 = vadd.s32 %v5041, %v5031
      %v5043 = vadd.s32 %v5042, %v5033
      %v5044 = vand.u32 %v5021, 65535
      %v5045 = vshrl.u32 %v5021, 16
      %v5046 = vand.u32 %v5016, 65535
      %v5047 = vshrl.u32 %v5016, 16
      %v5048 = vmul.u32 %v5044, %v5046
      %v5049 = vmul.u32 %v5044, %v5047
      %v5050 = vmul.u32 %v5045, %v5046
      %v5051 = vmul.u32 %v5045, %v5047
      %v5052 = vshll.u32 %v5049, 16
      %v5053 = vshrl.u32 %v5049, 16
      %v5054 = vshll.u32 %v5050, 16
      %v5055 = vshrl.u32 %v5050, 16
      %vm5056 = vc.u32 %v5048, %v5052
      %v5057 = vsel %vm5056, 1, 0
      %v5058 = vadd.s32 %v5048, %v5052
      %v5059 = vadd.s32 %v5051, %v5057
      %vm5060 = vc.u32 %v5058, %v5054
      %v5061 = vsel %vm5060, 1, 0
      %v5062 = vadd.s32 %v5058, %v5054
      %v5063 = vadd.s32 %v5059, %v5061
      %v5064 = vadd.s32 %v5063, %v5053
      %v5065 = vadd.s32 %v5064, %v5055
      %v5066 = vmul.u32 %v5021, %v5012
      %v5067 = vadd.s32 %v5043, %v5062
      %vm5068 = vc.u32 %v5043, %v5062
      %v5069 = vadd.s32 %v5065, 1
      %v5070 = vsel %vm5068, %v5069, %v5065
      %v5071 = vadd.s32 %v5066, %v5070
      %v5072 = vadd.s32 %v5071, 536870912
      %v5073 = vshrl.u32 %v5072, 30
      %v5074 = vshll.u32 %v5073, 30
      %v5075 = vsub.s32 %v5071, %v5074
      %vm5076 = vcmp.lt.s32.totalorder %v5075, 0
      %v5077 = vsub.s32 0, %v5075
      %v5078 = vsel %vm5076, %v5077, %v5075
      %v5079 = vclz %v5078
      %v5080 = vsub.s32 %v5079, 2
      %vm5081 = vcmp.gt.s32.totalorder 0, %v5080
      %v5082 = vsel %vm5081, 0, %v5080
      %v5083 = vsub.s32 32, %v5082
      %v5084 = vshll.u32 %v5075, %v5082
      %v5085 = vshrl.u32 %v5067, %v5083
      %v5086 = vor.u32 %v5084, %v5085
      %v5087 = vsub.s32 4294967266, %v5082
      %v5088 = vadd.s32 %v5087, 127
      %v5089 = vshll.u32 %v5088, 23
      %v5090 = vor.u32 4788187, %v5089
      %v5091 = vand.u32 2147483647, %v5090
      %v5093 = vcvt.s32.f32 %v5086
      %v5094 = vmul.f32 %v5093, %v5091
      %v5095 = vxor.u32 %v5094, 2147483648
      %v5096 = vsel %vm4975, %v5095, %v5094
      %v5097 = vsub.s32 4, %v5073
      %v5098 = vsel %vm4975, %v5097, %v5073
      %v5099 = vsel %vm4974, %v645, %v5096
      %v5100 = vsel %vm4974, 0, %v5098
      %v5101 = vmul.f32 %v5099, %v5099
      %v5102 = vmul.f32 %v5101, -0.001358992
      %v5103 = vadd.f32 %v5102, 0.041655596
      %v5104 = vmul.f32 %v5101, %v5103
      %v5105 = vadd.f32 %v5104, -0.4999988
      %v5106 = vmul.f32 %v5101, %v5105
      %v5107 = vadd.f32 1.0, %v5106
      %v5108 = vmul.f32 %v5099, %v5099
      %v5109 = vmul.f32 %v5108, -0.00019511016
      %v5110 = vadd.f32 %v5109, 0.008332121
      %v5111 = vmul.f32 %v5108, %v5110
      %v5112 = vadd.f32 %v5111, -0.16666654
      %v5113 = vmul.f32 %v5108, %v5112
      %v5114 = vadd.f32 %v5113, 1.0
      %v5115 = vmul.f32 %v5114, %v5099
      %vm5116 = vweird.f32 %v645
      %v5117 = vadd.s32 %v5100, 3
      %v5118 = vand.u32 %v5117, 3
      %vm5119 = vcmp.lt.s32.totalorder %v5118, 2
      %vm5120 = vcmp.eq.s32.totalorder %v5118, 0
      %v5121 = vxor.u32 %v5115, 2147483648
      %v5122 = vsel %vm5120, %v5107, %v5121
      %vm5123 = vcmp.eq.s32.totalorder %v5118, 2
      %v5124 = vxor.u32 %v5107, 2147483648
      %v5125 = vsel %vm5123, %v5124, %v5115
      %v5126 = vsel %vm5119, %v5122, %v5125
      %v5127 = vsel %vm5116, nan, %v5126
      %v5128 = vand.u32 2147483647, %v646
      %vm5129 = vcmp.le.f32.partialorder %v5128, 0.7853982
      %vm5130 = vcmp.lt.s32.totalorder %v646, 0
      %v5131 = vand.u32 %v646, 2139095040
      %v5132 = vshrl.u32 %v5131, 23
      %v5133 = vsub.s32 %v5132, 127
      %v5134 = vand.u32 2147483647, %v646
      %v5135 = vand.u32 %v5134, 8388607
      %v5136 = vor.u32 %v5135, 8388608
      %v5137 = vsub.s32 0, %v5136
      %v5138 = vadd.s32 %v5133, 1
      %vm5139 = vcmp.gt.s32.totalorder %v5138, 0
      %v5140 = vsel %vm5139, %v5138, 0
      %v5141 = vshrl.u32 %v5140, 5
      %v5142 = vand.u32 %v5140, 31
      %v5143 = vsub.s32 32, %v5142
      %v5144 = vshrl.u32 683565275, %v5143
      %v5145 = vshll.u32 683565275, %v5142
      %v5146 = vshrl.u32 2475754826, %v5143
      %v5147 = vor.u32 %v5145, %v5146
      %v5148 = vshll.u32 2475754826, %v5142
      %v5149 = vshrl.u32 2131351028, %v5143
      %v5150 = vor.u32 %v5148, %v5149
      %v5151 = vshll.u32 2131351028, %v5142
      %v5152 = vshrl.u32 2102212464, %v5143
      %v5153 = vor.u32 %v5151, %v5152
      %v5154 = vshll.u32 2102212464, %v5142
      %v5155 = vshrl.u32 920167782, %v5143
      %v5156 = vor.u32 %v5154, %v5155
      %v5157 = vshll.u32 920167782, %v5142
      %v5158 = vshrl.u32 1326507024, %v5143
      %v5159 = vor.u32 %v5157, %v5158
      %vm5160 = vcmp.lt.s32.totalorder %v5141, 1
      %vm5161 = vcmp.lt.s32.totalorder %v5141, 2
      %vm5162 = vcmp.lt.s32.totalorder %v5141, 3
      %vm5163 = vcmp.lt.s32.totalorder %v5141, 4
      %v5164 = vsel %vm5160, %v5144, %v5147
      %v5165 = vsel %vm5163, %v5153, 2102212464
      %v5166 = vsel %vm5162, %v5150, %v5165
      %v5167 = vsel %vm5161, %v5164, %v5166
      %v5168 = vsel %vm5160, %v5147, %v5150
      %v5169 = vsel %vm5163, %v5156, 920167782
      %v5170 = vsel %vm5162, %v5153, %v5169
      %v5171 = vsel %vm5161, %v5168, %v5170
      %v5172 = vsel %vm5160, %v5150, %v5153
      %v5173 = vsel %vm5163, %v5159, 1326507024
      %v5174 = vsel %vm5162, %v5156, %v5173
      %v5175 = vsel %vm5161, %v5172, %v5174
      %v5176 = vshll.u32 %v5136, 8
      %v5177 = vand.u32 %v5176, 65535
      %v5178 = vshrl.u32 %v5176, 16
      %v5179 = vand.u32 %v5175, 65535
      %v5180 = vshrl.u32 %v5175, 16
      %v5181 = vmul.u32 %v5177, %v5179
      %v5182 = vmul.u32 %v5177, %v5180
      %v5183 = vmul.u32 %v5178, %v5179
      %v5184 = vmul.u32 %v5178, %v5180
      %v5185 = vshll.u32 %v5182, 16
      %v5186 = vshrl.u32 %v5182, 16
      %v5187 = vshll.u32 %v5183, 16
      %v5188 = vshrl.u32 %v5183, 16
      %vm5189 = vc.u32 %v5181, %v5185
      %v5190 = vsel %vm5189, 1, 0
      %v5191 = vadd.s32 %v5181, %v5185
      %v5192 = vadd.s32 %v5184, %v5190
      %vm5193 = vc.u32 %v5191, %v5187
      %v5194 = vsel %vm5193, 1, 0
      %v5195 = vadd.s32 %v5191, %v5187
      %v5196 = vadd.s32 %v5192, %v5194
      %v5197 = vadd.s32 %v5196, %v5186
      %v5198 = vadd.s32 %v5197, %v5188
      %v5199 = vand.u32 %v5176, 65535
      %v5200 = vshrl.u32 %v5176, 16
      %v5201 = vand.u32 %v5171, 65535
      %v5202 = vshrl.u32 %v5171, 16
      %v5203 = vmul.u32 %v5199, %v5201
      %v5204 = vmul.u32 %v5199, %v5202
      %v5205 = vmul.u32 %v5200, %v5201
      %v5206 = vmul.u32 %v5200, %v5202
      %v5207 = vshll.u32 %v5204, 16
      %v5208 = vshrl.u32 %v5204, 16
      %v5209 = vshll.u32 %v5205, 16
      %v5210 = vshrl.u32 %v5205, 16
      %vm5211 = vc.u32 %v5203, %v5207
      %v5212 = vsel %vm5211, 1, 0
      %v5213 = vadd.s32 %v5203, %v5207
      %v5214 = vadd.s32 %v5206, %v5212
      %vm5215 = vc.u32 %v5213, %v5209
      %v5216 = vsel %vm5215, 1, 0
      %v5217 = vadd.s32 %v5213, %v5209
      %v5218 = vadd.s32 %v5214, %v5216
      %v5219 = vadd.s32 %v5218, %v5208
      %v5220 = vadd.s32 %v5219, %v5210
      %v5221 = vmul.u32 %v5176, %v5167
      %v5222 = vadd.s32 %v5198, %v5217
      %vm5223 = vc.u32 %v5198, %v5217
      %v5224 = vadd.s32 %v5220, 1
      %v5225 = vsel %vm5223, %v5224, %v5220
      %v5226 = vadd.s32 %v5221, %v5225
      %v5227 = vadd.s32 %v5226, 536870912
      %v5228 = vshrl.u32 %v5227, 30
      %v5229 = vshll.u32 %v5228, 30
      %v5230 = vsub.s32 %v5226, %v5229
      %vm5231 = vcmp.lt.s32.totalorder %v5230, 0
      %v5232 = vsub.s32 0, %v5230
      %v5233 = vsel %vm5231, %v5232, %v5230
      %v5234 = vclz %v5233
      %v5235 = vsub.s32 %v5234, 2
      %vm5236 = vcmp.gt.s32.totalorder 0, %v5235
      %v5237 = vsel %vm5236, 0, %v5235
      %v5238 = vsub.s32 32, %v5237
      %v5239 = vshll.u32 %v5230, %v5237
      %v5240 = vshrl.u32 %v5222, %v5238
      %v5241 = vor.u32 %v5239, %v5240
      %v5242 = vsub.s32 4294967266, %v5237
      %v5243 = vadd.s32 %v5242, 127
      %v5244 = vshll.u32 %v5243, 23
      %v5245 = vor.u32 4788187, %v5244
      %v5246 = vand.u32 2147483647, %v5245
      %v5248 = vcvt.s32.f32 %v5241
      %v5249 = vmul.f32 %v5248, %v5246
      %v5250 = vxor.u32 %v5249, 2147483648
      %v5251 = vsel %vm5130, %v5250, %v5249
      %v5252 = vsub.s32 4, %v5228
      %v5253 = vsel %vm5130, %v5252, %v5228
      %v5254 = vsel %vm5129, %v646, %v5251
      %v5255 = vsel %vm5129, 0, %v5253
      %v5256 = vmul.f32 %v5254, %v5254
      %v5257 = vmul.f32 %v5256, -0.001358992
      %v5258 = vadd.f32 %v5257, 0.041655596
      %v5259 = vmul.f32 %v5256, %v5258
      %v5260 = vadd.f32 %v5259, -0.4999988
      %v5261 = vmul.f32 %v5256, %v5260
      %v5262 = vadd.f32 1.0, %v5261
      %v5263 = vmul.f32 %v5254, %v5254
      %v5264 = vmul.f32 %v5263, -0.00019511016
      %v5265 = vadd.f32 %v5264, 0.008332121
      %v5266 = vmul.f32 %v5263, %v5265
      %v5267 = vadd.f32 %v5266, -0.16666654
      %v5268 = vmul.f32 %v5263, %v5267
      %v5269 = vadd.f32 %v5268, 1.0
      %v5270 = vmul.f32 %v5269, %v5254
      %vm5271 = vweird.f32 %v646
      %v5272 = vadd.s32 %v5255, 3
      %v5273 = vand.u32 %v5272, 3
      %vm5274 = vcmp.lt.s32.totalorder %v5273, 2
      %vm5275 = vcmp.eq.s32.totalorder %v5273, 0
      %v5276 = vxor.u32 %v5270, 2147483648
      %v5277 = vsel %vm5275, %v5262, %v5276
      %vm5278 = vcmp.eq.s32.totalorder %v5273, 2
      %v5279 = vxor.u32 %v5262, 2147483648
      %v5280 = vsel %vm5278, %v5279, %v5270
      %v5281 = vsel %vm5274, %v5277, %v5280
      %v5282 = vsel %vm5271, nan, %v5281
      %v5283 = vand.u32 2147483647, %v647
      %vm5284 = vcmp.le.f32.partialorder %v5283, 0.7853982
      %vm5285 = vcmp.lt.s32.totalorder %v647, 0
      %v5286 = vand.u32 %v647, 2139095040
      %v5287 = vshrl.u32 %v5286, 23
      %v5288 = vsub.s32 %v5287, 127
      %v5289 = vand.u32 2147483647, %v647
      %v5290 = vand.u32 %v5289, 8388607
      %v5291 = vor.u32 %v5290, 8388608
      %v5292 = vsub.s32 0, %v5291
      %v5293 = vadd.s32 %v5288, 1
      %vm5294 = vcmp.gt.s32.totalorder %v5293, 0
      %v5295 = vsel %vm5294, %v5293, 0
      %v5296 = vshrl.u32 %v5295, 5
      %v5297 = vand.u32 %v5295, 31
      %v5298 = vsub.s32 32, %v5297
      %v5299 = vshrl.u32 683565275, %v5298
      %v5300 = vshll.u32 683565275, %v5297
      %v5301 = vshrl.u32 2475754826, %v5298
      %v5302 = vor.u32 %v5300, %v5301
      %v5303 = vshll.u32 2475754826, %v5297
      %v5304 = vshrl.u32 2131351028, %v5298
      %v5305 = vor.u32 %v5303, %v5304
      %v5306 = vshll.u32 2131351028, %v5297
      %v5307 = vshrl.u32 2102212464, %v5298
      %v5308 = vor.u32 %v5306, %v5307
      %v5309 = vshll.u32 2102212464, %v5297
      %v5310 = vshrl.u32 920167782, %v5298
      %v5311 = vor.u32 %v5309, %v5310
      %v5312 = vshll.u32 920167782, %v5297
      %v5313 = vshrl.u32 1326507024, %v5298
      %v5314 = vor.u32 %v5312, %v5313
      %vm5315 = vcmp.lt.s32.totalorder %v5296, 1
      %vm5316 = vcmp.lt.s32.totalorder %v5296, 2
      %vm5317 = vcmp.lt.s32.totalorder %v5296, 3
      %vm5318 = vcmp.lt.s32.totalorder %v5296, 4
      %v5319 = vsel %vm5315, %v5299, %v5302
      %v5320 = vsel %vm5318, %v5308, 2102212464
      %v5321 = vsel %vm5317, %v5305, %v5320
      %v5322 = vsel %vm5316, %v5319, %v5321
      %v5323 = vsel %vm5315, %v5302, %v5305
      %v5324 = vsel %vm5318, %v5311, 920167782
      %v5325 = vsel %vm5317, %v5308, %v5324
      %v5326 = vsel %vm5316, %v5323, %v5325
      %v5327 = vsel %vm5315, %v5305, %v5308
      %v5328 = vsel %vm5318, %v5314, 1326507024
      %v5329 = vsel %vm5317, %v5311, %v5328
      %v5330 = vsel %vm5316, %v5327, %v5329
      %v5331 = vshll.u32 %v5291, 8
      %v5332 = vand.u32 %v5331, 65535
      %v5333 = vshrl.u32 %v5331, 16
      %v5334 = vand.u32 %v5330, 65535
      %v5335 = vshrl.u32 %v5330, 16
      %v5336 = vmul.u32 %v5332, %v5334
      %v5337 = vmul.u32 %v5332, %v5335
      %v5338 = vmul.u32 %v5333, %v5334
      %v5339 = vmul.u32 %v5333, %v5335
      %v5340 = vshll.u32 %v5337, 16
      %v5341 = vshrl.u32 %v5337, 16
      %v5342 = vshll.u32 %v5338, 16
      %v5343 = vshrl.u32 %v5338, 16
      %vm5344 = vc.u32 %v5336, %v5340
      %v5345 = vsel %vm5344, 1, 0
      %v5346 = vadd.s32 %v5336, %v5340
      %v5347 = vadd.s32 %v5339, %v5345
      %vm5348 = vc.u32 %v5346, %v5342
      %v5349 = vsel %vm5348, 1, 0
      %v5350 = vadd.s32 %v5346, %v5342
      %v5351 = vadd.s32 %v5347, %v5349
      %v5352 = vadd.s32 %v5351, %v5341
      %v5353 = vadd.s32 %v5352, %v5343
      %v5354 = vand.u32 %v5331, 65535
      %v5355 = vshrl.u32 %v5331, 16
      %v5356 = vand.u32 %v5326, 65535
      %v5357 = vshrl.u32 %v5326, 16
      %v5358 = vmul.u32 %v5354, %v5356
      %v5359 = vmul.u32 %v5354, %v5357
      %v5360 = vmul.u32 %v5355, %v5356
      %v5361 = vmul.u32 %v5355, %v5357
      %v5362 = vshll.u32 %v5359, 16
      %v5363 = vshrl.u32 %v5359, 16
      %v5364 = vshll.u32 %v5360, 16
      %v5365 = vshrl.u32 %v5360, 16
      %vm5366 = vc.u32 %v5358, %v5362
      %v5367 = vsel %vm5366, 1, 0
      %v5368 = vadd.s32 %v5358, %v5362
      %v5369 = vadd.s32 %v5361, %v5367
      %vm5370 = vc.u32 %v5368, %v5364
      %v5371 = vsel %vm5370, 1, 0
      %v5372 = vadd.s32 %v5368, %v5364
      %v5373 = vadd.s32 %v5369, %v5371
      %v5374 = vadd.s32 %v5373, %v5363
      %v5375 = vadd.s32 %v5374, %v5365
      %v5376 = vmul.u32 %v5331, %v5322
      %v5377 = vadd.s32 %v5353, %v5372
      %vm5378 = vc.u32 %v5353, %v5372
      %v5379 = vadd.s32 %v5375, 1
      %v5380 = vsel %vm5378, %v5379, %v5375
      %v5381 = vadd.s32 %v5376, %v5380
      %v5382 = vadd.s32 %v5381, 536870912
      %v5383 = vshrl.u32 %v5382, 30
      %v5384 = vshll.u32 %v5383, 30
      %v5385 = vsub.s32 %v5381, %v5384
      %vm5386 = vcmp.lt.s32.totalorder %v5385, 0
      %v5387 = vsub.s32 0, %v5385
      %v5388 = vsel %vm5386, %v5387, %v5385
      %v5389 = vclz %v5388
      %v5390 = vsub.s32 %v5389, 2
      %vm5391 = vcmp.gt.s32.totalorder 0, %v5390
      %v5392 = vsel %vm5391, 0, %v5390
      %v5393 = vsub.s32 32, %v5392
      %v5394 = vshll.u32 %v5385, %v5392
      %v5395 = vshrl.u32 %v5377, %v5393
      %v5396 = vor.u32 %v5394, %v5395
      %v5397 = vsub.s32 4294967266, %v5392
      %v5398 = vadd.s32 %v5397, 127
      %v5399 = vshll.u32 %v5398, 23
      %v5400 = vor.u32 4788187, %v5399
      %v5401 = vand.u32 2147483647, %v5400
      %v5403 = vcvt.s32.f32 %v5396
      %v5404 = vmul.f32 %v5403, %v5401
      %v5405 = vxor.u32 %v5404, 2147483648
      %v5406 = vsel %vm5285, %v5405, %v5404
      %v5407 = vsub.s32 4, %v5383
      %v5408 = vsel %vm5285, %v5407, %v5383
      %v5409 = vsel %vm5284, %v647, %v5406
      %v5410 = vsel %vm5284, 0, %v5408
      %v5411 = vmul.f32 %v5409, %v5409
      %v5412 = vmul.f32 %v5411, -0.001358992
      %v5413 = vadd.f32 %v5412, 0.041655596
      %v5414 = vmul.f32 %v5411, %v5413
      %v5415 = vadd.f32 %v5414, -0.4999988
      %v5416 = vmul.f32 %v5411, %v5415
      %v5417 = vadd.f32 1.0, %v5416
      %v5418 = vmul.f32 %v5409, %v5409
      %v5419 = vmul.f32 %v5418, -0.00019511016
      %v5420 = vadd.f32 %v5419, 0.008332121
      %v5421 = vmul.f32 %v5418, %v5420
      %v5422 = vadd.f32 %v5421, -0.16666654
      %v5423 = vmul.f32 %v5418, %v5422
      %v5424 = vadd.f32 %v5423, 1.0
      %v5425 = vmul.f32 %v5424, %v5409
      %vm5426 = vweird.f32 %v647
      %v5427 = vadd.s32 %v5410, 3
      %v5428 = vand.u32 %v5427, 3
      %vm5429 = vcmp.lt.s32.totalorder %v5428, 2
      %vm5430 = vcmp.eq.s32.totalorder %v5428, 0
      %v5431 = vxor.u32 %v5425, 2147483648
      %v5432 = vsel %vm5430, %v5417, %v5431
      %vm5433 = vcmp.eq.s32.totalorder %v5428, 2
      %v5434 = vxor.u32 %v5417, 2147483648
      %v5435 = vsel %vm5433, %v5434, %v5425
      %v5436 = vsel %vm5429, %v5432, %v5435
      %v5437 = vsel %vm5426, nan, %v5436
      %v5438 = vand.u32 2147483647, %v648
      %vm5439 = vcmp.le.f32.partialorder %v5438, 0.7853982
      %vm5440 = vcmp.lt.s32.totalorder %v648, 0
      %v5441 = vand.u32 %v648, 2139095040
      %v5442 = vshrl.u32 %v5441, 23
      %v5443 = vsub.s32 %v5442, 127
      %v5444 = vand.u32 2147483647, %v648
      %v5445 = vand.u32 %v5444, 8388607
      %v5446 = vor.u32 %v5445, 8388608
      %v5447 = vsub.s32 0, %v5446
      %v5448 = vadd.s32 %v5443, 1
      %vm5449 = vcmp.gt.s32.totalorder %v5448, 0
      %v5450 = vsel %vm5449, %v5448, 0
      %v5451 = vshrl.u32 %v5450, 5
      %v5452 = vand.u32 %v5450, 31
      %v5453 = vsub.s32 32, %v5452
      %v5454 = vshrl.u32 683565275, %v5453
      %v5455 = vshll.u32 683565275, %v5452
      %v5456 = vshrl.u32 2475754826, %v5453
      %v5457 = vor.u32 %v5455, %v5456
      %v5458 = vshll.u32 2475754826, %v5452
      %v5459 = vshrl.u32 2131351028, %v5453
      %v5460 = vor.u32 %v5458, %v5459
      %v5461 = vshll.u32 2131351028, %v5452
      %v5462 = vshrl.u32 2102212464, %v5453
      %v5463 = vor.u32 %v5461, %v5462
      %v5464 = vshll.u32 2102212464, %v5452
      %v5465 = vshrl.u32 920167782, %v5453
      %v5466 = vor.u32 %v5464, %v5465
      %v5467 = vshll.u32 920167782, %v5452
      %v5468 = vshrl.u32 1326507024, %v5453
      %v5469 = vor.u32 %v5467, %v5468
      %vm5470 = vcmp.lt.s32.totalorder %v5451, 1
      %vm5471 = vcmp.lt.s32.totalorder %v5451, 2
      %vm5472 = vcmp.lt.s32.totalorder %v5451, 3
      %vm5473 = vcmp.lt.s32.totalorder %v5451, 4
      %v5474 = vsel %vm5470, %v5454, %v5457
      %v5475 = vsel %vm5473, %v5463, 2102212464
      %v5476 = vsel %vm5472, %v5460, %v5475
      %v5477 = vsel %vm5471, %v5474, %v5476
      %v5478 = vsel %vm5470, %v5457, %v5460
      %v5479 = vsel %vm5473, %v5466, 920167782
      %v5480 = vsel %vm5472, %v5463, %v5479
      %v5481 = vsel %vm5471, %v5478, %v5480
      %v5482 = vsel %vm5470, %v5460, %v5463
      %v5483 = vsel %vm5473, %v5469, 1326507024
      %v5484 = vsel %vm5472, %v5466, %v5483
      %v5485 = vsel %vm5471, %v5482, %v5484
      %v5486 = vshll.u32 %v5446, 8
      %v5487 = vand.u32 %v5486, 65535
      %v5488 = vshrl.u32 %v5486, 16
      %v5489 = vand.u32 %v5485, 65535
      %v5490 = vshrl.u32 %v5485, 16
      %v5491 = vmul.u32 %v5487, %v5489
      %v5492 = vmul.u32 %v5487, %v5490
      %v5493 = vmul.u32 %v5488, %v5489
      %v5494 = vmul.u32 %v5488, %v5490
      %v5495 = vshll.u32 %v5492, 16
      %v5496 = vshrl.u32 %v5492, 16
      %v5497 = vshll.u32 %v5493, 16
      %v5498 = vshrl.u32 %v5493, 16
      %vm5499 = vc.u32 %v5491, %v5495
      %v5500 = vsel %vm5499, 1, 0
      %v5501 = vadd.s32 %v5491, %v5495
      %v5502 = vadd.s32 %v5494, %v5500
      %vm5503 = vc.u32 %v5501, %v5497
      %v5504 = vsel %vm5503, 1, 0
      %v5505 = vadd.s32 %v5501, %v5497
      %v5506 = vadd.s32 %v5502, %v5504
      %v5507 = vadd.s32 %v5506, %v5496
      %v5508 = vadd.s32 %v5507, %v5498
      %v5509 = vand.u32 %v5486, 65535
      %v5510 = vshrl.u32 %v5486, 16
      %v5511 = vand.u32 %v5481, 65535
      %v5512 = vshrl.u32 %v5481, 16
      %v5513 = vmul.u32 %v5509, %v5511
      %v5514 = vmul.u32 %v5509, %v5512
      %v5515 = vmul.u32 %v5510, %v5511
      %v5516 = vmul.u32 %v5510, %v5512
      %v5517 = vshll.u32 %v5514, 16
      %v5518 = vshrl.u32 %v5514, 16
      %v5519 = vshll.u32 %v5515, 16
      %v5520 = vshrl.u32 %v5515, 16
      %vm5521 = vc.u32 %v5513, %v5517
      %v5522 = vsel %vm5521, 1, 0
      %v5523 = vadd.s32 %v5513, %v5517
      %v5524 = vadd.s32 %v5516, %v5522
      %vm5525 = vc.u32 %v5523, %v5519
      %v5526 = vsel %vm5525, 1, 0
      %v5527 = vadd.s32 %v5523, %v5519
      %v5528 = vadd.s32 %v5524, %v5526
      %v5529 = vadd.s32 %v5528, %v5518
      %v5530 = vadd.s32 %v5529, %v5520
      %v5531 = vmul.u32 %v5486, %v5477
      %v5532 = vadd.s32 %v5508, %v5527
      %vm5533 = vc.u32 %v5508, %v5527
      %v5534 = vadd.s32 %v5530, 1
      %v5535 = vsel %vm5533, %v5534, %v5530
      %v5536 = vadd.s32 %v5531, %v5535
      %v5537 = vadd.s32 %v5536, 536870912
      %v5538 = vshrl.u32 %v5537, 30
      %v5539 = vshll.u32 %v5538, 30
      %v5540 = vsub.s32 %v5536, %v5539
      %vm5541 = vcmp.lt.s32.totalorder %v5540, 0
      %v5542 = vsub.s32 0, %v5540
      %v5543 = vsel %vm5541, %v5542, %v5540
      %v5544 = vclz %v5543
      %v5545 = vsub.s32 %v5544, 2
      %vm5546 = vcmp.gt.s32.totalorder 0, %v5545
      %v5547 = vsel %vm5546, 0, %v5545
      %v5548 = vsub.s32 32, %v5547
      %v5549 = vshll.u32 %v5540, %v5547
      %v5550 = vshrl.u32 %v5532, %v5548
      %v5551 = vor.u32 %v5549, %v5550
      %v5552 = vsub.s32 4294967266, %v5547
      %v5553 = vadd.s32 %v5552, 127
      %v5554 = vshll.u32 %v5553, 23
      %v5555 = vor.u32 4788187, %v5554
      %v5556 = vand.u32 2147483647, %v5555
      %v5558 = vcvt.s32.f32 %v5551
      %v5559 = vmul.f32 %v5558, %v5556
      %v5560 = vxor.u32 %v5559, 2147483648
      %v5561 = vsel %vm5440, %v5560, %v5559
      %v5562 = vsub.s32 4, %v5538
      %v5563 = vsel %vm5440, %v5562, %v5538
      %v5564 = vsel %vm5439, %v648, %v5561
      %v5565 = vsel %vm5439, 0, %v5563
      %v5566 = vmul.f32 %v5564, %v5564
      %v5567 = vmul.f32 %v5566, -0.001358992
      %v5568 = vadd.f32 %v5567, 0.041655596
      %v5569 = vmul.f32 %v5566, %v5568
      %v5570 = vadd.f32 %v5569, -0.4999988
      %v5571 = vmul.f32 %v5566, %v5570
      %v5572 = vadd.f32 1.0, %v5571
      %v5573 = vmul.f32 %v5564, %v5564
      %v5574 = vmul.f32 %v5573, -0.00019511016
      %v5575 = vadd.f32 %v5574, 0.008332121
      %v5576 = vmul.f32 %v5573, %v5575
      %v5577 = vadd.f32 %v5576, -0.16666654
      %v5578 = vmul.f32 %v5573, %v5577
      %v5579 = vadd.f32 %v5578, 1.0
      %v5580 = vmul.f32 %v5579, %v5564
      %vm5581 = vweird.f32 %v648
      %v5582 = vadd.s32 %v5565, 3
      %v5583 = vand.u32 %v5582, 3
      %vm5584 = vcmp.lt.s32.totalorder %v5583, 2
      %vm5585 = vcmp.eq.s32.totalorder %v5583, 0
      %v5586 = vxor.u32 %v5580, 2147483648
      %v5587 = vsel %vm5585, %v5572, %v5586
      %vm5588 = vcmp.eq.s32.totalorder %v5583, 2
      %v5589 = vxor.u32 %v5572, 2147483648
      %v5590 = vsel %vm5588, %v5589, %v5580
      %v5591 = vsel %vm5584, %v5587, %v5590
      %v5592 = vsel %vm5581, nan, %v5591
      %5594 = vset.pattern.permute.xlu0 0
      %5595 = vperm.xlu0 %5594, %v422
      %v5596 = vpop.permute.xlu0 %5595
      %5599 = vset.pattern.permute.xlu0 0
      %5600 = vperm.xlu0 %5599, %v423
      %v5601 = vpop.permute.xlu0 %5600
      %5604 = vset.pattern.permute.xlu0 0
      %5605 = vperm.xlu0 %5604, %v424
      %v5606 = vpop.permute.xlu0 %5605
      %5609 = vset.pattern.permute.xlu0 0
      %5610 = vperm.xlu0 %5609, %v425
      %v5611 = vpop.permute.xlu0 %5610
      %5614 = vset.pattern.permute.xlu0 0
      %5615 = vperm.xlu0 %5614, %v426
      %v5616 = vpop.permute.xlu0 %5615
      %5619 = vset.pattern.permute.xlu0 0
      %5620 = vperm.xlu0 %5619, %v427
      %v5621 = vpop.permute.xlu0 %5620
      %5624 = vset.pattern.permute.xlu0 0
      %5625 = vperm.xlu0 %5624, %v428
      %v5626 = vpop.permute.xlu0 %5625
      %5629 = vset.pattern.permute.xlu0 0
      %5630 = vperm.xlu0 %5629, %v429
      %v5631 = vpop.permute.xlu0 %5630
      %5634 = vset.pattern.permute.xlu0 0
      %5635 = vperm.xlu0 %5634, %v430
      %v5636 = vpop.permute.xlu0 %5635
      %5639 = vset.pattern.permute.xlu0 0
      %5640 = vperm.xlu0 %5639, %v431
      %v5641 = vpop.permute.xlu0 %5640
      %5644 = vset.pattern.permute.xlu0 0
      %5645 = vperm.xlu0 %5644, %v432
      %v5646 = vpop.permute.xlu0 %5645
      %5649 = vset.pattern.permute.xlu0 0
      %5650 = vperm.xlu0 %5649, %v433
      %v5651 = vpop.permute.xlu0 %5650
      %5654 = vset.pattern.permute.xlu0 0
      %5655 = vperm.xlu0 %5654, %v434
      %v5656 = vpop.permute.xlu0 %5655
      %5659 = vset.pattern.permute.xlu0 0
      %5660 = vperm.xlu0 %5659, %v435
      %v5661 = vpop.permute.xlu0 %5660
      %5664 = vset.pattern.permute.xlu0 0
      %5665 = vperm.xlu0 %5664, %v436
      %v5666 = vpop.permute.xlu0 %5665
      %5669 = vset.pattern.permute.xlu0 0
      %5670 = vperm.xlu0 %5669, %v437
      %v5671 = vpop.permute.xlu0 %5670
      %5674 = vset.pattern.permute.xlu0 0
      %5675 = vperm.xlu0 %5674, %v438
      %v5676 = vpop.permute.xlu0 %5675
      %5679 = vset.pattern.permute.xlu0 0
      %5680 = vperm.xlu0 %5679, %v439
      %v5681 = vpop.permute.xlu0 %5680
      %5684 = vset.pattern.permute.xlu0 0
      %5685 = vperm.xlu0 %5684, %v440
      %v5686 = vpop.permute.xlu0 %5685
      %5689 = vset.pattern.permute.xlu0 0
      %5690 = vperm.xlu0 %5689, %v441
      %v5691 = vpop.permute.xlu0 %5690
      %5694 = vset.pattern.permute.xlu0 0
      %5695 = vperm.xlu0 %5694, %v442
      %v5696 = vpop.permute.xlu0 %5695
      %5699 = vset.pattern.permute.xlu0 0
      %5700 = vperm.xlu0 %5699, %v443
      %v5701 = vpop.permute.xlu0 %5700
      %5704 = vset.pattern.permute.xlu0 0
      %5705 = vperm.xlu0 %5704, %v444
      %v5706 = vpop.permute.xlu0 %5705
      %5709 = vset.pattern.permute.xlu0 0
      %5710 = vperm.xlu0 %5709, %v445
      %v5711 = vpop.permute.xlu0 %5710
      %5714 = vset.pattern.permute.xlu0 0
      %5715 = vperm.xlu0 %5714, %v446
      %v5716 = vpop.permute.xlu0 %5715
      %5719 = vset.pattern.permute.xlu0 0
      %5720 = vperm.xlu0 %5719, %v447
      %v5721 = vpop.permute.xlu0 %5720
      %5724 = vset.pattern.permute.xlu0 0
      %5725 = vperm.xlu0 %5724, %v448
      %v5726 = vpop.permute.xlu0 %5725
      %5729 = vset.pattern.permute.xlu0 0
      %5730 = vperm.xlu0 %5729, %v449
      %v5731 = vpop.permute.xlu0 %5730
      %5734 = vset.pattern.permute.xlu0 0
      %5735 = vperm.xlu0 %5734, %v450
      %v5736 = vpop.permute.xlu0 %5735
      %5739 = vset.pattern.permute.xlu0 0
      %5740 = vperm.xlu0 %5739, %v451
      %v5741 = vpop.permute.xlu0 %5740
      %5744 = vset.pattern.permute.xlu0 0
      %5745 = vperm.xlu0 %5744, %v452
      %v5746 = vpop.permute.xlu0 %5745
      %5749 = vset.pattern.permute.xlu0 0
      %5750 = vperm.xlu0 %5749, %v453
      %v5751 = vpop.permute.xlu0 %5750
      %v5753 = vmul.f32 %v5596, %v802
      %v5754 = vmul.f32 %v5601, %v802
      %v5755 = vmul.f32 %v5606, %v956
      %v5756 = vmul.f32 %v5611, %v956
      %v5757 = vmul.f32 %v5616, %v1110
      %v5758 = vmul.f32 %v5621, %v1110
      %v5759 = vmul.f32 %v5626, %v1264
      %v5760 = vmul.f32 %v5631, %v1264
      %v5761 = vmul.f32 %v5636, %v1418
      %v5762 = vmul.f32 %v5641, %v1418
      %v5763 = vmul.f32 %v5646, %v1572
      %v5764 = vmul.f32 %v5651, %v1572
      %v5765 = vmul.f32 %v5656, %v1726
      %v5766 = vmul.f32 %v5661, %v1726
      %v5767 = vmul.f32 %v5666, %v1880
      %v5768 = vmul.f32 %v5671, %v1880
      %v5769 = vmul.f32 %v5676, %v2034
      %v5770 = vmul.f32 %v5681, %v2034
      %v5771 = vmul.f32 %v5686, %v2188
      %v5772 = vmul.f32 %v5691, %v2188
      %v5773 = vmul.f32 %v5696, %v2342
      %v5774 = vmul.f32 %v5701, %v2342
      %v5775 = vmul.f32 %v5706, %v2496
      %v5776 = vmul.f32 %v5711, %v2496
      %v5777 = vmul.f32 %v5716, %v2650
      %v5778 = vmul.f32 %v5721, %v2650
      %v5779 = vmul.f32 %v5726, %v2804
      %v5780 = vmul.f32 %v5731, %v2804
      %v5781 = vmul.f32 %v5736, %v2958
      %v5782 = vmul.f32 %v5741, %v2958
      %v5783 = vmul.f32 %v5746, %v3112
      %v5784 = vmul.f32 %v5751, %v3112
      %5786 = vset.pattern.permute.xlu0 0
      %5787 = vperm.xlu0 %5786, %v454
      %v5788 = vpop.permute.xlu0 %5787
      %5791 = vset.pattern.permute.xlu0 0
      %5792 = vperm.xlu0 %5791, %v455
      %v5793 = vpop.permute.xlu0 %5792
      %5796 = vset.pattern.permute.xlu0 0
      %5797 = vperm.xlu0 %5796, %v456
      %v5798 = vpop.permute.xlu0 %5797
      %5801 = vset.pattern.permute.xlu0 0
      %5802 = vperm.xlu0 %5801, %v457
      %v5803 = vpop.permute.xlu0 %5802
      %5806 = vset.pattern.permute.xlu0 0
      %5807 = vperm.xlu0 %5806, %v458
      %v5808 = vpop.permute.xlu0 %5807
      %5811 = vset.pattern.permute.xlu0 0
      %5812 = vperm.xlu0 %5811, %v459
      %v5813 = vpop.permute.xlu0 %5812
      %5816 = vset.pattern.permute.xlu0 0
      %5817 = vperm.xlu0 %5816, %v460
      %v5818 = vpop.permute.xlu0 %5817
      %5821 = vset.pattern.permute.xlu0 0
      %5822 = vperm.xlu0 %5821, %v461
      %v5823 = vpop.permute.xlu0 %5822
      %5826 = vset.pattern.permute.xlu0 0
      %5827 = vperm.xlu0 %5826, %v462
      %v5828 = vpop.permute.xlu0 %5827
      %5831 = vset.pattern.permute.xlu0 0
      %5832 = vperm.xlu0 %5831, %v463
      %v5833 = vpop.permute.xlu0 %5832
      %5836 = vset.pattern.permute.xlu0 0
      %5837 = vperm.xlu0 %5836, %v464
      %v5838 = vpop.permute.xlu0 %5837
      %5841 = vset.pattern.permute.xlu0 0
      %5842 = vperm.xlu0 %5841, %v465
      %v5843 = vpop.permute.xlu0 %5842
      %5846 = vset.pattern.permute.xlu0 0
      %5847 = vperm.xlu0 %5846, %v466
      %v5848 = vpop.permute.xlu0 %5847
      %5851 = vset.pattern.permute.xlu0 0
      %5852 = vperm.xlu0 %5851, %v467
      %v5853 = vpop.permute.xlu0 %5852
      %5856 = vset.pattern.permute.xlu0 0
      %5857 = vperm.xlu0 %5856, %v468
      %v5858 = vpop.permute.xlu0 %5857
      %5861 = vset.pattern.permute.xlu0 0
      %5862 = vperm.xlu0 %5861, %v469
      %v5863 = vpop.permute.xlu0 %5862
      %5866 = vset.pattern.permute.xlu0 0
      %5867 = vperm.xlu0 %5866, %v470
      %v5868 = vpop.permute.xlu0 %5867
      %5871 = vset.pattern.permute.xlu0 0
      %5872 = vperm.xlu0 %5871, %v471
      %v5873 = vpop.permute.xlu0 %5872
      %5876 = vset.pattern.permute.xlu0 0
      %5877 = vperm.xlu0 %5876, %v472
      %v5878 = vpop.permute.xlu0 %5877
      %5881 = vset.pattern.permute.xlu0 0
      %5882 = vperm.xlu0 %5881, %v473
      %v5883 = vpop.permute.xlu0 %5882
      %5886 = vset.pattern.permute.xlu0 0
      %5887 = vperm.xlu0 %5886, %v474
      %v5888 = vpop.permute.xlu0 %5887
      %5891 = vset.pattern.permute.xlu0 0
      %5892 = vperm.xlu0 %5891, %v475
      %v5893 = vpop.permute.xlu0 %5892
      %5896 = vset.pattern.permute.xlu0 0
      %5897 = vperm.xlu0 %5896, %v476
      %v5898 = vpop.permute.xlu0 %5897
      %5901 = vset.pattern.permute.xlu0 0
      %5902 = vperm.xlu0 %5901, %v477
      %v5903 = vpop.permute.xlu0 %5902
      %5906 = vset.pattern.permute.xlu0 0
      %5907 = vperm.xlu0 %5906, %v478
      %v5908 = vpop.permute.xlu0 %5907
      %5911 = vset.pattern.permute.xlu0 0
      %5912 = vperm.xlu0 %5911, %v479
      %v5913 = vpop.permute.xlu0 %5912
      %5916 = vset.pattern.permute.xlu0 0
      %5917 = vperm.xlu0 %5916, %v480
      %v5918 = vpop.permute.xlu0 %5917
      %5921 = vset.pattern.permute.xlu0 0
      %5922 = vperm.xlu0 %5921, %v481
      %v5923 = vpop.permute.xlu0 %5922
      %5926 = vset.pattern.permute.xlu0 0
      %5927 = vperm.xlu0 %5926, %v482
      %v5928 = vpop.permute.xlu0 %5927
      %5931 = vset.pattern.permute.xlu0 0
      %5932 = vperm.xlu0 %5931, %v483
      %v5933 = vpop.permute.xlu0 %5932
      %5936 = vset.pattern.permute.xlu0 0
      %5937 = vperm.xlu0 %5936, %v484
      %v5938 = vpop.permute.xlu0 %5937
      %5941 = vset.pattern.permute.xlu0 0
      %5942 = vperm.xlu0 %5941, %v485
      %v5943 = vpop.permute.xlu0 %5942
      %v5945 = vmul.f32 %v5788, %v3267
      %v5946 = vmul.f32 %v5793, %v3267
      %v5947 = vmul.f32 %v5798, %v3422
      %v5948 = vmul.f32 %v5803, %v3422
      %v5949 = vmul.f32 %v5808, %v3577
      %v5950 = vmul.f32 %v5813, %v3577
      %v5951 = vmul.f32 %v5818, %v3732
      %v5952 = vmul.f32 %v5823, %v3732
      %v5953 = vmul.f32 %v5828, %v3887
      %v5954 = vmul.f32 %v5833, %v3887
      %v5955 = vmul.f32 %v5838, %v4042
      %v5956 = vmul.f32 %v5843, %v4042
      %v5957 = vmul.f32 %v5848, %v4197
      %v5958 = vmul.f32 %v5853, %v4197
      %v5959 = vmul.f32 %v5858, %v4352
      %v5960 = vmul.f32 %v5863, %v4352
      %v5961 = vmul.f32 %v5868, %v4507
      %v5962 = vmul.f32 %v5873, %v4507
      %v5963 = vmul.f32 %v5878, %v4662
      %v5964 = vmul.f32 %v5883, %v4662
      %v5965 = vmul.f32 %v5888, %v4817
      %v5966 = vmul.f32 %v5893, %v4817
      %v5967 = vmul.f32 %v5898, %v4972
      %v5968 = vmul.f32 %v5903, %v4972
      %v5969 = vmul.f32 %v5908, %v5127
      %v5970 = vmul.f32 %v5913, %v5127
      %v5971 = vmul.f32 %v5918, %v5282
      %v5972 = vmul.f32 %v5923, %v5282
      %v5973 = vmul.f32 %v5928, %v5437
      %v5974 = vmul.f32 %v5933, %v5437
      %v5975 = vmul.f32 %v5938, %v5592
      %v5976 = vmul.f32 %v5943, %v5592
      %v5977 = vsub.f32 %v5753, %v5945
      %v5978 = vsub.f32 %v5754, %v5946
      %v5979 = vsub.f32 %v5755, %v5947
      %v5980 = vsub.f32 %v5756, %v5948
      %v5981 = vsub.f32 %v5757, %v5949
      %v5982 = vsub.f32 %v5758, %v5950
      %v5983 = vsub.f32 %v5759, %v5951
      %v5984 = vsub.f32 %v5760, %v5952
      %v5985 = vsub.f32 %v5761, %v5953
      %v5986 = vsub.f32 %v5762, %v5954
      %v5987 = vsub.f32 %v5763, %v5955
      %v5988 = vsub.f32 %v5764, %v5956
      %v5989 = vsub.f32 %v5765, %v5957
      %v5990 = vsub.f32 %v5766, %v5958
      %v5991 = vsub.f32 %v5767, %v5959
      %v5992 = vsub.f32 %v5768, %v5960
      %v5993 = vsub.f32 %v5769, %v5961
      %v5994 = vsub.f32 %v5770, %v5962
      %v5995 = vsub.f32 %v5771, %v5963
      %v5996 = vsub.f32 %v5772, %v5964
      %v5997 = vsub.f32 %v5773, %v5965
      %v5998 = vsub.f32 %v5774, %v5966
      %v5999 = vsub.f32 %v5775, %v5967
      %v6000 = vsub.f32 %v5776, %v5968
      %v6001 = vsub.f32 %v5777, %v5969
      %v6002 = vsub.f32 %v5778, %v5970
      %v6003 = vsub.f32 %v5779, %v5971
      %v6004 = vsub.f32 %v5780, %v5972
      %v6005 = vsub.f32 %v5781, %v5973
      %v6006 = vsub.f32 %v5782, %v5974
      %v6007 = vsub.f32 %v5783, %v5975
      %v6008 = vsub.f32 %v5784, %v5976
      %v6009 = vmul.f32 %v5788, %v802
      %v6010 = vmul.f32 %v5793, %v802
      %v6011 = vmul.f32 %v5798, %v956
      %v6012 = vmul.f32 %v5803, %v956
      %v6013 = vmul.f32 %v5808, %v1110
      %v6014 = vmul.f32 %v5813, %v1110
      %v6015 = vmul.f32 %v5818, %v1264
      %v6016 = vmul.f32 %v5823, %v1264
      %v6017 = vmul.f32 %v5828, %v1418
      %v6018 = vmul.f32 %v5833, %v1418
      %v6019 = vmul.f32 %v5838, %v1572
      %v6020 = vmul.f32 %v5843, %v1572
      %v6021 = vmul.f32 %v5848, %v1726
      %v6022 = vmul.f32 %v5853, %v1726
      %v6023 = vmul.f32 %v5858, %v1880
      %v6024 = vmul.f32 %v5863, %v1880
      %v6025 = vmul.f32 %v5868, %v2034
      %v6026 = vmul.f32 %v5873, %v2034
      %v6027 = vmul.f32 %v5878, %v2188
      %v6028 = vmul.f32 %v5883, %v2188
      %v6029 = vmul.f32 %v5888, %v2342
      %v6030 = vmul.f32 %v5893, %v2342
      %v6031 = vmul.f32 %v5898, %v2496
      %v6032 = vmul.f32 %v5903, %v2496
      %v6033 = vmul.f32 %v5908, %v2650
      %v6034 = vmul.f32 %v5913, %v2650
      %v6035 = vmul.f32 %v5918, %v2804
      %v6036 = vmul.f32 %v5923, %v2804
      %v6037 = vmul.f32 %v5928, %v2958
      %v6038 = vmul.f32 %v5933, %v2958
      %v6039 = vmul.f32 %v5938, %v3112
      %v6040 = vmul.f32 %v5943, %v3112
      %v6041 = vmul.f32 %v5596, %v3267
      %v6042 = vmul.f32 %v5601, %v3267
      %v6043 = vmul.f32 %v5606, %v3422
      %v6044 = vmul.f32 %v5611, %v3422
      %v6045 = vmul.f32 %v5616, %v3577
      %v6046 = vmul.f32 %v5621, %v3577
      %v6047 = vmul.f32 %v5626, %v3732
      %v6048 = vmul.f32 %v5631, %v3732
      %v6049 = vmul.f32 %v5636, %v3887
      %v6050 = vmul.f32 %v5641, %v3887
      %v6051 = vmul.f32 %v5646, %v4042
      %v6052 = vmul.f32 %v5651, %v4042
      %v6053 = vmul.f32 %v5656, %v4197
      %v6054 = vmul.f32 %v5661, %v4197
      %v6055 = vmul.f32 %v5666, %v4352
      %v6056 = vmul.f32 %v5671, %v4352
      %v6057 = vmul.f32 %v5676, %v4507
      %v6058 = vmul.f32 %v5681, %v4507
      %v6059 = vmul.f32 %v5686, %v4662
      %v6060 = vmul.f32 %v5691, %v4662
      %v6061 = vmul.f32 %v5696, %v4817
      %v6062 = vmul.f32 %v5701, %v4817
      %v6063 = vmul.f32 %v5706, %v4972
      %v6064 = vmul.f32 %v5711, %v4972
      %v6065 = vmul.f32 %v5716, %v5127
      %v6066 = vmul.f32 %v5721, %v5127
      %v6067 = vmul.f32 %v5726, %v5282
      %v6068 = vmul.f32 %v5731, %v5282
      %v6069 = vmul.f32 %v5736, %v5437
      %v6070 = vmul.f32 %v5741, %v5437
      %v6071 = vmul.f32 %v5746, %v5592
      %v6072 = vmul.f32 %v5751, %v5592
      %v6073 = vadd.f32 %v6009, %v6041
      %v6074 = vadd.f32 %v6010, %v6042
      %v6075 = vadd.f32 %v6011, %v6043
      %v6076 = vadd.f32 %v6012, %v6044
      %v6077 = vadd.f32 %v6013, %v6045
      %v6078 = vadd.f32 %v6014, %v6046
      %v6079 = vadd.f32 %v6015, %v6047
      %v6080 = vadd.f32 %v6016, %v6048
      %v6081 = vadd.f32 %v6017, %v6049
      %v6082 = vadd.f32 %v6018, %v6050
      %v6083 = vadd.f32 %v6019, %v6051
      %v6084 = vadd.f32 %v6020, %v6052
      %v6085 = vadd.f32 %v6021, %v6053
      %v6086 = vadd.f32 %v6022, %v6054
      %v6087 = vadd.f32 %v6023, %v6055
      %v6088 = vadd.f32 %v6024, %v6056
      %v6089 = vadd.f32 %v6025, %v6057
      %v6090 = vadd.f32 %v6026, %v6058
      %v6091 = vadd.f32 %v6027, %v6059
      %v6092 = vadd.f32 %v6028, %v6060
      %v6093 = vadd.f32 %v6029, %v6061
      %v6094 = vadd.f32 %v6030, %v6062
      %v6095 = vadd.f32 %v6031, %v6063
      %v6096 = vadd.f32 %v6032, %v6064
      %v6097 = vadd.f32 %v6033, %v6065
      %v6098 = vadd.f32 %v6034, %v6066
      %v6099 = vadd.f32 %v6035, %v6067
      %v6100 = vadd.f32 %v6036, %v6068
      %v6101 = vadd.f32 %v6037, %v6069
      %v6102 = vadd.f32 %v6038, %v6070
      %v6103 = vadd.f32 %v6039, %v6071
      %v6104 = vadd.f32 %v6040, %v6072
      %v6105 = vmul.f32 %v342, %v5977
      %v6106 = vmul.f32 %v343, %v5978
      %v6107 = vmul.f32 %v344, %v5979
      %v6108 = vmul.f32 %v345, %v5980
      %v6109 = vmul.f32 %v346, %v5981
      %v6110 = vmul.f32 %v347, %v5982
      %v6111 = vmul.f32 %v348, %v5983
      %v6112 = vmul.f32 %v349, %v5984
      %v6113 = vmul.f32 %v350, %v5985
      %v6114 = vmul.f32 %v351, %v5986
      %v6115 = vmul.f32 %v352, %v5987
      %v6116 = vmul.f32 %v353, %v5988
      %v6117 = vmul.f32 %v354, %v5989
      %v6118 = vmul.f32 %v355, %v5990
      %v6119 = vmul.f32 %v356, %v5991
      %v6120 = vmul.f32 %v357, %v5992
      %v6121 = vmul.f32 %v358, %v5993
      %v6122 = vmul.f32 %v359, %v5994
      %v6123 = vmul.f32 %v360, %v5995
      %v6124 = vmul.f32 %v361, %v5996
      %v6125 = vmul.f32 %v362, %v5997
      %v6126 = vmul.f32 %v363, %v5998
      %v6127 = vmul.f32 %v364, %v5999
      %v6128 = vmul.f32 %v365, %v6000
      %v6129 = vmul.f32 %v366, %v6001
      %v6130 = vmul.f32 %v367, %v6002
      %v6131 = vmul.f32 %v368, %v6003
      %v6132 = vmul.f32 %v369, %v6004
      %v6133 = vmul.f32 %v370, %v6005
      %v6134 = vmul.f32 %v371, %v6006
      %v6135 = vmul.f32 %v372, %v6007
      %v6136 = vmul.f32 %v373, %v6008
      %v6137 = vmul.f32 %v374, %v6073
      %v6138 = vmul.f32 %v375, %v6074
      %v6139 = vmul.f32 %v376, %v6075
      %v6140 = vmul.f32 %v377, %v6076
      %v6141 = vmul.f32 %v378, %v6077
      %v6142 = vmul.f32 %v379, %v6078
      %v6143 = vmul.f32 %v380, %v6079
      %v6144 = vmul.f32 %v381, %v6080
      %v6145 = vmul.f32 %v382, %v6081
      %v6146 = vmul.f32 %v383, %v6082
      %v6147 = vmul.f32 %v384, %v6083
      %v6148 = vmul.f32 %v385, %v6084
      %v6149 = vmul.f32 %v386, %v6085
      %v6150 = vmul.f32 %v387, %v6086
      %v6151 = vmul.f32 %v388, %v6087
      %v6152 = vmul.f32 %v389, %v6088
      %v6153 = vmul.f32 %v390, %v6089
      %v6154 = vmul.f32 %v391, %v6090
      %v6155 = vmul.f32 %v392, %v6091
      %v6156 = vmul.f32 %v393, %v6092
      %v6157 = vmul.f32 %v394, %v6093
      %v6158 = vmul.f32 %v395, %v6094
      %v6159 = vmul.f32 %v396, %v6095
      %v6160 = vmul.f32 %v397, %v6096
      %v6161 = vmul.f32 %v398, %v6097
      %v6162 = vmul.f32 %v399, %v6098
      %v6163 = vmul.f32 %v400, %v6099
      %v6164 = vmul.f32 %v401, %v6100
      %v6165 = vmul.f32 %v402, %v6101
      %v6166 = vmul.f32 %v403, %v6102
      %v6167 = vmul.f32 %v404, %v6103
      %v6168 = vmul.f32 %v405, %v6104
      %v6169 = vadd.f32 %v6105, %v6137
      %v6170 = vadd.f32 %v6106, %v6138
      %v6171 = vadd.f32 %v6107, %v6139
      %v6172 = vadd.f32 %v6108, %v6140
      %v6173 = vadd.f32 %v6109, %v6141
      %v6174 = vadd.f32 %v6110, %v6142
      %v6175 = vadd.f32 %v6111, %v6143
      %v6176 = vadd.f32 %v6112, %v6144
      %v6177 = vadd.f32 %v6113, %v6145
      %v6178 = vadd.f32 %v6114, %v6146
      %v6179 = vadd.f32 %v6115, %v6147
      %v6180 = vadd.f32 %v6116, %v6148
      %v6181 = vadd.f32 %v6117, %v6149
      %v6182 = vadd.f32 %v6118, %v6150
      %v6183 = vadd.f32 %v6119, %v6151
      %v6184 = vadd.f32 %v6120, %v6152
      %v6185 = vadd.f32 %v6121, %v6153
      %v6186 = vadd.f32 %v6122, %v6154
      %v6187 = vadd.f32 %v6123, %v6155
      %v6188 = vadd.f32 %v6124, %v6156
      %v6189 = vadd.f32 %v6125, %v6157
      %v6190 = vadd.f32 %v6126, %v6158
      %v6191 = vadd.f32 %v6127, %v6159
      %v6192 = vadd.f32 %v6128, %v6160
      %v6193 = vadd.f32 %v6129, %v6161
      %v6194 = vadd.f32 %v6130, %v6162
      %v6195 = vadd.f32 %v6131, %v6163
      %v6196 = vadd.f32 %v6132, %v6164
      %v6197 = vadd.f32 %v6133, %v6165
      %v6198 = vadd.f32 %v6134, %v6166
      %v6199 = vadd.f32 %v6135, %v6167
      %v6200 = vadd.f32 %v6136, %v6168
      %v6201 = vadd.f32 %v6169, %v6171
      %v6202 = vadd.f32 %v6201, %v6173
      %v6203 = vadd.f32 %v6202, %v6175
      %v6204 = vadd.f32 %v6203, %v6177
      %v6205 = vadd.f32 %v6204, %v6179
      %v6206 = vadd.f32 %v6205, %v6181
      %v6207 = vadd.f32 %v6206, %v6183
      %v6208 = vadd.f32 %v6207, %v6185
      %v6209 = vadd.f32 %v6208, %v6187
      %v6210 = vadd.f32 %v6209, %v6189
      %v6211 = vadd.f32 %v6210, %v6191
      %v6212 = vadd.f32 %v6211, %v6193
      %v6213 = vadd.f32 %v6212, %v6195
      %v6214 = vadd.f32 %v6213, %v6197
      %v6215 = vadd.f32 %v6214, %v6199
      %vm6216 = vcmask 1044480
      %v6217 = vsel %vm6216, %v6170, 0.0
      %v6218 = vsel %vm6216, %v6172, 0.0
      %v6219 = vadd.f32 %v6217, %v6218
      %v6220 = vsel %vm6216, %v6174, 0.0
      %v6221 = vadd.f32 %v6219, %v6220
      %v6222 = vsel %vm6216, %v6176, 0.0
      %v6223 = vadd.f32 %v6221, %v6222
      %v6224 = vsel %vm6216, %v6178, 0.0
      %v6225 = vadd.f32 %v6223, %v6224
      %v6226 = vsel %vm6216, %v6180, 0.0
      %v6227 = vadd.f32 %v6225, %v6226
      %v6228 = vsel %vm6216, %v6182, 0.0
      %v6229 = vadd.f32 %v6227, %v6228
      %v6230 = vsel %vm6216, %v6184, 0.0
      %v6231 = vadd.f32 %v6229, %v6230
      %v6232 = vsel %vm6216, %v6186, 0.0
      %v6233 = vadd.f32 %v6231, %v6232
      %v6234 = vsel %vm6216, %v6188, 0.0
      %v6235 = vadd.f32 %v6233, %v6234
      %v6236 = vsel %vm6216, %v6190, 0.0
      %v6237 = vadd.f32 %v6235, %v6236
      %v6238 = vsel %vm6216, %v6192, 0.0
      %v6239 = vadd.f32 %v6237, %v6238
      %v6240 = vsel %vm6216, %v6194, 0.0
      %v6241 = vadd.f32 %v6239, %v6240
      %v6242 = vsel %vm6216, %v6196, 0.0
      %v6243 = vadd.f32 %v6241, %v6242
      %v6244 = vsel %vm6216, %v6198, 0.0
      %v6245 = vadd.f32 %v6243, %v6244
      %v6246 = vsel %vm6216, %v6200, 0.0
      %v6247 = vadd.f32 %v6245, %v6246
      %v6248 = vmul.f32 %v374, %v5977
      %v6249 = vmul.f32 %v375, %v5978
      %v6250 = vmul.f32 %v376, %v5979
      %v6251 = vmul.f32 %v377, %v5980
      %v6252 = vmul.f32 %v378, %v5981
      %v6253 = vmul.f32 %v379, %v5982
      %v6254 = vmul.f32 %v380, %v5983
      %v6255 = vmul.f32 %v381, %v5984
      %v6256 = vmul.f32 %v382, %v5985
      %v6257 = vmul.f32 %v383, %v5986
      %v6258 = vmul.f32 %v384, %v5987
      %v6259 = vmul.f32 %v385, %v5988
      %v6260 = vmul.f32 %v386, %v5989
      %v6261 = vmul.f32 %v387, %v5990
      %v6262 = vmul.f32 %v388, %v5991
      %v6263 = vmul.f32 %v389, %v5992
      %v6264 = vmul.f32 %v390, %v5993
      %v6265 = vmul.f32 %v391, %v5994
      %v6266 = vmul.f32 %v392, %v5995
      %v6267 = vmul.f32 %v393, %v5996
      %v6268 = vmul.f32 %v394, %v5997
      %v6269 = vmul.f32 %v395, %v5998
      %v6270 = vmul.f32 %v396, %v5999
      %v6271 = vmul.f32 %v397, %v6000
      %v6272 = vmul.f32 %v398, %v6001
      %v6273 = vmul.f32 %v399, %v6002
      %v6274 = vmul.f32 %v400, %v6003
      %v6275 = vmul.f32 %v401, %v6004
      %v6276 = vmul.f32 %v402, %v6005
      %v6277 = vmul.f32 %v403, %v6006
      %v6278 = vmul.f32 %v404, %v6007
      %v6279 = vmul.f32 %v405, %v6008
      %v6280 = vmul.f32 %v342, %v6073
      %v6281 = vmul.f32 %v343, %v6074
      %v6282 = vmul.f32 %v344, %v6075
      %v6283 = vmul.f32 %v345, %v6076
      %v6284 = vmul.f32 %v346, %v6077
      %v6285 = vmul.f32 %v347, %v6078
      %v6286 = vmul.f32 %v348, %v6079
      %v6287 = vmul.f32 %v349, %v6080
      %v6288 = vmul.f32 %v350, %v6081
      %v6289 = vmul.f32 %v351, %v6082
      %v6290 = vmul.f32 %v352, %v6083
      %v6291 = vmul.f32 %v353, %v6084
      %v6292 = vmul.f32 %v354, %v6085
      %v6293 = vmul.f32 %v355, %v6086
      %v6294 = vmul.f32 %v356, %v6087
      %v6295 = vmul.f32 %v357, %v6088
      %v6296 = vmul.f32 %v358, %v6089
      %v6297 = vmul.f32 %v359, %v6090
      %v6298 = vmul.f32 %v360, %v6091
      %v6299 = vmul.f32 %v361, %v6092
      %v6300 = vmul.f32 %v362, %v6093
      %v6301 = vmul.f32 %v363, %v6094
      %v6302 = vmul.f32 %v364, %v6095
      %v6303 = vmul.f32 %v365, %v6096
      %v6304 = vmul.f32 %v366, %v6097
      %v6305 = vmul.f32 %v367, %v6098
      %v6306 = vmul.f32 %v368, %v6099
      %v6307 = vmul.f32 %v369, %v6100
      %v6308 = vmul.f32 %v370, %v6101
      %v6309 = vmul.f32 %v371, %v6102
      %v6310 = vmul.f32 %v372, %v6103
      %v6311 = vmul.f32 %v373, %v6104
      %v6312 = vsub.f32 %v6248, %v6280
      %v6313 = vsub.f32 %v6249, %v6281
      %v6314 = vsub.f32 %v6250, %v6282
      %v6315 = vsub.f32 %v6251, %v6283
      %v6316 = vsub.f32 %v6252, %v6284
      %v6317 = vsub.f32 %v6253, %v6285
      %v6318 = vsub.f32 %v6254, %v6286
      %v6319 = vsub.f32 %v6255, %v6287
      %v6320 = vsub.f32 %v6256, %v6288
      %v6321 = vsub.f32 %v6257, %v6289
      %v6322 = vsub.f32 %v6258, %v6290
      %v6323 = vsub.f32 %v6259, %v6291
      %v6324 = vsub.f32 %v6260, %v6292
      %v6325 = vsub.f32 %v6261, %v6293
      %v6326 = vsub.f32 %v6262, %v6294
      %v6327 = vsub.f32 %v6263, %v6295
      %v6328 = vsub.f32 %v6264, %v6296
      %v6329 = vsub.f32 %v6265, %v6297
      %v6330 = vsub.f32 %v6266, %v6298
      %v6331 = vsub.f32 %v6267, %v6299
      %v6332 = vsub.f32 %v6268, %v6300
      %v6333 = vsub.f32 %v6269, %v6301
      %v6334 = vsub.f32 %v6270, %v6302
      %v6335 = vsub.f32 %v6271, %v6303
      %v6336 = vsub.f32 %v6272, %v6304
      %v6337 = vsub.f32 %v6273, %v6305
      %v6338 = vsub.f32 %v6274, %v6306
      %v6339 = vsub.f32 %v6275, %v6307
      %v6340 = vsub.f32 %v6276, %v6308
      %v6341 = vsub.f32 %v6277, %v6309
      %v6342 = vsub.f32 %v6278, %v6310
      %v6343 = vsub.f32 %v6279, %v6311
      %v6344 = vadd.f32 %v6312, %v6314
      %v6345 = vadd.f32 %v6344, %v6316
      %v6346 = vadd.f32 %v6345, %v6318
      %v6347 = vadd.f32 %v6346, %v6320
      %v6348 = vadd.f32 %v6347, %v6322
      %v6349 = vadd.f32 %v6348, %v6324
      %v6350 = vadd.f32 %v6349, %v6326
      %v6351 = vadd.f32 %v6350, %v6328
      %v6352 = vadd.f32 %v6351, %v6330
      %v6353 = vadd.f32 %v6352, %v6332
      %v6354 = vadd.f32 %v6353, %v6334
      %v6355 = vadd.f32 %v6354, %v6336
      %v6356 = vadd.f32 %v6355, %v6338
      %v6357 = vadd.f32 %v6356, %v6340
      %v6358 = vadd.f32 %v6357, %v6342
      %v6359 = vsel %vm6216, %v6313, 0.0
      %v6360 = vsel %vm6216, %v6315, 0.0
      %v6361 = vadd.f32 %v6359, %v6360
      %v6362 = vsel %vm6216, %v6317, 0.0
      %v6363 = vadd.f32 %v6361, %v6362
      %v6364 = vsel %vm6216, %v6319, 0.0
      %v6365 = vadd.f32 %v6363, %v6364
      %v6366 = vsel %vm6216, %v6321, 0.0
      %v6367 = vadd.f32 %v6365, %v6366
      %v6368 = vsel %vm6216, %v6323, 0.0
      %v6369 = vadd.f32 %v6367, %v6368
      %v6370 = vsel %vm6216, %v6325, 0.0
      %v6371 = vadd.f32 %v6369, %v6370
      %v6372 = vsel %vm6216, %v6327, 0.0
      %v6373 = vadd.f32 %v6371, %v6372
      %v6374 = vsel %vm6216, %v6329, 0.0
      %v6375 = vadd.f32 %v6373, %v6374
      %v6376 = vsel %vm6216, %v6331, 0.0
      %v6377 = vadd.f32 %v6375, %v6376
      %v6378 = vsel %vm6216, %v6333, 0.0
      %v6379 = vadd.f32 %v6377, %v6378
      %v6380 = vsel %vm6216, %v6335, 0.0
      %v6381 = vadd.f32 %v6379, %v6380
      %v6382 = vsel %vm6216, %v6337, 0.0
      %v6383 = vadd.f32 %v6381, %v6382
      %v6384 = vsel %vm6216, %v6339, 0.0
      %v6385 = vadd.f32 %v6383, %v6384
      %v6386 = vsel %vm6216, %v6341, 0.0
      %v6387 = vadd.f32 %v6385, %v6386
      %v6388 = vsel %vm6216, %v6343, 0.0
      %v6389 = vadd.f32 %v6387, %v6388
      %6390 = vst [vmem:[%s336] sm:$0xff] %v6215
      %6391 = vst [vmem:[%s336 + $0x8] sm:$0x1f] %v6247
      %6392 = vst [vmem:[%s341] sm:$0xff] %v6358
      %6393 = vst [vmem:[%s341 + $0x8] sm:$0x1f] %v6389
      %p6394 = scmp.lt.s32.totalorder %s18, 1
      %s6395 = scalar_select %p6394, %s18, 1
      %s6396 = smul.addr %s6395, 2
      %s6397 = smul.addr %s6396, 8
      %s6398 = scalar_lea.vmem %s5, %s6397
      %p6399 = scmp.lt.s32.totalorder %s18, 1
      %s6400 = scalar_select %p6399, %s18, 1
      %s6401 = smul.addr %s6400, 2
      %s6402 = smul.addr %s6401, 8
      %s6403 = scalar_lea.vmem %s6, %s6402
      // Predicated region
      $region41: #{model_forward.4} parent=39 // pred_check
        %p6404 = pneg %p166
      $region42: #{model_forward.4} parent=39 // pred_check_branch
        %6406 = sbr.rel (%p6404) target = $region44
      $region43: #{model_forward.4} parent=39 // pred_region
        _
      $region44: #{model_forward.4} parent=39 // pred_fallthru
        _
      // Predicated region
      $region45: #{model_forward.4} parent=39 // pred_check
        %p6407 = pneg %p192
      $region46: #{model_forward.4} parent=39 // pred_check_branch
        %6409 = sbr.rel (%p6407) target = $region48
      $region47: #{model_forward.4} parent=39 // pred_region
        _
      $region48: #{model_forward.4} parent=39 // pred_fallthru
        _
    $region40: #{model_forward.4} parent=5 // pred_fallthru
      _
    %p6410 = scmp.le.s32.totalorder 2, %s13
    // Predicated region
    $region49: #{model_forward.4} parent=5 // pred_check
      %p6411 = pneg %p6410
    $region50: #{model_forward.4} parent=5 // pred_check_branch
      %6413 = sbr.rel (%p6411) target = $region52
    $region51: #{model_forward.4} parent=5 // pred_region
      %s6414 = ssub.s32 %s13, 2
      // Predicated region
      $region53: #{model_forward.4} parent=51 // pred_check
        %p6415 = pneg %p172
      $region54: #{model_forward.4} parent=51 // pred_check_branch
        %6417 = sbr.rel (%p6415) target = $region56
      $region55: #{model_forward.4} parent=51 // pred_region
        %p6418 = scmp.lt.s32.totalorder %s19, 1
        %s6419 = scalar_select %p6418, %s19, 1
        %s6420 = smul.addr %s6419, 2
        %s6421 = smul.addr %s6420, 8
        %s6422 = scalar_lea.vmem %s5, %s6421
      $region56: #{model_forward.4} parent=51 // pred_fallthru
        _
      // Predicated region
      $region57: #{model_forward.4} parent=51 // pred_check
        %p6423 = pneg %p198
      $region58: #{model_forward.4} parent=51 // pred_check_branch
        %6425 = sbr.rel (%p6423) target = $region60
      $region59: #{model_forward.4} parent=51 // pred_region
        %p6426 = scmp.lt.s32.totalorder %s19, 1
        %s6427 = scalar_select %p6426, %s19, 1
        %s6428 = smul.addr %s6427, 2
        %s6429 = smul.addr %s6428, 8
        %s6430 = scalar_lea.vmem %s6, %s6429
      $region60: #{model_forward.4} parent=51 // pred_fallthru
        _
    $region52: #{model_forward.4} parent=5 // pred_fallthru
      _
  $region6: #{model_forward.4} parent=0 // loop_footer
    %s17 = sadd.s32 1, %s13
  $region7: #{model_forward.4} parent=0 // loop_footer_branch
    %12 = sbr.rel target = $region3
  $region8: #{model_forward.4} parent=0 // loop_exit
    _

// kernel: model_forward.5
$region0: #{model_forward.5}
  #allocation0 [shape = 'u32[]', space=smem, size = 0x4, offset = 0x4, fixed_abs, tag = 'smem constant byte address 0x4 - core index']
  #allocation1 [shape = 'u32[72,128]{1,0:T(1,128)}', space=vmem, size = 0x9000, scoped, tag = 'internal scratch']
  %s0 = inlined_call_operand.vmem [shape: f32[2,1,3072], index: 0, kind: input, shape index: {}]
  %s1 = inlined_call_operand.hbm [shape: f32[2,1,1024], index: 1, kind: output, shape index: {}]
  %s2 = sld [smem:[#allocation0]]
  $region52: #{model_forward.5} parent=0
    _
  %s4 = ssub.s32 1, %s2
  %s5 = scalar_select 0, %s4, %s2
  $region1: #{model_forward.5} parent=0
    #allocation2 [shape = 'u8[8192]{0}', space=vmem, size = 0x2000, scoped, tag = 'input window, operand 0, single buffered']
    #allocation3 [shape = 'u8[8192]{0}', space=vmem, size = 0x2000, scoped, tag = 'output window, operand 0, single buffered']
    #allocation4 [shape = 's32[1]{0}', space=sflag, size = 0x4, scoped, tag = 'scoped memory for model_forward.5']
    %6 = vsyncpa [#allocation4], 0
    // Predicated region
    $region2: #{model_forward.5} parent=1 // pred_check
      _
    $region3: #{model_forward.5} parent=1 // pred_check_branch
      %8 = sbr.rel (0) target = $region5
    $region4: #{model_forward.5} parent=1 // pred_region
      // Predicated region
      $region6: #{model_forward.5} parent=4 // pred_check
        _
      $region7: #{model_forward.5} parent=4 // pred_check_branch
        %10 = sbr.rel (0) target = $region9
      $region8: #{model_forward.5} parent=4 // pred_region
        // Predicated region
        $region10: #{model_forward.5} parent=8 // pred_check
          _
        $region11: #{model_forward.5} parent=8 // pred_check_branch
          %12 = sbr.rel (0) target = $region13
        $region12: #{model_forward.5} parent=8 // pred_region
          // Predicated region
          $region25: #{model_forward.5} parent=12 // pred_check
            _
          $region26: #{model_forward.5} parent=12 // pred_check_branch
            %30 = sbr.rel (0) target = $region28
          $region27: #{model_forward.5} parent=12 // pred_region
            loop: start=0, step=1, limit=1
            $region29: #{model_forward.5} parent=27 // loop_pre_header
              _
            $region30: #{model_forward.5} parent=27 // loop_header
              %s32 = sphi 0, %s36
              %p33 = scmp.ge.s32.totalorder %s32, 1
              %s37 = sphi %s0, %s0
              %s38 = sphi [#allocation2], [#allocation2]
            $region31: #{model_forward.5} parent=27 // loop_header_branch
              %35 = sbr.rel (%p33) target = $region35
            $region32: #{model_forward.5} parent=27 // loop_body
              %v39 = vld [vmem:[%s37] sm:$0xff]
              %40 = vst [vmem:[%s38] sm:$0xff] %v39
              %v41 = vld [vmem:[%s37 + $0x18] sm:$0xff]
              %42 = vst [vmem:[%s38 + $0x8] sm:$0xff] %v41
            $region33: #{model_forward.5} parent=27 // loop_footer
              %s36 = sadd.s32 1, %s32
            $region34: #{model_forward.5} parent=27 // loop_footer_branch
              %31 = sbr.rel target = $region30
            $region35: #{model_forward.5} parent=27 // loop_exit
              _
          $region28: #{model_forward.5} parent=12 // pred_fallthru
            _
          // Predicated region
          $region36: #{model_forward.5} parent=12 // pred_check
            _
          $region37: #{model_forward.5} parent=12 // pred_check_branch
            %44 = sbr.rel target = $region39
          $region38: #{model_forward.5} parent=12 // pred_region
            _
          $region39: #{model_forward.5} parent=12 // pred_fallthru
            _
        $region13: #{model_forward.5} parent=8 // pred_fallthru
          _
        // Predicated region
        $region14: #{model_forward.5} parent=8 // pred_check
          _
        $region15: #{model_forward.5} parent=8 // pred_check_branch
          %14 = sbr.rel target = $region17
        $region16: #{model_forward.5} parent=8 // pred_region
          %s16 = ssub.s32 256, 1
          loop: start=0, step=1, limit=1
          $region18: #{model_forward.5} parent=16 // loop_pre_header
            _
          $region19: #{model_forward.5} parent=16 // loop_header
            %s18 = sphi 0, %s22
            %p19 = scmp.ge.s32.totalorder %s18, 1
            %s23 = sphi %s0, %s0
            %s24 = sphi [#allocation2], [#allocation2]
          $region20: #{model_forward.5} parent=16 // loop_header_branch
            %21 = sbr.rel (%p19) target = $region24
          $region21: #{model_forward.5} parent=16 // loop_body
            %v25 = vld [vmem:[%s23] sm:%s16]
            %26 = vst [vmem:[%s24] sm:%s16] %v25
            %v27 = vld [vmem:[%s23 + $0x18] sm:%s16]
            %28 = vst [vmem:[%s24 + $0x8] sm:%s16] %v27
          $region22: #{model_forward.5} parent=16 // loop_footer
            %s22 = sadd.s32 1, %s18
          $region23: #{model_forward.5} parent=16 // loop_footer_branch
            %17 = sbr.rel target = $region19
          $region24: #{model_forward.5} parent=16 // loop_exit
            _
        $region17: #{model_forward.5} parent=8 // pred_fallthru
          _
      $region9: #{model_forward.5} parent=4 // pred_fallthru
        _
      %45 = vnop
    $region5: #{model_forward.5} parent=1 // pred_fallthru
      _
    // Predicated region
    $region40: #{model_forward.5} parent=1 // pred_check
      _
    $region41: #{model_forward.5} parent=1 // pred_check_branch
      %47 = sbr.rel (0) target = $region43
    $region42: #{model_forward.5} parent=1 // pred_region
      _
    $region43: #{model_forward.5} parent=1 // pred_fallthru
      _
    %v48 = vld [vmem:[#allocation2] sm:$0xff]
    %v49 = vld [vmem:[#allocation2 + $0x8] sm:$0xff]
    %v50 = vand.u32 2147483647, %v48
    %v51 = vand.u32 2147483647, %v49
    %v54 = vperm.slane %v50, 0
    %v55 = vperm.slane %v50, 1
    %v56 = vperm.slane %v50, 2
    %v57 = vperm.slane %v50, 3
    %v58 = vperm.slane %v50, 4
    %v59 = vperm.slane %v50, 5
    %v60 = vperm.slane %v50, 6
    %v61 = vperm.slane %v50, 7
    %v62 = vperm.slane %v51, 0
    %v63 = vperm.slane %v51, 1
    %v64 = vperm.slane %v51, 2
    %v65 = vperm.slane %v51, 3
    %v66 = vperm.slane %v51, 4
    %v67 = vperm.slane %v51, 5
    %v68 = vperm.slane %v51, 6
    %v69 = vperm.slane %v51, 7
    %vm86 = vcmask 1040384
    %v87 = vsel %vm86, %v54, -inf
    %v88 = vsel %vm86, %v55, -inf
    %v89 = vsel %vm86, %v56, -inf
    %v90 = vmax.f32 %v87, %v89
    %v91 = vsel %vm86, %v57, -inf
    %v92 = vmax.f32 %v88, %v91
    %v93 = vsel %vm86, %v58, -inf
    %v94 = vmax.f32 %v90, %v93
    %v95 = vsel %vm86, %v59, -inf
    %v96 = vmax.f32 %v92, %v95
    %v97 = vsel %vm86, %v60, -inf
    %v98 = vmax.f32 %v94, %v97
    %v99 = vsel %vm86, %v61, -inf
    %v100 = vmax.f32 %v96, %v99
    %v101 = vmax.f32 %v98, %v100
    %102 = vmax.xlane.f32.xlu0 %v101
    %v103 = vpop.xlane.xlu0 %102
    %v104 = vsel %vm86, %v62, -inf
    %v105 = vsel %vm86, %v63, -inf
    %v106 = vsel %vm86, %v64, -inf
    %v107 = vmax.f32 %v104, %v106
    %v108 = vsel %vm86, %v65, -inf
    %v109 = vmax.f32 %v105, %v108
    %v110 = vsel %vm86, %v66, -inf
    %v111 = vmax.f32 %v107, %v110
    %v112 = vsel %vm86, %v67, -inf
    %v113 = vmax.f32 %v109, %v112
    %v114 = vsel %vm86, %v68, -inf
    %v115 = vmax.f32 %v111, %v114
    %v116 = vsel %vm86, %v69, -inf
    %v117 = vmax.f32 %v113, %v116
    %v118 = vmax.f32 %v115, %v117
    %119 = vmax.xlane.f32.xlu0 %v118
    %v120 = vpop.xlane.xlu0 %119
    %v121 = vadd.f32 %v103, 1e-08
    %v122 = vadd.f32 %v120, 1e-08
    %v123 = vrcp.pop %v121
    %v124 = vrcp.pop %v122
    %v127 = vperm.slane %v123, 0
    %v128 = vperm.slane %v124, 0
    %v131 = vmul.f32 %v48, %v127
    %v132 = vmul.f32 %v49, %v128
    %133 = vst [vmem:[#allocation3] sm:$0xff] %v131
    %134 = vst [vmem:[#allocation3 + $0x8] sm:$0xff] %v132
    // Predicated region
    $region44: #{model_forward.5} parent=1 // pred_check
      _
    $region45: #{model_forward.5} parent=1 // pred_check_branch
      %136 = sbr.rel (0) target = $region47
    $region46: #{model_forward.5} parent=1 // pred_region
      %138 = vsyncadd [#allocation4], 0
      %s139 = sshll.u32 [#allocation3], 4
      %s140 = int_to_ptr.vmem [resolvable:$true] %s139
      %s141 = sshll.u32 %s1, 4
      %s142 = int_to_ptr.hbm [resolvable:$true] %s141
      %147 = dma.vmem_to_hbm [thread:$0]  %s140, 256, %s142, [#allocation4], 128, 128, 8
    $region47: #{model_forward.5} parent=1 // pred_fallthru
      _
    // Predicated region
    $region48: #{model_forward.5} parent=1 // pred_check
      _
    $region49: #{model_forward.5} parent=1 // pred_check_branch
      %149 = sbr.rel (0) target = $region51
    $region50: #{model_forward.5} parent=1 // pred_region
      %151 = dma.done [#allocation4], 256
    $region51: #{model_forward.5} parent=1 // pred_fallthru
      _
    %152 = vsyncpa [#allocation4], 1

</llo_original>
